<compile_context>
chip_gen: v7x
topology: tpu7x:2x2x1
jax: 0.10.0
libtpu: 0.0.40
codegen_flags: <defaults>
</compile_context>

<pallas_src>
import jax
import jax.numpy as jnp
from jax.experimental import pallas as pl
from jax.experimental.pallas import tpu as pltpu

H1 = 32    # feature_map hidden width
F  = 16    # feature dimension produced by feature_map
H2 = 32    # position_map hidden width
D_IN = 4   # (x, y, z, t)
D_OUT = 3  # (vx, vy, vz)


def _velocity_kernel(xyzt_ref, w1_ref, b1_ref, wc_ref, w3t_ref, bc_ref, w4e_ref, vel_ref):
    # Channels-first layout: every activation is (C, TN) with the batch on lanes.
    x = xyzt_ref[...]                                    # (4, TN) rows = [x, y, z, t]
    t1 = x[3:4, :]                                       # (1, TN)   (t1 = t.detach())

    # ---- feature_map sine layer: z1 = W1 @ [x;y;z;t] + b1 ----
    z1 = jnp.dot(w1_ref[...], x, preferred_element_type=jnp.float32) + b1_ref[...]
    h1 = jnp.sin(z1)                                                     # (H1, TN)

    # ---- position_map hidden pre-activation (W2 folded into Wc in the wrapper);
    #      t1 column applied as a rank-1 update ----
    z3 = (jnp.dot(wc_ref[...], h1, preferred_element_type=jnp.float32)
          + w3t_ref[...] * t1 + bc_ref[...])                             # (H2, TN)

    # ---- velocity = d(mapped_xyz)/dt1 = (W4 * w3_t^T) @ cos(z3) ----
    vel = jnp.dot(w4e_ref[...], jnp.cos(z3), preferred_element_type=jnp.float32)
    vel_ref[...] = vel.astype(vel_ref.dtype)                             # (3, TN)


def velocity_forward(xyzt, params, *, tile_n=2048):
    """xyzt: (N, 4) float32 -> velocity (N, 3).  VelocityNetwork.forward, bbox_model=None.

    tile_n must be a multiple of 128.
    """
    # TODO(synk): bbox_model masking path omitted (bbox_model is None in this forward).
    w1, b1, w2, b2, w3, b3, w4, b4 = params     # torch nn.Linear convention (out, in) / (out,)
    del b4                                      # d(bias)/dt1 == 0
    N = xyzt.shape[0]
    f32 = jnp.float32

    # One-time wrapper-side re-orientation / folding (weights are tiny and constant).
    w1c = w1.astype(f32)                                       # (H1, 4)
    b1c = b1.reshape(H1, 1).astype(f32)                        # (H1, 1)
    w3_f = w3[:, :F].astype(f32)                               # (H2, F)
    w3_t = w3[:, F:F + 1].astype(f32)                          # (H2, 1) == dz3/dt1
    # Exact linear->linear fold:  W3f @ (W2 h + b2) + b3 = (W3f W2) h + (W3f b2 + b3)
    wc = w3_f @ w2.astype(f32)                                 # (H2, H1)
    bc = w3_f @ b2.reshape(F, 1).astype(f32) + b3.reshape(H2, 1).astype(f32)  # (H2, 1)
    w4_eff = w4.astype(f32) * w3_t.reshape(1, H2)              # (3, H2): fold diag(dz3/dt1)

    # Clamp the tile to the (lane-rounded) batch, pad batch to a tile multiple.
    tile_eff = max(128, min(tile_n, pl.cdiv(N, 128) * 128))
    n_pad = pl.cdiv(N, tile_eff) * tile_eff
    xyzt_T = jnp.pad(xyzt.astype(f32), ((0, n_pad - N), (0, 0))).T    # (4, n_pad): batch on lanes

    def full(arr):
        nd = arr.ndim
        return pl.BlockSpec(arr.shape, lambda i, _nd=nd: (0,) * _nd)

    vel_T = pl.pallas_call(
        _velocity_kernel,
        out_shape=jax.ShapeDtypeStruct((D_OUT, n_pad), jnp.float32),
        grid_spec=pltpu.PrefetchScalarGridSpec(
            num_scalar_prefetch=0,
            grid=(n_pad // tile_eff,),
            in_specs=[
                pl.BlockSpec((D_IN, tile_eff), lambda i: (0, i)),
                full(w1c), full(b1c), full(wc), full(w3_t), full(bc), full(w4_eff),
            ],
            out_specs=pl.BlockSpec((D_OUT, tile_eff), lambda i: (0, i)),
        ),
        compiler_params=pltpu.CompilerParams(
            dimension_semantics=("parallel",)),
    )(xyzt_T, w1c, b1c, wc, w3_t, bc, w4_eff)

    return vel_T.T[:N]


# ---------------- pure-JAX reference (mirrors the torch autograd path, unfused) ----------------
def _reference_velocity(xyzt, params):
    w1, b1, w2, b2, w3, b3, w4, b4 = params
    xyz, t = xyzt[:, :3], xyzt[:, 3:4]
    x = jnp.concatenate([xyz, t], axis=-1)
    feats = jnp.sin(x @ w1.T + b1) @ w2.T + b2           # detached wrt t1

    def position_map(t1):
        inp = jnp.concatenate([feats, t1], axis=-1)
        return jnp.sin(inp @ w3.T + b3) @ w4.T + b4

    _, vel = jax.jvp(position_map, (t,), (jnp.ones_like(t),))  # d(mapped_xyz)/dt1
    return vel


if __name__ == "__main__":
    key = jax.random.PRNGKey(0)
    ks = jax.random.split(key, 10)

    N = 2000  # not a multiple of tile_n: exercises the pad/slice path; grid = 2 steps
    xyzt = jax.random.uniform(ks[0], (N, D_IN), jnp.float32)

    w1 = 0.5 * jax.random.normal(ks[1], (H1, D_IN), jnp.float32)
    b1 = 0.1 * jax.random.normal(ks[2], (H1,), jnp.float32)
    w2 = 0.5 * jax.random.normal(ks[3], (F, H1), jnp.float32)
    b2 = 0.1 * jax.random.normal(ks[4], (F,), jnp.float32)
    w3 = 0.5 * jax.random.normal(ks[5], (H2, F + 1), jnp.float32)
    b3 = 0.1 * jax.random.normal(ks[6], (H2,), jnp.float32)
    w4 = 0.5 * jax.random.normal(ks[7], (D_OUT, H2), jnp.float32)
    b4 = 0.1 * jax.random.normal(ks[8], (D_OUT,), jnp.float32)   # no grad wrt t1

    params = (w1, b1, w2, b2, w3, b3, w4, b4)

    vel = velocity_forward(xyzt, params, tile_n=1024)
    vel = jax.block_until_ready(vel)

    ref = _reference_velocity(xyzt, params)
    assert vel.shape == (N, D_OUT)
    assert jnp.allclose(vel, ref, atol=2e-4, rtol=2e-4), "kernel mismatch vs autodiff reference"

    print("KERNEL_OK")
</pallas_src>

<mosaic_0001>
module attributes {stable_mosaic.version = 11 : i64} {
  func.func @_velocity_kernel(%arg0: i32, %arg1: memref<4x1024xf32, #tpu.memory_space<vmem>>, %arg2: memref<32x4xf32, #tpu.memory_space<vmem>>, %arg3: memref<32x1xf32, #tpu.memory_space<vmem>>, %arg4: memref<32x32xf32, #tpu.memory_space<vmem>>, %arg5: memref<32x1xf32, #tpu.memory_space<vmem>>, %arg6: memref<32x1xf32, #tpu.memory_space<vmem>>, %arg7: memref<3x32xf32, #tpu.memory_space<vmem>>, %arg8: memref<3x1024xf32, #tpu.memory_space<vmem>>) attributes {dimension_semantics = [#tpu.dimension_semantics<parallel>], iteration_bounds = array<i64: 2>, scalar_prefetch = 0 : i64, scratch_operands = 0 : i64, tpu.core_type = #tpu.core_type<tc>, window_params = [{transform_indices = @transform_0, window_bounds = array<i64: 4, 1024>}, {pipeline_mode = #tpu.pipeline_mode<synchronous>, transform_indices = @transform_1, window_bounds = array<i64: 32, 4>}, {pipeline_mode = #tpu.pipeline_mode<synchronous>, transform_indices = @transform_2, window_bounds = array<i64: 32, 1>}, {pipeline_mode = #tpu.pipeline_mode<synchronous>, transform_indices = @transform_3, window_bounds = array<i64: 32, 32>}, {pipeline_mode = #tpu.pipeline_mode<synchronous>, transform_indices = @transform_4, window_bounds = array<i64: 32, 1>}, {pipeline_mode = #tpu.pipeline_mode<synchronous>, transform_indices = @transform_5, window_bounds = array<i64: 32, 1>}, {pipeline_mode = #tpu.pipeline_mode<synchronous>, transform_indices = @transform_6, window_bounds = array<i64: 3, 32>}, {transform_indices = @transform_7, window_bounds = array<i64: 3, 1024>}]} {
    %c0 = arith.constant 0 : index
    %c0_0 = arith.constant 0 : index
    %0 = vector.load %arg1[%c0, %c0_0] : memref<4x1024xf32, #tpu.memory_space<vmem>>, vector<4x1024xf32>
    %1 = vector.extract_strided_slice %0 {offsets = [3, 0], sizes = [1, 1024], strides = [1, 1]} : vector<4x1024xf32> to vector<1x1024xf32>
    %c0_1 = arith.constant 0 : index
    %c0_2 = arith.constant 0 : index
    %2 = vector.load %arg2[%c0_1, %c0_2] : memref<32x4xf32, #tpu.memory_space<vmem>>, vector<32x4xf32>
    %cst = arith.constant dense<0.000000e+00> : vector<32x1024xf32>
    %3 = tpu.matmul %2, %0, %cst {dimension_numbers = #tpu.dot_dimension_numbers<[1], [0], [0], [1], [0, 0, 1, 1], [], []>} : vector<32x4xf32>, vector<4x1024xf32>, vector<32x1024xf32> -> vector<32x1024xf32>
    %c0_3 = arith.constant 0 : index
    %c0_4 = arith.constant 0 : index
    %4 = vector.load %arg3[%c0_3, %c0_4] : memref<32x1xf32, #tpu.memory_space<vmem>>, vector<32x1xf32>
    %5 = vector.broadcast %4 : vector<32x1xf32> to vector<32x1024xf32>
    %6 = arith.addf %3, %5 : vector<32x1024xf32>
    %7 = math.sin %6 : vector<32x1024xf32>
    %c0_5 = arith.constant 0 : index
    %c0_6 = arith.constant 0 : index
    %8 = vector.load %arg4[%c0_5, %c0_6] : memref<32x32xf32, #tpu.memory_space<vmem>>, vector<32x32xf32>
    %cst_7 = arith.constant dense<0.000000e+00> : vector<32x1024xf32>
    %9 = tpu.matmul %8, %7, %cst_7 {dimension_numbers = #tpu.dot_dimension_numbers<[1], [0], [0], [1], [0, 0, 1, 1], [], []>} : vector<32x32xf32>, vector<32x1024xf32>, vector<32x1024xf32> -> vector<32x1024xf32>
    %c0_8 = arith.constant 0 : index
    %c0_9 = arith.constant 0 : index
    %10 = vector.load %arg5[%c0_8, %c0_9] : memref<32x1xf32, #tpu.memory_space<vmem>>, vector<32x1xf32>
    %11 = vector.broadcast %10 : vector<32x1xf32> to vector<32x1024xf32>
    %12 = vector.broadcast %1 : vector<1x1024xf32> to vector<32x1024xf32>
    %13 = arith.mulf %11, %12 : vector<32x1024xf32>
    %14 = arith.addf %9, %13 : vector<32x1024xf32>
    %c0_10 = arith.constant 0 : index
    %c0_11 = arith.constant 0 : index
    %15 = vector.load %arg6[%c0_10, %c0_11] : memref<32x1xf32, #tpu.memory_space<vmem>>, vector<32x1xf32>
    %16 = vector.broadcast %15 : vector<32x1xf32> to vector<32x1024xf32>
    %17 = arith.addf %14, %16 : vector<32x1024xf32>
    %c0_12 = arith.constant 0 : index
    %c0_13 = arith.constant 0 : index
    %18 = vector.load %arg7[%c0_12, %c0_13] : memref<3x32xf32, #tpu.memory_space<vmem>>, vector<3x32xf32>
    %19 = math.cos %17 : vector<32x1024xf32>
    %cst_14 = arith.constant dense<0.000000e+00> : vector<3x1024xf32>
    %20 = tpu.matmul %18, %19, %cst_14 {dimension_numbers = #tpu.dot_dimension_numbers<[1], [0], [0], [1], [0, 0, 1, 1], [], []>} : vector<3x32xf32>, vector<32x1024xf32>, vector<3x1024xf32> -> vector<3x1024xf32>
    %c0_15 = arith.constant 0 : index
    %c0_16 = arith.constant 0 : index
    %21 = vector.load %arg8[%c0_15, %c0_16] : memref<3x1024xf32, #tpu.memory_space<vmem>>, vector<3x1024xf32>
    tpu.vector_store %arg8[%c0_15, %c0_16], %20 {strides = array<i32>} : memref<3x1024xf32, #tpu.memory_space<vmem>>, vector<3x1024xf32>,
    return
  }
  func.func @transform_0(%arg0: i32) -> (i32, i32) {
    %c0_i32 = arith.constant 0 : i32
    %c0_i32_0 = arith.constant 0 : i32
    return %c0_i32, %arg0 : i32, i32
  }
  func.func @transform_1(%arg0: i32) -> (i32, i32) {
    %c0_i32 = arith.constant 0 : i32
    %c0_i32_0 = arith.constant 0 : i32
    %c0_i32_1 = arith.constant 0 : i32
    return %c0_i32, %c0_i32_0 : i32, i32
  }
  func.func @transform_2(%arg0: i32) -> (i32, i32) {
    %c0_i32 = arith.constant 0 : i32
    %c0_i32_0 = arith.constant 0 : i32
    %c0_i32_1 = arith.constant 0 : i32
    return %c0_i32, %c0_i32_0 : i32, i32
  }
  func.func @transform_3(%arg0: i32) -> (i32, i32) {
    %c0_i32 = arith.constant 0 : i32
    %c0_i32_0 = arith.constant 0 : i32
    %c0_i32_1 = arith.constant 0 : i32
    return %c0_i32, %c0_i32_0 : i32, i32
  }
  func.func @transform_4(%arg0: i32) -> (i32, i32) {
    %c0_i32 = arith.constant 0 : i32
    %c0_i32_0 = arith.constant 0 : i32
    %c0_i32_1 = arith.constant 0 : i32
    return %c0_i32, %c0_i32_0 : i32, i32
  }
  func.func @transform_5(%arg0: i32) -> (i32, i32) {
    %c0_i32 = arith.constant 0 : i32
    %c0_i32_0 = arith.constant 0 : i32
    %c0_i32_1 = arith.constant 0 : i32
    return %c0_i32, %c0_i32_0 : i32, i32
  }
  func.func @transform_6(%arg0: i32) -> (i32, i32) {
    %c0_i32 = arith.constant 0 : i32
    %c0_i32_0 = arith.constant 0 : i32
    %c0_i32_1 = arith.constant 0 : i32
    return %c0_i32, %c0_i32_0 : i32, i32
  }
  func.func @transform_7(%arg0: i32) -> (i32, i32) {
    %c0_i32 = arith.constant 0 : i32
    %c0_i32_0 = arith.constant 0 : i32
    return %c0_i32, %arg0 : i32, i32
  }
}

</mosaic_0001>

<llo_original>
// kernel: tpu_custom_call.1
$region0: #{tpu_custom_call.1}
  #allocation0 [shape = 'u32[]', space=smem, size = 0x4, offset = 0x4, fixed_abs, tag = 'smem constant byte address 0x4 - core index']
  #allocation1 [shape = 'u32[144,128]{1,0:T(1,128)}', space=vmem, size = 0x12000, scoped, tag = 'internal scratch']
  %s0 = inlined_call_operand.vmem [shape: f32[4,2048], index: 0, kind: input, shape index: {}]
  %s1 = inlined_call_operand.vmem [shape: f32[32,4], index: 1, kind: input, shape index: {}]
  %s2 = inlined_call_operand.vmem [shape: f32[32,1], index: 2, kind: input, shape index: {}]
  %s3 = inlined_call_operand.vmem [shape: f32[32,32], index: 3, kind: input, shape index: {}]
  %s4 = inlined_call_operand.vmem [shape: f32[32,1], index: 4, kind: input, shape index: {}]
  %s5 = inlined_call_operand.vmem [shape: f32[32,1], index: 5, kind: input, shape index: {}]
  %s6 = inlined_call_operand.vmem [shape: f32[3,32], index: 6, kind: input, shape index: {}]
  %s7 = inlined_call_operand.hbm [shape: f32[3,2048], index: 7, kind: output, shape index: {}]
  %s8 = sld [smem:[#allocation0]]
  $region61: #{tpu_custom_call.1} parent=0
    _
  %s10 = ssub.s32 1, %s8
  %s11 = scalar_select 0, %s10, %s8
  $region1: #{tpu_custom_call.1} parent=0
    #allocation2 [shape = 'u8[32768]{0}', space=vmem, size = 0x8000, scoped, tag = 'output window, operand 0']
    #allocation3 [shape = 's32[2]{0}', space=sflag, size = 0x8, scoped, tag = 'scoped memory for tpu_custom_call.1']
    %12 = vsyncpa [#allocation3], 0
    %s13 = scalar_lea.sflag [#allocation3], 1
    %14 = vsyncpa %s13, 0
    loop: start=0, step=1, limit=4
    $region2: #{tpu_custom_call.1} parent=1 // loop_pre_header
      _
    $region3: #{tpu_custom_call.1} parent=1 // loop_header
      %s16 = sphi 0, %s20
      %p17 = scmp.ge.s32.totalorder %s16, 4
      %s26 = sphi 0, %s28
      %s29 = sphi 0, %s26
      %s30 = sphi 0, %s29
      %s46 = sphi 0, %s30
      %s50 = sphi 0, %s50
      %s52 = sphi 0, %s50
      %s53 = sphi 0, %s52
      %s67 = sphi 0, %s53
      %s71 = sphi 0, %s71
      %s73 = sphi 0, %s71
      %s74 = sphi 0, %s73
      %s88 = sphi 0, %s74
      %s92 = sphi 0, %s92
      %s94 = sphi 0, %s92
      %s95 = sphi 0, %s94
      %s109 = sphi 0, %s95
      %s113 = sphi 0, %s113
      %s115 = sphi 0, %s113
      %s116 = sphi 0, %s115
      %s130 = sphi 0, %s116
      %s134 = sphi 0, %s134
      %s136 = sphi 0, %s134
      %s137 = sphi 0, %s136
      %s151 = sphi 0, %s137
      %s155 = sphi 0, %s155
      %s157 = sphi 0, %s155
      %s158 = sphi 0, %s157
      %s172 = sphi 0, %s158
      %s178 = sphi 0, %s180
      %s181 = sphi 0, %s178
      %s182 = sphi 0, %s181
      %s198 = sphi 0, %s182
    $region4: #{tpu_custom_call.1} parent=1 // loop_header_branch
      %19 = sbr.rel (%p17) target = $region8
    $region5: #{tpu_custom_call.1} parent=1 // loop_body
      %s21 = ssub.s32 %s16, 1
      %s22 = ssub.s32 %s16, 2
      %s23 = sadd.s32 %s16, 1
      %s24 = ssub.s32 %s16, %s23
      %p25 = scmp.eq.s32.totalorder %s24, 0
      %s27 = sadd.s32 %s26, 1
      %s28 = scalar_select %p25, %s26, %s27
      %p31 = pneg %p25
      %p32 = scmp.eq.s32.totalorder %s16, 1
      %p33 = por %p31, %p32
      %p34 = scmp.ne.s32.totalorder %s26, %s29
      %p35 = scmp.eq.s32.totalorder %s16, 0
      %p36 = por %p34, %p35
      %p37 = scmp.ne.s32.totalorder %s26, %s29
      %p38 = scmp.eq.s32.totalorder %s21, 1
      %p39 = por %p37, %p38
      %p40 = scmp.ne.s32.totalorder %s29, %s30
      %p41 = scmp.eq.s32.totalorder %s21, 0
      %p42 = por %p40, %p41
      %p43 = scmp.ne.s32.totalorder %s29, %s30
      %p44 = scmp.eq.s32.totalorder %s22, 1
      %p45 = por %p43, %p44
      %p47 = scmp.ne.s32.totalorder %s30, %s46
      %p48 = scmp.eq.s32.totalorder %s22, 0
      %p49 = por %p47, %p48
      %s51 = sadd.s32 %s50, 1
      %p54 = scmp.eq.s32.totalorder %s16, 1
      %p55 = scmp.ne.s32.totalorder %s50, %s52
      %p56 = scmp.eq.s32.totalorder %s16, 0
      %p57 = por %p55, %p56
      %p58 = scmp.ne.s32.totalorder %s50, %s52
      %p59 = scmp.eq.s32.totalorder %s21, 1
      %p60 = por %p58, %p59
      %p61 = scmp.ne.s32.totalorder %s52, %s53
      %p62 = scmp.eq.s32.totalorder %s21, 0
      %p63 = por %p61, %p62
      %p64 = scmp.ne.s32.totalorder %s52, %s53
      %p65 = scmp.eq.s32.totalorder %s22, 1
      %p66 = por %p64, %p65
      %p68 = scmp.ne.s32.totalorder %s53, %s67
      %p69 = scmp.eq.s32.totalorder %s22, 0
      %p70 = por %p68, %p69
      %s72 = sadd.s32 %s71, 1
      %p75 = scmp.eq.s32.totalorder %s16, 1
      %p76 = scmp.ne.s32.totalorder %s71, %s73
      %p77 = scmp.eq.s32.totalorder %s16, 0
      %p78 = por %p76, %p77
      %p79 = scmp.ne.s32.totalorder %s71, %s73
      %p80 = scmp.eq.s32.totalorder %s21, 1
      %p81 = por %p79, %p80
      %p82 = scmp.ne.s32.totalorder %s73, %s74
      %p83 = scmp.eq.s32.totalorder %s21, 0
      %p84 = por %p82, %p83
      %p85 = scmp.ne.s32.totalorder %s73, %s74
      %p86 = scmp.eq.s32.totalorder %s22, 1
      %p87 = por %p85, %p86
      %p89 = scmp.ne.s32.totalorder %s74, %s88
      %p90 = scmp.eq.s32.totalorder %s22, 0
      %p91 = por %p89, %p90
      %s93 = sadd.s32 %s92, 1
      %p96 = scmp.eq.s32.totalorder %s16, 1
      %p97 = scmp.ne.s32.totalorder %s92, %s94
      %p98 = scmp.eq.s32.totalorder %s16, 0
      %p99 = por %p97, %p98
      %p100 = scmp.ne.s32.totalorder %s92, %s94
      %p101 = scmp.eq.s32.totalorder %s21, 1
      %p102 = por %p100, %p101
      %p103 = scmp.ne.s32.totalorder %s94, %s95
      %p104 = scmp.eq.s32.totalorder %s21, 0
      %p105 = por %p103, %p104
      %p106 = scmp.ne.s32.totalorder %s94, %s95
      %p107 = scmp.eq.s32.totalorder %s22, 1
      %p108 = por %p106, %p107
      %p110 = scmp.ne.s32.totalorder %s95, %s109
      %p111 = scmp.eq.s32.totalorder %s22, 0
      %p112 = por %p110, %p111
      %s114 = sadd.s32 %s113, 1
      %p117 = scmp.eq.s32.totalorder %s16, 1
      %p118 = scmp.ne.s32.totalorder %s113, %s115
      %p119 = scmp.eq.s32.totalorder %s16, 0
      %p120 = por %p118, %p119
      %p121 = scmp.ne.s32.totalorder %s113, %s115
      %p122 = scmp.eq.s32.totalorder %s21, 1
      %p123 = por %p121, %p122
      %p124 = scmp.ne.s32.totalorder %s115, %s116
      %p125 = scmp.eq.s32.totalorder %s21, 0
      %p126 = por %p124, %p125
      %p127 = scmp.ne.s32.totalorder %s115, %s116
      %p128 = scmp.eq.s32.totalorder %s22, 1
      %p129 = por %p127, %p128
      %p131 = scmp.ne.s32.totalorder %s116, %s130
      %p132 = scmp.eq.s32.totalorder %s22, 0
      %p133 = por %p131, %p132
      %s135 = sadd.s32 %s134, 1
      %p138 = scmp.eq.s32.totalorder %s16, 1
      %p139 = scmp.ne.s32.totalorder %s134, %s136
      %p140 = scmp.eq.s32.totalorder %s16, 0
      %p141 = por %p139, %p140
      %p142 = scmp.ne.s32.totalorder %s134, %s136
      %p143 = scmp.eq.s32.totalorder %s21, 1
      %p144 = por %p142, %p143
      %p145 = scmp.ne.s32.totalorder %s136, %s137
      %p146 = scmp.eq.s32.totalorder %s21, 0
      %p147 = por %p145, %p146
      %p148 = scmp.ne.s32.totalorder %s136, %s137
      %p149 = scmp.eq.s32.totalorder %s22, 1
      %p150 = por %p148, %p149
      %p152 = scmp.ne.s32.totalorder %s137, %s151
      %p153 = scmp.eq.s32.totalorder %s22, 0
      %p154 = por %p152, %p153
      %s156 = sadd.s32 %s155, 1
      %p159 = scmp.eq.s32.totalorder %s16, 1
      %p160 = scmp.ne.s32.totalorder %s155, %s157
      %p161 = scmp.eq.s32.totalorder %s16, 0
      %p162 = por %p160, %p161
      %p163 = scmp.ne.s32.totalorder %s155, %s157
      %p164 = scmp.eq.s32.totalorder %s21, 1
      %p165 = por %p163, %p164
      %p166 = scmp.ne.s32.totalorder %s157, %s158
      %p167 = scmp.eq.s32.totalorder %s21, 0
      %p168 = por %p166, %p167
      %p169 = scmp.ne.s32.totalorder %s157, %s158
      %p170 = scmp.eq.s32.totalorder %s22, 1
      %p171 = por %p169, %p170
      %p173 = scmp.ne.s32.totalorder %s158, %s172
      %p174 = scmp.eq.s32.totalorder %s22, 0
      %p175 = por %p173, %p174
      %s176 = ssub.s32 %s16, %s23
      %p177 = scmp.eq.s32.totalorder %s176, 0
      %s179 = sadd.s32 %s178, 1
      %s180 = scalar_select %p177, %s178, %s179
      %p183 = pneg %p177
      %p184 = scmp.eq.s32.totalorder %s16, 1
      %p185 = por %p183, %p184
      %p186 = scmp.ne.s32.totalorder %s178, %s181
      %p187 = scmp.eq.s32.totalorder %s16, 0
      %p188 = por %p186, %p187
      %p189 = scmp.ne.s32.totalorder %s178, %s181
      %p190 = scmp.eq.s32.totalorder %s21, 1
      %p191 = por %p189, %p190
      %p192 = scmp.ne.s32.totalorder %s181, %s182
      %p193 = scmp.eq.s32.totalorder %s21, 0
      %p194 = por %p192, %p193
      %p195 = scmp.ne.s32.totalorder %s181, %s182
      %p196 = scmp.eq.s32.totalorder %s22, 1
      %p197 = por %p195, %p196
      %p199 = scmp.ne.s32.totalorder %s182, %s198
      %p200 = scmp.eq.s32.totalorder %s22, 0
      %p201 = por %p199, %p200
      %p202 = scmp.le.s32.totalorder 1, %s16
      %p203 = scmp.lt.s32.totalorder %s16, 3
      %p204 = pnand %p202, %p203
      %p205 = pneg %p204
      // Predicated region
      $region9: #{tpu_custom_call.1} parent=5 // pred_check
        _
      $region10: #{tpu_custom_call.1} parent=5 // pred_check_branch
        %207 = sbr.rel (%p204) target = $region12
      $region11: #{tpu_custom_call.1} parent=5 // pred_region
        %s208 = ssub.s32 %s16, 1
        // Predicated region
        $region13: #{tpu_custom_call.1} parent=11 // pred_check
          %p209 = pneg %p63
        $region14: #{tpu_custom_call.1} parent=11 // pred_check_branch
          %211 = sbr.rel (%p209) target = $region16
        $region15: #{tpu_custom_call.1} parent=11 // pred_region
          _
        $region16: #{tpu_custom_call.1} parent=11 // pred_fallthru
          _
        // Predicated region
        $region17: #{tpu_custom_call.1} parent=11 // pred_check
          %p212 = pneg %p84
        $region18: #{tpu_custom_call.1} parent=11 // pred_check_branch
          %214 = sbr.rel (%p212) target = $region20
        $region19: #{tpu_custom_call.1} parent=11 // pred_region
          _
        $region20: #{tpu_custom_call.1} parent=11 // pred_fallthru
          _
        // Predicated region
        $region21: #{tpu_custom_call.1} parent=11 // pred_check
          %p215 = pneg %p105
        $region22: #{tpu_custom_call.1} parent=11 // pred_check_branch
          %217 = sbr.rel (%p215) target = $region24
        $region23: #{tpu_custom_call.1} parent=11 // pred_region
          _
        $region24: #{tpu_custom_call.1} parent=11 // pred_fallthru
          _
        // Predicated region
        $region25: #{tpu_custom_call.1} parent=11 // pred_check
          %p218 = pneg %p126
        $region26: #{tpu_custom_call.1} parent=11 // pred_check_branch
          %220 = sbr.rel (%p218) target = $region28
        $region27: #{tpu_custom_call.1} parent=11 // pred_region
          _
        $region28: #{tpu_custom_call.1} parent=11 // pred_fallthru
          _
        // Predicated region
        $region29: #{tpu_custom_call.1} parent=11 // pred_check
          %p221 = pneg %p147
        $region30: #{tpu_custom_call.1} parent=11 // pred_check_branch
          %223 = sbr.rel (%p221) target = $region32
        $region31: #{tpu_custom_call.1} parent=11 // pred_region
          _
        $region32: #{tpu_custom_call.1} parent=11 // pred_fallthru
          _
        // Predicated region
        $region33: #{tpu_custom_call.1} parent=11 // pred_check
          %p224 = pneg %p168
        $region34: #{tpu_custom_call.1} parent=11 // pred_check_branch
          %226 = sbr.rel (%p224) target = $region36
        $region35: #{tpu_custom_call.1} parent=11 // pred_region
          _
        $region36: #{tpu_custom_call.1} parent=11 // pred_fallthru
          _
      $region12: #{tpu_custom_call.1} parent=5 // pred_fallthru
        _
      %p227 = scmp.lt.s32.totalorder %s16, 2
      // Predicated region
      $region37: #{tpu_custom_call.1} parent=5 // pred_check
        %p228 = pneg %p227
      $region38: #{tpu_custom_call.1} parent=5 // pred_check_branch
        %230 = sbr.rel (%p228) target = $region40
      $region39: #{tpu_custom_call.1} parent=5 // pred_region
        // Predicated region
        $region41: #{tpu_custom_call.1} parent=39 // pred_check
          %p231 = pneg %p36
        $region42: #{tpu_custom_call.1} parent=39 // pred_check_branch
          %233 = sbr.rel (%p231) target = $region44
        $region43: #{tpu_custom_call.1} parent=39 // pred_region
          %s234 = smul.u32 8, %s16
          %p235 = scmp.lt.s32.totalorder %s234, 15
          %s236 = scalar_select %p235, %s234, 15
          %s237 = smul.addr %s236, 4
          %s238 = scalar_lea.vmem %s0, %s237
          %s239 = smul.u32 8, %s16
        $region44: #{tpu_custom_call.1} parent=39 // pred_fallthru
          _
      $region40: #{tpu_custom_call.1} parent=5 // pred_fallthru
        _
      %p240 = scmp.le.s32.totalorder 1, %s16
      %p241 = scmp.lt.s32.totalorder %s16, 3
      %p242 = pnand %p240, %p241
      %p243 = pneg %p242
      // Predicated region
      $region45: #{tpu_custom_call.1} parent=5 // pred_check
        _
      $region46: #{tpu_custom_call.1} parent=5 // pred_check_branch
        %245 = sbr.rel (%p242) target = $region48
      $region47: #{tpu_custom_call.1} parent=5 // pred_region
        %s246 = ssub.s32 %s16, 1
        %s247 = smul.u32 8, %s21
        %p248 = scmp.lt.s32.totalorder %s247, 15
        %s249 = scalar_select %p248, %s247, 15
        %s250 = smul.addr %s249, 4
        %s251 = scalar_lea.vmem %s0, %s250
        %p252 = pneg %p42
        %p253 = pneg %p39
        %p254 = pneg %p63
        %p255 = pneg %p60
        %p256 = pneg %p84
        %p257 = pneg %p81
        %p258 = pneg %p105
        %p259 = pneg %p102
        %p260 = pneg %p126
        %p261 = pneg %p123
        %p262 = pneg %p147
        %p263 = pneg %p144
        %p264 = pneg %p168
        %p265 = pneg %p165
        %p266 = pneg %p194
        %p267 = pneg %p191
        %s268 = sand.u32 %s181, 1
        %s269 = scalar_lea.sflag [#allocation3], %s268
        %s270 = sand.u32 %s181, 1
        %s271 = smul.addr %s270, 32
        %s272 = scalar_lea.vmem [#allocation2], %s271
        %s273 = smul.u32 8, %s21
        %p274 = scmp.lt.s32.totalorder %s273, 15
        %s275 = scalar_select %p274, %s273, 15
        %s276 = smul.addr %s275, 4
        %s277 = scalar_lea.vmem %s0, %s276
        %s278 = smul.u32 8, %s21
        %s279 = smul.u32 8, %s21
        %v280 = vld [vmem:[%s277] sm:$0xff]
        %v281 = vld [vmem:[%s277 + $0x8] sm:$0xff]
        %v282 = vld [vmem:[%s277 + $0x10] sm:$0xff]
        %v283 = vld [vmem:[%s277 + $0x18] sm:$0xff]
        %v284 = vld [vmem:[%s1] sm:$0xff]
        %v285 = vld [vmem:[%s1 + $0x8] sm:$0xff]
        %v286 = vld [vmem:[%s1 + $0x10] sm:$0xff]
        %v287 = vld [vmem:[%s1 + $0x18] sm:$0xff]
        %v288 = vld [vmem:[%s2] sm:$0xff]
        %v289 = vld [vmem:[%s2 + $0x8] sm:$0xff]
        %v290 = vld [vmem:[%s2 + $0x10] sm:$0xff]
        %v291 = vld [vmem:[%s2 + $0x18] sm:$0xff]
        %293 = vset.pattern.permute.xlu0 0
        %294 = vperm.xlu0 %293, %v288
        %v295 = vpop.permute.xlu0 %294
        %298 = vset.pattern.permute.xlu0 0
        %299 = vperm.xlu0 %298, %v289
        %v300 = vpop.permute.xlu0 %299
        %303 = vset.pattern.permute.xlu0 0
        %304 = vperm.xlu0 %303, %v290
        %v305 = vpop.permute.xlu0 %304
        %308 = vset.pattern.permute.xlu0 0
        %309 = vperm.xlu0 %308, %v291
        %v310 = vpop.permute.xlu0 %309
        %v316 = vcombine.high %v280, %v280
        %v317 = vcombine.high %v281, %v281
        %v318 = vcombine.high %v282, %v282
        %v319 = vcombine.high %v283, %v283
        %vm320 = vcmask 31744
        %v322 = vsel %vm320, %v284, 0
        %v325 = vsel %vm320, %v285, 0
        %v328 = vsel %vm320, %v286, 0
        %v331 = vsel %vm320, %v287, 0
        %vm333 = vcmask 1043456
        %v334 = vsel %vm333, %v280, 0
        %v336 = vsel %vm333, %v316, 0
        %v338 = vsel %vm333, %v281, 0
        %v340 = vsel %vm333, %v317, 0
        %v342 = vsel %vm333, %v282, 0
        %v344 = vsel %vm333, %v318, 0
        %v346 = vsel %vm333, %v283, 0
        %v348 = vsel %vm333, %v319, 0
        %350 = vmatprep.subr.mxu0 %v336
        %351 = vmatpush1.msra.mxu0 %v334
        %352 = vmatprep.subr.mxu0 0.0
        %353 = vmatpush1.msra.mxu0 0.0
        %354 = vmatprep.subr.mxu0 0.0
        %355 = vmatpush1.msra.mxu0 0.0
        %356 = vmatprep.subr.mxu0 0.0
        %357 = vmatpush1.msra.mxu0 0.0
        %358 = vmatprep.subr.mxu0 0.0
        %359 = vmatpush1.msra.mxu0 0.0
        %360 = vmatprep.subr.mxu0 0.0
        %361 = vmatpush1.msra.mxu0 0.0
        %362 = vmatprep.subr.mxu0 0.0
        %363 = vmatpush1.msra.mxu0 0.0
        %364 = vmatprep.subr.mxu0 0.0
        %365 = vmatpush1.msra.mxu0 0.0
        %366 = vmatprep.subr.mxu0 0.0
        %367 = vmatpush1.msra.mxu0 0.0
        %368 = vmatprep.subr.mxu0 0.0
        %369 = vmatpush1.msra.mxu0 0.0
        %370 = vmatprep.subr.mxu0 0.0
        %371 = vmatpush1.msra.mxu0 0.0
        %372 = vmatprep.subr.mxu0 0.0
        %373 = vmatpush1.msra.mxu0 0.0
        %374 = vmatprep.subr.mxu0 0.0
        %375 = vmatpush1.msra.mxu0 0.0
        %376 = vmatprep.subr.mxu0 0.0
        %377 = vmatpush1.msra.mxu0 0.0
        %378 = vmatprep.subr.mxu0 0.0
        %379 = vmatpush1.msra.mxu0 0.0
        %380 = vmatprep.subr.mxu0 0.0
        %381 = vmatpush1.msra.mxu0 0.0
        %382 = vmatprep.subr.mxu0 0.0
        %383 = vmatpush1.msra.mxu0 0.0
        %384 = vmatprep.subr.mxu0 0.0
        %385 = vmatpush1.msra.mxu0 0.0
        %386 = vmatprep.subr.mxu0 0.0
        %387 = vmatpush1.msra.mxu0 0.0
        %388 = vmatprep.subr.mxu0 0.0
        %389 = vmatpush1.msra.mxu0 0.0
        %390 = vmatprep.subr.mxu0 0.0
        %391 = vmatpush1.msra.mxu0 0.0
        %392 = vmatprep.subr.mxu0 0.0
        %393 = vmatpush1.msra.mxu0 0.0
        %394 = vmatprep.subr.mxu0 0.0
        %395 = vmatpush1.msra.mxu0 0.0
        %396 = vmatprep.subr.mxu0 0.0
        %397 = vmatpush1.msra.mxu0 0.0
        %398 = vmatprep.subr.mxu0 0.0
        %399 = vmatpush1.msra.mxu0 0.0
        %400 = vmatprep.subr.mxu0 0.0
        %401 = vmatpush1.msra.mxu0 0.0
        %402 = vmatprep.subr.mxu0 0.0
        %403 = vmatpush1.msra.mxu0 0.0
        %404 = vmatprep.subr.mxu0 0.0
        %405 = vmatpush1.msra.mxu0 0.0
        %406 = vmatprep.subr.mxu0 0.0
        %407 = vmatpush1.msra.mxu0 0.0
        %408 = vmatprep.subr.mxu0 0.0
        %409 = vmatpush1.msra.mxu0 0.0
        %410 = vmatprep.subr.mxu0 0.0
        %411 = vmatpush1.msra.mxu0 0.0
        %412 = vmatprep.subr.mxu0 0.0
        %413 = vmatpush1.msra.mxu0 0.0
        %414 = vmatprep.mubr.f32.mxu0 0.0
        %415 = vmatmul.mubr.f32.gmra.mrb[0].mxu0 %v322
        %v416 = vpop.f32.mrb[0].mxu0
        %v417 = vadd.f32 %v295, %v416
        %v418 = vpop.f32.mrb[0].mxu0
        %v419 = vadd.f32 %v295, %v418
        %420 = vmatprep.mubr.f32.mxu0 0.0
        %421 = vmatmul.mubr.f32.gmra.mrb[0].mxu0 %v325
        %v422 = vpop.f32.mrb[0].mxu0
        %v423 = vadd.f32 %v300, %v422
        %v424 = vpop.f32.mrb[0].mxu0
        %v425 = vadd.f32 %v300, %v424
        %426 = vmatprep.mubr.f32.mxu0 0.0
        %427 = vmatmul.mubr.f32.gmra.mrb[0].mxu0 %v328
        %v428 = vpop.f32.mrb[0].mxu0
        %v429 = vadd.f32 %v305, %v428
        %v430 = vpop.f32.mrb[0].mxu0
        %v431 = vadd.f32 %v305, %v430
        %432 = vmatprep.mubr.f32.mxu0 0.0
        %433 = vmatmul.mubr.f32.gmra.mrb[0].mxu0 %v331
        %v434 = vpop.f32.mrb[0].mxu0
        %v435 = vadd.f32 %v310, %v434
        %v436 = vpop.f32.mrb[0].mxu0
        %v437 = vadd.f32 %v310, %v436
        %438 = vdwg.mxu0
        %439 = vmatprep.subr.mxu0 %v340
        %440 = vmatpush1.msra.mxu0 %v338
        %441 = vmatprep.subr.mxu0 0.0
        %442 = vmatpush1.msra.mxu0 0.0
        %443 = vmatprep.subr.mxu0 0.0
        %444 = vmatpush1.msra.mxu0 0.0
        %445 = vmatprep.subr.mxu0 0.0
        %446 = vmatpush1.msra.mxu0 0.0
        %447 = vmatprep.subr.mxu0 0.0
        %448 = vmatpush1.msra.mxu0 0.0
        %449 = vmatprep.subr.mxu0 0.0
        %450 = vmatpush1.msra.mxu0 0.0
        %451 = vmatprep.subr.mxu0 0.0
        %452 = vmatpush1.msra.mxu0 0.0
        %453 = vmatprep.subr.mxu0 0.0
        %454 = vmatpush1.msra.mxu0 0.0
        %455 = vmatprep.subr.mxu0 0.0
        %456 = vmatpush1.msra.mxu0 0.0
        %457 = vmatprep.subr.mxu0 0.0
        %458 = vmatpush1.msra.mxu0 0.0
        %459 = vmatprep.subr.mxu0 0.0
        %460 = vmatpush1.msra.mxu0 0.0
        %461 = vmatprep.subr.mxu0 0.0
        %462 = vmatpush1.msra.mxu0 0.0
        %463 = vmatprep.subr.mxu0 0.0
        %464 = vmatpush1.msra.mxu0 0.0
        %465 = vmatprep.subr.mxu0 0.0
        %466 = vmatpush1.msra.mxu0 0.0
        %467 = vmatprep.subr.mxu0 0.0
        %468 = vmatpush1.msra.mxu0 0.0
        %469 = vmatprep.subr.mxu0 0.0
        %470 = vmatpush1.msra.mxu0 0.0
        %471 = vmatprep.subr.mxu0 0.0
        %472 = vmatpush1.msra.mxu0 0.0
        %473 = vmatprep.subr.mxu0 0.0
        %474 = vmatpush1.msra.mxu0 0.0
        %475 = vmatprep.subr.mxu0 0.0
        %476 = vmatpush1.msra.mxu0 0.0
        %477 = vmatprep.subr.mxu0 0.0
        %478 = vmatpush1.msra.mxu0 0.0
        %479 = vmatprep.subr.mxu0 0.0
        %480 = vmatpush1.msra.mxu0 0.0
        %481 = vmatprep.subr.mxu0 0.0
        %482 = vmatpush1.msra.mxu0 0.0
        %483 = vmatprep.subr.mxu0 0.0
        %484 = vmatpush1.msra.mxu0 0.0
        %485 = vmatprep.subr.mxu0 0.0
        %486 = vmatpush1.msra.mxu0 0.0
        %487 = vmatprep.subr.mxu0 0.0
        %488 = vmatpush1.msra.mxu0 0.0
        %489 = vmatprep.subr.mxu0 0.0
        %490 = vmatpush1.msra.mxu0 0.0
        %491 = vmatprep.subr.mxu0 0.0
        %492 = vmatpush1.msra.mxu0 0.0
        %493 = vmatprep.subr.mxu0 0.0
        %494 = vmatpush1.msra.mxu0 0.0
        %495 = vmatprep.subr.mxu0 0.0
        %496 = vmatpush1.msra.mxu0 0.0
        %497 = vmatprep.subr.mxu0 0.0
        %498 = vmatpush1.msra.mxu0 0.0
        %499 = vmatprep.subr.mxu0 0.0
        %500 = vmatpush1.msra.mxu0 0.0
        %501 = vmatprep.subr.mxu0 0.0
        %502 = vmatpush1.msra.mxu0 0.0
        %503 = vmatprep.mubr.f32.mxu0 0.0
        %504 = vmatmul.mubr.f32.gmra.mrb[0].mxu0 %v322
        %v505 = vpop.f32.mrb[0].mxu0
        %v506 = vadd.f32 %v295, %v505
        %v507 = vpop.f32.mrb[0].mxu0
        %v508 = vadd.f32 %v295, %v507
        %509 = vmatprep.mubr.f32.mxu0 0.0
        %510 = vmatmul.mubr.f32.gmra.mrb[0].mxu0 %v325
        %v511 = vpop.f32.mrb[0].mxu0
        %v512 = vadd.f32 %v300, %v511
        %v513 = vpop.f32.mrb[0].mxu0
        %v514 = vadd.f32 %v300, %v513
        %515 = vmatprep.mubr.f32.mxu0 0.0
        %516 = vmatmul.mubr.f32.gmra.mrb[0].mxu0 %v328
        %v517 = vpop.f32.mrb[0].mxu0
        %v518 = vadd.f32 %v305, %v517
        %v519 = vpop.f32.mrb[0].mxu0
        %v520 = vadd.f32 %v305, %v519
        %521 = vmatprep.mubr.f32.mxu0 0.0
        %522 = vmatmul.mubr.f32.gmra.mrb[0].mxu0 %v331
        %v523 = vpop.f32.mrb[0].mxu0
        %v524 = vadd.f32 %v310, %v523
        %v525 = vpop.f32.mrb[0].mxu0
        %v526 = vadd.f32 %v310, %v525
        %527 = vdwg.mxu0
        %528 = vmatprep.subr.mxu0 %v344
        %529 = vmatpush1.msra.mxu0 %v342
        %530 = vmatprep.subr.mxu0 0.0
        %531 = vmatpush1.msra.mxu0 0.0
        %532 = vmatprep.subr.mxu0 0.0
        %533 = vmatpush1.msra.mxu0 0.0
        %534 = vmatprep.subr.mxu0 0.0
        %535 = vmatpush1.msra.mxu0 0.0
        %536 = vmatprep.subr.mxu0 0.0
        %537 = vmatpush1.msra.mxu0 0.0
        %538 = vmatprep.subr.mxu0 0.0
        %539 = vmatpush1.msra.mxu0 0.0
        %540 = vmatprep.subr.mxu0 0.0
        %541 = vmatpush1.msra.mxu0 0.0
        %542 = vmatprep.subr.mxu0 0.0
        %543 = vmatpush1.msra.mxu0 0.0
        %544 = vmatprep.subr.mxu0 0.0
        %545 = vmatpush1.msra.mxu0 0.0
        %546 = vmatprep.subr.mxu0 0.0
        %547 = vmatpush1.msra.mxu0 0.0
        %548 = vmatprep.subr.mxu0 0.0
        %549 = vmatpush1.msra.mxu0 0.0
        %550 = vmatprep.subr.mxu0 0.0
        %551 = vmatpush1.msra.mxu0 0.0
        %552 = vmatprep.subr.mxu0 0.0
        %553 = vmatpush1.msra.mxu0 0.0
        %554 = vmatprep.subr.mxu0 0.0
        %555 = vmatpush1.msra.mxu0 0.0
        %556 = vmatprep.subr.mxu0 0.0
        %557 = vmatpush1.msra.mxu0 0.0
        %558 = vmatprep.subr.mxu0 0.0
        %559 = vmatpush1.msra.mxu0 0.0
        %560 = vmatprep.subr.mxu0 0.0
        %561 = vmatpush1.msra.mxu0 0.0
        %562 = vmatprep.subr.mxu0 0.0
        %563 = vmatpush1.msra.mxu0 0.0
        %564 = vmatprep.subr.mxu0 0.0
        %565 = vmatpush1.msra.mxu0 0.0
        %566 = vmatprep.subr.mxu0 0.0
        %567 = vmatpush1.msra.mxu0 0.0
        %568 = vmatprep.subr.mxu0 0.0
        %569 = vmatpush1.msra.mxu0 0.0
        %570 = vmatprep.subr.mxu0 0.0
        %571 = vmatpush1.msra.mxu0 0.0
        %572 = vmatprep.subr.mxu0 0.0
        %573 = vmatpush1.msra.mxu0 0.0
        %574 = vmatprep.subr.mxu0 0.0
        %575 = vmatpush1.msra.mxu0 0.0
        %576 = vmatprep.subr.mxu0 0.0
        %577 = vmatpush1.msra.mxu0 0.0
        %578 = vmatprep.subr.mxu0 0.0
        %579 = vmatpush1.msra.mxu0 0.0
        %580 = vmatprep.subr.mxu0 0.0
        %581 = vmatpush1.msra.mxu0 0.0
        %582 = vmatprep.subr.mxu0 0.0
        %583 = vmatpush1.msra.mxu0 0.0
        %584 = vmatprep.subr.mxu0 0.0
        %585 = vmatpush1.msra.mxu0 0.0
        %586 = vmatprep.subr.mxu0 0.0
        %587 = vmatpush1.msra.mxu0 0.0
        %588 = vmatprep.subr.mxu0 0.0
        %589 = vmatpush1.msra.mxu0 0.0
        %590 = vmatprep.subr.mxu0 0.0
        %591 = vmatpush1.msra.mxu0 0.0
        %592 = vmatprep.mubr.f32.mxu0 0.0
        %593 = vmatmul.mubr.f32.gmra.mrb[0].mxu0 %v322
        %v594 = vpop.f32.mrb[0].mxu0
        %v595 = vadd.f32 %v295, %v594
        %v596 = vpop.f32.mrb[0].mxu0
        %v597 = vadd.f32 %v295, %v596
        %598 = vmatprep.mubr.f32.mxu0 0.0
        %599 = vmatmul.mubr.f32.gmra.mrb[0].mxu0 %v325
        %v600 = vpop.f32.mrb[0].mxu0
        %v601 = vadd.f32 %v300, %v600
        %v602 = vpop.f32.mrb[0].mxu0
        %v603 = vadd.f32 %v300, %v602
        %604 = vmatprep.mubr.f32.mxu0 0.0
        %605 = vmatmul.mubr.f32.gmra.mrb[0].mxu0 %v328
        %v606 = vpop.f32.mrb[0].mxu0
        %v607 = vadd.f32 %v305, %v606
        %v608 = vpop.f32.mrb[0].mxu0
        %v609 = vadd.f32 %v305, %v608
        %610 = vmatprep.mubr.f32.mxu0 0.0
        %611 = vmatmul.mubr.f32.gmra.mrb[0].mxu0 %v331
        %v612 = vpop.f32.mrb[0].mxu0
        %v613 = vadd.f32 %v310, %v612
        %v614 = vpop.f32.mrb[0].mxu0
        %v615 = vadd.f32 %v310, %v614
        %616 = vdwg.mxu0
        %617 = vmatprep.subr.mxu0 %v348
        %618 = vmatpush1.msra.mxu0 %v346
        %619 = vmatprep.subr.mxu0 0.0
        %620 = vmatpush1.msra.mxu0 0.0
        %621 = vmatprep.subr.mxu0 0.0
        %622 = vmatpush1.msra.mxu0 0.0
        %623 = vmatprep.subr.mxu0 0.0
        %624 = vmatpush1.msra.mxu0 0.0
        %625 = vmatprep.subr.mxu0 0.0
        %626 = vmatpush1.msra.mxu0 0.0
        %627 = vmatprep.subr.mxu0 0.0
        %628 = vmatpush1.msra.mxu0 0.0
        %629 = vmatprep.subr.mxu0 0.0
        %630 = vmatpush1.msra.mxu0 0.0
        %631 = vmatprep.subr.mxu0 0.0
        %632 = vmatpush1.msra.mxu0 0.0
        %633 = vmatprep.subr.mxu0 0.0
        %634 = vmatpush1.msra.mxu0 0.0
        %635 = vmatprep.subr.mxu0 0.0
        %636 = vmatpush1.msra.mxu0 0.0
        %637 = vmatprep.subr.mxu0 0.0
        %638 = vmatpush1.msra.mxu0 0.0
        %639 = vmatprep.subr.mxu0 0.0
        %640 = vmatpush1.msra.mxu0 0.0
        %641 = vmatprep.subr.mxu0 0.0
        %642 = vmatpush1.msra.mxu0 0.0
        %643 = vmatprep.subr.mxu0 0.0
        %644 = vmatpush1.msra.mxu0 0.0
        %645 = vmatprep.subr.mxu0 0.0
        %646 = vmatpush1.msra.mxu0 0.0
        %647 = vmatprep.subr.mxu0 0.0
        %648 = vmatpush1.msra.mxu0 0.0
        %649 = vmatprep.subr.mxu0 0.0
        %650 = vmatpush1.msra.mxu0 0.0
        %651 = vmatprep.subr.mxu0 0.0
        %652 = vmatpush1.msra.mxu0 0.0
        %653 = vmatprep.subr.mxu0 0.0
        %654 = vmatpush1.msra.mxu0 0.0
        %655 = vmatprep.subr.mxu0 0.0
        %656 = vmatpush1.msra.mxu0 0.0
        %657 = vmatprep.subr.mxu0 0.0
        %658 = vmatpush1.msra.mxu0 0.0
        %659 = vmatprep.subr.mxu0 0.0
        %660 = vmatpush1.msra.mxu0 0.0
        %661 = vmatprep.subr.mxu0 0.0
        %662 = vmatpush1.msra.mxu0 0.0
        %663 = vmatprep.subr.mxu0 0.0
        %664 = vmatpush1.msra.mxu0 0.0
        %665 = vmatprep.subr.mxu0 0.0
        %666 = vmatpush1.msra.mxu0 0.0
        %667 = vmatprep.subr.mxu0 0.0
        %668 = vmatpush1.msra.mxu0 0.0
        %669 = vmatprep.subr.mxu0 0.0
        %670 = vmatpush1.msra.mxu0 0.0
        %671 = vmatprep.subr.mxu0 0.0
        %672 = vmatpush1.msra.mxu0 0.0
        %673 = vmatprep.subr.mxu0 0.0
        %674 = vmatpush1.msra.mxu0 0.0
        %675 = vmatprep.subr.mxu0 0.0
        %676 = vmatpush1.msra.mxu0 0.0
        %677 = vmatprep.subr.mxu0 0.0
        %678 = vmatpush1.msra.mxu0 0.0
        %679 = vmatprep.subr.mxu0 0.0
        %680 = vmatpush1.msra.mxu0 0.0
        %681 = vmatprep.mubr.f32.mxu0 0.0
        %682 = vmatmul.mubr.f32.gmra.mrb[0].mxu0 %v322
        %v683 = vpop.f32.mrb[0].mxu0
        %v684 = vadd.f32 %v295, %v683
        %v685 = vpop.f32.mrb[0].mxu0
        %v686 = vadd.f32 %v295, %v685
        %687 = vmatprep.mubr.f32.mxu0 0.0
        %688 = vmatmul.mubr.f32.gmra.mrb[0].mxu0 %v325
        %v689 = vpop.f32.mrb[0].mxu0
        %v690 = vadd.f32 %v300, %v689
        %v691 = vpop.f32.mrb[0].mxu0
        %v692 = vadd.f32 %v300, %v691
        %693 = vmatprep.mubr.f32.mxu0 0.0
        %694 = vmatmul.mubr.f32.gmra.mrb[0].mxu0 %v328
        %v695 = vpop.f32.mrb[0].mxu0
        %v696 = vadd.f32 %v305, %v695
        %v697 = vpop.f32.mrb[0].mxu0
        %v698 = vadd.f32 %v305, %v697
        %699 = vmatprep.mubr.f32.mxu0 0.0
        %700 = vmatmul.mubr.f32.gmra.mrb[0].mxu0 %v331
        %v701 = vpop.f32.mrb[0].mxu0
        %v702 = vadd.f32 %v310, %v701
        %v703 = vpop.f32.mrb[0].mxu0
        %v704 = vadd.f32 %v310, %v703
        %705 = vdwg.mxu0
        %v706 = vand.u32 2147483647, %v417
        %vm707 = vcmp.le.f32.partialorder %v706, 0.7853982
        %vm708 = vcmp.lt.s32.totalorder %v417, 0
        %v709 = vand.u32 %v417, 2139095040
        %v710 = vshrl.u32 %v709, 23
        %v711 = vsub.s32 %v710, 127
        %v712 = vand.u32 2147483647, %v417
        %v713 = vand.u32 %v712, 8388607
        %v714 = vor.u32 %v713, 8388608
        %v715 = vsub.s32 0, %v714
        %v716 = vadd.s32 %v711, 1
        %vm717 = vcmp.gt.s32.totalorder %v716, 0
        %v718 = vsel %vm717, %v716, 0
        %v719 = vshrl.u32 %v718, 5
        %v720 = vand.u32 %v718, 31
        %v721 = vsub.s32 32, %v720
        %v722 = vshrl.u32 683565275, %v721
        %v723 = vshll.u32 683565275, %v720
        %v724 = vshrl.u32 2475754826, %v721
        %v725 = vor.u32 %v723, %v724
        %v726 = vshll.u32 2475754826, %v720
        %v727 = vshrl.u32 2131351028, %v721
        %v728 = vor.u32 %v726, %v727
        %v729 = vshll.u32 2131351028, %v720
        %v730 = vshrl.u32 2102212464, %v721
        %v731 = vor.u32 %v729, %v730
        %v732 = vshll.u32 2102212464, %v720
        %v733 = vshrl.u32 920167782, %v721
        %v734 = vor.u32 %v732, %v733
        %v735 = vshll.u32 920167782, %v720
        %v736 = vshrl.u32 1326507024, %v721
        %v737 = vor.u32 %v735, %v736
        %vm738 = vcmp.lt.s32.totalorder %v719, 1
        %vm739 = vcmp.lt.s32.totalorder %v719, 2
        %vm740 = vcmp.lt.s32.totalorder %v719, 3
        %vm741 = vcmp.lt.s32.totalorder %v719, 4
        %v742 = vsel %vm738, %v722, %v725
        %v743 = vsel %vm741, %v731, 2102212464
        %v744 = vsel %vm740, %v728, %v743
        %v745 = vsel %vm739, %v742, %v744
        %v746 = vsel %vm738, %v725, %v728
        %v747 = vsel %vm741, %v734, 920167782
        %v748 = vsel %vm740, %v731, %v747
        %v749 = vsel %vm739, %v746, %v748
        %v750 = vsel %vm738, %v728, %v731
        %v751 = vsel %vm741, %v737, 1326507024
        %v752 = vsel %vm740, %v734, %v751
        %v753 = vsel %vm739, %v750, %v752
        %v754 = vshll.u32 %v714, 8
        %v755 = vmul.u32.u64.compose %v754, %v753
        %v756 = vextract.low.u32 %v755
        %v757 = vextract.high.u32 %v755
        %v758 = vmul.u32.u64.compose %v754, %v749
        %v759 = vextract.low.u32 %v758
        %v760 = vextract.high.u32 %v758
        %v761 = vmul.u32 %v754, %v745
        %v762 = vadd.s32 %v757, %v759
        %vm763 = vc.u32 %v757, %v759
        %v764 = vadd.s32 %v760, 1
        %v765 = vsel %vm763, %v764, %v760
        %v766 = vadd.s32 %v761, %v765
        %v767 = vadd.s32 %v766, 536870912
        %v768 = vshrl.u32 %v767, 30
        %v769 = vshll.u32 %v768, 30
        %v770 = vsub.s32 %v766, %v769
        %vm771 = vcmp.lt.s32.totalorder %v770, 0
        %v772 = vsub.s32 0, %v770
        %v773 = vsel %vm771, %v772, %v770
        %v774 = vclz %v773
        %v775 = vsub.s32 %v774, 2
        %vm776 = vcmp.gt.s32.totalorder 0, %v775
        %v777 = vsel %vm776, 0, %v775
        %v778 = vsub.s32 32, %v777
        %v779 = vshll.u32 %v770, %v777
        %v780 = vshrl.u32 %v762, %v778
        %v781 = vor.u32 %v779, %v780
        %v782 = vsub.s32 4294967266, %v777
        %v783 = vadd.s32 %v782, 127
        %v784 = vshll.u32 %v783, 23
        %v785 = vor.u32 4788187, %v784
        %v786 = vand.u32 2147483647, %v785
        %v788 = vcvt.s32.f32 %v781
        %v789 = vmul.f32 %v788, %v786
        %v790 = vxor.u32 %v789, 2147483648
        %v791 = vsel %vm708, %v790, %v789
        %v792 = vsub.s32 4, %v768
        %v793 = vsel %vm708, %v792, %v768
        %v794 = vsel %vm707, %v417, %v791
        %v795 = vsel %vm707, 0, %v793
        %v796 = vcosq.f32.pop %v794
        %v797 = vsinq.f32.pop %v794
        %vm798 = vweird.f32 %v417
        %v799 = vadd.s32 %v795, 3
        %v800 = vand.u32 %v799, 3
        %vm801 = vcmp.lt.s32.totalorder %v800, 2
        %vm802 = vcmp.eq.s32.totalorder %v800, 0
        %v803 = vxor.u32 %v797, 2147483648
        %v804 = vsel %vm802, %v796, %v803
        %vm805 = vcmp.eq.s32.totalorder %v800, 2
        %v806 = vxor.u32 %v796, 2147483648
        %v807 = vsel %vm805, %v806, %v797
        %v808 = vsel %vm801, %v804, %v807
        %v809 = vsel %vm798, nan, %v808
        %v810 = vand.u32 2147483647, %v419
        %vm811 = vcmp.le.f32.partialorder %v810, 0.7853982
        %vm812 = vcmp.lt.s32.totalorder %v419, 0
        %v813 = vand.u32 %v419, 2139095040
        %v814 = vshrl.u32 %v813, 23
        %v815 = vsub.s32 %v814, 127
        %v816 = vand.u32 2147483647, %v419
        %v817 = vand.u32 %v816, 8388607
        %v818 = vor.u32 %v817, 8388608
        %v819 = vsub.s32 0, %v818
        %v820 = vadd.s32 %v815, 1
        %vm821 = vcmp.gt.s32.totalorder %v820, 0
        %v822 = vsel %vm821, %v820, 0
        %v823 = vshrl.u32 %v822, 5
        %v824 = vand.u32 %v822, 31
        %v825 = vsub.s32 32, %v824
        %v826 = vshrl.u32 683565275, %v825
        %v827 = vshll.u32 683565275, %v824
        %v828 = vshrl.u32 2475754826, %v825
        %v829 = vor.u32 %v827, %v828
        %v830 = vshll.u32 2475754826, %v824
        %v831 = vshrl.u32 2131351028, %v825
        %v832 = vor.u32 %v830, %v831
        %v833 = vshll.u32 2131351028, %v824
        %v834 = vshrl.u32 2102212464, %v825
        %v835 = vor.u32 %v833, %v834
        %v836 = vshll.u32 2102212464, %v824
        %v837 = vshrl.u32 920167782, %v825
        %v838 = vor.u32 %v836, %v837
        %v839 = vshll.u32 920167782, %v824
        %v840 = vshrl.u32 1326507024, %v825
        %v841 = vor.u32 %v839, %v840
        %vm842 = vcmp.lt.s32.totalorder %v823, 1
        %vm843 = vcmp.lt.s32.totalorder %v823, 2
        %vm844 = vcmp.lt.s32.totalorder %v823, 3
        %vm845 = vcmp.lt.s32.totalorder %v823, 4
        %v846 = vsel %vm842, %v826, %v829
        %v847 = vsel %vm845, %v835, 2102212464
        %v848 = vsel %vm844, %v832, %v847
        %v849 = vsel %vm843, %v846, %v848
        %v850 = vsel %vm842, %v829, %v832
        %v851 = vsel %vm845, %v838, 920167782
        %v852 = vsel %vm844, %v835, %v851
        %v853 = vsel %vm843, %v850, %v852
        %v854 = vsel %vm842, %v832, %v835
        %v855 = vsel %vm845, %v841, 1326507024
        %v856 = vsel %vm844, %v838, %v855
        %v857 = vsel %vm843, %v854, %v856
        %v858 = vshll.u32 %v818, 8
        %v859 = vmul.u32.u64.compose %v858, %v857
        %v860 = vextract.low.u32 %v859
        %v861 = vextract.high.u32 %v859
        %v862 = vmul.u32.u64.compose %v858, %v853
        %v863 = vextract.low.u32 %v862
        %v864 = vextract.high.u32 %v862
        %v865 = vmul.u32 %v858, %v849
        %v866 = vadd.s32 %v861, %v863
        %vm867 = vc.u32 %v861, %v863
        %v868 = vadd.s32 %v864, 1
        %v869 = vsel %vm867, %v868, %v864
        %v870 = vadd.s32 %v865, %v869
        %v871 = vadd.s32 %v870, 536870912
        %v872 = vshrl.u32 %v871, 30
        %v873 = vshll.u32 %v872, 30
        %v874 = vsub.s32 %v870, %v873
        %vm875 = vcmp.lt.s32.totalorder %v874, 0
        %v876 = vsub.s32 0, %v874
        %v877 = vsel %vm875, %v876, %v874
        %v878 = vclz %v877
        %v879 = vsub.s32 %v878, 2
        %vm880 = vcmp.gt.s32.totalorder 0, %v879
        %v881 = vsel %vm880, 0, %v879
        %v882 = vsub.s32 32, %v881
        %v883 = vshll.u32 %v874, %v881
        %v884 = vshrl.u32 %v866, %v882
        %v885 = vor.u32 %v883, %v884
        %v886 = vsub.s32 4294967266, %v881
        %v887 = vadd.s32 %v886, 127
        %v888 = vshll.u32 %v887, 23
        %v889 = vor.u32 4788187, %v888
        %v890 = vand.u32 2147483647, %v889
        %v892 = vcvt.s32.f32 %v885
        %v893 = vmul.f32 %v892, %v890
        %v894 = vxor.u32 %v893, 2147483648
        %v895 = vsel %vm812, %v894, %v893
        %v896 = vsub.s32 4, %v872
        %v897 = vsel %vm812, %v896, %v872
        %v898 = vsel %vm811, %v419, %v895
        %v899 = vsel %vm811, 0, %v897
        %v900 = vcosq.f32.pop %v898
        %v901 = vsinq.f32.pop %v898
        %vm902 = vweird.f32 %v419
        %v903 = vadd.s32 %v899, 3
        %v904 = vand.u32 %v903, 3
        %vm905 = vcmp.lt.s32.totalorder %v904, 2
        %vm906 = vcmp.eq.s32.totalorder %v904, 0
        %v907 = vxor.u32 %v901, 2147483648
        %v908 = vsel %vm906, %v900, %v907
        %vm909 = vcmp.eq.s32.totalorder %v904, 2
        %v910 = vxor.u32 %v900, 2147483648
        %v911 = vsel %vm909, %v910, %v901
        %v912 = vsel %vm905, %v908, %v911
        %v913 = vsel %vm902, nan, %v912
        %v914 = vand.u32 2147483647, %v506
        %vm915 = vcmp.le.f32.partialorder %v914, 0.7853982
        %vm916 = vcmp.lt.s32.totalorder %v506, 0
        %v917 = vand.u32 %v506, 2139095040
        %v918 = vshrl.u32 %v917, 23
        %v919 = vsub.s32 %v918, 127
        %v920 = vand.u32 2147483647, %v506
        %v921 = vand.u32 %v920, 8388607
        %v922 = vor.u32 %v921, 8388608
        %v923 = vsub.s32 0, %v922
        %v924 = vadd.s32 %v919, 1
        %vm925 = vcmp.gt.s32.totalorder %v924, 0
        %v926 = vsel %vm925, %v924, 0
        %v927 = vshrl.u32 %v926, 5
        %v928 = vand.u32 %v926, 31
        %v929 = vsub.s32 32, %v928
        %v930 = vshrl.u32 683565275, %v929
        %v931 = vshll.u32 683565275, %v928
        %v932 = vshrl.u32 2475754826, %v929
        %v933 = vor.u32 %v931, %v932
        %v934 = vshll.u32 2475754826, %v928
        %v935 = vshrl.u32 2131351028, %v929
        %v936 = vor.u32 %v934, %v935
        %v937 = vshll.u32 2131351028, %v928
        %v938 = vshrl.u32 2102212464, %v929
        %v939 = vor.u32 %v937, %v938
        %v940 = vshll.u32 2102212464, %v928
        %v941 = vshrl.u32 920167782, %v929
        %v942 = vor.u32 %v940, %v941
        %v943 = vshll.u32 920167782, %v928
        %v944 = vshrl.u32 1326507024, %v929
        %v945 = vor.u32 %v943, %v944
        %vm946 = vcmp.lt.s32.totalorder %v927, 1
        %vm947 = vcmp.lt.s32.totalorder %v927, 2
        %vm948 = vcmp.lt.s32.totalorder %v927, 3
        %vm949 = vcmp.lt.s32.totalorder %v927, 4
        %v950 = vsel %vm946, %v930, %v933
        %v951 = vsel %vm949, %v939, 2102212464
        %v952 = vsel %vm948, %v936, %v951
        %v953 = vsel %vm947, %v950, %v952
        %v954 = vsel %vm946, %v933, %v936
        %v955 = vsel %vm949, %v942, 920167782
        %v956 = vsel %vm948, %v939, %v955
        %v957 = vsel %vm947, %v954, %v956
        %v958 = vsel %vm946, %v936, %v939
        %v959 = vsel %vm949, %v945, 1326507024
        %v960 = vsel %vm948, %v942, %v959
        %v961 = vsel %vm947, %v958, %v960
        %v962 = vshll.u32 %v922, 8
        %v963 = vmul.u32.u64.compose %v962, %v961
        %v964 = vextract.low.u32 %v963
        %v965 = vextract.high.u32 %v963
        %v966 = vmul.u32.u64.compose %v962, %v957
        %v967 = vextract.low.u32 %v966
        %v968 = vextract.high.u32 %v966
        %v969 = vmul.u32 %v962, %v953
        %v970 = vadd.s32 %v965, %v967
        %vm971 = vc.u32 %v965, %v967
        %v972 = vadd.s32 %v968, 1
        %v973 = vsel %vm971, %v972, %v968
        %v974 = vadd.s32 %v969, %v973
        %v975 = vadd.s32 %v974, 536870912
        %v976 = vshrl.u32 %v975, 30
        %v977 = vshll.u32 %v976, 30
        %v978 = vsub.s32 %v974, %v977
        %vm979 = vcmp.lt.s32.totalorder %v978, 0
        %v980 = vsub.s32 0, %v978
        %v981 = vsel %vm979, %v980, %v978
        %v982 = vclz %v981
        %v983 = vsub.s32 %v982, 2
        %vm984 = vcmp.gt.s32.totalorder 0, %v983
        %v985 = vsel %vm984, 0, %v983
        %v986 = vsub.s32 32, %v985
        %v987 = vshll.u32 %v978, %v985
        %v988 = vshrl.u32 %v970, %v986
        %v989 = vor.u32 %v987, %v988
        %v990 = vsub.s32 4294967266, %v985
        %v991 = vadd.s32 %v990, 127
        %v992 = vshll.u32 %v991, 23
        %v993 = vor.u32 4788187, %v992
        %v994 = vand.u32 2147483647, %v993
        %v996 = vcvt.s32.f32 %v989
        %v997 = vmul.f32 %v996, %v994
        %v998 = vxor.u32 %v997, 2147483648
        %v999 = vsel %vm916, %v998, %v997
        %v1000 = vsub.s32 4, %v976
        %v1001 = vsel %vm916, %v1000, %v976
        %v1002 = vsel %vm915, %v506, %v999
        %v1003 = vsel %vm915, 0, %v1001
        %v1004 = vcosq.f32.pop %v1002
        %v1005 = vsinq.f32.pop %v1002
        %vm1006 = vweird.f32 %v506
        %v1007 = vadd.s32 %v1003, 3
        %v1008 = vand.u32 %v1007, 3
        %vm1009 = vcmp.lt.s32.totalorder %v1008, 2
        %vm1010 = vcmp.eq.s32.totalorder %v1008, 0
        %v1011 = vxor.u32 %v1005, 2147483648
        %v1012 = vsel %vm1010, %v1004, %v1011
        %vm1013 = vcmp.eq.s32.totalorder %v1008, 2
        %v1014 = vxor.u32 %v1004, 2147483648
        %v1015 = vsel %vm1013, %v1014, %v1005
        %v1016 = vsel %vm1009, %v1012, %v1015
        %v1017 = vsel %vm1006, nan, %v1016
        %v1018 = vand.u32 2147483647, %v508
        %vm1019 = vcmp.le.f32.partialorder %v1018, 0.7853982
        %vm1020 = vcmp.lt.s32.totalorder %v508, 0
        %v1021 = vand.u32 %v508, 2139095040
        %v1022 = vshrl.u32 %v1021, 23
        %v1023 = vsub.s32 %v1022, 127
        %v1024 = vand.u32 2147483647, %v508
        %v1025 = vand.u32 %v1024, 8388607
        %v1026 = vor.u32 %v1025, 8388608
        %v1027 = vsub.s32 0, %v1026
        %v1028 = vadd.s32 %v1023, 1
        %vm1029 = vcmp.gt.s32.totalorder %v1028, 0
        %v1030 = vsel %vm1029, %v1028, 0
        %v1031 = vshrl.u32 %v1030, 5
        %v1032 = vand.u32 %v1030, 31
        %v1033 = vsub.s32 32, %v1032
        %v1034 = vshrl.u32 683565275, %v1033
        %v1035 = vshll.u32 683565275, %v1032
        %v1036 = vshrl.u32 2475754826, %v1033
        %v1037 = vor.u32 %v1035, %v1036
        %v1038 = vshll.u32 2475754826, %v1032
        %v1039 = vshrl.u32 2131351028, %v1033
        %v1040 = vor.u32 %v1038, %v1039
        %v1041 = vshll.u32 2131351028, %v1032
        %v1042 = vshrl.u32 2102212464, %v1033
        %v1043 = vor.u32 %v1041, %v1042
        %v1044 = vshll.u32 2102212464, %v1032
        %v1045 = vshrl.u32 920167782, %v1033
        %v1046 = vor.u32 %v1044, %v1045
        %v1047 = vshll.u32 920167782, %v1032
        %v1048 = vshrl.u32 1326507024, %v1033
        %v1049 = vor.u32 %v1047, %v1048
        %vm1050 = vcmp.lt.s32.totalorder %v1031, 1
        %vm1051 = vcmp.lt.s32.totalorder %v1031, 2
        %vm1052 = vcmp.lt.s32.totalorder %v1031, 3
        %vm1053 = vcmp.lt.s32.totalorder %v1031, 4
        %v1054 = vsel %vm1050, %v1034, %v1037
        %v1055 = vsel %vm1053, %v1043, 2102212464
        %v1056 = vsel %vm1052, %v1040, %v1055
        %v1057 = vsel %vm1051, %v1054, %v1056
        %v1058 = vsel %vm1050, %v1037, %v1040
        %v1059 = vsel %vm1053, %v1046, 920167782
        %v1060 = vsel %vm1052, %v1043, %v1059
        %v1061 = vsel %vm1051, %v1058, %v1060
        %v1062 = vsel %vm1050, %v1040, %v1043
        %v1063 = vsel %vm1053, %v1049, 1326507024
        %v1064 = vsel %vm1052, %v1046, %v1063
        %v1065 = vsel %vm1051, %v1062, %v1064
        %v1066 = vshll.u32 %v1026, 8
        %v1067 = vmul.u32.u64.compose %v1066, %v1065
        %v1068 = vextract.low.u32 %v1067
        %v1069 = vextract.high.u32 %v1067
        %v1070 = vmul.u32.u64.compose %v1066, %v1061
        %v1071 = vextract.low.u32 %v1070
        %v1072 = vextract.high.u32 %v1070
        %v1073 = vmul.u32 %v1066, %v1057
        %v1074 = vadd.s32 %v1069, %v1071
        %vm1075 = vc.u32 %v1069, %v1071
        %v1076 = vadd.s32 %v1072, 1
        %v1077 = vsel %vm1075, %v1076, %v1072
        %v1078 = vadd.s32 %v1073, %v1077
        %v1079 = vadd.s32 %v1078, 536870912
        %v1080 = vshrl.u32 %v1079, 30
        %v1081 = vshll.u32 %v1080, 30
        %v1082 = vsub.s32 %v1078, %v1081
        %vm1083 = vcmp.lt.s32.totalorder %v1082, 0
        %v1084 = vsub.s32 0, %v1082
        %v1085 = vsel %vm1083, %v1084, %v1082
        %v1086 = vclz %v1085
        %v1087 = vsub.s32 %v1086, 2
        %vm1088 = vcmp.gt.s32.totalorder 0, %v1087
        %v1089 = vsel %vm1088, 0, %v1087
        %v1090 = vsub.s32 32, %v1089
        %v1091 = vshll.u32 %v1082, %v1089
        %v1092 = vshrl.u32 %v1074, %v1090
        %v1093 = vor.u32 %v1091, %v1092
        %v1094 = vsub.s32 4294967266, %v1089
        %v1095 = vadd.s32 %v1094, 127
        %v1096 = vshll.u32 %v1095, 23
        %v1097 = vor.u32 4788187, %v1096
        %v1098 = vand.u32 2147483647, %v1097
        %v1100 = vcvt.s32.f32 %v1093
        %v1101 = vmul.f32 %v1100, %v1098
        %v1102 = vxor.u32 %v1101, 2147483648
        %v1103 = vsel %vm1020, %v1102, %v1101
        %v1104 = vsub.s32 4, %v1080
        %v1105 = vsel %vm1020, %v1104, %v1080
        %v1106 = vsel %vm1019, %v508, %v1103
        %v1107 = vsel %vm1019, 0, %v1105
        %v1108 = vcosq.f32.pop %v1106
        %v1109 = vsinq.f32.pop %v1106
        %vm1110 = vweird.f32 %v508
        %v1111 = vadd.s32 %v1107, 3
        %v1112 = vand.u32 %v1111, 3
        %vm1113 = vcmp.lt.s32.totalorder %v1112, 2
        %vm1114 = vcmp.eq.s32.totalorder %v1112, 0
        %v1115 = vxor.u32 %v1109, 2147483648
        %v1116 = vsel %vm1114, %v1108, %v1115
        %vm1117 = vcmp.eq.s32.totalorder %v1112, 2
        %v1118 = vxor.u32 %v1108, 2147483648
        %v1119 = vsel %vm1117, %v1118, %v1109
        %v1120 = vsel %vm1113, %v1116, %v1119
        %v1121 = vsel %vm1110, nan, %v1120
        %v1122 = vand.u32 2147483647, %v595
        %vm1123 = vcmp.le.f32.partialorder %v1122, 0.7853982
        %vm1124 = vcmp.lt.s32.totalorder %v595, 0
        %v1125 = vand.u32 %v595, 2139095040
        %v1126 = vshrl.u32 %v1125, 23
        %v1127 = vsub.s32 %v1126, 127
        %v1128 = vand.u32 2147483647, %v595
        %v1129 = vand.u32 %v1128, 8388607
        %v1130 = vor.u32 %v1129, 8388608
        %v1131 = vsub.s32 0, %v1130
        %v1132 = vadd.s32 %v1127, 1
        %vm1133 = vcmp.gt.s32.totalorder %v1132, 0
        %v1134 = vsel %vm1133, %v1132, 0
        %v1135 = vshrl.u32 %v1134, 5
        %v1136 = vand.u32 %v1134, 31
        %v1137 = vsub.s32 32, %v1136
        %v1138 = vshrl.u32 683565275, %v1137
        %v1139 = vshll.u32 683565275, %v1136
        %v1140 = vshrl.u32 2475754826, %v1137
        %v1141 = vor.u32 %v1139, %v1140
        %v1142 = vshll.u32 2475754826, %v1136
        %v1143 = vshrl.u32 2131351028, %v1137
        %v1144 = vor.u32 %v1142, %v1143
        %v1145 = vshll.u32 2131351028, %v1136
        %v1146 = vshrl.u32 2102212464, %v1137
        %v1147 = vor.u32 %v1145, %v1146
        %v1148 = vshll.u32 2102212464, %v1136
        %v1149 = vshrl.u32 920167782, %v1137
        %v1150 = vor.u32 %v1148, %v1149
        %v1151 = vshll.u32 920167782, %v1136
        %v1152 = vshrl.u32 1326507024, %v1137
        %v1153 = vor.u32 %v1151, %v1152
        %vm1154 = vcmp.lt.s32.totalorder %v1135, 1
        %vm1155 = vcmp.lt.s32.totalorder %v1135, 2
        %vm1156 = vcmp.lt.s32.totalorder %v1135, 3
        %vm1157 = vcmp.lt.s32.totalorder %v1135, 4
        %v1158 = vsel %vm1154, %v1138, %v1141
        %v1159 = vsel %vm1157, %v1147, 2102212464
        %v1160 = vsel %vm1156, %v1144, %v1159
        %v1161 = vsel %vm1155, %v1158, %v1160
        %v1162 = vsel %vm1154, %v1141, %v1144
        %v1163 = vsel %vm1157, %v1150, 920167782
        %v1164 = vsel %vm1156, %v1147, %v1163
        %v1165 = vsel %vm1155, %v1162, %v1164
        %v1166 = vsel %vm1154, %v1144, %v1147
        %v1167 = vsel %vm1157, %v1153, 1326507024
        %v1168 = vsel %vm1156, %v1150, %v1167
        %v1169 = vsel %vm1155, %v1166, %v1168
        %v1170 = vshll.u32 %v1130, 8
        %v1171 = vmul.u32.u64.compose %v1170, %v1169
        %v1172 = vextract.low.u32 %v1171
        %v1173 = vextract.high.u32 %v1171
        %v1174 = vmul.u32.u64.compose %v1170, %v1165
        %v1175 = vextract.low.u32 %v1174
        %v1176 = vextract.high.u32 %v1174
        %v1177 = vmul.u32 %v1170, %v1161
        %v1178 = vadd.s32 %v1173, %v1175
        %vm1179 = vc.u32 %v1173, %v1175
        %v1180 = vadd.s32 %v1176, 1
        %v1181 = vsel %vm1179, %v1180, %v1176
        %v1182 = vadd.s32 %v1177, %v1181
        %v1183 = vadd.s32 %v1182, 536870912
        %v1184 = vshrl.u32 %v1183, 30
        %v1185 = vshll.u32 %v1184, 30
        %v1186 = vsub.s32 %v1182, %v1185
        %vm1187 = vcmp.lt.s32.totalorder %v1186, 0
        %v1188 = vsub.s32 0, %v1186
        %v1189 = vsel %vm1187, %v1188, %v1186
        %v1190 = vclz %v1189
        %v1191 = vsub.s32 %v1190, 2
        %vm1192 = vcmp.gt.s32.totalorder 0, %v1191
        %v1193 = vsel %vm1192, 0, %v1191
        %v1194 = vsub.s32 32, %v1193
        %v1195 = vshll.u32 %v1186, %v1193
        %v1196 = vshrl.u32 %v1178, %v1194
        %v1197 = vor.u32 %v1195, %v1196
        %v1198 = vsub.s32 4294967266, %v1193
        %v1199 = vadd.s32 %v1198, 127
        %v1200 = vshll.u32 %v1199, 23
        %v1201 = vor.u32 4788187, %v1200
        %v1202 = vand.u32 2147483647, %v1201
        %v1204 = vcvt.s32.f32 %v1197
        %v1205 = vmul.f32 %v1204, %v1202
        %v1206 = vxor.u32 %v1205, 2147483648
        %v1207 = vsel %vm1124, %v1206, %v1205
        %v1208 = vsub.s32 4, %v1184
        %v1209 = vsel %vm1124, %v1208, %v1184
        %v1210 = vsel %vm1123, %v595, %v1207
        %v1211 = vsel %vm1123, 0, %v1209
        %v1212 = vcosq.f32.pop %v1210
        %v1213 = vsinq.f32.pop %v1210
        %vm1214 = vweird.f32 %v595
        %v1215 = vadd.s32 %v1211, 3
        %v1216 = vand.u32 %v1215, 3
        %vm1217 = vcmp.lt.s32.totalorder %v1216, 2
        %vm1218 = vcmp.eq.s32.totalorder %v1216, 0
        %v1219 = vxor.u32 %v1213, 2147483648
        %v1220 = vsel %vm1218, %v1212, %v1219
        %vm1221 = vcmp.eq.s32.totalorder %v1216, 2
        %v1222 = vxor.u32 %v1212, 2147483648
        %v1223 = vsel %vm1221, %v1222, %v1213
        %v1224 = vsel %vm1217, %v1220, %v1223
        %v1225 = vsel %vm1214, nan, %v1224
        %v1226 = vand.u32 2147483647, %v597
        %vm1227 = vcmp.le.f32.partialorder %v1226, 0.7853982
        %vm1228 = vcmp.lt.s32.totalorder %v597, 0
        %v1229 = vand.u32 %v597, 2139095040
        %v1230 = vshrl.u32 %v1229, 23
        %v1231 = vsub.s32 %v1230, 127
        %v1232 = vand.u32 2147483647, %v597
        %v1233 = vand.u32 %v1232, 8388607
        %v1234 = vor.u32 %v1233, 8388608
        %v1235 = vsub.s32 0, %v1234
        %v1236 = vadd.s32 %v1231, 1
        %vm1237 = vcmp.gt.s32.totalorder %v1236, 0
        %v1238 = vsel %vm1237, %v1236, 0
        %v1239 = vshrl.u32 %v1238, 5
        %v1240 = vand.u32 %v1238, 31
        %v1241 = vsub.s32 32, %v1240
        %v1242 = vshrl.u32 683565275, %v1241
        %v1243 = vshll.u32 683565275, %v1240
        %v1244 = vshrl.u32 2475754826, %v1241
        %v1245 = vor.u32 %v1243, %v1244
        %v1246 = vshll.u32 2475754826, %v1240
        %v1247 = vshrl.u32 2131351028, %v1241
        %v1248 = vor.u32 %v1246, %v1247
        %v1249 = vshll.u32 2131351028, %v1240
        %v1250 = vshrl.u32 2102212464, %v1241
        %v1251 = vor.u32 %v1249, %v1250
        %v1252 = vshll.u32 2102212464, %v1240
        %v1253 = vshrl.u32 920167782, %v1241
        %v1254 = vor.u32 %v1252, %v1253
        %v1255 = vshll.u32 920167782, %v1240
        %v1256 = vshrl.u32 1326507024, %v1241
        %v1257 = vor.u32 %v1255, %v1256
        %vm1258 = vcmp.lt.s32.totalorder %v1239, 1
        %vm1259 = vcmp.lt.s32.totalorder %v1239, 2
        %vm1260 = vcmp.lt.s32.totalorder %v1239, 3
        %vm1261 = vcmp.lt.s32.totalorder %v1239, 4
        %v1262 = vsel %vm1258, %v1242, %v1245
        %v1263 = vsel %vm1261, %v1251, 2102212464
        %v1264 = vsel %vm1260, %v1248, %v1263
        %v1265 = vsel %vm1259, %v1262, %v1264
        %v1266 = vsel %vm1258, %v1245, %v1248
        %v1267 = vsel %vm1261, %v1254, 920167782
        %v1268 = vsel %vm1260, %v1251, %v1267
        %v1269 = vsel %vm1259, %v1266, %v1268
        %v1270 = vsel %vm1258, %v1248, %v1251
        %v1271 = vsel %vm1261, %v1257, 1326507024
        %v1272 = vsel %vm1260, %v1254, %v1271
        %v1273 = vsel %vm1259, %v1270, %v1272
        %v1274 = vshll.u32 %v1234, 8
        %v1275 = vmul.u32.u64.compose %v1274, %v1273
        %v1276 = vextract.low.u32 %v1275
        %v1277 = vextract.high.u32 %v1275
        %v1278 = vmul.u32.u64.compose %v1274, %v1269
        %v1279 = vextract.low.u32 %v1278
        %v1280 = vextract.high.u32 %v1278
        %v1281 = vmul.u32 %v1274, %v1265
        %v1282 = vadd.s32 %v1277, %v1279
        %vm1283 = vc.u32 %v1277, %v1279
        %v1284 = vadd.s32 %v1280, 1
        %v1285 = vsel %vm1283, %v1284, %v1280
        %v1286 = vadd.s32 %v1281, %v1285
        %v1287 = vadd.s32 %v1286, 536870912
        %v1288 = vshrl.u32 %v1287, 30
        %v1289 = vshll.u32 %v1288, 30
        %v1290 = vsub.s32 %v1286, %v1289
        %vm1291 = vcmp.lt.s32.totalorder %v1290, 0
        %v1292 = vsub.s32 0, %v1290
        %v1293 = vsel %vm1291, %v1292, %v1290
        %v1294 = vclz %v1293
        %v1295 = vsub.s32 %v1294, 2
        %vm1296 = vcmp.gt.s32.totalorder 0, %v1295
        %v1297 = vsel %vm1296, 0, %v1295
        %v1298 = vsub.s32 32, %v1297
        %v1299 = vshll.u32 %v1290, %v1297
        %v1300 = vshrl.u32 %v1282, %v1298
        %v1301 = vor.u32 %v1299, %v1300
        %v1302 = vsub.s32 4294967266, %v1297
        %v1303 = vadd.s32 %v1302, 127
        %v1304 = vshll.u32 %v1303, 23
        %v1305 = vor.u32 4788187, %v1304
        %v1306 = vand.u32 2147483647, %v1305
        %v1308 = vcvt.s32.f32 %v1301
        %v1309 = vmul.f32 %v1308, %v1306
        %v1310 = vxor.u32 %v1309, 2147483648
        %v1311 = vsel %vm1228, %v1310, %v1309
        %v1312 = vsub.s32 4, %v1288
        %v1313 = vsel %vm1228, %v1312, %v1288
        %v1314 = vsel %vm1227, %v597, %v1311
        %v1315 = vsel %vm1227, 0, %v1313
        %v1316 = vcosq.f32.pop %v1314
        %v1317 = vsinq.f32.pop %v1314
        %vm1318 = vweird.f32 %v597
        %v1319 = vadd.s32 %v1315, 3
        %v1320 = vand.u32 %v1319, 3
        %vm1321 = vcmp.lt.s32.totalorder %v1320, 2
        %vm1322 = vcmp.eq.s32.totalorder %v1320, 0
        %v1323 = vxor.u32 %v1317, 2147483648
        %v1324 = vsel %vm1322, %v1316, %v1323
        %vm1325 = vcmp.eq.s32.totalorder %v1320, 2
        %v1326 = vxor.u32 %v1316, 2147483648
        %v1327 = vsel %vm1325, %v1326, %v1317
        %v1328 = vsel %vm1321, %v1324, %v1327
        %v1329 = vsel %vm1318, nan, %v1328
        %v1330 = vand.u32 2147483647, %v684
        %vm1331 = vcmp.le.f32.partialorder %v1330, 0.7853982
        %vm1332 = vcmp.lt.s32.totalorder %v684, 0
        %v1333 = vand.u32 %v684, 2139095040
        %v1334 = vshrl.u32 %v1333, 23
        %v1335 = vsub.s32 %v1334, 127
        %v1336 = vand.u32 2147483647, %v684
        %v1337 = vand.u32 %v1336, 8388607
        %v1338 = vor.u32 %v1337, 8388608
        %v1339 = vsub.s32 0, %v1338
        %v1340 = vadd.s32 %v1335, 1
        %vm1341 = vcmp.gt.s32.totalorder %v1340, 0
        %v1342 = vsel %vm1341, %v1340, 0
        %v1343 = vshrl.u32 %v1342, 5
        %v1344 = vand.u32 %v1342, 31
        %v1345 = vsub.s32 32, %v1344
        %v1346 = vshrl.u32 683565275, %v1345
        %v1347 = vshll.u32 683565275, %v1344
        %v1348 = vshrl.u32 2475754826, %v1345
        %v1349 = vor.u32 %v1347, %v1348
        %v1350 = vshll.u32 2475754826, %v1344
        %v1351 = vshrl.u32 2131351028, %v1345
        %v1352 = vor.u32 %v1350, %v1351
        %v1353 = vshll.u32 2131351028, %v1344
        %v1354 = vshrl.u32 2102212464, %v1345
        %v1355 = vor.u32 %v1353, %v1354
        %v1356 = vshll.u32 2102212464, %v1344
        %v1357 = vshrl.u32 920167782, %v1345
        %v1358 = vor.u32 %v1356, %v1357
        %v1359 = vshll.u32 920167782, %v1344
        %v1360 = vshrl.u32 1326507024, %v1345
        %v1361 = vor.u32 %v1359, %v1360
        %vm1362 = vcmp.lt.s32.totalorder %v1343, 1
        %vm1363 = vcmp.lt.s32.totalorder %v1343, 2
        %vm1364 = vcmp.lt.s32.totalorder %v1343, 3
        %vm1365 = vcmp.lt.s32.totalorder %v1343, 4
        %v1366 = vsel %vm1362, %v1346, %v1349
        %v1367 = vsel %vm1365, %v1355, 2102212464
        %v1368 = vsel %vm1364, %v1352, %v1367
        %v1369 = vsel %vm1363, %v1366, %v1368
        %v1370 = vsel %vm1362, %v1349, %v1352
        %v1371 = vsel %vm1365, %v1358, 920167782
        %v1372 = vsel %vm1364, %v1355, %v1371
        %v1373 = vsel %vm1363, %v1370, %v1372
        %v1374 = vsel %vm1362, %v1352, %v1355
        %v1375 = vsel %vm1365, %v1361, 1326507024
        %v1376 = vsel %vm1364, %v1358, %v1375
        %v1377 = vsel %vm1363, %v1374, %v1376
        %v1378 = vshll.u32 %v1338, 8
        %v1379 = vmul.u32.u64.compose %v1378, %v1377
        %v1380 = vextract.low.u32 %v1379
        %v1381 = vextract.high.u32 %v1379
        %v1382 = vmul.u32.u64.compose %v1378, %v1373
        %v1383 = vextract.low.u32 %v1382
        %v1384 = vextract.high.u32 %v1382
        %v1385 = vmul.u32 %v1378, %v1369
        %v1386 = vadd.s32 %v1381, %v1383
        %vm1387 = vc.u32 %v1381, %v1383
        %v1388 = vadd.s32 %v1384, 1
        %v1389 = vsel %vm1387, %v1388, %v1384
        %v1390 = vadd.s32 %v1385, %v1389
        %v1391 = vadd.s32 %v1390, 536870912
        %v1392 = vshrl.u32 %v1391, 30
        %v1393 = vshll.u32 %v1392, 30
        %v1394 = vsub.s32 %v1390, %v1393
        %vm1395 = vcmp.lt.s32.totalorder %v1394, 0
        %v1396 = vsub.s32 0, %v1394
        %v1397 = vsel %vm1395, %v1396, %v1394
        %v1398 = vclz %v1397
        %v1399 = vsub.s32 %v1398, 2
        %vm1400 = vcmp.gt.s32.totalorder 0, %v1399
        %v1401 = vsel %vm1400, 0, %v1399
        %v1402 = vsub.s32 32, %v1401
        %v1403 = vshll.u32 %v1394, %v1401
        %v1404 = vshrl.u32 %v1386, %v1402
        %v1405 = vor.u32 %v1403, %v1404
        %v1406 = vsub.s32 4294967266, %v1401
        %v1407 = vadd.s32 %v1406, 127
        %v1408 = vshll.u32 %v1407, 23
        %v1409 = vor.u32 4788187, %v1408
        %v1410 = vand.u32 2147483647, %v1409
        %v1412 = vcvt.s32.f32 %v1405
        %v1413 = vmul.f32 %v1412, %v1410
        %v1414 = vxor.u32 %v1413, 2147483648
        %v1415 = vsel %vm1332, %v1414, %v1413
        %v1416 = vsub.s32 4, %v1392
        %v1417 = vsel %vm1332, %v1416, %v1392
        %v1418 = vsel %vm1331, %v684, %v1415
        %v1419 = vsel %vm1331, 0, %v1417
        %v1420 = vcosq.f32.pop %v1418
        %v1421 = vsinq.f32.pop %v1418
        %vm1422 = vweird.f32 %v684
        %v1423 = vadd.s32 %v1419, 3
        %v1424 = vand.u32 %v1423, 3
        %vm1425 = vcmp.lt.s32.totalorder %v1424, 2
        %vm1426 = vcmp.eq.s32.totalorder %v1424, 0
        %v1427 = vxor.u32 %v1421, 2147483648
        %v1428 = vsel %vm1426, %v1420, %v1427
        %vm1429 = vcmp.eq.s32.totalorder %v1424, 2
        %v1430 = vxor.u32 %v1420, 2147483648
        %v1431 = vsel %vm1429, %v1430, %v1421
        %v1432 = vsel %vm1425, %v1428, %v1431
        %v1433 = vsel %vm1422, nan, %v1432
        %v1434 = vand.u32 2147483647, %v686
        %vm1435 = vcmp.le.f32.partialorder %v1434, 0.7853982
        %vm1436 = vcmp.lt.s32.totalorder %v686, 0
        %v1437 = vand.u32 %v686, 2139095040
        %v1438 = vshrl.u32 %v1437, 23
        %v1439 = vsub.s32 %v1438, 127
        %v1440 = vand.u32 2147483647, %v686
        %v1441 = vand.u32 %v1440, 8388607
        %v1442 = vor.u32 %v1441, 8388608
        %v1443 = vsub.s32 0, %v1442
        %v1444 = vadd.s32 %v1439, 1
        %vm1445 = vcmp.gt.s32.totalorder %v1444, 0
        %v1446 = vsel %vm1445, %v1444, 0
        %v1447 = vshrl.u32 %v1446, 5
        %v1448 = vand.u32 %v1446, 31
        %v1449 = vsub.s32 32, %v1448
        %v1450 = vshrl.u32 683565275, %v1449
        %v1451 = vshll.u32 683565275, %v1448
        %v1452 = vshrl.u32 2475754826, %v1449
        %v1453 = vor.u32 %v1451, %v1452
        %v1454 = vshll.u32 2475754826, %v1448
        %v1455 = vshrl.u32 2131351028, %v1449
        %v1456 = vor.u32 %v1454, %v1455
        %v1457 = vshll.u32 2131351028, %v1448
        %v1458 = vshrl.u32 2102212464, %v1449
        %v1459 = vor.u32 %v1457, %v1458
        %v1460 = vshll.u32 2102212464, %v1448
        %v1461 = vshrl.u32 920167782, %v1449
        %v1462 = vor.u32 %v1460, %v1461
        %v1463 = vshll.u32 920167782, %v1448
        %v1464 = vshrl.u32 1326507024, %v1449
        %v1465 = vor.u32 %v1463, %v1464
        %vm1466 = vcmp.lt.s32.totalorder %v1447, 1
        %vm1467 = vcmp.lt.s32.totalorder %v1447, 2
        %vm1468 = vcmp.lt.s32.totalorder %v1447, 3
        %vm1469 = vcmp.lt.s32.totalorder %v1447, 4
        %v1470 = vsel %vm1466, %v1450, %v1453
        %v1471 = vsel %vm1469, %v1459, 2102212464
        %v1472 = vsel %vm1468, %v1456, %v1471
        %v1473 = vsel %vm1467, %v1470, %v1472
        %v1474 = vsel %vm1466, %v1453, %v1456
        %v1475 = vsel %vm1469, %v1462, 920167782
        %v1476 = vsel %vm1468, %v1459, %v1475
        %v1477 = vsel %vm1467, %v1474, %v1476
        %v1478 = vsel %vm1466, %v1456, %v1459
        %v1479 = vsel %vm1469, %v1465, 1326507024
        %v1480 = vsel %vm1468, %v1462, %v1479
        %v1481 = vsel %vm1467, %v1478, %v1480
        %v1482 = vshll.u32 %v1442, 8
        %v1483 = vmul.u32.u64.compose %v1482, %v1481
        %v1484 = vextract.low.u32 %v1483
        %v1485 = vextract.high.u32 %v1483
        %v1486 = vmul.u32.u64.compose %v1482, %v1477
        %v1487 = vextract.low.u32 %v1486
        %v1488 = vextract.high.u32 %v1486
        %v1489 = vmul.u32 %v1482, %v1473
        %v1490 = vadd.s32 %v1485, %v1487
        %vm1491 = vc.u32 %v1485, %v1487
        %v1492 = vadd.s32 %v1488, 1
        %v1493 = vsel %vm1491, %v1492, %v1488
        %v1494 = vadd.s32 %v1489, %v1493
        %v1495 = vadd.s32 %v1494, 536870912
        %v1496 = vshrl.u32 %v1495, 30
        %v1497 = vshll.u32 %v1496, 30
        %v1498 = vsub.s32 %v1494, %v1497
        %vm1499 = vcmp.lt.s32.totalorder %v1498, 0
        %v1500 = vsub.s32 0, %v1498
        %v1501 = vsel %vm1499, %v1500, %v1498
        %v1502 = vclz %v1501
        %v1503 = vsub.s32 %v1502, 2
        %vm1504 = vcmp.gt.s32.totalorder 0, %v1503
        %v1505 = vsel %vm1504, 0, %v1503
        %v1506 = vsub.s32 32, %v1505
        %v1507 = vshll.u32 %v1498, %v1505
        %v1508 = vshrl.u32 %v1490, %v1506
        %v1509 = vor.u32 %v1507, %v1508
        %v1510 = vsub.s32 4294967266, %v1505
        %v1511 = vadd.s32 %v1510, 127
        %v1512 = vshll.u32 %v1511, 23
        %v1513 = vor.u32 4788187, %v1512
        %v1514 = vand.u32 2147483647, %v1513
        %v1516 = vcvt.s32.f32 %v1509
        %v1517 = vmul.f32 %v1516, %v1514
        %v1518 = vxor.u32 %v1517, 2147483648
        %v1519 = vsel %vm1436, %v1518, %v1517
        %v1520 = vsub.s32 4, %v1496
        %v1521 = vsel %vm1436, %v1520, %v1496
        %v1522 = vsel %vm1435, %v686, %v1519
        %v1523 = vsel %vm1435, 0, %v1521
        %v1524 = vcosq.f32.pop %v1522
        %v1525 = vsinq.f32.pop %v1522
        %vm1526 = vweird.f32 %v686
        %v1527 = vadd.s32 %v1523, 3
        %v1528 = vand.u32 %v1527, 3
        %vm1529 = vcmp.lt.s32.totalorder %v1528, 2
        %vm1530 = vcmp.eq.s32.totalorder %v1528, 0
        %v1531 = vxor.u32 %v1525, 2147483648
        %v1532 = vsel %vm1530, %v1524, %v1531
        %vm1533 = vcmp.eq.s32.totalorder %v1528, 2
        %v1534 = vxor.u32 %v1524, 2147483648
        %v1535 = vsel %vm1533, %v1534, %v1525
        %v1536 = vsel %vm1529, %v1532, %v1535
        %v1537 = vsel %vm1526, nan, %v1536
        %v1538 = vand.u32 2147483647, %v423
        %vm1539 = vcmp.le.f32.partialorder %v1538, 0.7853982
        %vm1540 = vcmp.lt.s32.totalorder %v423, 0
        %v1541 = vand.u32 %v423, 2139095040
        %v1542 = vshrl.u32 %v1541, 23
        %v1543 = vsub.s32 %v1542, 127
        %v1544 = vand.u32 2147483647, %v423
        %v1545 = vand.u32 %v1544, 8388607
        %v1546 = vor.u32 %v1545, 8388608
        %v1547 = vsub.s32 0, %v1546
        %v1548 = vadd.s32 %v1543, 1
        %vm1549 = vcmp.gt.s32.totalorder %v1548, 0
        %v1550 = vsel %vm1549, %v1548, 0
        %v1551 = vshrl.u32 %v1550, 5
        %v1552 = vand.u32 %v1550, 31
        %v1553 = vsub.s32 32, %v1552
        %v1554 = vshrl.u32 683565275, %v1553
        %v1555 = vshll.u32 683565275, %v1552
        %v1556 = vshrl.u32 2475754826, %v1553
        %v1557 = vor.u32 %v1555, %v1556
        %v1558 = vshll.u32 2475754826, %v1552
        %v1559 = vshrl.u32 2131351028, %v1553
        %v1560 = vor.u32 %v1558, %v1559
        %v1561 = vshll.u32 2131351028, %v1552
        %v1562 = vshrl.u32 2102212464, %v1553
        %v1563 = vor.u32 %v1561, %v1562
        %v1564 = vshll.u32 2102212464, %v1552
        %v1565 = vshrl.u32 920167782, %v1553
        %v1566 = vor.u32 %v1564, %v1565
        %v1567 = vshll.u32 920167782, %v1552
        %v1568 = vshrl.u32 1326507024, %v1553
        %v1569 = vor.u32 %v1567, %v1568
        %vm1570 = vcmp.lt.s32.totalorder %v1551, 1
        %vm1571 = vcmp.lt.s32.totalorder %v1551, 2
        %vm1572 = vcmp.lt.s32.totalorder %v1551, 3
        %vm1573 = vcmp.lt.s32.totalorder %v1551, 4
        %v1574 = vsel %vm1570, %v1554, %v1557
        %v1575 = vsel %vm1573, %v1563, 2102212464
        %v1576 = vsel %vm1572, %v1560, %v1575
        %v1577 = vsel %vm1571, %v1574, %v1576
        %v1578 = vsel %vm1570, %v1557, %v1560
        %v1579 = vsel %vm1573, %v1566, 920167782
        %v1580 = vsel %vm1572, %v1563, %v1579
        %v1581 = vsel %vm1571, %v1578, %v1580
        %v1582 = vsel %vm1570, %v1560, %v1563
        %v1583 = vsel %vm1573, %v1569, 1326507024
        %v1584 = vsel %vm1572, %v1566, %v1583
        %v1585 = vsel %vm1571, %v1582, %v1584
        %v1586 = vshll.u32 %v1546, 8
        %v1587 = vmul.u32.u64.compose %v1586, %v1585
        %v1588 = vextract.low.u32 %v1587
        %v1589 = vextract.high.u32 %v1587
        %v1590 = vmul.u32.u64.compose %v1586, %v1581
        %v1591 = vextract.low.u32 %v1590
        %v1592 = vextract.high.u32 %v1590
        %v1593 = vmul.u32 %v1586, %v1577
        %v1594 = vadd.s32 %v1589, %v1591
        %vm1595 = vc.u32 %v1589, %v1591
        %v1596 = vadd.s32 %v1592, 1
        %v1597 = vsel %vm1595, %v1596, %v1592
        %v1598 = vadd.s32 %v1593, %v1597
        %v1599 = vadd.s32 %v1598, 536870912
        %v1600 = vshrl.u32 %v1599, 30
        %v1601 = vshll.u32 %v1600, 30
        %v1602 = vsub.s32 %v1598, %v1601
        %vm1603 = vcmp.lt.s32.totalorder %v1602, 0
        %v1604 = vsub.s32 0, %v1602
        %v1605 = vsel %vm1603, %v1604, %v1602
        %v1606 = vclz %v1605
        %v1607 = vsub.s32 %v1606, 2
        %vm1608 = vcmp.gt.s32.totalorder 0, %v1607
        %v1609 = vsel %vm1608, 0, %v1607
        %v1610 = vsub.s32 32, %v1609
        %v1611 = vshll.u32 %v1602, %v1609
        %v1612 = vshrl.u32 %v1594, %v1610
        %v1613 = vor.u32 %v1611, %v1612
        %v1614 = vsub.s32 4294967266, %v1609
        %v1615 = vadd.s32 %v1614, 127
        %v1616 = vshll.u32 %v1615, 23
        %v1617 = vor.u32 4788187, %v1616
        %v1618 = vand.u32 2147483647, %v1617
        %v1620 = vcvt.s32.f32 %v1613
        %v1621 = vmul.f32 %v1620, %v1618
        %v1622 = vxor.u32 %v1621, 2147483648
        %v1623 = vsel %vm1540, %v1622, %v1621
        %v1624 = vsub.s32 4, %v1600
        %v1625 = vsel %vm1540, %v1624, %v1600
        %v1626 = vsel %vm1539, %v423, %v1623
        %v1627 = vsel %vm1539, 0, %v1625
        %v1628 = vcosq.f32.pop %v1626
        %v1629 = vsinq.f32.pop %v1626
        %vm1630 = vweird.f32 %v423
        %v1631 = vadd.s32 %v1627, 3
        %v1632 = vand.u32 %v1631, 3
        %vm1633 = vcmp.lt.s32.totalorder %v1632, 2
        %vm1634 = vcmp.eq.s32.totalorder %v1632, 0
        %v1635 = vxor.u32 %v1629, 2147483648
        %v1636 = vsel %vm1634, %v1628, %v1635
        %vm1637 = vcmp.eq.s32.totalorder %v1632, 2
        %v1638 = vxor.u32 %v1628, 2147483648
        %v1639 = vsel %vm1637, %v1638, %v1629
        %v1640 = vsel %vm1633, %v1636, %v1639
        %v1641 = vsel %vm1630, nan, %v1640
        %v1642 = vand.u32 2147483647, %v425
        %vm1643 = vcmp.le.f32.partialorder %v1642, 0.7853982
        %vm1644 = vcmp.lt.s32.totalorder %v425, 0
        %v1645 = vand.u32 %v425, 2139095040
        %v1646 = vshrl.u32 %v1645, 23
        %v1647 = vsub.s32 %v1646, 127
        %v1648 = vand.u32 2147483647, %v425
        %v1649 = vand.u32 %v1648, 8388607
        %v1650 = vor.u32 %v1649, 8388608
        %v1651 = vsub.s32 0, %v1650
        %v1652 = vadd.s32 %v1647, 1
        %vm1653 = vcmp.gt.s32.totalorder %v1652, 0
        %v1654 = vsel %vm1653, %v1652, 0
        %v1655 = vshrl.u32 %v1654, 5
        %v1656 = vand.u32 %v1654, 31
        %v1657 = vsub.s32 32, %v1656
        %v1658 = vshrl.u32 683565275, %v1657
        %v1659 = vshll.u32 683565275, %v1656
        %v1660 = vshrl.u32 2475754826, %v1657
        %v1661 = vor.u32 %v1659, %v1660
        %v1662 = vshll.u32 2475754826, %v1656
        %v1663 = vshrl.u32 2131351028, %v1657
        %v1664 = vor.u32 %v1662, %v1663
        %v1665 = vshll.u32 2131351028, %v1656
        %v1666 = vshrl.u32 2102212464, %v1657
        %v1667 = vor.u32 %v1665, %v1666
        %v1668 = vshll.u32 2102212464, %v1656
        %v1669 = vshrl.u32 920167782, %v1657
        %v1670 = vor.u32 %v1668, %v1669
        %v1671 = vshll.u32 920167782, %v1656
        %v1672 = vshrl.u32 1326507024, %v1657
        %v1673 = vor.u32 %v1671, %v1672
        %vm1674 = vcmp.lt.s32.totalorder %v1655, 1
        %vm1675 = vcmp.lt.s32.totalorder %v1655, 2
        %vm1676 = vcmp.lt.s32.totalorder %v1655, 3
        %vm1677 = vcmp.lt.s32.totalorder %v1655, 4
        %v1678 = vsel %vm1674, %v1658, %v1661
        %v1679 = vsel %vm1677, %v1667, 2102212464
        %v1680 = vsel %vm1676, %v1664, %v1679
        %v1681 = vsel %vm1675, %v1678, %v1680
        %v1682 = vsel %vm1674, %v1661, %v1664
        %v1683 = vsel %vm1677, %v1670, 920167782
        %v1684 = vsel %vm1676, %v1667, %v1683
        %v1685 = vsel %vm1675, %v1682, %v1684
        %v1686 = vsel %vm1674, %v1664, %v1667
        %v1687 = vsel %vm1677, %v1673, 1326507024
        %v1688 = vsel %vm1676, %v1670, %v1687
        %v1689 = vsel %vm1675, %v1686, %v1688
        %v1690 = vshll.u32 %v1650, 8
        %v1691 = vmul.u32.u64.compose %v1690, %v1689
        %v1692 = vextract.low.u32 %v1691
        %v1693 = vextract.high.u32 %v1691
        %v1694 = vmul.u32.u64.compose %v1690, %v1685
        %v1695 = vextract.low.u32 %v1694
        %v1696 = vextract.high.u32 %v1694
        %v1697 = vmul.u32 %v1690, %v1681
        %v1698 = vadd.s32 %v1693, %v1695
        %vm1699 = vc.u32 %v1693, %v1695
        %v1700 = vadd.s32 %v1696, 1
        %v1701 = vsel %vm1699, %v1700, %v1696
        %v1702 = vadd.s32 %v1697, %v1701
        %v1703 = vadd.s32 %v1702, 536870912
        %v1704 = vshrl.u32 %v1703, 30
        %v1705 = vshll.u32 %v1704, 30
        %v1706 = vsub.s32 %v1702, %v1705
        %vm1707 = vcmp.lt.s32.totalorder %v1706, 0
        %v1708 = vsub.s32 0, %v1706
        %v1709 = vsel %vm1707, %v1708, %v1706
        %v1710 = vclz %v1709
        %v1711 = vsub.s32 %v1710, 2
        %vm1712 = vcmp.gt.s32.totalorder 0, %v1711
        %v1713 = vsel %vm1712, 0, %v1711
        %v1714 = vsub.s32 32, %v1713
        %v1715 = vshll.u32 %v1706, %v1713
        %v1716 = vshrl.u32 %v1698, %v1714
        %v1717 = vor.u32 %v1715, %v1716
        %v1718 = vsub.s32 4294967266, %v1713
        %v1719 = vadd.s32 %v1718, 127
        %v1720 = vshll.u32 %v1719, 23
        %v1721 = vor.u32 4788187, %v1720
        %v1722 = vand.u32 2147483647, %v1721
        %v1724 = vcvt.s32.f32 %v1717
        %v1725 = vmul.f32 %v1724, %v1722
        %v1726 = vxor.u32 %v1725, 2147483648
        %v1727 = vsel %vm1644, %v1726, %v1725
        %v1728 = vsub.s32 4, %v1704
        %v1729 = vsel %vm1644, %v1728, %v1704
        %v1730 = vsel %vm1643, %v425, %v1727
        %v1731 = vsel %vm1643, 0, %v1729
        %v1732 = vcosq.f32.pop %v1730
        %v1733 = vsinq.f32.pop %v1730
        %vm1734 = vweird.f32 %v425
        %v1735 = vadd.s32 %v1731, 3
        %v1736 = vand.u32 %v1735, 3
        %vm1737 = vcmp.lt.s32.totalorder %v1736, 2
        %vm1738 = vcmp.eq.s32.totalorder %v1736, 0
        %v1739 = vxor.u32 %v1733, 2147483648
        %v1740 = vsel %vm1738, %v1732, %v1739
        %vm1741 = vcmp.eq.s32.totalorder %v1736, 2
        %v1742 = vxor.u32 %v1732, 2147483648
        %v1743 = vsel %vm1741, %v1742, %v1733
        %v1744 = vsel %vm1737, %v1740, %v1743
        %v1745 = vsel %vm1734, nan, %v1744
        %v1746 = vand.u32 2147483647, %v512
        %vm1747 = vcmp.le.f32.partialorder %v1746, 0.7853982
        %vm1748 = vcmp.lt.s32.totalorder %v512, 0
        %v1749 = vand.u32 %v512, 2139095040
        %v1750 = vshrl.u32 %v1749, 23
        %v1751 = vsub.s32 %v1750, 127
        %v1752 = vand.u32 2147483647, %v512
        %v1753 = vand.u32 %v1752, 8388607
        %v1754 = vor.u32 %v1753, 8388608
        %v1755 = vsub.s32 0, %v1754
        %v1756 = vadd.s32 %v1751, 1
        %vm1757 = vcmp.gt.s32.totalorder %v1756, 0
        %v1758 = vsel %vm1757, %v1756, 0
        %v1759 = vshrl.u32 %v1758, 5
        %v1760 = vand.u32 %v1758, 31
        %v1761 = vsub.s32 32, %v1760
        %v1762 = vshrl.u32 683565275, %v1761
        %v1763 = vshll.u32 683565275, %v1760
        %v1764 = vshrl.u32 2475754826, %v1761
        %v1765 = vor.u32 %v1763, %v1764
        %v1766 = vshll.u32 2475754826, %v1760
        %v1767 = vshrl.u32 2131351028, %v1761
        %v1768 = vor.u32 %v1766, %v1767
        %v1769 = vshll.u32 2131351028, %v1760
        %v1770 = vshrl.u32 2102212464, %v1761
        %v1771 = vor.u32 %v1769, %v1770
        %v1772 = vshll.u32 2102212464, %v1760
        %v1773 = vshrl.u32 920167782, %v1761
        %v1774 = vor.u32 %v1772, %v1773
        %v1775 = vshll.u32 920167782, %v1760
        %v1776 = vshrl.u32 1326507024, %v1761
        %v1777 = vor.u32 %v1775, %v1776
        %vm1778 = vcmp.lt.s32.totalorder %v1759, 1
        %vm1779 = vcmp.lt.s32.totalorder %v1759, 2
        %vm1780 = vcmp.lt.s32.totalorder %v1759, 3
        %vm1781 = vcmp.lt.s32.totalorder %v1759, 4
        %v1782 = vsel %vm1778, %v1762, %v1765
        %v1783 = vsel %vm1781, %v1771, 2102212464
        %v1784 = vsel %vm1780, %v1768, %v1783
        %v1785 = vsel %vm1779, %v1782, %v1784
        %v1786 = vsel %vm1778, %v1765, %v1768
        %v1787 = vsel %vm1781, %v1774, 920167782
        %v1788 = vsel %vm1780, %v1771, %v1787
        %v1789 = vsel %vm1779, %v1786, %v1788
        %v1790 = vsel %vm1778, %v1768, %v1771
        %v1791 = vsel %vm1781, %v1777, 1326507024
        %v1792 = vsel %vm1780, %v1774, %v1791
        %v1793 = vsel %vm1779, %v1790, %v1792
        %v1794 = vshll.u32 %v1754, 8
        %v1795 = vmul.u32.u64.compose %v1794, %v1793
        %v1796 = vextract.low.u32 %v1795
        %v1797 = vextract.high.u32 %v1795
        %v1798 = vmul.u32.u64.compose %v1794, %v1789
        %v1799 = vextract.low.u32 %v1798
        %v1800 = vextract.high.u32 %v1798
        %v1801 = vmul.u32 %v1794, %v1785
        %v1802 = vadd.s32 %v1797, %v1799
        %vm1803 = vc.u32 %v1797, %v1799
        %v1804 = vadd.s32 %v1800, 1
        %v1805 = vsel %vm1803, %v1804, %v1800
        %v1806 = vadd.s32 %v1801, %v1805
        %v1807 = vadd.s32 %v1806, 536870912
        %v1808 = vshrl.u32 %v1807, 30
        %v1809 = vshll.u32 %v1808, 30
        %v1810 = vsub.s32 %v1806, %v1809
        %vm1811 = vcmp.lt.s32.totalorder %v1810, 0
        %v1812 = vsub.s32 0, %v1810
        %v1813 = vsel %vm1811, %v1812, %v1810
        %v1814 = vclz %v1813
        %v1815 = vsub.s32 %v1814, 2
        %vm1816 = vcmp.gt.s32.totalorder 0, %v1815
        %v1817 = vsel %vm1816, 0, %v1815
        %v1818 = vsub.s32 32, %v1817
        %v1819 = vshll.u32 %v1810, %v1817
        %v1820 = vshrl.u32 %v1802, %v1818
        %v1821 = vor.u32 %v1819, %v1820
        %v1822 = vsub.s32 4294967266, %v1817
        %v1823 = vadd.s32 %v1822, 127
        %v1824 = vshll.u32 %v1823, 23
        %v1825 = vor.u32 4788187, %v1824
        %v1826 = vand.u32 2147483647, %v1825
        %v1828 = vcvt.s32.f32 %v1821
        %v1829 = vmul.f32 %v1828, %v1826
        %v1830 = vxor.u32 %v1829, 2147483648
        %v1831 = vsel %vm1748, %v1830, %v1829
        %v1832 = vsub.s32 4, %v1808
        %v1833 = vsel %vm1748, %v1832, %v1808
        %v1834 = vsel %vm1747, %v512, %v1831
        %v1835 = vsel %vm1747, 0, %v1833
        %v1836 = vcosq.f32.pop %v1834
        %v1837 = vsinq.f32.pop %v1834
        %vm1838 = vweird.f32 %v512
        %v1839 = vadd.s32 %v1835, 3
        %v1840 = vand.u32 %v1839, 3
        %vm1841 = vcmp.lt.s32.totalorder %v1840, 2
        %vm1842 = vcmp.eq.s32.totalorder %v1840, 0
        %v1843 = vxor.u32 %v1837, 2147483648
        %v1844 = vsel %vm1842, %v1836, %v1843
        %vm1845 = vcmp.eq.s32.totalorder %v1840, 2
        %v1846 = vxor.u32 %v1836, 2147483648
        %v1847 = vsel %vm1845, %v1846, %v1837
        %v1848 = vsel %vm1841, %v1844, %v1847
        %v1849 = vsel %vm1838, nan, %v1848
        %v1850 = vand.u32 2147483647, %v514
        %vm1851 = vcmp.le.f32.partialorder %v1850, 0.7853982
        %vm1852 = vcmp.lt.s32.totalorder %v514, 0
        %v1853 = vand.u32 %v514, 2139095040
        %v1854 = vshrl.u32 %v1853, 23
        %v1855 = vsub.s32 %v1854, 127
        %v1856 = vand.u32 2147483647, %v514
        %v1857 = vand.u32 %v1856, 8388607
        %v1858 = vor.u32 %v1857, 8388608
        %v1859 = vsub.s32 0, %v1858
        %v1860 = vadd.s32 %v1855, 1
        %vm1861 = vcmp.gt.s32.totalorder %v1860, 0
        %v1862 = vsel %vm1861, %v1860, 0
        %v1863 = vshrl.u32 %v1862, 5
        %v1864 = vand.u32 %v1862, 31
        %v1865 = vsub.s32 32, %v1864
        %v1866 = vshrl.u32 683565275, %v1865
        %v1867 = vshll.u32 683565275, %v1864
        %v1868 = vshrl.u32 2475754826, %v1865
        %v1869 = vor.u32 %v1867, %v1868
        %v1870 = vshll.u32 2475754826, %v1864
        %v1871 = vshrl.u32 2131351028, %v1865
        %v1872 = vor.u32 %v1870, %v1871
        %v1873 = vshll.u32 2131351028, %v1864
        %v1874 = vshrl.u32 2102212464, %v1865
        %v1875 = vor.u32 %v1873, %v1874
        %v1876 = vshll.u32 2102212464, %v1864
        %v1877 = vshrl.u32 920167782, %v1865
        %v1878 = vor.u32 %v1876, %v1877
        %v1879 = vshll.u32 920167782, %v1864
        %v1880 = vshrl.u32 1326507024, %v1865
        %v1881 = vor.u32 %v1879, %v1880
        %vm1882 = vcmp.lt.s32.totalorder %v1863, 1
        %vm1883 = vcmp.lt.s32.totalorder %v1863, 2
        %vm1884 = vcmp.lt.s32.totalorder %v1863, 3
        %vm1885 = vcmp.lt.s32.totalorder %v1863, 4
        %v1886 = vsel %vm1882, %v1866, %v1869
        %v1887 = vsel %vm1885, %v1875, 2102212464
        %v1888 = vsel %vm1884, %v1872, %v1887
        %v1889 = vsel %vm1883, %v1886, %v1888
        %v1890 = vsel %vm1882, %v1869, %v1872
        %v1891 = vsel %vm1885, %v1878, 920167782
        %v1892 = vsel %vm1884, %v1875, %v1891
        %v1893 = vsel %vm1883, %v1890, %v1892
        %v1894 = vsel %vm1882, %v1872, %v1875
        %v1895 = vsel %vm1885, %v1881, 1326507024
        %v1896 = vsel %vm1884, %v1878, %v1895
        %v1897 = vsel %vm1883, %v1894, %v1896
        %v1898 = vshll.u32 %v1858, 8
        %v1899 = vmul.u32.u64.compose %v1898, %v1897
        %v1900 = vextract.low.u32 %v1899
        %v1901 = vextract.high.u32 %v1899
        %v1902 = vmul.u32.u64.compose %v1898, %v1893
        %v1903 = vextract.low.u32 %v1902
        %v1904 = vextract.high.u32 %v1902
        %v1905 = vmul.u32 %v1898, %v1889
        %v1906 = vadd.s32 %v1901, %v1903
        %vm1907 = vc.u32 %v1901, %v1903
        %v1908 = vadd.s32 %v1904, 1
        %v1909 = vsel %vm1907, %v1908, %v1904
        %v1910 = vadd.s32 %v1905, %v1909
        %v1911 = vadd.s32 %v1910, 536870912
        %v1912 = vshrl.u32 %v1911, 30
        %v1913 = vshll.u32 %v1912, 30
        %v1914 = vsub.s32 %v1910, %v1913
        %vm1915 = vcmp.lt.s32.totalorder %v1914, 0
        %v1916 = vsub.s32 0, %v1914
        %v1917 = vsel %vm1915, %v1916, %v1914
        %v1918 = vclz %v1917
        %v1919 = vsub.s32 %v1918, 2
        %vm1920 = vcmp.gt.s32.totalorder 0, %v1919
        %v1921 = vsel %vm1920, 0, %v1919
        %v1922 = vsub.s32 32, %v1921
        %v1923 = vshll.u32 %v1914, %v1921
        %v1924 = vshrl.u32 %v1906, %v1922
        %v1925 = vor.u32 %v1923, %v1924
        %v1926 = vsub.s32 4294967266, %v1921
        %v1927 = vadd.s32 %v1926, 127
        %v1928 = vshll.u32 %v1927, 23
        %v1929 = vor.u32 4788187, %v1928
        %v1930 = vand.u32 2147483647, %v1929
        %v1932 = vcvt.s32.f32 %v1925
        %v1933 = vmul.f32 %v1932, %v1930
        %v1934 = vxor.u32 %v1933, 2147483648
        %v1935 = vsel %vm1852, %v1934, %v1933
        %v1936 = vsub.s32 4, %v1912
        %v1937 = vsel %vm1852, %v1936, %v1912
        %v1938 = vsel %vm1851, %v514, %v1935
        %v1939 = vsel %vm1851, 0, %v1937
        %v1940 = vcosq.f32.pop %v1938
        %v1941 = vsinq.f32.pop %v1938
        %vm1942 = vweird.f32 %v514
        %v1943 = vadd.s32 %v1939, 3
        %v1944 = vand.u32 %v1943, 3
        %vm1945 = vcmp.lt.s32.totalorder %v1944, 2
        %vm1946 = vcmp.eq.s32.totalorder %v1944, 0
        %v1947 = vxor.u32 %v1941, 2147483648
        %v1948 = vsel %vm1946, %v1940, %v1947
        %vm1949 = vcmp.eq.s32.totalorder %v1944, 2
        %v1950 = vxor.u32 %v1940, 2147483648
        %v1951 = vsel %vm1949, %v1950, %v1941
        %v1952 = vsel %vm1945, %v1948, %v1951
        %v1953 = vsel %vm1942, nan, %v1952
        %v1954 = vand.u32 2147483647, %v601
        %vm1955 = vcmp.le.f32.partialorder %v1954, 0.7853982
        %vm1956 = vcmp.lt.s32.totalorder %v601, 0
        %v1957 = vand.u32 %v601, 2139095040
        %v1958 = vshrl.u32 %v1957, 23
        %v1959 = vsub.s32 %v1958, 127
        %v1960 = vand.u32 2147483647, %v601
        %v1961 = vand.u32 %v1960, 8388607
        %v1962 = vor.u32 %v1961, 8388608
        %v1963 = vsub.s32 0, %v1962
        %v1964 = vadd.s32 %v1959, 1
        %vm1965 = vcmp.gt.s32.totalorder %v1964, 0
        %v1966 = vsel %vm1965, %v1964, 0
        %v1967 = vshrl.u32 %v1966, 5
        %v1968 = vand.u32 %v1966, 31
        %v1969 = vsub.s32 32, %v1968
        %v1970 = vshrl.u32 683565275, %v1969
        %v1971 = vshll.u32 683565275, %v1968
        %v1972 = vshrl.u32 2475754826, %v1969
        %v1973 = vor.u32 %v1971, %v1972
        %v1974 = vshll.u32 2475754826, %v1968
        %v1975 = vshrl.u32 2131351028, %v1969
        %v1976 = vor.u32 %v1974, %v1975
        %v1977 = vshll.u32 2131351028, %v1968
        %v1978 = vshrl.u32 2102212464, %v1969
        %v1979 = vor.u32 %v1977, %v1978
        %v1980 = vshll.u32 2102212464, %v1968
        %v1981 = vshrl.u32 920167782, %v1969
        %v1982 = vor.u32 %v1980, %v1981
        %v1983 = vshll.u32 920167782, %v1968
        %v1984 = vshrl.u32 1326507024, %v1969
        %v1985 = vor.u32 %v1983, %v1984
        %vm1986 = vcmp.lt.s32.totalorder %v1967, 1
        %vm1987 = vcmp.lt.s32.totalorder %v1967, 2
        %vm1988 = vcmp.lt.s32.totalorder %v1967, 3
        %vm1989 = vcmp.lt.s32.totalorder %v1967, 4
        %v1990 = vsel %vm1986, %v1970, %v1973
        %v1991 = vsel %vm1989, %v1979, 2102212464
        %v1992 = vsel %vm1988, %v1976, %v1991
        %v1993 = vsel %vm1987, %v1990, %v1992
        %v1994 = vsel %vm1986, %v1973, %v1976
        %v1995 = vsel %vm1989, %v1982, 920167782
        %v1996 = vsel %vm1988, %v1979, %v1995
        %v1997 = vsel %vm1987, %v1994, %v1996
        %v1998 = vsel %vm1986, %v1976, %v1979
        %v1999 = vsel %vm1989, %v1985, 1326507024
        %v2000 = vsel %vm1988, %v1982, %v1999
        %v2001 = vsel %vm1987, %v1998, %v2000
        %v2002 = vshll.u32 %v1962, 8
        %v2003 = vmul.u32.u64.compose %v2002, %v2001
        %v2004 = vextract.low.u32 %v2003
        %v2005 = vextract.high.u32 %v2003
        %v2006 = vmul.u32.u64.compose %v2002, %v1997
        %v2007 = vextract.low.u32 %v2006
        %v2008 = vextract.high.u32 %v2006
        %v2009 = vmul.u32 %v2002, %v1993
        %v2010 = vadd.s32 %v2005, %v2007
        %vm2011 = vc.u32 %v2005, %v2007
        %v2012 = vadd.s32 %v2008, 1
        %v2013 = vsel %vm2011, %v2012, %v2008
        %v2014 = vadd.s32 %v2009, %v2013
        %v2015 = vadd.s32 %v2014, 536870912
        %v2016 = vshrl.u32 %v2015, 30
        %v2017 = vshll.u32 %v2016, 30
        %v2018 = vsub.s32 %v2014, %v2017
        %vm2019 = vcmp.lt.s32.totalorder %v2018, 0
        %v2020 = vsub.s32 0, %v2018
        %v2021 = vsel %vm2019, %v2020, %v2018
        %v2022 = vclz %v2021
        %v2023 = vsub.s32 %v2022, 2
        %vm2024 = vcmp.gt.s32.totalorder 0, %v2023
        %v2025 = vsel %vm2024, 0, %v2023
        %v2026 = vsub.s32 32, %v2025
        %v2027 = vshll.u32 %v2018, %v2025
        %v2028 = vshrl.u32 %v2010, %v2026
        %v2029 = vor.u32 %v2027, %v2028
        %v2030 = vsub.s32 4294967266, %v2025
        %v2031 = vadd.s32 %v2030, 127
        %v2032 = vshll.u32 %v2031, 23
        %v2033 = vor.u32 4788187, %v2032
        %v2034 = vand.u32 2147483647, %v2033
        %v2036 = vcvt.s32.f32 %v2029
        %v2037 = vmul.f32 %v2036, %v2034
        %v2038 = vxor.u32 %v2037, 2147483648
        %v2039 = vsel %vm1956, %v2038, %v2037
        %v2040 = vsub.s32 4, %v2016
        %v2041 = vsel %vm1956, %v2040, %v2016
        %v2042 = vsel %vm1955, %v601, %v2039
        %v2043 = vsel %vm1955, 0, %v2041
        %v2044 = vcosq.f32.pop %v2042
        %v2045 = vsinq.f32.pop %v2042
        %vm2046 = vweird.f32 %v601
        %v2047 = vadd.s32 %v2043, 3
        %v2048 = vand.u32 %v2047, 3
        %vm2049 = vcmp.lt.s32.totalorder %v2048, 2
        %vm2050 = vcmp.eq.s32.totalorder %v2048, 0
        %v2051 = vxor.u32 %v2045, 2147483648
        %v2052 = vsel %vm2050, %v2044, %v2051
        %vm2053 = vcmp.eq.s32.totalorder %v2048, 2
        %v2054 = vxor.u32 %v2044, 2147483648
        %v2055 = vsel %vm2053, %v2054, %v2045
        %v2056 = vsel %vm2049, %v2052, %v2055
        %v2057 = vsel %vm2046, nan, %v2056
        %v2058 = vand.u32 2147483647, %v603
        %vm2059 = vcmp.le.f32.partialorder %v2058, 0.7853982
        %vm2060 = vcmp.lt.s32.totalorder %v603, 0
        %v2061 = vand.u32 %v603, 2139095040
        %v2062 = vshrl.u32 %v2061, 23
        %v2063 = vsub.s32 %v2062, 127
        %v2064 = vand.u32 2147483647, %v603
        %v2065 = vand.u32 %v2064, 8388607
        %v2066 = vor.u32 %v2065, 8388608
        %v2067 = vsub.s32 0, %v2066
        %v2068 = vadd.s32 %v2063, 1
        %vm2069 = vcmp.gt.s32.totalorder %v2068, 0
        %v2070 = vsel %vm2069, %v2068, 0
        %v2071 = vshrl.u32 %v2070, 5
        %v2072 = vand.u32 %v2070, 31
        %v2073 = vsub.s32 32, %v2072
        %v2074 = vshrl.u32 683565275, %v2073
        %v2075 = vshll.u32 683565275, %v2072
        %v2076 = vshrl.u32 2475754826, %v2073
        %v2077 = vor.u32 %v2075, %v2076
        %v2078 = vshll.u32 2475754826, %v2072
        %v2079 = vshrl.u32 2131351028, %v2073
        %v2080 = vor.u32 %v2078, %v2079
        %v2081 = vshll.u32 2131351028, %v2072
        %v2082 = vshrl.u32 2102212464, %v2073
        %v2083 = vor.u32 %v2081, %v2082
        %v2084 = vshll.u32 2102212464, %v2072
        %v2085 = vshrl.u32 920167782, %v2073
        %v2086 = vor.u32 %v2084, %v2085
        %v2087 = vshll.u32 920167782, %v2072
        %v2088 = vshrl.u32 1326507024, %v2073
        %v2089 = vor.u32 %v2087, %v2088
        %vm2090 = vcmp.lt.s32.totalorder %v2071, 1
        %vm2091 = vcmp.lt.s32.totalorder %v2071, 2
        %vm2092 = vcmp.lt.s32.totalorder %v2071, 3
        %vm2093 = vcmp.lt.s32.totalorder %v2071, 4
        %v2094 = vsel %vm2090, %v2074, %v2077
        %v2095 = vsel %vm2093, %v2083, 2102212464
        %v2096 = vsel %vm2092, %v2080, %v2095
        %v2097 = vsel %vm2091, %v2094, %v2096
        %v2098 = vsel %vm2090, %v2077, %v2080
        %v2099 = vsel %vm2093, %v2086, 920167782
        %v2100 = vsel %vm2092, %v2083, %v2099
        %v2101 = vsel %vm2091, %v2098, %v2100
        %v2102 = vsel %vm2090, %v2080, %v2083
        %v2103 = vsel %vm2093, %v2089, 1326507024
        %v2104 = vsel %vm2092, %v2086, %v2103
        %v2105 = vsel %vm2091, %v2102, %v2104
        %v2106 = vshll.u32 %v2066, 8
        %v2107 = vmul.u32.u64.compose %v2106, %v2105
        %v2108 = vextract.low.u32 %v2107
        %v2109 = vextract.high.u32 %v2107
        %v2110 = vmul.u32.u64.compose %v2106, %v2101
        %v2111 = vextract.low.u32 %v2110
        %v2112 = vextract.high.u32 %v2110
        %v2113 = vmul.u32 %v2106, %v2097
        %v2114 = vadd.s32 %v2109, %v2111
        %vm2115 = vc.u32 %v2109, %v2111
        %v2116 = vadd.s32 %v2112, 1
        %v2117 = vsel %vm2115, %v2116, %v2112
        %v2118 = vadd.s32 %v2113, %v2117
        %v2119 = vadd.s32 %v2118, 536870912
        %v2120 = vshrl.u32 %v2119, 30
        %v2121 = vshll.u32 %v2120, 30
        %v2122 = vsub.s32 %v2118, %v2121
        %vm2123 = vcmp.lt.s32.totalorder %v2122, 0
        %v2124 = vsub.s32 0, %v2122
        %v2125 = vsel %vm2123, %v2124, %v2122
        %v2126 = vclz %v2125
        %v2127 = vsub.s32 %v2126, 2
        %vm2128 = vcmp.gt.s32.totalorder 0, %v2127
        %v2129 = vsel %vm2128, 0, %v2127
        %v2130 = vsub.s32 32, %v2129
        %v2131 = vshll.u32 %v2122, %v2129
        %v2132 = vshrl.u32 %v2114, %v2130
        %v2133 = vor.u32 %v2131, %v2132
        %v2134 = vsub.s32 4294967266, %v2129
        %v2135 = vadd.s32 %v2134, 127
        %v2136 = vshll.u32 %v2135, 23
        %v2137 = vor.u32 4788187, %v2136
        %v2138 = vand.u32 2147483647, %v2137
        %v2140 = vcvt.s32.f32 %v2133
        %v2141 = vmul.f32 %v2140, %v2138
        %v2142 = vxor.u32 %v2141, 2147483648
        %v2143 = vsel %vm2060, %v2142, %v2141
        %v2144 = vsub.s32 4, %v2120
        %v2145 = vsel %vm2060, %v2144, %v2120
        %v2146 = vsel %vm2059, %v603, %v2143
        %v2147 = vsel %vm2059, 0, %v2145
        %v2148 = vcosq.f32.pop %v2146
        %v2149 = vsinq.f32.pop %v2146
        %vm2150 = vweird.f32 %v603
        %v2151 = vadd.s32 %v2147, 3
        %v2152 = vand.u32 %v2151, 3
        %vm2153 = vcmp.lt.s32.totalorder %v2152, 2
        %vm2154 = vcmp.eq.s32.totalorder %v2152, 0
        %v2155 = vxor.u32 %v2149, 2147483648
        %v2156 = vsel %vm2154, %v2148, %v2155
        %vm2157 = vcmp.eq.s32.totalorder %v2152, 2
        %v2158 = vxor.u32 %v2148, 2147483648
        %v2159 = vsel %vm2157, %v2158, %v2149
        %v2160 = vsel %vm2153, %v2156, %v2159
        %v2161 = vsel %vm2150, nan, %v2160
        %v2162 = vand.u32 2147483647, %v690
        %vm2163 = vcmp.le.f32.partialorder %v2162, 0.7853982
        %vm2164 = vcmp.lt.s32.totalorder %v690, 0
        %v2165 = vand.u32 %v690, 2139095040
        %v2166 = vshrl.u32 %v2165, 23
        %v2167 = vsub.s32 %v2166, 127
        %v2168 = vand.u32 2147483647, %v690
        %v2169 = vand.u32 %v2168, 8388607
        %v2170 = vor.u32 %v2169, 8388608
        %v2171 = vsub.s32 0, %v2170
        %v2172 = vadd.s32 %v2167, 1
        %vm2173 = vcmp.gt.s32.totalorder %v2172, 0
        %v2174 = vsel %vm2173, %v2172, 0
        %v2175 = vshrl.u32 %v2174, 5
        %v2176 = vand.u32 %v2174, 31
        %v2177 = vsub.s32 32, %v2176
        %v2178 = vshrl.u32 683565275, %v2177
        %v2179 = vshll.u32 683565275, %v2176
        %v2180 = vshrl.u32 2475754826, %v2177
        %v2181 = vor.u32 %v2179, %v2180
        %v2182 = vshll.u32 2475754826, %v2176
        %v2183 = vshrl.u32 2131351028, %v2177
        %v2184 = vor.u32 %v2182, %v2183
        %v2185 = vshll.u32 2131351028, %v2176
        %v2186 = vshrl.u32 2102212464, %v2177
        %v2187 = vor.u32 %v2185, %v2186
        %v2188 = vshll.u32 2102212464, %v2176
        %v2189 = vshrl.u32 920167782, %v2177
        %v2190 = vor.u32 %v2188, %v2189
        %v2191 = vshll.u32 920167782, %v2176
        %v2192 = vshrl.u32 1326507024, %v2177
        %v2193 = vor.u32 %v2191, %v2192
        %vm2194 = vcmp.lt.s32.totalorder %v2175, 1
        %vm2195 = vcmp.lt.s32.totalorder %v2175, 2
        %vm2196 = vcmp.lt.s32.totalorder %v2175, 3
        %vm2197 = vcmp.lt.s32.totalorder %v2175, 4
        %v2198 = vsel %vm2194, %v2178, %v2181
        %v2199 = vsel %vm2197, %v2187, 2102212464
        %v2200 = vsel %vm2196, %v2184, %v2199
        %v2201 = vsel %vm2195, %v2198, %v2200
        %v2202 = vsel %vm2194, %v2181, %v2184
        %v2203 = vsel %vm2197, %v2190, 920167782
        %v2204 = vsel %vm2196, %v2187, %v2203
        %v2205 = vsel %vm2195, %v2202, %v2204
        %v2206 = vsel %vm2194, %v2184, %v2187
        %v2207 = vsel %vm2197, %v2193, 1326507024
        %v2208 = vsel %vm2196, %v2190, %v2207
        %v2209 = vsel %vm2195, %v2206, %v2208
        %v2210 = vshll.u32 %v2170, 8
        %v2211 = vmul.u32.u64.compose %v2210, %v2209
        %v2212 = vextract.low.u32 %v2211
        %v2213 = vextract.high.u32 %v2211
        %v2214 = vmul.u32.u64.compose %v2210, %v2205
        %v2215 = vextract.low.u32 %v2214
        %v2216 = vextract.high.u32 %v2214
        %v2217 = vmul.u32 %v2210, %v2201
        %v2218 = vadd.s32 %v2213, %v2215
        %vm2219 = vc.u32 %v2213, %v2215
        %v2220 = vadd.s32 %v2216, 1
        %v2221 = vsel %vm2219, %v2220, %v2216
        %v2222 = vadd.s32 %v2217, %v2221
        %v2223 = vadd.s32 %v2222, 536870912
        %v2224 = vshrl.u32 %v2223, 30
        %v2225 = vshll.u32 %v2224, 30
        %v2226 = vsub.s32 %v2222, %v2225
        %vm2227 = vcmp.lt.s32.totalorder %v2226, 0
        %v2228 = vsub.s32 0, %v2226
        %v2229 = vsel %vm2227, %v2228, %v2226
        %v2230 = vclz %v2229
        %v2231 = vsub.s32 %v2230, 2
        %vm2232 = vcmp.gt.s32.totalorder 0, %v2231
        %v2233 = vsel %vm2232, 0, %v2231
        %v2234 = vsub.s32 32, %v2233
        %v2235 = vshll.u32 %v2226, %v2233
        %v2236 = vshrl.u32 %v2218, %v2234
        %v2237 = vor.u32 %v2235, %v2236
        %v2238 = vsub.s32 4294967266, %v2233
        %v2239 = vadd.s32 %v2238, 127
        %v2240 = vshll.u32 %v2239, 23
        %v2241 = vor.u32 4788187, %v2240
        %v2242 = vand.u32 2147483647, %v2241
        %v2244 = vcvt.s32.f32 %v2237
        %v2245 = vmul.f32 %v2244, %v2242
        %v2246 = vxor.u32 %v2245, 2147483648
        %v2247 = vsel %vm2164, %v2246, %v2245
        %v2248 = vsub.s32 4, %v2224
        %v2249 = vsel %vm2164, %v2248, %v2224
        %v2250 = vsel %vm2163, %v690, %v2247
        %v2251 = vsel %vm2163, 0, %v2249
        %v2252 = vcosq.f32.pop %v2250
        %v2253 = vsinq.f32.pop %v2250
        %vm2254 = vweird.f32 %v690
        %v2255 = vadd.s32 %v2251, 3
        %v2256 = vand.u32 %v2255, 3
        %vm2257 = vcmp.lt.s32.totalorder %v2256, 2
        %vm2258 = vcmp.eq.s32.totalorder %v2256, 0
        %v2259 = vxor.u32 %v2253, 2147483648
        %v2260 = vsel %vm2258, %v2252, %v2259
        %vm2261 = vcmp.eq.s32.totalorder %v2256, 2
        %v2262 = vxor.u32 %v2252, 2147483648
        %v2263 = vsel %vm2261, %v2262, %v2253
        %v2264 = vsel %vm2257, %v2260, %v2263
        %v2265 = vsel %vm2254, nan, %v2264
        %v2266 = vand.u32 2147483647, %v692
        %vm2267 = vcmp.le.f32.partialorder %v2266, 0.7853982
        %vm2268 = vcmp.lt.s32.totalorder %v692, 0
        %v2269 = vand.u32 %v692, 2139095040
        %v2270 = vshrl.u32 %v2269, 23
        %v2271 = vsub.s32 %v2270, 127
        %v2272 = vand.u32 2147483647, %v692
        %v2273 = vand.u32 %v2272, 8388607
        %v2274 = vor.u32 %v2273, 8388608
        %v2275 = vsub.s32 0, %v2274
        %v2276 = vadd.s32 %v2271, 1
        %vm2277 = vcmp.gt.s32.totalorder %v2276, 0
        %v2278 = vsel %vm2277, %v2276, 0
        %v2279 = vshrl.u32 %v2278, 5
        %v2280 = vand.u32 %v2278, 31
        %v2281 = vsub.s32 32, %v2280
        %v2282 = vshrl.u32 683565275, %v2281
        %v2283 = vshll.u32 683565275, %v2280
        %v2284 = vshrl.u32 2475754826, %v2281
        %v2285 = vor.u32 %v2283, %v2284
        %v2286 = vshll.u32 2475754826, %v2280
        %v2287 = vshrl.u32 2131351028, %v2281
        %v2288 = vor.u32 %v2286, %v2287
        %v2289 = vshll.u32 2131351028, %v2280
        %v2290 = vshrl.u32 2102212464, %v2281
        %v2291 = vor.u32 %v2289, %v2290
        %v2292 = vshll.u32 2102212464, %v2280
        %v2293 = vshrl.u32 920167782, %v2281
        %v2294 = vor.u32 %v2292, %v2293
        %v2295 = vshll.u32 920167782, %v2280
        %v2296 = vshrl.u32 1326507024, %v2281
        %v2297 = vor.u32 %v2295, %v2296
        %vm2298 = vcmp.lt.s32.totalorder %v2279, 1
        %vm2299 = vcmp.lt.s32.totalorder %v2279, 2
        %vm2300 = vcmp.lt.s32.totalorder %v2279, 3
        %vm2301 = vcmp.lt.s32.totalorder %v2279, 4
        %v2302 = vsel %vm2298, %v2282, %v2285
        %v2303 = vsel %vm2301, %v2291, 2102212464
        %v2304 = vsel %vm2300, %v2288, %v2303
        %v2305 = vsel %vm2299, %v2302, %v2304
        %v2306 = vsel %vm2298, %v2285, %v2288
        %v2307 = vsel %vm2301, %v2294, 920167782
        %v2308 = vsel %vm2300, %v2291, %v2307
        %v2309 = vsel %vm2299, %v2306, %v2308
        %v2310 = vsel %vm2298, %v2288, %v2291
        %v2311 = vsel %vm2301, %v2297, 1326507024
        %v2312 = vsel %vm2300, %v2294, %v2311
        %v2313 = vsel %vm2299, %v2310, %v2312
        %v2314 = vshll.u32 %v2274, 8
        %v2315 = vmul.u32.u64.compose %v2314, %v2313
        %v2316 = vextract.low.u32 %v2315
        %v2317 = vextract.high.u32 %v2315
        %v2318 = vmul.u32.u64.compose %v2314, %v2309
        %v2319 = vextract.low.u32 %v2318
        %v2320 = vextract.high.u32 %v2318
        %v2321 = vmul.u32 %v2314, %v2305
        %v2322 = vadd.s32 %v2317, %v2319
        %vm2323 = vc.u32 %v2317, %v2319
        %v2324 = vadd.s32 %v2320, 1
        %v2325 = vsel %vm2323, %v2324, %v2320
        %v2326 = vadd.s32 %v2321, %v2325
        %v2327 = vadd.s32 %v2326, 536870912
        %v2328 = vshrl.u32 %v2327, 30
        %v2329 = vshll.u32 %v2328, 30
        %v2330 = vsub.s32 %v2326, %v2329
        %vm2331 = vcmp.lt.s32.totalorder %v2330, 0
        %v2332 = vsub.s32 0, %v2330
        %v2333 = vsel %vm2331, %v2332, %v2330
        %v2334 = vclz %v2333
        %v2335 = vsub.s32 %v2334, 2
        %vm2336 = vcmp.gt.s32.totalorder 0, %v2335
        %v2337 = vsel %vm2336, 0, %v2335
        %v2338 = vsub.s32 32, %v2337
        %v2339 = vshll.u32 %v2330, %v2337
        %v2340 = vshrl.u32 %v2322, %v2338
        %v2341 = vor.u32 %v2339, %v2340
        %v2342 = vsub.s32 4294967266, %v2337
        %v2343 = vadd.s32 %v2342, 127
        %v2344 = vshll.u32 %v2343, 23
        %v2345 = vor.u32 4788187, %v2344
        %v2346 = vand.u32 2147483647, %v2345
        %v2348 = vcvt.s32.f32 %v2341
        %v2349 = vmul.f32 %v2348, %v2346
        %v2350 = vxor.u32 %v2349, 2147483648
        %v2351 = vsel %vm2268, %v2350, %v2349
        %v2352 = vsub.s32 4, %v2328
        %v2353 = vsel %vm2268, %v2352, %v2328
        %v2354 = vsel %vm2267, %v692, %v2351
        %v2355 = vsel %vm2267, 0, %v2353
        %v2356 = vcosq.f32.pop %v2354
        %v2357 = vsinq.f32.pop %v2354
        %vm2358 = vweird.f32 %v692
        %v2359 = vadd.s32 %v2355, 3
        %v2360 = vand.u32 %v2359, 3
        %vm2361 = vcmp.lt.s32.totalorder %v2360, 2
        %vm2362 = vcmp.eq.s32.totalorder %v2360, 0
        %v2363 = vxor.u32 %v2357, 2147483648
        %v2364 = vsel %vm2362, %v2356, %v2363
        %vm2365 = vcmp.eq.s32.totalorder %v2360, 2
        %v2366 = vxor.u32 %v2356, 2147483648
        %v2367 = vsel %vm2365, %v2366, %v2357
        %v2368 = vsel %vm2361, %v2364, %v2367
        %v2369 = vsel %vm2358, nan, %v2368
        %v2370 = vand.u32 2147483647, %v429
        %vm2371 = vcmp.le.f32.partialorder %v2370, 0.7853982
        %vm2372 = vcmp.lt.s32.totalorder %v429, 0
        %v2373 = vand.u32 %v429, 2139095040
        %v2374 = vshrl.u32 %v2373, 23
        %v2375 = vsub.s32 %v2374, 127
        %v2376 = vand.u32 2147483647, %v429
        %v2377 = vand.u32 %v2376, 8388607
        %v2378 = vor.u32 %v2377, 8388608
        %v2379 = vsub.s32 0, %v2378
        %v2380 = vadd.s32 %v2375, 1
        %vm2381 = vcmp.gt.s32.totalorder %v2380, 0
        %v2382 = vsel %vm2381, %v2380, 0
        %v2383 = vshrl.u32 %v2382, 5
        %v2384 = vand.u32 %v2382, 31
        %v2385 = vsub.s32 32, %v2384
        %v2386 = vshrl.u32 683565275, %v2385
        %v2387 = vshll.u32 683565275, %v2384
        %v2388 = vshrl.u32 2475754826, %v2385
        %v2389 = vor.u32 %v2387, %v2388
        %v2390 = vshll.u32 2475754826, %v2384
        %v2391 = vshrl.u32 2131351028, %v2385
        %v2392 = vor.u32 %v2390, %v2391
        %v2393 = vshll.u32 2131351028, %v2384
        %v2394 = vshrl.u32 2102212464, %v2385
        %v2395 = vor.u32 %v2393, %v2394
        %v2396 = vshll.u32 2102212464, %v2384
        %v2397 = vshrl.u32 920167782, %v2385
        %v2398 = vor.u32 %v2396, %v2397
        %v2399 = vshll.u32 920167782, %v2384
        %v2400 = vshrl.u32 1326507024, %v2385
        %v2401 = vor.u32 %v2399, %v2400
        %vm2402 = vcmp.lt.s32.totalorder %v2383, 1
        %vm2403 = vcmp.lt.s32.totalorder %v2383, 2
        %vm2404 = vcmp.lt.s32.totalorder %v2383, 3
        %vm2405 = vcmp.lt.s32.totalorder %v2383, 4
        %v2406 = vsel %vm2402, %v2386, %v2389
        %v2407 = vsel %vm2405, %v2395, 2102212464
        %v2408 = vsel %vm2404, %v2392, %v2407
        %v2409 = vsel %vm2403, %v2406, %v2408
        %v2410 = vsel %vm2402, %v2389, %v2392
        %v2411 = vsel %vm2405, %v2398, 920167782
        %v2412 = vsel %vm2404, %v2395, %v2411
        %v2413 = vsel %vm2403, %v2410, %v2412
        %v2414 = vsel %vm2402, %v2392, %v2395
        %v2415 = vsel %vm2405, %v2401, 1326507024
        %v2416 = vsel %vm2404, %v2398, %v2415
        %v2417 = vsel %vm2403, %v2414, %v2416
        %v2418 = vshll.u32 %v2378, 8
        %v2419 = vmul.u32.u64.compose %v2418, %v2417
        %v2420 = vextract.low.u32 %v2419
        %v2421 = vextract.high.u32 %v2419
        %v2422 = vmul.u32.u64.compose %v2418, %v2413
        %v2423 = vextract.low.u32 %v2422
        %v2424 = vextract.high.u32 %v2422
        %v2425 = vmul.u32 %v2418, %v2409
        %v2426 = vadd.s32 %v2421, %v2423
        %vm2427 = vc.u32 %v2421, %v2423
        %v2428 = vadd.s32 %v2424, 1
        %v2429 = vsel %vm2427, %v2428, %v2424
        %v2430 = vadd.s32 %v2425, %v2429
        %v2431 = vadd.s32 %v2430, 536870912
        %v2432 = vshrl.u32 %v2431, 30
        %v2433 = vshll.u32 %v2432, 30
        %v2434 = vsub.s32 %v2430, %v2433
        %vm2435 = vcmp.lt.s32.totalorder %v2434, 0
        %v2436 = vsub.s32 0, %v2434
        %v2437 = vsel %vm2435, %v2436, %v2434
        %v2438 = vclz %v2437
        %v2439 = vsub.s32 %v2438, 2
        %vm2440 = vcmp.gt.s32.totalorder 0, %v2439
        %v2441 = vsel %vm2440, 0, %v2439
        %v2442 = vsub.s32 32, %v2441
        %v2443 = vshll.u32 %v2434, %v2441
        %v2444 = vshrl.u32 %v2426, %v2442
        %v2445 = vor.u32 %v2443, %v2444
        %v2446 = vsub.s32 4294967266, %v2441
        %v2447 = vadd.s32 %v2446, 127
        %v2448 = vshll.u32 %v2447, 23
        %v2449 = vor.u32 4788187, %v2448
        %v2450 = vand.u32 2147483647, %v2449
        %v2452 = vcvt.s32.f32 %v2445
        %v2453 = vmul.f32 %v2452, %v2450
        %v2454 = vxor.u32 %v2453, 2147483648
        %v2455 = vsel %vm2372, %v2454, %v2453
        %v2456 = vsub.s32 4, %v2432
        %v2457 = vsel %vm2372, %v2456, %v2432
        %v2458 = vsel %vm2371, %v429, %v2455
        %v2459 = vsel %vm2371, 0, %v2457
        %v2460 = vcosq.f32.pop %v2458
        %v2461 = vsinq.f32.pop %v2458
        %vm2462 = vweird.f32 %v429
        %v2463 = vadd.s32 %v2459, 3
        %v2464 = vand.u32 %v2463, 3
        %vm2465 = vcmp.lt.s32.totalorder %v2464, 2
        %vm2466 = vcmp.eq.s32.totalorder %v2464, 0
        %v2467 = vxor.u32 %v2461, 2147483648
        %v2468 = vsel %vm2466, %v2460, %v2467
        %vm2469 = vcmp.eq.s32.totalorder %v2464, 2
        %v2470 = vxor.u32 %v2460, 2147483648
        %v2471 = vsel %vm2469, %v2470, %v2461
        %v2472 = vsel %vm2465, %v2468, %v2471
        %v2473 = vsel %vm2462, nan, %v2472
        %v2474 = vand.u32 2147483647, %v431
        %vm2475 = vcmp.le.f32.partialorder %v2474, 0.7853982
        %vm2476 = vcmp.lt.s32.totalorder %v431, 0
        %v2477 = vand.u32 %v431, 2139095040
        %v2478 = vshrl.u32 %v2477, 23
        %v2479 = vsub.s32 %v2478, 127
        %v2480 = vand.u32 2147483647, %v431
        %v2481 = vand.u32 %v2480, 8388607
        %v2482 = vor.u32 %v2481, 8388608
        %v2483 = vsub.s32 0, %v2482
        %v2484 = vadd.s32 %v2479, 1
        %vm2485 = vcmp.gt.s32.totalorder %v2484, 0
        %v2486 = vsel %vm2485, %v2484, 0
        %v2487 = vshrl.u32 %v2486, 5
        %v2488 = vand.u32 %v2486, 31
        %v2489 = vsub.s32 32, %v2488
        %v2490 = vshrl.u32 683565275, %v2489
        %v2491 = vshll.u32 683565275, %v2488
        %v2492 = vshrl.u32 2475754826, %v2489
        %v2493 = vor.u32 %v2491, %v2492
        %v2494 = vshll.u32 2475754826, %v2488
        %v2495 = vshrl.u32 2131351028, %v2489
        %v2496 = vor.u32 %v2494, %v2495
        %v2497 = vshll.u32 2131351028, %v2488
        %v2498 = vshrl.u32 2102212464, %v2489
        %v2499 = vor.u32 %v2497, %v2498
        %v2500 = vshll.u32 2102212464, %v2488
        %v2501 = vshrl.u32 920167782, %v2489
        %v2502 = vor.u32 %v2500, %v2501
        %v2503 = vshll.u32 920167782, %v2488
        %v2504 = vshrl.u32 1326507024, %v2489
        %v2505 = vor.u32 %v2503, %v2504
        %vm2506 = vcmp.lt.s32.totalorder %v2487, 1
        %vm2507 = vcmp.lt.s32.totalorder %v2487, 2
        %vm2508 = vcmp.lt.s32.totalorder %v2487, 3
        %vm2509 = vcmp.lt.s32.totalorder %v2487, 4
        %v2510 = vsel %vm2506, %v2490, %v2493
        %v2511 = vsel %vm2509, %v2499, 2102212464
        %v2512 = vsel %vm2508, %v2496, %v2511
        %v2513 = vsel %vm2507, %v2510, %v2512
        %v2514 = vsel %vm2506, %v2493, %v2496
        %v2515 = vsel %vm2509, %v2502, 920167782
        %v2516 = vsel %vm2508, %v2499, %v2515
        %v2517 = vsel %vm2507, %v2514, %v2516
        %v2518 = vsel %vm2506, %v2496, %v2499
        %v2519 = vsel %vm2509, %v2505, 1326507024
        %v2520 = vsel %vm2508, %v2502, %v2519
        %v2521 = vsel %vm2507, %v2518, %v2520
        %v2522 = vshll.u32 %v2482, 8
        %v2523 = vmul.u32.u64.compose %v2522, %v2521
        %v2524 = vextract.low.u32 %v2523
        %v2525 = vextract.high.u32 %v2523
        %v2526 = vmul.u32.u64.compose %v2522, %v2517
        %v2527 = vextract.low.u32 %v2526
        %v2528 = vextract.high.u32 %v2526
        %v2529 = vmul.u32 %v2522, %v2513
        %v2530 = vadd.s32 %v2525, %v2527
        %vm2531 = vc.u32 %v2525, %v2527
        %v2532 = vadd.s32 %v2528, 1
        %v2533 = vsel %vm2531, %v2532, %v2528
        %v2534 = vadd.s32 %v2529, %v2533
        %v2535 = vadd.s32 %v2534, 536870912
        %v2536 = vshrl.u32 %v2535, 30
        %v2537 = vshll.u32 %v2536, 30
        %v2538 = vsub.s32 %v2534, %v2537
        %vm2539 = vcmp.lt.s32.totalorder %v2538, 0
        %v2540 = vsub.s32 0, %v2538
        %v2541 = vsel %vm2539, %v2540, %v2538
        %v2542 = vclz %v2541
        %v2543 = vsub.s32 %v2542, 2
        %vm2544 = vcmp.gt.s32.totalorder 0, %v2543
        %v2545 = vsel %vm2544, 0, %v2543
        %v2546 = vsub.s32 32, %v2545
        %v2547 = vshll.u32 %v2538, %v2545
        %v2548 = vshrl.u32 %v2530, %v2546
        %v2549 = vor.u32 %v2547, %v2548
        %v2550 = vsub.s32 4294967266, %v2545
        %v2551 = vadd.s32 %v2550, 127
        %v2552 = vshll.u32 %v2551, 23
        %v2553 = vor.u32 4788187, %v2552
        %v2554 = vand.u32 2147483647, %v2553
        %v2556 = vcvt.s32.f32 %v2549
        %v2557 = vmul.f32 %v2556, %v2554
        %v2558 = vxor.u32 %v2557, 2147483648
        %v2559 = vsel %vm2476, %v2558, %v2557
        %v2560 = vsub.s32 4, %v2536
        %v2561 = vsel %vm2476, %v2560, %v2536
        %v2562 = vsel %vm2475, %v431, %v2559
        %v2563 = vsel %vm2475, 0, %v2561
        %v2564 = vcosq.f32.pop %v2562
        %v2565 = vsinq.f32.pop %v2562
        %vm2566 = vweird.f32 %v431
        %v2567 = vadd.s32 %v2563, 3
        %v2568 = vand.u32 %v2567, 3
        %vm2569 = vcmp.lt.s32.totalorder %v2568, 2
        %vm2570 = vcmp.eq.s32.totalorder %v2568, 0
        %v2571 = vxor.u32 %v2565, 2147483648
        %v2572 = vsel %vm2570, %v2564, %v2571
        %vm2573 = vcmp.eq.s32.totalorder %v2568, 2
        %v2574 = vxor.u32 %v2564, 2147483648
        %v2575 = vsel %vm2573, %v2574, %v2565
        %v2576 = vsel %vm2569, %v2572, %v2575
        %v2577 = vsel %vm2566, nan, %v2576
        %v2578 = vand.u32 2147483647, %v518
        %vm2579 = vcmp.le.f32.partialorder %v2578, 0.7853982
        %vm2580 = vcmp.lt.s32.totalorder %v518, 0
        %v2581 = vand.u32 %v518, 2139095040
        %v2582 = vshrl.u32 %v2581, 23
        %v2583 = vsub.s32 %v2582, 127
        %v2584 = vand.u32 2147483647, %v518
        %v2585 = vand.u32 %v2584, 8388607
        %v2586 = vor.u32 %v2585, 8388608
        %v2587 = vsub.s32 0, %v2586
        %v2588 = vadd.s32 %v2583, 1
        %vm2589 = vcmp.gt.s32.totalorder %v2588, 0
        %v2590 = vsel %vm2589, %v2588, 0
        %v2591 = vshrl.u32 %v2590, 5
        %v2592 = vand.u32 %v2590, 31
        %v2593 = vsub.s32 32, %v2592
        %v2594 = vshrl.u32 683565275, %v2593
        %v2595 = vshll.u32 683565275, %v2592
        %v2596 = vshrl.u32 2475754826, %v2593
        %v2597 = vor.u32 %v2595, %v2596
        %v2598 = vshll.u32 2475754826, %v2592
        %v2599 = vshrl.u32 2131351028, %v2593
        %v2600 = vor.u32 %v2598, %v2599
        %v2601 = vshll.u32 2131351028, %v2592
        %v2602 = vshrl.u32 2102212464, %v2593
        %v2603 = vor.u32 %v2601, %v2602
        %v2604 = vshll.u32 2102212464, %v2592
        %v2605 = vshrl.u32 920167782, %v2593
        %v2606 = vor.u32 %v2604, %v2605
        %v2607 = vshll.u32 920167782, %v2592
        %v2608 = vshrl.u32 1326507024, %v2593
        %v2609 = vor.u32 %v2607, %v2608
        %vm2610 = vcmp.lt.s32.totalorder %v2591, 1
        %vm2611 = vcmp.lt.s32.totalorder %v2591, 2
        %vm2612 = vcmp.lt.s32.totalorder %v2591, 3
        %vm2613 = vcmp.lt.s32.totalorder %v2591, 4
        %v2614 = vsel %vm2610, %v2594, %v2597
        %v2615 = vsel %vm2613, %v2603, 2102212464
        %v2616 = vsel %vm2612, %v2600, %v2615
        %v2617 = vsel %vm2611, %v2614, %v2616
        %v2618 = vsel %vm2610, %v2597, %v2600
        %v2619 = vsel %vm2613, %v2606, 920167782
        %v2620 = vsel %vm2612, %v2603, %v2619
        %v2621 = vsel %vm2611, %v2618, %v2620
        %v2622 = vsel %vm2610, %v2600, %v2603
        %v2623 = vsel %vm2613, %v2609, 1326507024
        %v2624 = vsel %vm2612, %v2606, %v2623
        %v2625 = vsel %vm2611, %v2622, %v2624
        %v2626 = vshll.u32 %v2586, 8
        %v2627 = vmul.u32.u64.compose %v2626, %v2625
        %v2628 = vextract.low.u32 %v2627
        %v2629 = vextract.high.u32 %v2627
        %v2630 = vmul.u32.u64.compose %v2626, %v2621
        %v2631 = vextract.low.u32 %v2630
        %v2632 = vextract.high.u32 %v2630
        %v2633 = vmul.u32 %v2626, %v2617
        %v2634 = vadd.s32 %v2629, %v2631
        %vm2635 = vc.u32 %v2629, %v2631
        %v2636 = vadd.s32 %v2632, 1
        %v2637 = vsel %vm2635, %v2636, %v2632
        %v2638 = vadd.s32 %v2633, %v2637
        %v2639 = vadd.s32 %v2638, 536870912
        %v2640 = vshrl.u32 %v2639, 30
        %v2641 = vshll.u32 %v2640, 30
        %v2642 = vsub.s32 %v2638, %v2641
        %vm2643 = vcmp.lt.s32.totalorder %v2642, 0
        %v2644 = vsub.s32 0, %v2642
        %v2645 = vsel %vm2643, %v2644, %v2642
        %v2646 = vclz %v2645
        %v2647 = vsub.s32 %v2646, 2
        %vm2648 = vcmp.gt.s32.totalorder 0, %v2647
        %v2649 = vsel %vm2648, 0, %v2647
        %v2650 = vsub.s32 32, %v2649
        %v2651 = vshll.u32 %v2642, %v2649
        %v2652 = vshrl.u32 %v2634, %v2650
        %v2653 = vor.u32 %v2651, %v2652
        %v2654 = vsub.s32 4294967266, %v2649
        %v2655 = vadd.s32 %v2654, 127
        %v2656 = vshll.u32 %v2655, 23
        %v2657 = vor.u32 4788187, %v2656
        %v2658 = vand.u32 2147483647, %v2657
        %v2660 = vcvt.s32.f32 %v2653
        %v2661 = vmul.f32 %v2660, %v2658
        %v2662 = vxor.u32 %v2661, 2147483648
        %v2663 = vsel %vm2580, %v2662, %v2661
        %v2664 = vsub.s32 4, %v2640
        %v2665 = vsel %vm2580, %v2664, %v2640
        %v2666 = vsel %vm2579, %v518, %v2663
        %v2667 = vsel %vm2579, 0, %v2665
        %v2668 = vcosq.f32.pop %v2666
        %v2669 = vsinq.f32.pop %v2666
        %vm2670 = vweird.f32 %v518
        %v2671 = vadd.s32 %v2667, 3
        %v2672 = vand.u32 %v2671, 3
        %vm2673 = vcmp.lt.s32.totalorder %v2672, 2
        %vm2674 = vcmp.eq.s32.totalorder %v2672, 0
        %v2675 = vxor.u32 %v2669, 2147483648
        %v2676 = vsel %vm2674, %v2668, %v2675
        %vm2677 = vcmp.eq.s32.totalorder %v2672, 2
        %v2678 = vxor.u32 %v2668, 2147483648
        %v2679 = vsel %vm2677, %v2678, %v2669
        %v2680 = vsel %vm2673, %v2676, %v2679
        %v2681 = vsel %vm2670, nan, %v2680
        %v2682 = vand.u32 2147483647, %v520
        %vm2683 = vcmp.le.f32.partialorder %v2682, 0.7853982
        %vm2684 = vcmp.lt.s32.totalorder %v520, 0
        %v2685 = vand.u32 %v520, 2139095040
        %v2686 = vshrl.u32 %v2685, 23
        %v2687 = vsub.s32 %v2686, 127
        %v2688 = vand.u32 2147483647, %v520
        %v2689 = vand.u32 %v2688, 8388607
        %v2690 = vor.u32 %v2689, 8388608
        %v2691 = vsub.s32 0, %v2690
        %v2692 = vadd.s32 %v2687, 1
        %vm2693 = vcmp.gt.s32.totalorder %v2692, 0
        %v2694 = vsel %vm2693, %v2692, 0
        %v2695 = vshrl.u32 %v2694, 5
        %v2696 = vand.u32 %v2694, 31
        %v2697 = vsub.s32 32, %v2696
        %v2698 = vshrl.u32 683565275, %v2697
        %v2699 = vshll.u32 683565275, %v2696
        %v2700 = vshrl.u32 2475754826, %v2697
        %v2701 = vor.u32 %v2699, %v2700
        %v2702 = vshll.u32 2475754826, %v2696
        %v2703 = vshrl.u32 2131351028, %v2697
        %v2704 = vor.u32 %v2702, %v2703
        %v2705 = vshll.u32 2131351028, %v2696
        %v2706 = vshrl.u32 2102212464, %v2697
        %v2707 = vor.u32 %v2705, %v2706
        %v2708 = vshll.u32 2102212464, %v2696
        %v2709 = vshrl.u32 920167782, %v2697
        %v2710 = vor.u32 %v2708, %v2709
        %v2711 = vshll.u32 920167782, %v2696
        %v2712 = vshrl.u32 1326507024, %v2697
        %v2713 = vor.u32 %v2711, %v2712
        %vm2714 = vcmp.lt.s32.totalorder %v2695, 1
        %vm2715 = vcmp.lt.s32.totalorder %v2695, 2
        %vm2716 = vcmp.lt.s32.totalorder %v2695, 3
        %vm2717 = vcmp.lt.s32.totalorder %v2695, 4
        %v2718 = vsel %vm2714, %v2698, %v2701
        %v2719 = vsel %vm2717, %v2707, 2102212464
        %v2720 = vsel %vm2716, %v2704, %v2719
        %v2721 = vsel %vm2715, %v2718, %v2720
        %v2722 = vsel %vm2714, %v2701, %v2704
        %v2723 = vsel %vm2717, %v2710, 920167782
        %v2724 = vsel %vm2716, %v2707, %v2723
        %v2725 = vsel %vm2715, %v2722, %v2724
        %v2726 = vsel %vm2714, %v2704, %v2707
        %v2727 = vsel %vm2717, %v2713, 1326507024
        %v2728 = vsel %vm2716, %v2710, %v2727
        %v2729 = vsel %vm2715, %v2726, %v2728
        %v2730 = vshll.u32 %v2690, 8
        %v2731 = vmul.u32.u64.compose %v2730, %v2729
        %v2732 = vextract.low.u32 %v2731
        %v2733 = vextract.high.u32 %v2731
        %v2734 = vmul.u32.u64.compose %v2730, %v2725
        %v2735 = vextract.low.u32 %v2734
        %v2736 = vextract.high.u32 %v2734
        %v2737 = vmul.u32 %v2730, %v2721
        %v2738 = vadd.s32 %v2733, %v2735
        %vm2739 = vc.u32 %v2733, %v2735
        %v2740 = vadd.s32 %v2736, 1
        %v2741 = vsel %vm2739, %v2740, %v2736
        %v2742 = vadd.s32 %v2737, %v2741
        %v2743 = vadd.s32 %v2742, 536870912
        %v2744 = vshrl.u32 %v2743, 30
        %v2745 = vshll.u32 %v2744, 30
        %v2746 = vsub.s32 %v2742, %v2745
        %vm2747 = vcmp.lt.s32.totalorder %v2746, 0
        %v2748 = vsub.s32 0, %v2746
        %v2749 = vsel %vm2747, %v2748, %v2746
        %v2750 = vclz %v2749
        %v2751 = vsub.s32 %v2750, 2
        %vm2752 = vcmp.gt.s32.totalorder 0, %v2751
        %v2753 = vsel %vm2752, 0, %v2751
        %v2754 = vsub.s32 32, %v2753
        %v2755 = vshll.u32 %v2746, %v2753
        %v2756 = vshrl.u32 %v2738, %v2754
        %v2757 = vor.u32 %v2755, %v2756
        %v2758 = vsub.s32 4294967266, %v2753
        %v2759 = vadd.s32 %v2758, 127
        %v2760 = vshll.u32 %v2759, 23
        %v2761 = vor.u32 4788187, %v2760
        %v2762 = vand.u32 2147483647, %v2761
        %v2764 = vcvt.s32.f32 %v2757
        %v2765 = vmul.f32 %v2764, %v2762
        %v2766 = vxor.u32 %v2765, 2147483648
        %v2767 = vsel %vm2684, %v2766, %v2765
        %v2768 = vsub.s32 4, %v2744
        %v2769 = vsel %vm2684, %v2768, %v2744
        %v2770 = vsel %vm2683, %v520, %v2767
        %v2771 = vsel %vm2683, 0, %v2769
        %v2772 = vcosq.f32.pop %v2770
        %v2773 = vsinq.f32.pop %v2770
        %vm2774 = vweird.f32 %v520
        %v2775 = vadd.s32 %v2771, 3
        %v2776 = vand.u32 %v2775, 3
        %vm2777 = vcmp.lt.s32.totalorder %v2776, 2
        %vm2778 = vcmp.eq.s32.totalorder %v2776, 0
        %v2779 = vxor.u32 %v2773, 2147483648
        %v2780 = vsel %vm2778, %v2772, %v2779
        %vm2781 = vcmp.eq.s32.totalorder %v2776, 2
        %v2782 = vxor.u32 %v2772, 2147483648
        %v2783 = vsel %vm2781, %v2782, %v2773
        %v2784 = vsel %vm2777, %v2780, %v2783
        %v2785 = vsel %vm2774, nan, %v2784
        %v2786 = vand.u32 2147483647, %v607
        %vm2787 = vcmp.le.f32.partialorder %v2786, 0.7853982
        %vm2788 = vcmp.lt.s32.totalorder %v607, 0
        %v2789 = vand.u32 %v607, 2139095040
        %v2790 = vshrl.u32 %v2789, 23
        %v2791 = vsub.s32 %v2790, 127
        %v2792 = vand.u32 2147483647, %v607
        %v2793 = vand.u32 %v2792, 8388607
        %v2794 = vor.u32 %v2793, 8388608
        %v2795 = vsub.s32 0, %v2794
        %v2796 = vadd.s32 %v2791, 1
        %vm2797 = vcmp.gt.s32.totalorder %v2796, 0
        %v2798 = vsel %vm2797, %v2796, 0
        %v2799 = vshrl.u32 %v2798, 5
        %v2800 = vand.u32 %v2798, 31
        %v2801 = vsub.s32 32, %v2800
        %v2802 = vshrl.u32 683565275, %v2801
        %v2803 = vshll.u32 683565275, %v2800
        %v2804 = vshrl.u32 2475754826, %v2801
        %v2805 = vor.u32 %v2803, %v2804
        %v2806 = vshll.u32 2475754826, %v2800
        %v2807 = vshrl.u32 2131351028, %v2801
        %v2808 = vor.u32 %v2806, %v2807
        %v2809 = vshll.u32 2131351028, %v2800
        %v2810 = vshrl.u32 2102212464, %v2801
        %v2811 = vor.u32 %v2809, %v2810
        %v2812 = vshll.u32 2102212464, %v2800
        %v2813 = vshrl.u32 920167782, %v2801
        %v2814 = vor.u32 %v2812, %v2813
        %v2815 = vshll.u32 920167782, %v2800
        %v2816 = vshrl.u32 1326507024, %v2801
        %v2817 = vor.u32 %v2815, %v2816
        %vm2818 = vcmp.lt.s32.totalorder %v2799, 1
        %vm2819 = vcmp.lt.s32.totalorder %v2799, 2
        %vm2820 = vcmp.lt.s32.totalorder %v2799, 3
        %vm2821 = vcmp.lt.s32.totalorder %v2799, 4
        %v2822 = vsel %vm2818, %v2802, %v2805
        %v2823 = vsel %vm2821, %v2811, 2102212464
        %v2824 = vsel %vm2820, %v2808, %v2823
        %v2825 = vsel %vm2819, %v2822, %v2824
        %v2826 = vsel %vm2818, %v2805, %v2808
        %v2827 = vsel %vm2821, %v2814, 920167782
        %v2828 = vsel %vm2820, %v2811, %v2827
        %v2829 = vsel %vm2819, %v2826, %v2828
        %v2830 = vsel %vm2818, %v2808, %v2811
        %v2831 = vsel %vm2821, %v2817, 1326507024
        %v2832 = vsel %vm2820, %v2814, %v2831
        %v2833 = vsel %vm2819, %v2830, %v2832
        %v2834 = vshll.u32 %v2794, 8
        %v2835 = vmul.u32.u64.compose %v2834, %v2833
        %v2836 = vextract.low.u32 %v2835
        %v2837 = vextract.high.u32 %v2835
        %v2838 = vmul.u32.u64.compose %v2834, %v2829
        %v2839 = vextract.low.u32 %v2838
        %v2840 = vextract.high.u32 %v2838
        %v2841 = vmul.u32 %v2834, %v2825
        %v2842 = vadd.s32 %v2837, %v2839
        %vm2843 = vc.u32 %v2837, %v2839
        %v2844 = vadd.s32 %v2840, 1
        %v2845 = vsel %vm2843, %v2844, %v2840
        %v2846 = vadd.s32 %v2841, %v2845
        %v2847 = vadd.s32 %v2846, 536870912
        %v2848 = vshrl.u32 %v2847, 30
        %v2849 = vshll.u32 %v2848, 30
        %v2850 = vsub.s32 %v2846, %v2849
        %vm2851 = vcmp.lt.s32.totalorder %v2850, 0
        %v2852 = vsub.s32 0, %v2850
        %v2853 = vsel %vm2851, %v2852, %v2850
        %v2854 = vclz %v2853
        %v2855 = vsub.s32 %v2854, 2
        %vm2856 = vcmp.gt.s32.totalorder 0, %v2855
        %v2857 = vsel %vm2856, 0, %v2855
        %v2858 = vsub.s32 32, %v2857
        %v2859 = vshll.u32 %v2850, %v2857
        %v2860 = vshrl.u32 %v2842, %v2858
        %v2861 = vor.u32 %v2859, %v2860
        %v2862 = vsub.s32 4294967266, %v2857
        %v2863 = vadd.s32 %v2862, 127
        %v2864 = vshll.u32 %v2863, 23
        %v2865 = vor.u32 4788187, %v2864
        %v2866 = vand.u32 2147483647, %v2865
        %v2868 = vcvt.s32.f32 %v2861
        %v2869 = vmul.f32 %v2868, %v2866
        %v2870 = vxor.u32 %v2869, 2147483648
        %v2871 = vsel %vm2788, %v2870, %v2869
        %v2872 = vsub.s32 4, %v2848
        %v2873 = vsel %vm2788, %v2872, %v2848
        %v2874 = vsel %vm2787, %v607, %v2871
        %v2875 = vsel %vm2787, 0, %v2873
        %v2876 = vcosq.f32.pop %v2874
        %v2877 = vsinq.f32.pop %v2874
        %vm2878 = vweird.f32 %v607
        %v2879 = vadd.s32 %v2875, 3
        %v2880 = vand.u32 %v2879, 3
        %vm2881 = vcmp.lt.s32.totalorder %v2880, 2
        %vm2882 = vcmp.eq.s32.totalorder %v2880, 0
        %v2883 = vxor.u32 %v2877, 2147483648
        %v2884 = vsel %vm2882, %v2876, %v2883
        %vm2885 = vcmp.eq.s32.totalorder %v2880, 2
        %v2886 = vxor.u32 %v2876, 2147483648
        %v2887 = vsel %vm2885, %v2886, %v2877
        %v2888 = vsel %vm2881, %v2884, %v2887
        %v2889 = vsel %vm2878, nan, %v2888
        %v2890 = vand.u32 2147483647, %v609
        %vm2891 = vcmp.le.f32.partialorder %v2890, 0.7853982
        %vm2892 = vcmp.lt.s32.totalorder %v609, 0
        %v2893 = vand.u32 %v609, 2139095040
        %v2894 = vshrl.u32 %v2893, 23
        %v2895 = vsub.s32 %v2894, 127
        %v2896 = vand.u32 2147483647, %v609
        %v2897 = vand.u32 %v2896, 8388607
        %v2898 = vor.u32 %v2897, 8388608
        %v2899 = vsub.s32 0, %v2898
        %v2900 = vadd.s32 %v2895, 1
        %vm2901 = vcmp.gt.s32.totalorder %v2900, 0
        %v2902 = vsel %vm2901, %v2900, 0
        %v2903 = vshrl.u32 %v2902, 5
        %v2904 = vand.u32 %v2902, 31
        %v2905 = vsub.s32 32, %v2904
        %v2906 = vshrl.u32 683565275, %v2905
        %v2907 = vshll.u32 683565275, %v2904
        %v2908 = vshrl.u32 2475754826, %v2905
        %v2909 = vor.u32 %v2907, %v2908
        %v2910 = vshll.u32 2475754826, %v2904
        %v2911 = vshrl.u32 2131351028, %v2905
        %v2912 = vor.u32 %v2910, %v2911
        %v2913 = vshll.u32 2131351028, %v2904
        %v2914 = vshrl.u32 2102212464, %v2905
        %v2915 = vor.u32 %v2913, %v2914
        %v2916 = vshll.u32 2102212464, %v2904
        %v2917 = vshrl.u32 920167782, %v2905
        %v2918 = vor.u32 %v2916, %v2917
        %v2919 = vshll.u32 920167782, %v2904
        %v2920 = vshrl.u32 1326507024, %v2905
        %v2921 = vor.u32 %v2919, %v2920
        %vm2922 = vcmp.lt.s32.totalorder %v2903, 1
        %vm2923 = vcmp.lt.s32.totalorder %v2903, 2
        %vm2924 = vcmp.lt.s32.totalorder %v2903, 3
        %vm2925 = vcmp.lt.s32.totalorder %v2903, 4
        %v2926 = vsel %vm2922, %v2906, %v2909
        %v2927 = vsel %vm2925, %v2915, 2102212464
        %v2928 = vsel %vm2924, %v2912, %v2927
        %v2929 = vsel %vm2923, %v2926, %v2928
        %v2930 = vsel %vm2922, %v2909, %v2912
        %v2931 = vsel %vm2925, %v2918, 920167782
        %v2932 = vsel %vm2924, %v2915, %v2931
        %v2933 = vsel %vm2923, %v2930, %v2932
        %v2934 = vsel %vm2922, %v2912, %v2915
        %v2935 = vsel %vm2925, %v2921, 1326507024
        %v2936 = vsel %vm2924, %v2918, %v2935
        %v2937 = vsel %vm2923, %v2934, %v2936
        %v2938 = vshll.u32 %v2898, 8
        %v2939 = vmul.u32.u64.compose %v2938, %v2937
        %v2940 = vextract.low.u32 %v2939
        %v2941 = vextract.high.u32 %v2939
        %v2942 = vmul.u32.u64.compose %v2938, %v2933
        %v2943 = vextract.low.u32 %v2942
        %v2944 = vextract.high.u32 %v2942
        %v2945 = vmul.u32 %v2938, %v2929
        %v2946 = vadd.s32 %v2941, %v2943
        %vm2947 = vc.u32 %v2941, %v2943
        %v2948 = vadd.s32 %v2944, 1
        %v2949 = vsel %vm2947, %v2948, %v2944
        %v2950 = vadd.s32 %v2945, %v2949
        %v2951 = vadd.s32 %v2950, 536870912
        %v2952 = vshrl.u32 %v2951, 30
        %v2953 = vshll.u32 %v2952, 30
        %v2954 = vsub.s32 %v2950, %v2953
        %vm2955 = vcmp.lt.s32.totalorder %v2954, 0
        %v2956 = vsub.s32 0, %v2954
        %v2957 = vsel %vm2955, %v2956, %v2954
        %v2958 = vclz %v2957
        %v2959 = vsub.s32 %v2958, 2
        %vm2960 = vcmp.gt.s32.totalorder 0, %v2959
        %v2961 = vsel %vm2960, 0, %v2959
        %v2962 = vsub.s32 32, %v2961
        %v2963 = vshll.u32 %v2954, %v2961
        %v2964 = vshrl.u32 %v2946, %v2962
        %v2965 = vor.u32 %v2963, %v2964
        %v2966 = vsub.s32 4294967266, %v2961
        %v2967 = vadd.s32 %v2966, 127
        %v2968 = vshll.u32 %v2967, 23
        %v2969 = vor.u32 4788187, %v2968
        %v2970 = vand.u32 2147483647, %v2969
        %v2972 = vcvt.s32.f32 %v2965
        %v2973 = vmul.f32 %v2972, %v2970
        %v2974 = vxor.u32 %v2973, 2147483648
        %v2975 = vsel %vm2892, %v2974, %v2973
        %v2976 = vsub.s32 4, %v2952
        %v2977 = vsel %vm2892, %v2976, %v2952
        %v2978 = vsel %vm2891, %v609, %v2975
        %v2979 = vsel %vm2891, 0, %v2977
        %v2980 = vcosq.f32.pop %v2978
        %v2981 = vsinq.f32.pop %v2978
        %vm2982 = vweird.f32 %v609
        %v2983 = vadd.s32 %v2979, 3
        %v2984 = vand.u32 %v2983, 3
        %vm2985 = vcmp.lt.s32.totalorder %v2984, 2
        %vm2986 = vcmp.eq.s32.totalorder %v2984, 0
        %v2987 = vxor.u32 %v2981, 2147483648
        %v2988 = vsel %vm2986, %v2980, %v2987
        %vm2989 = vcmp.eq.s32.totalorder %v2984, 2
        %v2990 = vxor.u32 %v2980, 2147483648
        %v2991 = vsel %vm2989, %v2990, %v2981
        %v2992 = vsel %vm2985, %v2988, %v2991
        %v2993 = vsel %vm2982, nan, %v2992
        %v2994 = vand.u32 2147483647, %v696
        %vm2995 = vcmp.le.f32.partialorder %v2994, 0.7853982
        %vm2996 = vcmp.lt.s32.totalorder %v696, 0
        %v2997 = vand.u32 %v696, 2139095040
        %v2998 = vshrl.u32 %v2997, 23
        %v2999 = vsub.s32 %v2998, 127
        %v3000 = vand.u32 2147483647, %v696
        %v3001 = vand.u32 %v3000, 8388607
        %v3002 = vor.u32 %v3001, 8388608
        %v3003 = vsub.s32 0, %v3002
        %v3004 = vadd.s32 %v2999, 1
        %vm3005 = vcmp.gt.s32.totalorder %v3004, 0
        %v3006 = vsel %vm3005, %v3004, 0
        %v3007 = vshrl.u32 %v3006, 5
        %v3008 = vand.u32 %v3006, 31
        %v3009 = vsub.s32 32, %v3008
        %v3010 = vshrl.u32 683565275, %v3009
        %v3011 = vshll.u32 683565275, %v3008
        %v3012 = vshrl.u32 2475754826, %v3009
        %v3013 = vor.u32 %v3011, %v3012
        %v3014 = vshll.u32 2475754826, %v3008
        %v3015 = vshrl.u32 2131351028, %v3009
        %v3016 = vor.u32 %v3014, %v3015
        %v3017 = vshll.u32 2131351028, %v3008
        %v3018 = vshrl.u32 2102212464, %v3009
        %v3019 = vor.u32 %v3017, %v3018
        %v3020 = vshll.u32 2102212464, %v3008
        %v3021 = vshrl.u32 920167782, %v3009
        %v3022 = vor.u32 %v3020, %v3021
        %v3023 = vshll.u32 920167782, %v3008
        %v3024 = vshrl.u32 1326507024, %v3009
        %v3025 = vor.u32 %v3023, %v3024
        %vm3026 = vcmp.lt.s32.totalorder %v3007, 1
        %vm3027 = vcmp.lt.s32.totalorder %v3007, 2
        %vm3028 = vcmp.lt.s32.totalorder %v3007, 3
        %vm3029 = vcmp.lt.s32.totalorder %v3007, 4
        %v3030 = vsel %vm3026, %v3010, %v3013
        %v3031 = vsel %vm3029, %v3019, 2102212464
        %v3032 = vsel %vm3028, %v3016, %v3031
        %v3033 = vsel %vm3027, %v3030, %v3032
        %v3034 = vsel %vm3026, %v3013, %v3016
        %v3035 = vsel %vm3029, %v3022, 920167782
        %v3036 = vsel %vm3028, %v3019, %v3035
        %v3037 = vsel %vm3027, %v3034, %v3036
        %v3038 = vsel %vm3026, %v3016, %v3019
        %v3039 = vsel %vm3029, %v3025, 1326507024
        %v3040 = vsel %vm3028, %v3022, %v3039
        %v3041 = vsel %vm3027, %v3038, %v3040
        %v3042 = vshll.u32 %v3002, 8
        %v3043 = vmul.u32.u64.compose %v3042, %v3041
        %v3044 = vextract.low.u32 %v3043
        %v3045 = vextract.high.u32 %v3043
        %v3046 = vmul.u32.u64.compose %v3042, %v3037
        %v3047 = vextract.low.u32 %v3046
        %v3048 = vextract.high.u32 %v3046
        %v3049 = vmul.u32 %v3042, %v3033
        %v3050 = vadd.s32 %v3045, %v3047
        %vm3051 = vc.u32 %v3045, %v3047
        %v3052 = vadd.s32 %v3048, 1
        %v3053 = vsel %vm3051, %v3052, %v3048
        %v3054 = vadd.s32 %v3049, %v3053
        %v3055 = vadd.s32 %v3054, 536870912
        %v3056 = vshrl.u32 %v3055, 30
        %v3057 = vshll.u32 %v3056, 30
        %v3058 = vsub.s32 %v3054, %v3057
        %vm3059 = vcmp.lt.s32.totalorder %v3058, 0
        %v3060 = vsub.s32 0, %v3058
        %v3061 = vsel %vm3059, %v3060, %v3058
        %v3062 = vclz %v3061
        %v3063 = vsub.s32 %v3062, 2
        %vm3064 = vcmp.gt.s32.totalorder 0, %v3063
        %v3065 = vsel %vm3064, 0, %v3063
        %v3066 = vsub.s32 32, %v3065
        %v3067 = vshll.u32 %v3058, %v3065
        %v3068 = vshrl.u32 %v3050, %v3066
        %v3069 = vor.u32 %v3067, %v3068
        %v3070 = vsub.s32 4294967266, %v3065
        %v3071 = vadd.s32 %v3070, 127
        %v3072 = vshll.u32 %v3071, 23
        %v3073 = vor.u32 4788187, %v3072
        %v3074 = vand.u32 2147483647, %v3073
        %v3076 = vcvt.s32.f32 %v3069
        %v3077 = vmul.f32 %v3076, %v3074
        %v3078 = vxor.u32 %v3077, 2147483648
        %v3079 = vsel %vm2996, %v3078, %v3077
        %v3080 = vsub.s32 4, %v3056
        %v3081 = vsel %vm2996, %v3080, %v3056
        %v3082 = vsel %vm2995, %v696, %v3079
        %v3083 = vsel %vm2995, 0, %v3081
        %v3084 = vcosq.f32.pop %v3082
        %v3085 = vsinq.f32.pop %v3082
        %vm3086 = vweird.f32 %v696
        %v3087 = vadd.s32 %v3083, 3
        %v3088 = vand.u32 %v3087, 3
        %vm3089 = vcmp.lt.s32.totalorder %v3088, 2
        %vm3090 = vcmp.eq.s32.totalorder %v3088, 0
        %v3091 = vxor.u32 %v3085, 2147483648
        %v3092 = vsel %vm3090, %v3084, %v3091
        %vm3093 = vcmp.eq.s32.totalorder %v3088, 2
        %v3094 = vxor.u32 %v3084, 2147483648
        %v3095 = vsel %vm3093, %v3094, %v3085
        %v3096 = vsel %vm3089, %v3092, %v3095
        %v3097 = vsel %vm3086, nan, %v3096
        %v3098 = vand.u32 2147483647, %v698
        %vm3099 = vcmp.le.f32.partialorder %v3098, 0.7853982
        %vm3100 = vcmp.lt.s32.totalorder %v698, 0
        %v3101 = vand.u32 %v698, 2139095040
        %v3102 = vshrl.u32 %v3101, 23
        %v3103 = vsub.s32 %v3102, 127
        %v3104 = vand.u32 2147483647, %v698
        %v3105 = vand.u32 %v3104, 8388607
        %v3106 = vor.u32 %v3105, 8388608
        %v3107 = vsub.s32 0, %v3106
        %v3108 = vadd.s32 %v3103, 1
        %vm3109 = vcmp.gt.s32.totalorder %v3108, 0
        %v3110 = vsel %vm3109, %v3108, 0
        %v3111 = vshrl.u32 %v3110, 5
        %v3112 = vand.u32 %v3110, 31
        %v3113 = vsub.s32 32, %v3112
        %v3114 = vshrl.u32 683565275, %v3113
        %v3115 = vshll.u32 683565275, %v3112
        %v3116 = vshrl.u32 2475754826, %v3113
        %v3117 = vor.u32 %v3115, %v3116
        %v3118 = vshll.u32 2475754826, %v3112
        %v3119 = vshrl.u32 2131351028, %v3113
        %v3120 = vor.u32 %v3118, %v3119
        %v3121 = vshll.u32 2131351028, %v3112
        %v3122 = vshrl.u32 2102212464, %v3113
        %v3123 = vor.u32 %v3121, %v3122
        %v3124 = vshll.u32 2102212464, %v3112
        %v3125 = vshrl.u32 920167782, %v3113
        %v3126 = vor.u32 %v3124, %v3125
        %v3127 = vshll.u32 920167782, %v3112
        %v3128 = vshrl.u32 1326507024, %v3113
        %v3129 = vor.u32 %v3127, %v3128
        %vm3130 = vcmp.lt.s32.totalorder %v3111, 1
        %vm3131 = vcmp.lt.s32.totalorder %v3111, 2
        %vm3132 = vcmp.lt.s32.totalorder %v3111, 3
        %vm3133 = vcmp.lt.s32.totalorder %v3111, 4
        %v3134 = vsel %vm3130, %v3114, %v3117
        %v3135 = vsel %vm3133, %v3123, 2102212464
        %v3136 = vsel %vm3132, %v3120, %v3135
        %v3137 = vsel %vm3131, %v3134, %v3136
        %v3138 = vsel %vm3130, %v3117, %v3120
        %v3139 = vsel %vm3133, %v3126, 920167782
        %v3140 = vsel %vm3132, %v3123, %v3139
        %v3141 = vsel %vm3131, %v3138, %v3140
        %v3142 = vsel %vm3130, %v3120, %v3123
        %v3143 = vsel %vm3133, %v3129, 1326507024
        %v3144 = vsel %vm3132, %v3126, %v3143
        %v3145 = vsel %vm3131, %v3142, %v3144
        %v3146 = vshll.u32 %v3106, 8
        %v3147 = vmul.u32.u64.compose %v3146, %v3145
        %v3148 = vextract.low.u32 %v3147
        %v3149 = vextract.high.u32 %v3147
        %v3150 = vmul.u32.u64.compose %v3146, %v3141
        %v3151 = vextract.low.u32 %v3150
        %v3152 = vextract.high.u32 %v3150
        %v3153 = vmul.u32 %v3146, %v3137
        %v3154 = vadd.s32 %v3149, %v3151
        %vm3155 = vc.u32 %v3149, %v3151
        %v3156 = vadd.s32 %v3152, 1
        %v3157 = vsel %vm3155, %v3156, %v3152
        %v3158 = vadd.s32 %v3153, %v3157
        %v3159 = vadd.s32 %v3158, 536870912
        %v3160 = vshrl.u32 %v3159, 30
        %v3161 = vshll.u32 %v3160, 30
        %v3162 = vsub.s32 %v3158, %v3161
        %vm3163 = vcmp.lt.s32.totalorder %v3162, 0
        %v3164 = vsub.s32 0, %v3162
        %v3165 = vsel %vm3163, %v3164, %v3162
        %v3166 = vclz %v3165
        %v3167 = vsub.s32 %v3166, 2
        %vm3168 = vcmp.gt.s32.totalorder 0, %v3167
        %v3169 = vsel %vm3168, 0, %v3167
        %v3170 = vsub.s32 32, %v3169
        %v3171 = vshll.u32 %v3162, %v3169
        %v3172 = vshrl.u32 %v3154, %v3170
        %v3173 = vor.u32 %v3171, %v3172
        %v3174 = vsub.s32 4294967266, %v3169
        %v3175 = vadd.s32 %v3174, 127
        %v3176 = vshll.u32 %v3175, 23
        %v3177 = vor.u32 4788187, %v3176
        %v3178 = vand.u32 2147483647, %v3177
        %v3180 = vcvt.s32.f32 %v3173
        %v3181 = vmul.f32 %v3180, %v3178
        %v3182 = vxor.u32 %v3181, 2147483648
        %v3183 = vsel %vm3100, %v3182, %v3181
        %v3184 = vsub.s32 4, %v3160
        %v3185 = vsel %vm3100, %v3184, %v3160
        %v3186 = vsel %vm3099, %v698, %v3183
        %v3187 = vsel %vm3099, 0, %v3185
        %v3188 = vcosq.f32.pop %v3186
        %v3189 = vsinq.f32.pop %v3186
        %vm3190 = vweird.f32 %v698
        %v3191 = vadd.s32 %v3187, 3
        %v3192 = vand.u32 %v3191, 3
        %vm3193 = vcmp.lt.s32.totalorder %v3192, 2
        %vm3194 = vcmp.eq.s32.totalorder %v3192, 0
        %v3195 = vxor.u32 %v3189, 2147483648
        %v3196 = vsel %vm3194, %v3188, %v3195
        %vm3197 = vcmp.eq.s32.totalorder %v3192, 2
        %v3198 = vxor.u32 %v3188, 2147483648
        %v3199 = vsel %vm3197, %v3198, %v3189
        %v3200 = vsel %vm3193, %v3196, %v3199
        %v3201 = vsel %vm3190, nan, %v3200
        %v3202 = vand.u32 2147483647, %v435
        %vm3203 = vcmp.le.f32.partialorder %v3202, 0.7853982
        %vm3204 = vcmp.lt.s32.totalorder %v435, 0
        %v3205 = vand.u32 %v435, 2139095040
        %v3206 = vshrl.u32 %v3205, 23
        %v3207 = vsub.s32 %v3206, 127
        %v3208 = vand.u32 2147483647, %v435
        %v3209 = vand.u32 %v3208, 8388607
        %v3210 = vor.u32 %v3209, 8388608
        %v3211 = vsub.s32 0, %v3210
        %v3212 = vadd.s32 %v3207, 1
        %vm3213 = vcmp.gt.s32.totalorder %v3212, 0
        %v3214 = vsel %vm3213, %v3212, 0
        %v3215 = vshrl.u32 %v3214, 5
        %v3216 = vand.u32 %v3214, 31
        %v3217 = vsub.s32 32, %v3216
        %v3218 = vshrl.u32 683565275, %v3217
        %v3219 = vshll.u32 683565275, %v3216
        %v3220 = vshrl.u32 2475754826, %v3217
        %v3221 = vor.u32 %v3219, %v3220
        %v3222 = vshll.u32 2475754826, %v3216
        %v3223 = vshrl.u32 2131351028, %v3217
        %v3224 = vor.u32 %v3222, %v3223
        %v3225 = vshll.u32 2131351028, %v3216
        %v3226 = vshrl.u32 2102212464, %v3217
        %v3227 = vor.u32 %v3225, %v3226
        %v3228 = vshll.u32 2102212464, %v3216
        %v3229 = vshrl.u32 920167782, %v3217
        %v3230 = vor.u32 %v3228, %v3229
        %v3231 = vshll.u32 920167782, %v3216
        %v3232 = vshrl.u32 1326507024, %v3217
        %v3233 = vor.u32 %v3231, %v3232
        %vm3234 = vcmp.lt.s32.totalorder %v3215, 1
        %vm3235 = vcmp.lt.s32.totalorder %v3215, 2
        %vm3236 = vcmp.lt.s32.totalorder %v3215, 3
        %vm3237 = vcmp.lt.s32.totalorder %v3215, 4
        %v3238 = vsel %vm3234, %v3218, %v3221
        %v3239 = vsel %vm3237, %v3227, 2102212464
        %v3240 = vsel %vm3236, %v3224, %v3239
        %v3241 = vsel %vm3235, %v3238, %v3240
        %v3242 = vsel %vm3234, %v3221, %v3224
        %v3243 = vsel %vm3237, %v3230, 920167782
        %v3244 = vsel %vm3236, %v3227, %v3243
        %v3245 = vsel %vm3235, %v3242, %v3244
        %v3246 = vsel %vm3234, %v3224, %v3227
        %v3247 = vsel %vm3237, %v3233, 1326507024
        %v3248 = vsel %vm3236, %v3230, %v3247
        %v3249 = vsel %vm3235, %v3246, %v3248
        %v3250 = vshll.u32 %v3210, 8
        %v3251 = vmul.u32.u64.compose %v3250, %v3249
        %v3252 = vextract.low.u32 %v3251
        %v3253 = vextract.high.u32 %v3251
        %v3254 = vmul.u32.u64.compose %v3250, %v3245
        %v3255 = vextract.low.u32 %v3254
        %v3256 = vextract.high.u32 %v3254
        %v3257 = vmul.u32 %v3250, %v3241
        %v3258 = vadd.s32 %v3253, %v3255
        %vm3259 = vc.u32 %v3253, %v3255
        %v3260 = vadd.s32 %v3256, 1
        %v3261 = vsel %vm3259, %v3260, %v3256
        %v3262 = vadd.s32 %v3257, %v3261
        %v3263 = vadd.s32 %v3262, 536870912
        %v3264 = vshrl.u32 %v3263, 30
        %v3265 = vshll.u32 %v3264, 30
        %v3266 = vsub.s32 %v3262, %v3265
        %vm3267 = vcmp.lt.s32.totalorder %v3266, 0
        %v3268 = vsub.s32 0, %v3266
        %v3269 = vsel %vm3267, %v3268, %v3266
        %v3270 = vclz %v3269
        %v3271 = vsub.s32 %v3270, 2
        %vm3272 = vcmp.gt.s32.totalorder 0, %v3271
        %v3273 = vsel %vm3272, 0, %v3271
        %v3274 = vsub.s32 32, %v3273
        %v3275 = vshll.u32 %v3266, %v3273
        %v3276 = vshrl.u32 %v3258, %v3274
        %v3277 = vor.u32 %v3275, %v3276
        %v3278 = vsub.s32 4294967266, %v3273
        %v3279 = vadd.s32 %v3278, 127
        %v3280 = vshll.u32 %v3279, 23
        %v3281 = vor.u32 4788187, %v3280
        %v3282 = vand.u32 2147483647, %v3281
        %v3284 = vcvt.s32.f32 %v3277
        %v3285 = vmul.f32 %v3284, %v3282
        %v3286 = vxor.u32 %v3285, 2147483648
        %v3287 = vsel %vm3204, %v3286, %v3285
        %v3288 = vsub.s32 4, %v3264
        %v3289 = vsel %vm3204, %v3288, %v3264
        %v3290 = vsel %vm3203, %v435, %v3287
        %v3291 = vsel %vm3203, 0, %v3289
        %v3292 = vcosq.f32.pop %v3290
        %v3293 = vsinq.f32.pop %v3290
        %vm3294 = vweird.f32 %v435
        %v3295 = vadd.s32 %v3291, 3
        %v3296 = vand.u32 %v3295, 3
        %vm3297 = vcmp.lt.s32.totalorder %v3296, 2
        %vm3298 = vcmp.eq.s32.totalorder %v3296, 0
        %v3299 = vxor.u32 %v3293, 2147483648
        %v3300 = vsel %vm3298, %v3292, %v3299
        %vm3301 = vcmp.eq.s32.totalorder %v3296, 2
        %v3302 = vxor.u32 %v3292, 2147483648
        %v3303 = vsel %vm3301, %v3302, %v3293
        %v3304 = vsel %vm3297, %v3300, %v3303
        %v3305 = vsel %vm3294, nan, %v3304
        %v3306 = vand.u32 2147483647, %v437
        %vm3307 = vcmp.le.f32.partialorder %v3306, 0.7853982
        %vm3308 = vcmp.lt.s32.totalorder %v437, 0
        %v3309 = vand.u32 %v437, 2139095040
        %v3310 = vshrl.u32 %v3309, 23
        %v3311 = vsub.s32 %v3310, 127
        %v3312 = vand.u32 2147483647, %v437
        %v3313 = vand.u32 %v3312, 8388607
        %v3314 = vor.u32 %v3313, 8388608
        %v3315 = vsub.s32 0, %v3314
        %v3316 = vadd.s32 %v3311, 1
        %vm3317 = vcmp.gt.s32.totalorder %v3316, 0
        %v3318 = vsel %vm3317, %v3316, 0
        %v3319 = vshrl.u32 %v3318, 5
        %v3320 = vand.u32 %v3318, 31
        %v3321 = vsub.s32 32, %v3320
        %v3322 = vshrl.u32 683565275, %v3321
        %v3323 = vshll.u32 683565275, %v3320
        %v3324 = vshrl.u32 2475754826, %v3321
        %v3325 = vor.u32 %v3323, %v3324
        %v3326 = vshll.u32 2475754826, %v3320
        %v3327 = vshrl.u32 2131351028, %v3321
        %v3328 = vor.u32 %v3326, %v3327
        %v3329 = vshll.u32 2131351028, %v3320
        %v3330 = vshrl.u32 2102212464, %v3321
        %v3331 = vor.u32 %v3329, %v3330
        %v3332 = vshll.u32 2102212464, %v3320
        %v3333 = vshrl.u32 920167782, %v3321
        %v3334 = vor.u32 %v3332, %v3333
        %v3335 = vshll.u32 920167782, %v3320
        %v3336 = vshrl.u32 1326507024, %v3321
        %v3337 = vor.u32 %v3335, %v3336
        %vm3338 = vcmp.lt.s32.totalorder %v3319, 1
        %vm3339 = vcmp.lt.s32.totalorder %v3319, 2
        %vm3340 = vcmp.lt.s32.totalorder %v3319, 3
        %vm3341 = vcmp.lt.s32.totalorder %v3319, 4
        %v3342 = vsel %vm3338, %v3322, %v3325
        %v3343 = vsel %vm3341, %v3331, 2102212464
        %v3344 = vsel %vm3340, %v3328, %v3343
        %v3345 = vsel %vm3339, %v3342, %v3344
        %v3346 = vsel %vm3338, %v3325, %v3328
        %v3347 = vsel %vm3341, %v3334, 920167782
        %v3348 = vsel %vm3340, %v3331, %v3347
        %v3349 = vsel %vm3339, %v3346, %v3348
        %v3350 = vsel %vm3338, %v3328, %v3331
        %v3351 = vsel %vm3341, %v3337, 1326507024
        %v3352 = vsel %vm3340, %v3334, %v3351
        %v3353 = vsel %vm3339, %v3350, %v3352
        %v3354 = vshll.u32 %v3314, 8
        %v3355 = vmul.u32.u64.compose %v3354, %v3353
        %v3356 = vextract.low.u32 %v3355
        %v3357 = vextract.high.u32 %v3355
        %v3358 = vmul.u32.u64.compose %v3354, %v3349
        %v3359 = vextract.low.u32 %v3358
        %v3360 = vextract.high.u32 %v3358
        %v3361 = vmul.u32 %v3354, %v3345
        %v3362 = vadd.s32 %v3357, %v3359
        %vm3363 = vc.u32 %v3357, %v3359
        %v3364 = vadd.s32 %v3360, 1
        %v3365 = vsel %vm3363, %v3364, %v3360
        %v3366 = vadd.s32 %v3361, %v3365
        %v3367 = vadd.s32 %v3366, 536870912
        %v3368 = vshrl.u32 %v3367, 30
        %v3369 = vshll.u32 %v3368, 30
        %v3370 = vsub.s32 %v3366, %v3369
        %vm3371 = vcmp.lt.s32.totalorder %v3370, 0
        %v3372 = vsub.s32 0, %v3370
        %v3373 = vsel %vm3371, %v3372, %v3370
        %v3374 = vclz %v3373
        %v3375 = vsub.s32 %v3374, 2
        %vm3376 = vcmp.gt.s32.totalorder 0, %v3375
        %v3377 = vsel %vm3376, 0, %v3375
        %v3378 = vsub.s32 32, %v3377
        %v3379 = vshll.u32 %v3370, %v3377
        %v3380 = vshrl.u32 %v3362, %v3378
        %v3381 = vor.u32 %v3379, %v3380
        %v3382 = vsub.s32 4294967266, %v3377
        %v3383 = vadd.s32 %v3382, 127
        %v3384 = vshll.u32 %v3383, 23
        %v3385 = vor.u32 4788187, %v3384
        %v3386 = vand.u32 2147483647, %v3385
        %v3388 = vcvt.s32.f32 %v3381
        %v3389 = vmul.f32 %v3388, %v3386
        %v3390 = vxor.u32 %v3389, 2147483648
        %v3391 = vsel %vm3308, %v3390, %v3389
        %v3392 = vsub.s32 4, %v3368
        %v3393 = vsel %vm3308, %v3392, %v3368
        %v3394 = vsel %vm3307, %v437, %v3391
        %v3395 = vsel %vm3307, 0, %v3393
        %v3396 = vcosq.f32.pop %v3394
        %v3397 = vsinq.f32.pop %v3394
        %vm3398 = vweird.f32 %v437
        %v3399 = vadd.s32 %v3395, 3
        %v3400 = vand.u32 %v3399, 3
        %vm3401 = vcmp.lt.s32.totalorder %v3400, 2
        %vm3402 = vcmp.eq.s32.totalorder %v3400, 0
        %v3403 = vxor.u32 %v3397, 2147483648
        %v3404 = vsel %vm3402, %v3396, %v3403
        %vm3405 = vcmp.eq.s32.totalorder %v3400, 2
        %v3406 = vxor.u32 %v3396, 2147483648
        %v3407 = vsel %vm3405, %v3406, %v3397
        %v3408 = vsel %vm3401, %v3404, %v3407
        %v3409 = vsel %vm3398, nan, %v3408
        %v3410 = vand.u32 2147483647, %v524
        %vm3411 = vcmp.le.f32.partialorder %v3410, 0.7853982
        %vm3412 = vcmp.lt.s32.totalorder %v524, 0
        %v3413 = vand.u32 %v524, 2139095040
        %v3414 = vshrl.u32 %v3413, 23
        %v3415 = vsub.s32 %v3414, 127
        %v3416 = vand.u32 2147483647, %v524
        %v3417 = vand.u32 %v3416, 8388607
        %v3418 = vor.u32 %v3417, 8388608
        %v3419 = vsub.s32 0, %v3418
        %v3420 = vadd.s32 %v3415, 1
        %vm3421 = vcmp.gt.s32.totalorder %v3420, 0
        %v3422 = vsel %vm3421, %v3420, 0
        %v3423 = vshrl.u32 %v3422, 5
        %v3424 = vand.u32 %v3422, 31
        %v3425 = vsub.s32 32, %v3424
        %v3426 = vshrl.u32 683565275, %v3425
        %v3427 = vshll.u32 683565275, %v3424
        %v3428 = vshrl.u32 2475754826, %v3425
        %v3429 = vor.u32 %v3427, %v3428
        %v3430 = vshll.u32 2475754826, %v3424
        %v3431 = vshrl.u32 2131351028, %v3425
        %v3432 = vor.u32 %v3430, %v3431
        %v3433 = vshll.u32 2131351028, %v3424
        %v3434 = vshrl.u32 2102212464, %v3425
        %v3435 = vor.u32 %v3433, %v3434
        %v3436 = vshll.u32 2102212464, %v3424
        %v3437 = vshrl.u32 920167782, %v3425
        %v3438 = vor.u32 %v3436, %v3437
        %v3439 = vshll.u32 920167782, %v3424
        %v3440 = vshrl.u32 1326507024, %v3425
        %v3441 = vor.u32 %v3439, %v3440
        %vm3442 = vcmp.lt.s32.totalorder %v3423, 1
        %vm3443 = vcmp.lt.s32.totalorder %v3423, 2
        %vm3444 = vcmp.lt.s32.totalorder %v3423, 3
        %vm3445 = vcmp.lt.s32.totalorder %v3423, 4
        %v3446 = vsel %vm3442, %v3426, %v3429
        %v3447 = vsel %vm3445, %v3435, 2102212464
        %v3448 = vsel %vm3444, %v3432, %v3447
        %v3449 = vsel %vm3443, %v3446, %v3448
        %v3450 = vsel %vm3442, %v3429, %v3432
        %v3451 = vsel %vm3445, %v3438, 920167782
        %v3452 = vsel %vm3444, %v3435, %v3451
        %v3453 = vsel %vm3443, %v3450, %v3452
        %v3454 = vsel %vm3442, %v3432, %v3435
        %v3455 = vsel %vm3445, %v3441, 1326507024
        %v3456 = vsel %vm3444, %v3438, %v3455
        %v3457 = vsel %vm3443, %v3454, %v3456
        %v3458 = vshll.u32 %v3418, 8
        %v3459 = vmul.u32.u64.compose %v3458, %v3457
        %v3460 = vextract.low.u32 %v3459
        %v3461 = vextract.high.u32 %v3459
        %v3462 = vmul.u32.u64.compose %v3458, %v3453
        %v3463 = vextract.low.u32 %v3462
        %v3464 = vextract.high.u32 %v3462
        %v3465 = vmul.u32 %v3458, %v3449
        %v3466 = vadd.s32 %v3461, %v3463
        %vm3467 = vc.u32 %v3461, %v3463
        %v3468 = vadd.s32 %v3464, 1
        %v3469 = vsel %vm3467, %v3468, %v3464
        %v3470 = vadd.s32 %v3465, %v3469
        %v3471 = vadd.s32 %v3470, 536870912
        %v3472 = vshrl.u32 %v3471, 30
        %v3473 = vshll.u32 %v3472, 30
        %v3474 = vsub.s32 %v3470, %v3473
        %vm3475 = vcmp.lt.s32.totalorder %v3474, 0
        %v3476 = vsub.s32 0, %v3474
        %v3477 = vsel %vm3475, %v3476, %v3474
        %v3478 = vclz %v3477
        %v3479 = vsub.s32 %v3478, 2
        %vm3480 = vcmp.gt.s32.totalorder 0, %v3479
        %v3481 = vsel %vm3480, 0, %v3479
        %v3482 = vsub.s32 32, %v3481
        %v3483 = vshll.u32 %v3474, %v3481
        %v3484 = vshrl.u32 %v3466, %v3482
        %v3485 = vor.u32 %v3483, %v3484
        %v3486 = vsub.s32 4294967266, %v3481
        %v3487 = vadd.s32 %v3486, 127
        %v3488 = vshll.u32 %v3487, 23
        %v3489 = vor.u32 4788187, %v3488
        %v3490 = vand.u32 2147483647, %v3489
        %v3492 = vcvt.s32.f32 %v3485
        %v3493 = vmul.f32 %v3492, %v3490
        %v3494 = vxor.u32 %v3493, 2147483648
        %v3495 = vsel %vm3412, %v3494, %v3493
        %v3496 = vsub.s32 4, %v3472
        %v3497 = vsel %vm3412, %v3496, %v3472
        %v3498 = vsel %vm3411, %v524, %v3495
        %v3499 = vsel %vm3411, 0, %v3497
        %v3500 = vcosq.f32.pop %v3498
        %v3501 = vsinq.f32.pop %v3498
        %vm3502 = vweird.f32 %v524
        %v3503 = vadd.s32 %v3499, 3
        %v3504 = vand.u32 %v3503, 3
        %vm3505 = vcmp.lt.s32.totalorder %v3504, 2
        %vm3506 = vcmp.eq.s32.totalorder %v3504, 0
        %v3507 = vxor.u32 %v3501, 2147483648
        %v3508 = vsel %vm3506, %v3500, %v3507
        %vm3509 = vcmp.eq.s32.totalorder %v3504, 2
        %v3510 = vxor.u32 %v3500, 2147483648
        %v3511 = vsel %vm3509, %v3510, %v3501
        %v3512 = vsel %vm3505, %v3508, %v3511
        %v3513 = vsel %vm3502, nan, %v3512
        %v3514 = vand.u32 2147483647, %v526
        %vm3515 = vcmp.le.f32.partialorder %v3514, 0.7853982
        %vm3516 = vcmp.lt.s32.totalorder %v526, 0
        %v3517 = vand.u32 %v526, 2139095040
        %v3518 = vshrl.u32 %v3517, 23
        %v3519 = vsub.s32 %v3518, 127
        %v3520 = vand.u32 2147483647, %v526
        %v3521 = vand.u32 %v3520, 8388607
        %v3522 = vor.u32 %v3521, 8388608
        %v3523 = vsub.s32 0, %v3522
        %v3524 = vadd.s32 %v3519, 1
        %vm3525 = vcmp.gt.s32.totalorder %v3524, 0
        %v3526 = vsel %vm3525, %v3524, 0
        %v3527 = vshrl.u32 %v3526, 5
        %v3528 = vand.u32 %v3526, 31
        %v3529 = vsub.s32 32, %v3528
        %v3530 = vshrl.u32 683565275, %v3529
        %v3531 = vshll.u32 683565275, %v3528
        %v3532 = vshrl.u32 2475754826, %v3529
        %v3533 = vor.u32 %v3531, %v3532
        %v3534 = vshll.u32 2475754826, %v3528
        %v3535 = vshrl.u32 2131351028, %v3529
        %v3536 = vor.u32 %v3534, %v3535
        %v3537 = vshll.u32 2131351028, %v3528
        %v3538 = vshrl.u32 2102212464, %v3529
        %v3539 = vor.u32 %v3537, %v3538
        %v3540 = vshll.u32 2102212464, %v3528
        %v3541 = vshrl.u32 920167782, %v3529
        %v3542 = vor.u32 %v3540, %v3541
        %v3543 = vshll.u32 920167782, %v3528
        %v3544 = vshrl.u32 1326507024, %v3529
        %v3545 = vor.u32 %v3543, %v3544
        %vm3546 = vcmp.lt.s32.totalorder %v3527, 1
        %vm3547 = vcmp.lt.s32.totalorder %v3527, 2
        %vm3548 = vcmp.lt.s32.totalorder %v3527, 3
        %vm3549 = vcmp.lt.s32.totalorder %v3527, 4
        %v3550 = vsel %vm3546, %v3530, %v3533
        %v3551 = vsel %vm3549, %v3539, 2102212464
        %v3552 = vsel %vm3548, %v3536, %v3551
        %v3553 = vsel %vm3547, %v3550, %v3552
        %v3554 = vsel %vm3546, %v3533, %v3536
        %v3555 = vsel %vm3549, %v3542, 920167782
        %v3556 = vsel %vm3548, %v3539, %v3555
        %v3557 = vsel %vm3547, %v3554, %v3556
        %v3558 = vsel %vm3546, %v3536, %v3539
        %v3559 = vsel %vm3549, %v3545, 1326507024
        %v3560 = vsel %vm3548, %v3542, %v3559
        %v3561 = vsel %vm3547, %v3558, %v3560
        %v3562 = vshll.u32 %v3522, 8
        %v3563 = vmul.u32.u64.compose %v3562, %v3561
        %v3564 = vextract.low.u32 %v3563
        %v3565 = vextract.high.u32 %v3563
        %v3566 = vmul.u32.u64.compose %v3562, %v3557
        %v3567 = vextract.low.u32 %v3566
        %v3568 = vextract.high.u32 %v3566
        %v3569 = vmul.u32 %v3562, %v3553
        %v3570 = vadd.s32 %v3565, %v3567
        %vm3571 = vc.u32 %v3565, %v3567
        %v3572 = vadd.s32 %v3568, 1
        %v3573 = vsel %vm3571, %v3572, %v3568
        %v3574 = vadd.s32 %v3569, %v3573
        %v3575 = vadd.s32 %v3574, 536870912
        %v3576 = vshrl.u32 %v3575, 30
        %v3577 = vshll.u32 %v3576, 30
        %v3578 = vsub.s32 %v3574, %v3577
        %vm3579 = vcmp.lt.s32.totalorder %v3578, 0
        %v3580 = vsub.s32 0, %v3578
        %v3581 = vsel %vm3579, %v3580, %v3578
        %v3582 = vclz %v3581
        %v3583 = vsub.s32 %v3582, 2
        %vm3584 = vcmp.gt.s32.totalorder 0, %v3583
        %v3585 = vsel %vm3584, 0, %v3583
        %v3586 = vsub.s32 32, %v3585
        %v3587 = vshll.u32 %v3578, %v3585
        %v3588 = vshrl.u32 %v3570, %v3586
        %v3589 = vor.u32 %v3587, %v3588
        %v3590 = vsub.s32 4294967266, %v3585
        %v3591 = vadd.s32 %v3590, 127
        %v3592 = vshll.u32 %v3591, 23
        %v3593 = vor.u32 4788187, %v3592
        %v3594 = vand.u32 2147483647, %v3593
        %v3596 = vcvt.s32.f32 %v3589
        %v3597 = vmul.f32 %v3596, %v3594
        %v3598 = vxor.u32 %v3597, 2147483648
        %v3599 = vsel %vm3516, %v3598, %v3597
        %v3600 = vsub.s32 4, %v3576
        %v3601 = vsel %vm3516, %v3600, %v3576
        %v3602 = vsel %vm3515, %v526, %v3599
        %v3603 = vsel %vm3515, 0, %v3601
        %v3604 = vcosq.f32.pop %v3602
        %v3605 = vsinq.f32.pop %v3602
        %vm3606 = vweird.f32 %v526
        %v3607 = vadd.s32 %v3603, 3
        %v3608 = vand.u32 %v3607, 3
        %vm3609 = vcmp.lt.s32.totalorder %v3608, 2
        %vm3610 = vcmp.eq.s32.totalorder %v3608, 0
        %v3611 = vxor.u32 %v3605, 2147483648
        %v3612 = vsel %vm3610, %v3604, %v3611
        %vm3613 = vcmp.eq.s32.totalorder %v3608, 2
        %v3614 = vxor.u32 %v3604, 2147483648
        %v3615 = vsel %vm3613, %v3614, %v3605
        %v3616 = vsel %vm3609, %v3612, %v3615
        %v3617 = vsel %vm3606, nan, %v3616
        %v3618 = vand.u32 2147483647, %v613
        %vm3619 = vcmp.le.f32.partialorder %v3618, 0.7853982
        %vm3620 = vcmp.lt.s32.totalorder %v613, 0
        %v3621 = vand.u32 %v613, 2139095040
        %v3622 = vshrl.u32 %v3621, 23
        %v3623 = vsub.s32 %v3622, 127
        %v3624 = vand.u32 2147483647, %v613
        %v3625 = vand.u32 %v3624, 8388607
        %v3626 = vor.u32 %v3625, 8388608
        %v3627 = vsub.s32 0, %v3626
        %v3628 = vadd.s32 %v3623, 1
        %vm3629 = vcmp.gt.s32.totalorder %v3628, 0
        %v3630 = vsel %vm3629, %v3628, 0
        %v3631 = vshrl.u32 %v3630, 5
        %v3632 = vand.u32 %v3630, 31
        %v3633 = vsub.s32 32, %v3632
        %v3634 = vshrl.u32 683565275, %v3633
        %v3635 = vshll.u32 683565275, %v3632
        %v3636 = vshrl.u32 2475754826, %v3633
        %v3637 = vor.u32 %v3635, %v3636
        %v3638 = vshll.u32 2475754826, %v3632
        %v3639 = vshrl.u32 2131351028, %v3633
        %v3640 = vor.u32 %v3638, %v3639
        %v3641 = vshll.u32 2131351028, %v3632
        %v3642 = vshrl.u32 2102212464, %v3633
        %v3643 = vor.u32 %v3641, %v3642
        %v3644 = vshll.u32 2102212464, %v3632
        %v3645 = vshrl.u32 920167782, %v3633
        %v3646 = vor.u32 %v3644, %v3645
        %v3647 = vshll.u32 920167782, %v3632
        %v3648 = vshrl.u32 1326507024, %v3633
        %v3649 = vor.u32 %v3647, %v3648
        %vm3650 = vcmp.lt.s32.totalorder %v3631, 1
        %vm3651 = vcmp.lt.s32.totalorder %v3631, 2
        %vm3652 = vcmp.lt.s32.totalorder %v3631, 3
        %vm3653 = vcmp.lt.s32.totalorder %v3631, 4
        %v3654 = vsel %vm3650, %v3634, %v3637
        %v3655 = vsel %vm3653, %v3643, 2102212464
        %v3656 = vsel %vm3652, %v3640, %v3655
        %v3657 = vsel %vm3651, %v3654, %v3656
        %v3658 = vsel %vm3650, %v3637, %v3640
        %v3659 = vsel %vm3653, %v3646, 920167782
        %v3660 = vsel %vm3652, %v3643, %v3659
        %v3661 = vsel %vm3651, %v3658, %v3660
        %v3662 = vsel %vm3650, %v3640, %v3643
        %v3663 = vsel %vm3653, %v3649, 1326507024
        %v3664 = vsel %vm3652, %v3646, %v3663
        %v3665 = vsel %vm3651, %v3662, %v3664
        %v3666 = vshll.u32 %v3626, 8
        %v3667 = vmul.u32.u64.compose %v3666, %v3665
        %v3668 = vextract.low.u32 %v3667
        %v3669 = vextract.high.u32 %v3667
        %v3670 = vmul.u32.u64.compose %v3666, %v3661
        %v3671 = vextract.low.u32 %v3670
        %v3672 = vextract.high.u32 %v3670
        %v3673 = vmul.u32 %v3666, %v3657
        %v3674 = vadd.s32 %v3669, %v3671
        %vm3675 = vc.u32 %v3669, %v3671
        %v3676 = vadd.s32 %v3672, 1
        %v3677 = vsel %vm3675, %v3676, %v3672
        %v3678 = vadd.s32 %v3673, %v3677
        %v3679 = vadd.s32 %v3678, 536870912
        %v3680 = vshrl.u32 %v3679, 30
        %v3681 = vshll.u32 %v3680, 30
        %v3682 = vsub.s32 %v3678, %v3681
        %vm3683 = vcmp.lt.s32.totalorder %v3682, 0
        %v3684 = vsub.s32 0, %v3682
        %v3685 = vsel %vm3683, %v3684, %v3682
        %v3686 = vclz %v3685
        %v3687 = vsub.s32 %v3686, 2
        %vm3688 = vcmp.gt.s32.totalorder 0, %v3687
        %v3689 = vsel %vm3688, 0, %v3687
        %v3690 = vsub.s32 32, %v3689
        %v3691 = vshll.u32 %v3682, %v3689
        %v3692 = vshrl.u32 %v3674, %v3690
        %v3693 = vor.u32 %v3691, %v3692
        %v3694 = vsub.s32 4294967266, %v3689
        %v3695 = vadd.s32 %v3694, 127
        %v3696 = vshll.u32 %v3695, 23
        %v3697 = vor.u32 4788187, %v3696
        %v3698 = vand.u32 2147483647, %v3697
        %v3700 = vcvt.s32.f32 %v3693
        %v3701 = vmul.f32 %v3700, %v3698
        %v3702 = vxor.u32 %v3701, 2147483648
        %v3703 = vsel %vm3620, %v3702, %v3701
        %v3704 = vsub.s32 4, %v3680
        %v3705 = vsel %vm3620, %v3704, %v3680
        %v3706 = vsel %vm3619, %v613, %v3703
        %v3707 = vsel %vm3619, 0, %v3705
        %v3708 = vcosq.f32.pop %v3706
        %v3709 = vsinq.f32.pop %v3706
        %vm3710 = vweird.f32 %v613
        %v3711 = vadd.s32 %v3707, 3
        %v3712 = vand.u32 %v3711, 3
        %vm3713 = vcmp.lt.s32.totalorder %v3712, 2
        %vm3714 = vcmp.eq.s32.totalorder %v3712, 0
        %v3715 = vxor.u32 %v3709, 2147483648
        %v3716 = vsel %vm3714, %v3708, %v3715
        %vm3717 = vcmp.eq.s32.totalorder %v3712, 2
        %v3718 = vxor.u32 %v3708, 2147483648
        %v3719 = vsel %vm3717, %v3718, %v3709
        %v3720 = vsel %vm3713, %v3716, %v3719
        %v3721 = vsel %vm3710, nan, %v3720
        %v3722 = vand.u32 2147483647, %v615
        %vm3723 = vcmp.le.f32.partialorder %v3722, 0.7853982
        %vm3724 = vcmp.lt.s32.totalorder %v615, 0
        %v3725 = vand.u32 %v615, 2139095040
        %v3726 = vshrl.u32 %v3725, 23
        %v3727 = vsub.s32 %v3726, 127
        %v3728 = vand.u32 2147483647, %v615
        %v3729 = vand.u32 %v3728, 8388607
        %v3730 = vor.u32 %v3729, 8388608
        %v3731 = vsub.s32 0, %v3730
        %v3732 = vadd.s32 %v3727, 1
        %vm3733 = vcmp.gt.s32.totalorder %v3732, 0
        %v3734 = vsel %vm3733, %v3732, 0
        %v3735 = vshrl.u32 %v3734, 5
        %v3736 = vand.u32 %v3734, 31
        %v3737 = vsub.s32 32, %v3736
        %v3738 = vshrl.u32 683565275, %v3737
        %v3739 = vshll.u32 683565275, %v3736
        %v3740 = vshrl.u32 2475754826, %v3737
        %v3741 = vor.u32 %v3739, %v3740
        %v3742 = vshll.u32 2475754826, %v3736
        %v3743 = vshrl.u32 2131351028, %v3737
        %v3744 = vor.u32 %v3742, %v3743
        %v3745 = vshll.u32 2131351028, %v3736
        %v3746 = vshrl.u32 2102212464, %v3737
        %v3747 = vor.u32 %v3745, %v3746
        %v3748 = vshll.u32 2102212464, %v3736
        %v3749 = vshrl.u32 920167782, %v3737
        %v3750 = vor.u32 %v3748, %v3749
        %v3751 = vshll.u32 920167782, %v3736
        %v3752 = vshrl.u32 1326507024, %v3737
        %v3753 = vor.u32 %v3751, %v3752
        %vm3754 = vcmp.lt.s32.totalorder %v3735, 1
        %vm3755 = vcmp.lt.s32.totalorder %v3735, 2
        %vm3756 = vcmp.lt.s32.totalorder %v3735, 3
        %vm3757 = vcmp.lt.s32.totalorder %v3735, 4
        %v3758 = vsel %vm3754, %v3738, %v3741
        %v3759 = vsel %vm3757, %v3747, 2102212464
        %v3760 = vsel %vm3756, %v3744, %v3759
        %v3761 = vsel %vm3755, %v3758, %v3760
        %v3762 = vsel %vm3754, %v3741, %v3744
        %v3763 = vsel %vm3757, %v3750, 920167782
        %v3764 = vsel %vm3756, %v3747, %v3763
        %v3765 = vsel %vm3755, %v3762, %v3764
        %v3766 = vsel %vm3754, %v3744, %v3747
        %v3767 = vsel %vm3757, %v3753, 1326507024
        %v3768 = vsel %vm3756, %v3750, %v3767
        %v3769 = vsel %vm3755, %v3766, %v3768
        %v3770 = vshll.u32 %v3730, 8
        %v3771 = vmul.u32.u64.compose %v3770, %v3769
        %v3772 = vextract.low.u32 %v3771
        %v3773 = vextract.high.u32 %v3771
        %v3774 = vmul.u32.u64.compose %v3770, %v3765
        %v3775 = vextract.low.u32 %v3774
        %v3776 = vextract.high.u32 %v3774
        %v3777 = vmul.u32 %v3770, %v3761
        %v3778 = vadd.s32 %v3773, %v3775
        %vm3779 = vc.u32 %v3773, %v3775
        %v3780 = vadd.s32 %v3776, 1
        %v3781 = vsel %vm3779, %v3780, %v3776
        %v3782 = vadd.s32 %v3777, %v3781
        %v3783 = vadd.s32 %v3782, 536870912
        %v3784 = vshrl.u32 %v3783, 30
        %v3785 = vshll.u32 %v3784, 30
        %v3786 = vsub.s32 %v3782, %v3785
        %vm3787 = vcmp.lt.s32.totalorder %v3786, 0
        %v3788 = vsub.s32 0, %v3786
        %v3789 = vsel %vm3787, %v3788, %v3786
        %v3790 = vclz %v3789
        %v3791 = vsub.s32 %v3790, 2
        %vm3792 = vcmp.gt.s32.totalorder 0, %v3791
        %v3793 = vsel %vm3792, 0, %v3791
        %v3794 = vsub.s32 32, %v3793
        %v3795 = vshll.u32 %v3786, %v3793
        %v3796 = vshrl.u32 %v3778, %v3794
        %v3797 = vor.u32 %v3795, %v3796
        %v3798 = vsub.s32 4294967266, %v3793
        %v3799 = vadd.s32 %v3798, 127
        %v3800 = vshll.u32 %v3799, 23
        %v3801 = vor.u32 4788187, %v3800
        %v3802 = vand.u32 2147483647, %v3801
        %v3804 = vcvt.s32.f32 %v3797
        %v3805 = vmul.f32 %v3804, %v3802
        %v3806 = vxor.u32 %v3805, 2147483648
        %v3807 = vsel %vm3724, %v3806, %v3805
        %v3808 = vsub.s32 4, %v3784
        %v3809 = vsel %vm3724, %v3808, %v3784
        %v3810 = vsel %vm3723, %v615, %v3807
        %v3811 = vsel %vm3723, 0, %v3809
        %v3812 = vcosq.f32.pop %v3810
        %v3813 = vsinq.f32.pop %v3810
        %vm3814 = vweird.f32 %v615
        %v3815 = vadd.s32 %v3811, 3
        %v3816 = vand.u32 %v3815, 3
        %vm3817 = vcmp.lt.s32.totalorder %v3816, 2
        %vm3818 = vcmp.eq.s32.totalorder %v3816, 0
        %v3819 = vxor.u32 %v3813, 2147483648
        %v3820 = vsel %vm3818, %v3812, %v3819
        %vm3821 = vcmp.eq.s32.totalorder %v3816, 2
        %v3822 = vxor.u32 %v3812, 2147483648
        %v3823 = vsel %vm3821, %v3822, %v3813
        %v3824 = vsel %vm3817, %v3820, %v3823
        %v3825 = vsel %vm3814, nan, %v3824
        %v3826 = vand.u32 2147483647, %v702
        %vm3827 = vcmp.le.f32.partialorder %v3826, 0.7853982
        %vm3828 = vcmp.lt.s32.totalorder %v702, 0
        %v3829 = vand.u32 %v702, 2139095040
        %v3830 = vshrl.u32 %v3829, 23
        %v3831 = vsub.s32 %v3830, 127
        %v3832 = vand.u32 2147483647, %v702
        %v3833 = vand.u32 %v3832, 8388607
        %v3834 = vor.u32 %v3833, 8388608
        %v3835 = vsub.s32 0, %v3834
        %v3836 = vadd.s32 %v3831, 1
        %vm3837 = vcmp.gt.s32.totalorder %v3836, 0
        %v3838 = vsel %vm3837, %v3836, 0
        %v3839 = vshrl.u32 %v3838, 5
        %v3840 = vand.u32 %v3838, 31
        %v3841 = vsub.s32 32, %v3840
        %v3842 = vshrl.u32 683565275, %v3841
        %v3843 = vshll.u32 683565275, %v3840
        %v3844 = vshrl.u32 2475754826, %v3841
        %v3845 = vor.u32 %v3843, %v3844
        %v3846 = vshll.u32 2475754826, %v3840
        %v3847 = vshrl.u32 2131351028, %v3841
        %v3848 = vor.u32 %v3846, %v3847
        %v3849 = vshll.u32 2131351028, %v3840
        %v3850 = vshrl.u32 2102212464, %v3841
        %v3851 = vor.u32 %v3849, %v3850
        %v3852 = vshll.u32 2102212464, %v3840
        %v3853 = vshrl.u32 920167782, %v3841
        %v3854 = vor.u32 %v3852, %v3853
        %v3855 = vshll.u32 920167782, %v3840
        %v3856 = vshrl.u32 1326507024, %v3841
        %v3857 = vor.u32 %v3855, %v3856
        %vm3858 = vcmp.lt.s32.totalorder %v3839, 1
        %vm3859 = vcmp.lt.s32.totalorder %v3839, 2
        %vm3860 = vcmp.lt.s32.totalorder %v3839, 3
        %vm3861 = vcmp.lt.s32.totalorder %v3839, 4
        %v3862 = vsel %vm3858, %v3842, %v3845
        %v3863 = vsel %vm3861, %v3851, 2102212464
        %v3864 = vsel %vm3860, %v3848, %v3863
        %v3865 = vsel %vm3859, %v3862, %v3864
        %v3866 = vsel %vm3858, %v3845, %v3848
        %v3867 = vsel %vm3861, %v3854, 920167782
        %v3868 = vsel %vm3860, %v3851, %v3867
        %v3869 = vsel %vm3859, %v3866, %v3868
        %v3870 = vsel %vm3858, %v3848, %v3851
        %v3871 = vsel %vm3861, %v3857, 1326507024
        %v3872 = vsel %vm3860, %v3854, %v3871
        %v3873 = vsel %vm3859, %v3870, %v3872
        %v3874 = vshll.u32 %v3834, 8
        %v3875 = vmul.u32.u64.compose %v3874, %v3873
        %v3876 = vextract.low.u32 %v3875
        %v3877 = vextract.high.u32 %v3875
        %v3878 = vmul.u32.u64.compose %v3874, %v3869
        %v3879 = vextract.low.u32 %v3878
        %v3880 = vextract.high.u32 %v3878
        %v3881 = vmul.u32 %v3874, %v3865
        %v3882 = vadd.s32 %v3877, %v3879
        %vm3883 = vc.u32 %v3877, %v3879
        %v3884 = vadd.s32 %v3880, 1
        %v3885 = vsel %vm3883, %v3884, %v3880
        %v3886 = vadd.s32 %v3881, %v3885
        %v3887 = vadd.s32 %v3886, 536870912
        %v3888 = vshrl.u32 %v3887, 30
        %v3889 = vshll.u32 %v3888, 30
        %v3890 = vsub.s32 %v3886, %v3889
        %vm3891 = vcmp.lt.s32.totalorder %v3890, 0
        %v3892 = vsub.s32 0, %v3890
        %v3893 = vsel %vm3891, %v3892, %v3890
        %v3894 = vclz %v3893
        %v3895 = vsub.s32 %v3894, 2
        %vm3896 = vcmp.gt.s32.totalorder 0, %v3895
        %v3897 = vsel %vm3896, 0, %v3895
        %v3898 = vsub.s32 32, %v3897
        %v3899 = vshll.u32 %v3890, %v3897
        %v3900 = vshrl.u32 %v3882, %v3898
        %v3901 = vor.u32 %v3899, %v3900
        %v3902 = vsub.s32 4294967266, %v3897
        %v3903 = vadd.s32 %v3902, 127
        %v3904 = vshll.u32 %v3903, 23
        %v3905 = vor.u32 4788187, %v3904
        %v3906 = vand.u32 2147483647, %v3905
        %v3908 = vcvt.s32.f32 %v3901
        %v3909 = vmul.f32 %v3908, %v3906
        %v3910 = vxor.u32 %v3909, 2147483648
        %v3911 = vsel %vm3828, %v3910, %v3909
        %v3912 = vsub.s32 4, %v3888
        %v3913 = vsel %vm3828, %v3912, %v3888
        %v3914 = vsel %vm3827, %v702, %v3911
        %v3915 = vsel %vm3827, 0, %v3913
        %v3916 = vcosq.f32.pop %v3914
        %v3917 = vsinq.f32.pop %v3914
        %vm3918 = vweird.f32 %v702
        %v3919 = vadd.s32 %v3915, 3
        %v3920 = vand.u32 %v3919, 3
        %vm3921 = vcmp.lt.s32.totalorder %v3920, 2
        %vm3922 = vcmp.eq.s32.totalorder %v3920, 0
        %v3923 = vxor.u32 %v3917, 2147483648
        %v3924 = vsel %vm3922, %v3916, %v3923
        %vm3925 = vcmp.eq.s32.totalorder %v3920, 2
        %v3926 = vxor.u32 %v3916, 2147483648
        %v3927 = vsel %vm3925, %v3926, %v3917
        %v3928 = vsel %vm3921, %v3924, %v3927
        %v3929 = vsel %vm3918, nan, %v3928
        %v3930 = vand.u32 2147483647, %v704
        %vm3931 = vcmp.le.f32.partialorder %v3930, 0.7853982
        %vm3932 = vcmp.lt.s32.totalorder %v704, 0
        %v3933 = vand.u32 %v704, 2139095040
        %v3934 = vshrl.u32 %v3933, 23
        %v3935 = vsub.s32 %v3934, 127
        %v3936 = vand.u32 2147483647, %v704
        %v3937 = vand.u32 %v3936, 8388607
        %v3938 = vor.u32 %v3937, 8388608
        %v3939 = vsub.s32 0, %v3938
        %v3940 = vadd.s32 %v3935, 1
        %vm3941 = vcmp.gt.s32.totalorder %v3940, 0
        %v3942 = vsel %vm3941, %v3940, 0
        %v3943 = vshrl.u32 %v3942, 5
        %v3944 = vand.u32 %v3942, 31
        %v3945 = vsub.s32 32, %v3944
        %v3946 = vshrl.u32 683565275, %v3945
        %v3947 = vshll.u32 683565275, %v3944
        %v3948 = vshrl.u32 2475754826, %v3945
        %v3949 = vor.u32 %v3947, %v3948
        %v3950 = vshll.u32 2475754826, %v3944
        %v3951 = vshrl.u32 2131351028, %v3945
        %v3952 = vor.u32 %v3950, %v3951
        %v3953 = vshll.u32 2131351028, %v3944
        %v3954 = vshrl.u32 2102212464, %v3945
        %v3955 = vor.u32 %v3953, %v3954
        %v3956 = vshll.u32 2102212464, %v3944
        %v3957 = vshrl.u32 920167782, %v3945
        %v3958 = vor.u32 %v3956, %v3957
        %v3959 = vshll.u32 920167782, %v3944
        %v3960 = vshrl.u32 1326507024, %v3945
        %v3961 = vor.u32 %v3959, %v3960
        %vm3962 = vcmp.lt.s32.totalorder %v3943, 1
        %vm3963 = vcmp.lt.s32.totalorder %v3943, 2
        %vm3964 = vcmp.lt.s32.totalorder %v3943, 3
        %vm3965 = vcmp.lt.s32.totalorder %v3943, 4
        %v3966 = vsel %vm3962, %v3946, %v3949
        %v3967 = vsel %vm3965, %v3955, 2102212464
        %v3968 = vsel %vm3964, %v3952, %v3967
        %v3969 = vsel %vm3963, %v3966, %v3968
        %v3970 = vsel %vm3962, %v3949, %v3952
        %v3971 = vsel %vm3965, %v3958, 920167782
        %v3972 = vsel %vm3964, %v3955, %v3971
        %v3973 = vsel %vm3963, %v3970, %v3972
        %v3974 = vsel %vm3962, %v3952, %v3955
        %v3975 = vsel %vm3965, %v3961, 1326507024
        %v3976 = vsel %vm3964, %v3958, %v3975
        %v3977 = vsel %vm3963, %v3974, %v3976
        %v3978 = vshll.u32 %v3938, 8
        %v3979 = vmul.u32.u64.compose %v3978, %v3977
        %v3980 = vextract.low.u32 %v3979
        %v3981 = vextract.high.u32 %v3979
        %v3982 = vmul.u32.u64.compose %v3978, %v3973
        %v3983 = vextract.low.u32 %v3982
        %v3984 = vextract.high.u32 %v3982
        %v3985 = vmul.u32 %v3978, %v3969
        %v3986 = vadd.s32 %v3981, %v3983
        %vm3987 = vc.u32 %v3981, %v3983
        %v3988 = vadd.s32 %v3984, 1
        %v3989 = vsel %vm3987, %v3988, %v3984
        %v3990 = vadd.s32 %v3985, %v3989
        %v3991 = vadd.s32 %v3990, 536870912
        %v3992 = vshrl.u32 %v3991, 30
        %v3993 = vshll.u32 %v3992, 30
        %v3994 = vsub.s32 %v3990, %v3993
        %vm3995 = vcmp.lt.s32.totalorder %v3994, 0
        %v3996 = vsub.s32 0, %v3994
        %v3997 = vsel %vm3995, %v3996, %v3994
        %v3998 = vclz %v3997
        %v3999 = vsub.s32 %v3998, 2
        %vm4000 = vcmp.gt.s32.totalorder 0, %v3999
        %v4001 = vsel %vm4000, 0, %v3999
        %v4002 = vsub.s32 32, %v4001
        %v4003 = vshll.u32 %v3994, %v4001
        %v4004 = vshrl.u32 %v3986, %v4002
        %v4005 = vor.u32 %v4003, %v4004
        %v4006 = vsub.s32 4294967266, %v4001
        %v4007 = vadd.s32 %v4006, 127
        %v4008 = vshll.u32 %v4007, 23
        %v4009 = vor.u32 4788187, %v4008
        %v4010 = vand.u32 2147483647, %v4009
        %v4012 = vcvt.s32.f32 %v4005
        %v4013 = vmul.f32 %v4012, %v4010
        %v4014 = vxor.u32 %v4013, 2147483648
        %v4015 = vsel %vm3932, %v4014, %v4013
        %v4016 = vsub.s32 4, %v3992
        %v4017 = vsel %vm3932, %v4016, %v3992
        %v4018 = vsel %vm3931, %v704, %v4015
        %v4019 = vsel %vm3931, 0, %v4017
        %v4020 = vcosq.f32.pop %v4018
        %v4021 = vsinq.f32.pop %v4018
        %vm4022 = vweird.f32 %v704
        %v4023 = vadd.s32 %v4019, 3
        %v4024 = vand.u32 %v4023, 3
        %vm4025 = vcmp.lt.s32.totalorder %v4024, 2
        %vm4026 = vcmp.eq.s32.totalorder %v4024, 0
        %v4027 = vxor.u32 %v4021, 2147483648
        %v4028 = vsel %vm4026, %v4020, %v4027
        %vm4029 = vcmp.eq.s32.totalorder %v4024, 2
        %v4030 = vxor.u32 %v4020, 2147483648
        %v4031 = vsel %vm4029, %v4030, %v4021
        %v4032 = vsel %vm4025, %v4028, %v4031
        %v4033 = vsel %vm4022, nan, %v4032
        %v4034 = vld [vmem:[%s3] sm:$0xff]
        %v4035 = vld [vmem:[%s3 + $0x8] sm:$0xff]
        %v4036 = vld [vmem:[%s3 + $0x10] sm:$0xff]
        %v4037 = vld [vmem:[%s3 + $0x18] sm:$0xff]
        %v4038 = vld [vmem:[%s4] sm:$0xff]
        %v4039 = vld [vmem:[%s4 + $0x8] sm:$0xff]
        %v4040 = vld [vmem:[%s4 + $0x10] sm:$0xff]
        %v4041 = vld [vmem:[%s4 + $0x18] sm:$0xff]
        %4043 = vset.pattern.permute.xlu0 0
        %4044 = vperm.xlu0 %4043, %v4038
        %v4045 = vpop.permute.xlu0 %4044
        %4048 = vset.pattern.permute.xlu0 0
        %4049 = vperm.xlu0 %4048, %v4039
        %v4050 = vpop.permute.xlu0 %4049
        %4053 = vset.pattern.permute.xlu0 0
        %4054 = vperm.xlu0 %4053, %v4040
        %v4055 = vpop.permute.xlu0 %4054
        %4058 = vset.pattern.permute.xlu0 0
        %4059 = vperm.xlu0 %4058, %v4041
        %v4060 = vpop.permute.xlu0 %4059
        %v4062 = vlaneseq
        %v4063 = vshrl.u32 %v4062, 7
        %v4064 = vsub.s32 3, %v4063
        %v4065 = vrot.slane %v280, %v4064
        %v4066 = vlaneseq
        %v4067 = vshrl.u32 %v4066, 7
        %v4068 = vsub.s32 7, %v4067
        %v4069 = vrot.slane %v280, %v4068
        %v4070 = vlaneseq
        %v4071 = vshrl.u32 %v4070, 7
        %v4072 = vsub.s32 3, %v4071
        %v4073 = vrot.slane %v281, %v4072
        %v4074 = vlaneseq
        %v4075 = vshrl.u32 %v4074, 7
        %v4076 = vsub.s32 7, %v4075
        %v4077 = vrot.slane %v281, %v4076
        %v4078 = vlaneseq
        %v4079 = vshrl.u32 %v4078, 7
        %v4080 = vsub.s32 3, %v4079
        %v4081 = vrot.slane %v282, %v4080
        %v4082 = vlaneseq
        %v4083 = vshrl.u32 %v4082, 7
        %v4084 = vsub.s32 7, %v4083
        %v4085 = vrot.slane %v282, %v4084
        %v4086 = vlaneseq
        %v4087 = vshrl.u32 %v4086, 7
        %v4088 = vsub.s32 3, %v4087
        %v4089 = vrot.slane %v283, %v4088
        %v4090 = vlaneseq
        %v4091 = vshrl.u32 %v4090, 7
        %v4092 = vsub.s32 7, %v4091
        %v4093 = vrot.slane %v283, %v4092
        %v4102 = vlaneseq
        %v4103 = vshrl.u32 %v4102, 7
        %v4104 = vsub.s32 3, %v4103
        %v4105 = vrot.slane %v4065, %v4104
        %v4106 = vlaneseq
        %v4107 = vshrl.u32 %v4106, 7
        %v4108 = vsub.s32 3, %v4107
        %v4109 = vrot.slane %v4069, %v4108
        %v4110 = vlaneseq
        %v4111 = vshrl.u32 %v4110, 7
        %v4112 = vsub.s32 3, %v4111
        %v4113 = vrot.slane %v4073, %v4112
        %v4114 = vlaneseq
        %v4115 = vshrl.u32 %v4114, 7
        %v4116 = vsub.s32 3, %v4115
        %v4117 = vrot.slane %v4077, %v4116
        %v4118 = vlaneseq
        %v4119 = vshrl.u32 %v4118, 7
        %v4120 = vsub.s32 3, %v4119
        %v4121 = vrot.slane %v4081, %v4120
        %v4122 = vlaneseq
        %v4123 = vshrl.u32 %v4122, 7
        %v4124 = vsub.s32 3, %v4123
        %v4125 = vrot.slane %v4085, %v4124
        %v4126 = vlaneseq
        %v4127 = vshrl.u32 %v4126, 7
        %v4128 = vsub.s32 3, %v4127
        %v4129 = vrot.slane %v4089, %v4128
        %v4130 = vlaneseq
        %v4131 = vshrl.u32 %v4130, 7
        %v4132 = vsub.s32 3, %v4131
        %v4133 = vrot.slane %v4093, %v4132
        %v4134 = vmul.f32 %v4045, %v4105
        %v4135 = vmul.f32 %v4045, %v4109
        %v4136 = vmul.f32 %v4045, %v4113
        %v4137 = vmul.f32 %v4045, %v4117
        %v4138 = vmul.f32 %v4045, %v4121
        %v4139 = vmul.f32 %v4045, %v4125
        %v4140 = vmul.f32 %v4045, %v4129
        %v4141 = vmul.f32 %v4045, %v4133
        %v4142 = vmul.f32 %v4050, %v4105
        %v4143 = vmul.f32 %v4050, %v4109
        %v4144 = vmul.f32 %v4050, %v4113
        %v4145 = vmul.f32 %v4050, %v4117
        %v4146 = vmul.f32 %v4050, %v4121
        %v4147 = vmul.f32 %v4050, %v4125
        %v4148 = vmul.f32 %v4050, %v4129
        %v4149 = vmul.f32 %v4050, %v4133
        %v4150 = vmul.f32 %v4055, %v4105
        %v4151 = vmul.f32 %v4055, %v4109
        %v4152 = vmul.f32 %v4055, %v4113
        %v4153 = vmul.f32 %v4055, %v4117
        %v4154 = vmul.f32 %v4055, %v4121
        %v4155 = vmul.f32 %v4055, %v4125
        %v4156 = vmul.f32 %v4055, %v4129
        %v4157 = vmul.f32 %v4055, %v4133
        %v4158 = vmul.f32 %v4060, %v4105
        %v4159 = vmul.f32 %v4060, %v4109
        %v4160 = vmul.f32 %v4060, %v4113
        %v4161 = vmul.f32 %v4060, %v4117
        %v4162 = vmul.f32 %v4060, %v4121
        %v4163 = vmul.f32 %v4060, %v4125
        %v4164 = vmul.f32 %v4060, %v4129
        %v4165 = vmul.f32 %v4060, %v4133
        %vm4166 = vcmask 261120
        %v4168 = vsel %vm4166, %v4034, 0
        %v4171 = vsel %vm4166, %v4035, 0
        %v4174 = vsel %vm4166, %v4036, 0
        %v4177 = vsel %vm4166, %v4037, 0
        %4179 = vmatprep.subr.mxu0 %v913
        %4180 = vmatpush1.msra.mxu0 %v809
        %4181 = vmatprep.subr.mxu0 %v1745
        %4182 = vmatpush1.msra.mxu0 %v1641
        %4183 = vmatprep.subr.mxu0 %v2577
        %4184 = vmatpush1.msra.mxu0 %v2473
        %4185 = vmatprep.subr.mxu0 %v3409
        %4186 = vmatpush1.msra.mxu0 %v3305
        %4187 = vmatprep.subr.mxu0 0.0
        %4188 = vmatpush1.msra.mxu0 0.0
        %4189 = vmatprep.subr.mxu0 0.0
        %4190 = vmatpush1.msra.mxu0 0.0
        %4191 = vmatprep.subr.mxu0 0.0
        %4192 = vmatpush1.msra.mxu0 0.0
        %4193 = vmatprep.subr.mxu0 0.0
        %4194 = vmatpush1.msra.mxu0 0.0
        %4195 = vmatprep.subr.mxu0 0.0
        %4196 = vmatpush1.msra.mxu0 0.0
        %4197 = vmatprep.subr.mxu0 0.0
        %4198 = vmatpush1.msra.mxu0 0.0
        %4199 = vmatprep.subr.mxu0 0.0
        %4200 = vmatpush1.msra.mxu0 0.0
        %4201 = vmatprep.subr.mxu0 0.0
        %4202 = vmatpush1.msra.mxu0 0.0
        %4203 = vmatprep.subr.mxu0 0.0
        %4204 = vmatpush1.msra.mxu0 0.0
        %4205 = vmatprep.subr.mxu0 0.0
        %4206 = vmatpush1.msra.mxu0 0.0
        %4207 = vmatprep.subr.mxu0 0.0
        %4208 = vmatpush1.msra.mxu0 0.0
        %4209 = vmatprep.subr.mxu0 0.0
        %4210 = vmatpush1.msra.mxu0 0.0
        %4211 = vmatprep.subr.mxu0 0.0
        %4212 = vmatpush1.msra.mxu0 0.0
        %4213 = vmatprep.subr.mxu0 0.0
        %4214 = vmatpush1.msra.mxu0 0.0
        %4215 = vmatprep.subr.mxu0 0.0
        %4216 = vmatpush1.msra.mxu0 0.0
        %4217 = vmatprep.subr.mxu0 0.0
        %4218 = vmatpush1.msra.mxu0 0.0
        %4219 = vmatprep.subr.mxu0 0.0
        %4220 = vmatpush1.msra.mxu0 0.0
        %4221 = vmatprep.subr.mxu0 0.0
        %4222 = vmatpush1.msra.mxu0 0.0
        %4223 = vmatprep.subr.mxu0 0.0
        %4224 = vmatpush1.msra.mxu0 0.0
        %4225 = vmatprep.subr.mxu0 0.0
        %4226 = vmatpush1.msra.mxu0 0.0
        %4227 = vmatprep.subr.mxu0 0.0
        %4228 = vmatpush1.msra.mxu0 0.0
        %4229 = vmatprep.subr.mxu0 0.0
        %4230 = vmatpush1.msra.mxu0 0.0
        %4231 = vmatprep.subr.mxu0 0.0
        %4232 = vmatpush1.msra.mxu0 0.0
        %4233 = vmatprep.subr.mxu0 0.0
        %4234 = vmatpush1.msra.mxu0 0.0
        %4235 = vmatprep.subr.mxu0 0.0
        %4236 = vmatpush1.msra.mxu0 0.0
        %4237 = vmatprep.subr.mxu0 0.0
        %4238 = vmatpush1.msra.mxu0 0.0
        %4239 = vmatprep.subr.mxu0 0.0
        %4240 = vmatpush1.msra.mxu0 0.0
        %4241 = vmatprep.subr.mxu0 0.0
        %4242 = vmatpush1.msra.mxu0 0.0
        %4243 = vmatprep.mubr.f32.mxu0 0.0
        %4244 = vmatmul.mubr.f32.gmra.mrb[0].mxu0 %v4168
        %v4245 = vpop.f32.mrb[0].mxu0
        %v4246 = vadd.f32 %v4134, %v4245
        %v4247 = vpop.f32.mrb[0].mxu0
        %v4248 = vadd.f32 %v4135, %v4247
        %4249 = vmatprep.mubr.f32.mxu0 0.0
        %4250 = vmatmul.mubr.f32.gmra.mrb[0].mxu0 %v4171
        %v4251 = vpop.f32.mrb[0].mxu0
        %v4252 = vadd.f32 %v4142, %v4251
        %v4253 = vpop.f32.mrb[0].mxu0
        %v4254 = vadd.f32 %v4143, %v4253
        %4255 = vmatprep.mubr.f32.mxu0 0.0
        %4256 = vmatmul.mubr.f32.gmra.mrb[0].mxu0 %v4174
        %v4257 = vpop.f32.mrb[0].mxu0
        %v4258 = vadd.f32 %v4150, %v4257
        %v4259 = vpop.f32.mrb[0].mxu0
        %v4260 = vadd.f32 %v4151, %v4259
        %4261 = vmatprep.mubr.f32.mxu0 0.0
        %4262 = vmatmul.mubr.f32.gmra.mrb[0].mxu0 %v4177
        %v4263 = vpop.f32.mrb[0].mxu0
        %v4264 = vadd.f32 %v4158, %v4263
        %v4265 = vpop.f32.mrb[0].mxu0
        %v4266 = vadd.f32 %v4159, %v4265
        %4267 = vdwg.mxu0
        %4268 = vmatprep.subr.mxu0 %v1121
        %4269 = vmatpush1.msra.mxu0 %v1017
        %4270 = vmatprep.subr.mxu0 %v1953
        %4271 = vmatpush1.msra.mxu0 %v1849
        %4272 = vmatprep.subr.mxu0 %v2785
        %4273 = vmatpush1.msra.mxu0 %v2681
        %4274 = vmatprep.subr.mxu0 %v3617
        %4275 = vmatpush1.msra.mxu0 %v3513
        %4276 = vmatprep.subr.mxu0 0.0
        %4277 = vmatpush1.msra.mxu0 0.0
        %4278 = vmatprep.subr.mxu0 0.0
        %4279 = vmatpush1.msra.mxu0 0.0
        %4280 = vmatprep.subr.mxu0 0.0
        %4281 = vmatpush1.msra.mxu0 0.0
        %4282 = vmatprep.subr.mxu0 0.0
        %4283 = vmatpush1.msra.mxu0 0.0
        %4284 = vmatprep.subr.mxu0 0.0
        %4285 = vmatpush1.msra.mxu0 0.0
        %4286 = vmatprep.subr.mxu0 0.0
        %4287 = vmatpush1.msra.mxu0 0.0
        %4288 = vmatprep.subr.mxu0 0.0
        %4289 = vmatpush1.msra.mxu0 0.0
        %4290 = vmatprep.subr.mxu0 0.0
        %4291 = vmatpush1.msra.mxu0 0.0
        %4292 = vmatprep.subr.mxu0 0.0
        %4293 = vmatpush1.msra.mxu0 0.0
        %4294 = vmatprep.subr.mxu0 0.0
        %4295 = vmatpush1.msra.mxu0 0.0
        %4296 = vmatprep.subr.mxu0 0.0
        %4297 = vmatpush1.msra.mxu0 0.0
        %4298 = vmatprep.subr.mxu0 0.0
        %4299 = vmatpush1.msra.mxu0 0.0
        %4300 = vmatprep.subr.mxu0 0.0
        %4301 = vmatpush1.msra.mxu0 0.0
        %4302 = vmatprep.subr.mxu0 0.0
        %4303 = vmatpush1.msra.mxu0 0.0
        %4304 = vmatprep.subr.mxu0 0.0
        %4305 = vmatpush1.msra.mxu0 0.0
        %4306 = vmatprep.subr.mxu0 0.0
        %4307 = vmatpush1.msra.mxu0 0.0
        %4308 = vmatprep.subr.mxu0 0.0
        %4309 = vmatpush1.msra.mxu0 0.0
        %4310 = vmatprep.subr.mxu0 0.0
        %4311 = vmatpush1.msra.mxu0 0.0
        %4312 = vmatprep.subr.mxu0 0.0
        %4313 = vmatpush1.msra.mxu0 0.0
        %4314 = vmatprep.subr.mxu0 0.0
        %4315 = vmatpush1.msra.mxu0 0.0
        %4316 = vmatprep.subr.mxu0 0.0
        %4317 = vmatpush1.msra.mxu0 0.0
        %4318 = vmatprep.subr.mxu0 0.0
        %4319 = vmatpush1.msra.mxu0 0.0
        %4320 = vmatprep.subr.mxu0 0.0
        %4321 = vmatpush1.msra.mxu0 0.0
        %4322 = vmatprep.subr.mxu0 0.0
        %4323 = vmatpush1.msra.mxu0 0.0
        %4324 = vmatprep.subr.mxu0 0.0
        %4325 = vmatpush1.msra.mxu0 0.0
        %4326 = vmatprep.subr.mxu0 0.0
        %4327 = vmatpush1.msra.mxu0 0.0
        %4328 = vmatprep.subr.mxu0 0.0
        %4329 = vmatpush1.msra.mxu0 0.0
        %4330 = vmatprep.subr.mxu0 0.0
        %4331 = vmatpush1.msra.mxu0 0.0
        %4332 = vmatprep.mubr.f32.mxu0 0.0
        %4333 = vmatmul.mubr.f32.gmra.mrb[0].mxu0 %v4168
        %v4334 = vpop.f32.mrb[0].mxu0
        %v4335 = vadd.f32 %v4136, %v4334
        %v4336 = vpop.f32.mrb[0].mxu0
        %v4337 = vadd.f32 %v4137, %v4336
        %4338 = vmatprep.mubr.f32.mxu0 0.0
        %4339 = vmatmul.mubr.f32.gmra.mrb[0].mxu0 %v4171
        %v4340 = vpop.f32.mrb[0].mxu0
        %v4341 = vadd.f32 %v4144, %v4340
        %v4342 = vpop.f32.mrb[0].mxu0
        %v4343 = vadd.f32 %v4145, %v4342
        %4344 = vmatprep.mubr.f32.mxu0 0.0
        %4345 = vmatmul.mubr.f32.gmra.mrb[0].mxu0 %v4174
        %v4346 = vpop.f32.mrb[0].mxu0
        %v4347 = vadd.f32 %v4152, %v4346
        %v4348 = vpop.f32.mrb[0].mxu0
        %v4349 = vadd.f32 %v4153, %v4348
        %4350 = vmatprep.mubr.f32.mxu0 0.0
        %4351 = vmatmul.mubr.f32.gmra.mrb[0].mxu0 %v4177
        %v4352 = vpop.f32.mrb[0].mxu0
        %v4353 = vadd.f32 %v4160, %v4352
        %v4354 = vpop.f32.mrb[0].mxu0
        %v4355 = vadd.f32 %v4161, %v4354
        %4356 = vdwg.mxu0
        %4357 = vmatprep.subr.mxu0 %v1329
        %4358 = vmatpush1.msra.mxu0 %v1225
        %4359 = vmatprep.subr.mxu0 %v2161
        %4360 = vmatpush1.msra.mxu0 %v2057
        %4361 = vmatprep.subr.mxu0 %v2993
        %4362 = vmatpush1.msra.mxu0 %v2889
        %4363 = vmatprep.subr.mxu0 %v3825
        %4364 = vmatpush1.msra.mxu0 %v3721
        %4365 = vmatprep.subr.mxu0 0.0
        %4366 = vmatpush1.msra.mxu0 0.0
        %4367 = vmatprep.subr.mxu0 0.0
        %4368 = vmatpush1.msra.mxu0 0.0
        %4369 = vmatprep.subr.mxu0 0.0
        %4370 = vmatpush1.msra.mxu0 0.0
        %4371 = vmatprep.subr.mxu0 0.0
        %4372 = vmatpush1.msra.mxu0 0.0
        %4373 = vmatprep.subr.mxu0 0.0
        %4374 = vmatpush1.msra.mxu0 0.0
        %4375 = vmatprep.subr.mxu0 0.0
        %4376 = vmatpush1.msra.mxu0 0.0
        %4377 = vmatprep.subr.mxu0 0.0
        %4378 = vmatpush1.msra.mxu0 0.0
        %4379 = vmatprep.subr.mxu0 0.0
        %4380 = vmatpush1.msra.mxu0 0.0
        %4381 = vmatprep.subr.mxu0 0.0
        %4382 = vmatpush1.msra.mxu0 0.0
        %4383 = vmatprep.subr.mxu0 0.0
        %4384 = vmatpush1.msra.mxu0 0.0
        %4385 = vmatprep.subr.mxu0 0.0
        %4386 = vmatpush1.msra.mxu0 0.0
        %4387 = vmatprep.subr.mxu0 0.0
        %4388 = vmatpush1.msra.mxu0 0.0
        %4389 = vmatprep.subr.mxu0 0.0
        %4390 = vmatpush1.msra.mxu0 0.0
        %4391 = vmatprep.subr.mxu0 0.0
        %4392 = vmatpush1.msra.mxu0 0.0
        %4393 = vmatprep.subr.mxu0 0.0
        %4394 = vmatpush1.msra.mxu0 0.0
        %4395 = vmatprep.subr.mxu0 0.0
        %4396 = vmatpush1.msra.mxu0 0.0
        %4397 = vmatprep.subr.mxu0 0.0
        %4398 = vmatpush1.msra.mxu0 0.0
        %4399 = vmatprep.subr.mxu0 0.0
        %4400 = vmatpush1.msra.mxu0 0.0
        %4401 = vmatprep.subr.mxu0 0.0
        %4402 = vmatpush1.msra.mxu0 0.0
        %4403 = vmatprep.subr.mxu0 0.0
        %4404 = vmatpush1.msra.mxu0 0.0
        %4405 = vmatprep.subr.mxu0 0.0
        %4406 = vmatpush1.msra.mxu0 0.0
        %4407 = vmatprep.subr.mxu0 0.0
        %4408 = vmatpush1.msra.mxu0 0.0
        %4409 = vmatprep.subr.mxu0 0.0
        %4410 = vmatpush1.msra.mxu0 0.0
        %4411 = vmatprep.subr.mxu0 0.0
        %4412 = vmatpush1.msra.mxu0 0.0
        %4413 = vmatprep.subr.mxu0 0.0
        %4414 = vmatpush1.msra.mxu0 0.0
        %4415 = vmatprep.subr.mxu0 0.0
        %4416 = vmatpush1.msra.mxu0 0.0
        %4417 = vmatprep.subr.mxu0 0.0
        %4418 = vmatpush1.msra.mxu0 0.0
        %4419 = vmatprep.subr.mxu0 0.0
        %4420 = vmatpush1.msra.mxu0 0.0
        %4421 = vmatprep.mubr.f32.mxu0 0.0
        %4422 = vmatmul.mubr.f32.gmra.mrb[0].mxu0 %v4168
        %v4423 = vpop.f32.mrb[0].mxu0
        %v4424 = vadd.f32 %v4138, %v4423
        %v4425 = vpop.f32.mrb[0].mxu0
        %v4426 = vadd.f32 %v4139, %v4425
        %4427 = vmatprep.mubr.f32.mxu0 0.0
        %4428 = vmatmul.mubr.f32.gmra.mrb[0].mxu0 %v4171
        %v4429 = vpop.f32.mrb[0].mxu0
        %v4430 = vadd.f32 %v4146, %v4429
        %v4431 = vpop.f32.mrb[0].mxu0
        %v4432 = vadd.f32 %v4147, %v4431
        %4433 = vmatprep.mubr.f32.mxu0 0.0
        %4434 = vmatmul.mubr.f32.gmra.mrb[0].mxu0 %v4174
        %v4435 = vpop.f32.mrb[0].mxu0
        %v4436 = vadd.f32 %v4154, %v4435
        %v4437 = vpop.f32.mrb[0].mxu0
        %v4438 = vadd.f32 %v4155, %v4437
        %4439 = vmatprep.mubr.f32.mxu0 0.0
        %4440 = vmatmul.mubr.f32.gmra.mrb[0].mxu0 %v4177
        %v4441 = vpop.f32.mrb[0].mxu0
        %v4442 = vadd.f32 %v4162, %v4441
        %v4443 = vpop.f32.mrb[0].mxu0
        %v4444 = vadd.f32 %v4163, %v4443
        %4445 = vdwg.mxu0
        %4446 = vmatprep.subr.mxu0 %v1537
        %4447 = vmatpush1.msra.mxu0 %v1433
        %4448 = vmatprep.subr.mxu0 %v2369
        %4449 = vmatpush1.msra.mxu0 %v2265
        %4450 = vmatprep.subr.mxu0 %v3201
        %4451 = vmatpush1.msra.mxu0 %v3097
        %4452 = vmatprep.subr.mxu0 %v4033
        %4453 = vmatpush1.msra.mxu0 %v3929
        %4454 = vmatprep.subr.mxu0 0.0
        %4455 = vmatpush1.msra.mxu0 0.0
        %4456 = vmatprep.subr.mxu0 0.0
        %4457 = vmatpush1.msra.mxu0 0.0
        %4458 = vmatprep.subr.mxu0 0.0
        %4459 = vmatpush1.msra.mxu0 0.0
        %4460 = vmatprep.subr.mxu0 0.0
        %4461 = vmatpush1.msra.mxu0 0.0
        %4462 = vmatprep.subr.mxu0 0.0
        %4463 = vmatpush1.msra.mxu0 0.0
        %4464 = vmatprep.subr.mxu0 0.0
        %4465 = vmatpush1.msra.mxu0 0.0
        %4466 = vmatprep.subr.mxu0 0.0
        %4467 = vmatpush1.msra.mxu0 0.0
        %4468 = vmatprep.subr.mxu0 0.0
        %4469 = vmatpush1.msra.mxu0 0.0
        %4470 = vmatprep.subr.mxu0 0.0
        %4471 = vmatpush1.msra.mxu0 0.0
        %4472 = vmatprep.subr.mxu0 0.0
        %4473 = vmatpush1.msra.mxu0 0.0
        %4474 = vmatprep.subr.mxu0 0.0
        %4475 = vmatpush1.msra.mxu0 0.0
        %4476 = vmatprep.subr.mxu0 0.0
        %4477 = vmatpush1.msra.mxu0 0.0
        %4478 = vmatprep.subr.mxu0 0.0
        %4479 = vmatpush1.msra.mxu0 0.0
        %4480 = vmatprep.subr.mxu0 0.0
        %4481 = vmatpush1.msra.mxu0 0.0
        %4482 = vmatprep.subr.mxu0 0.0
        %4483 = vmatpush1.msra.mxu0 0.0
        %4484 = vmatprep.subr.mxu0 0.0
        %4485 = vmatpush1.msra.mxu0 0.0
        %4486 = vmatprep.subr.mxu0 0.0
        %4487 = vmatpush1.msra.mxu0 0.0
        %4488 = vmatprep.subr.mxu0 0.0
        %4489 = vmatpush1.msra.mxu0 0.0
        %4490 = vmatprep.subr.mxu0 0.0
        %4491 = vmatpush1.msra.mxu0 0.0
        %4492 = vmatprep.subr.mxu0 0.0
        %4493 = vmatpush1.msra.mxu0 0.0
        %4494 = vmatprep.subr.mxu0 0.0
        %4495 = vmatpush1.msra.mxu0 0.0
        %4496 = vmatprep.subr.mxu0 0.0
        %4497 = vmatpush1.msra.mxu0 0.0
        %4498 = vmatprep.subr.mxu0 0.0
        %4499 = vmatpush1.msra.mxu0 0.0
        %4500 = vmatprep.subr.mxu0 0.0
        %4501 = vmatpush1.msra.mxu0 0.0
        %4502 = vmatprep.subr.mxu0 0.0
        %4503 = vmatpush1.msra.mxu0 0.0
        %4504 = vmatprep.subr.mxu0 0.0
        %4505 = vmatpush1.msra.mxu0 0.0
        %4506 = vmatprep.subr.mxu0 0.0
        %4507 = vmatpush1.msra.mxu0 0.0
        %4508 = vmatprep.subr.mxu0 0.0
        %4509 = vmatpush1.msra.mxu0 0.0
        %4510 = vmatprep.mubr.f32.mxu0 0.0
        %4511 = vmatmul.mubr.f32.gmra.mrb[0].mxu0 %v4168
        %v4512 = vpop.f32.mrb[0].mxu0
        %v4513 = vadd.f32 %v4140, %v4512
        %v4514 = vpop.f32.mrb[0].mxu0
        %v4515 = vadd.f32 %v4141, %v4514
        %4516 = vmatprep.mubr.f32.mxu0 0.0
        %4517 = vmatmul.mubr.f32.gmra.mrb[0].mxu0 %v4171
        %v4518 = vpop.f32.mrb[0].mxu0
        %v4519 = vadd.f32 %v4148, %v4518
        %v4520 = vpop.f32.mrb[0].mxu0
        %v4521 = vadd.f32 %v4149, %v4520
        %4522 = vmatprep.mubr.f32.mxu0 0.0
        %4523 = vmatmul.mubr.f32.gmra.mrb[0].mxu0 %v4174
        %v4524 = vpop.f32.mrb[0].mxu0
        %v4525 = vadd.f32 %v4156, %v4524
        %v4526 = vpop.f32.mrb[0].mxu0
        %v4527 = vadd.f32 %v4157, %v4526
        %4528 = vmatprep.mubr.f32.mxu0 0.0
        %4529 = vmatmul.mubr.f32.gmra.mrb[0].mxu0 %v4177
        %v4530 = vpop.f32.mrb[0].mxu0
        %v4531 = vadd.f32 %v4164, %v4530
        %v4532 = vpop.f32.mrb[0].mxu0
        %v4533 = vadd.f32 %v4165, %v4532
        %4534 = vdwg.mxu0
        %v4535 = vld [vmem:[%s5] sm:$0xff]
        %v4536 = vld [vmem:[%s5 + $0x8] sm:$0xff]
        %v4537 = vld [vmem:[%s5 + $0x10] sm:$0xff]
        %v4538 = vld [vmem:[%s5 + $0x18] sm:$0xff]
        %4540 = vset.pattern.permute.xlu0 0
        %4541 = vperm.xlu0 %4540, %v4535
        %v4542 = vpop.permute.xlu0 %4541
        %4545 = vset.pattern.permute.xlu0 0
        %4546 = vperm.xlu0 %4545, %v4536
        %v4547 = vpop.permute.xlu0 %4546
        %4550 = vset.pattern.permute.xlu0 0
        %4551 = vperm.xlu0 %4550, %v4537
        %v4552 = vpop.permute.xlu0 %4551
        %4555 = vset.pattern.permute.xlu0 0
        %4556 = vperm.xlu0 %4555, %v4538
        %v4557 = vpop.permute.xlu0 %4556
        %v4559 = vadd.f32 %v4246, %v4542
        %v4560 = vadd.f32 %v4248, %v4542
        %v4561 = vadd.f32 %v4335, %v4542
        %v4562 = vadd.f32 %v4337, %v4542
        %v4563 = vadd.f32 %v4424, %v4542
        %v4564 = vadd.f32 %v4426, %v4542
        %v4565 = vadd.f32 %v4513, %v4542
        %v4566 = vadd.f32 %v4515, %v4542
        %v4567 = vadd.f32 %v4252, %v4547
        %v4568 = vadd.f32 %v4254, %v4547
        %v4569 = vadd.f32 %v4341, %v4547
        %v4570 = vadd.f32 %v4343, %v4547
        %v4571 = vadd.f32 %v4430, %v4547
        %v4572 = vadd.f32 %v4432, %v4547
        %v4573 = vadd.f32 %v4519, %v4547
        %v4574 = vadd.f32 %v4521, %v4547
        %v4575 = vadd.f32 %v4258, %v4552
        %v4576 = vadd.f32 %v4260, %v4552
        %v4577 = vadd.f32 %v4347, %v4552
        %v4578 = vadd.f32 %v4349, %v4552
        %v4579 = vadd.f32 %v4436, %v4552
        %v4580 = vadd.f32 %v4438, %v4552
        %v4581 = vadd.f32 %v4525, %v4552
        %v4582 = vadd.f32 %v4527, %v4552
        %v4583 = vadd.f32 %v4264, %v4557
        %v4584 = vadd.f32 %v4266, %v4557
        %v4585 = vadd.f32 %v4353, %v4557
        %v4586 = vadd.f32 %v4355, %v4557
        %v4587 = vadd.f32 %v4442, %v4557
        %v4588 = vadd.f32 %v4444, %v4557
        %v4589 = vadd.f32 %v4531, %v4557
        %v4590 = vadd.f32 %v4533, %v4557
        %v4591 = vld [vmem:[%s6] sm:$0x7]
        %v4592 = vand.u32 2147483647, %v4559
        %vm4593 = vcmp.le.f32.partialorder %v4592, 0.7853982
        %vm4594 = vcmp.lt.s32.totalorder %v4559, 0
        %v4595 = vand.u32 %v4559, 2139095040
        %v4596 = vshrl.u32 %v4595, 23
        %v4597 = vsub.s32 %v4596, 127
        %v4598 = vand.u32 2147483647, %v4559
        %v4599 = vand.u32 %v4598, 8388607
        %v4600 = vor.u32 %v4599, 8388608
        %v4601 = vsub.s32 0, %v4600
        %v4602 = vadd.s32 %v4597, 1
        %vm4603 = vcmp.gt.s32.totalorder %v4602, 0
        %v4604 = vsel %vm4603, %v4602, 0
        %v4605 = vshrl.u32 %v4604, 5
        %v4606 = vand.u32 %v4604, 31
        %v4607 = vsub.s32 32, %v4606
        %v4608 = vshrl.u32 683565275, %v4607
        %v4609 = vshll.u32 683565275, %v4606
        %v4610 = vshrl.u32 2475754826, %v4607
        %v4611 = vor.u32 %v4609, %v4610
        %v4612 = vshll.u32 2475754826, %v4606
        %v4613 = vshrl.u32 2131351028, %v4607
        %v4614 = vor.u32 %v4612, %v4613
        %v4615 = vshll.u32 2131351028, %v4606
        %v4616 = vshrl.u32 2102212464, %v4607
        %v4617 = vor.u32 %v4615, %v4616
        %v4618 = vshll.u32 2102212464, %v4606
        %v4619 = vshrl.u32 920167782, %v4607
        %v4620 = vor.u32 %v4618, %v4619
        %v4621 = vshll.u32 920167782, %v4606
        %v4622 = vshrl.u32 1326507024, %v4607
        %v4623 = vor.u32 %v4621, %v4622
        %vm4624 = vcmp.lt.s32.totalorder %v4605, 1
        %vm4625 = vcmp.lt.s32.totalorder %v4605, 2
        %vm4626 = vcmp.lt.s32.totalorder %v4605, 3
        %vm4627 = vcmp.lt.s32.totalorder %v4605, 4
        %v4628 = vsel %vm4624, %v4608, %v4611
        %v4629 = vsel %vm4627, %v4617, 2102212464
        %v4630 = vsel %vm4626, %v4614, %v4629
        %v4631 = vsel %vm4625, %v4628, %v4630
        %v4632 = vsel %vm4624, %v4611, %v4614
        %v4633 = vsel %vm4627, %v4620, 920167782
        %v4634 = vsel %vm4626, %v4617, %v4633
        %v4635 = vsel %vm4625, %v4632, %v4634
        %v4636 = vsel %vm4624, %v4614, %v4617
        %v4637 = vsel %vm4627, %v4623, 1326507024
        %v4638 = vsel %vm4626, %v4620, %v4637
        %v4639 = vsel %vm4625, %v4636, %v4638
        %v4640 = vshll.u32 %v4600, 8
        %v4641 = vmul.u32.u64.compose %v4640, %v4639
        %v4642 = vextract.low.u32 %v4641
        %v4643 = vextract.high.u32 %v4641
        %v4644 = vmul.u32.u64.compose %v4640, %v4635
        %v4645 = vextract.low.u32 %v4644
        %v4646 = vextract.high.u32 %v4644
        %v4647 = vmul.u32 %v4640, %v4631
        %v4648 = vadd.s32 %v4643, %v4645
        %vm4649 = vc.u32 %v4643, %v4645
        %v4650 = vadd.s32 %v4646, 1
        %v4651 = vsel %vm4649, %v4650, %v4646
        %v4652 = vadd.s32 %v4647, %v4651
        %v4653 = vadd.s32 %v4652, 536870912
        %v4654 = vshrl.u32 %v4653, 30
        %v4655 = vshll.u32 %v4654, 30
        %v4656 = vsub.s32 %v4652, %v4655
        %vm4657 = vcmp.lt.s32.totalorder %v4656, 0
        %v4658 = vsub.s32 0, %v4656
        %v4659 = vsel %vm4657, %v4658, %v4656
        %v4660 = vclz %v4659
        %v4661 = vsub.s32 %v4660, 2
        %vm4662 = vcmp.gt.s32.totalorder 0, %v4661
        %v4663 = vsel %vm4662, 0, %v4661
        %v4664 = vsub.s32 32, %v4663
        %v4665 = vshll.u32 %v4656, %v4663
        %v4666 = vshrl.u32 %v4648, %v4664
        %v4667 = vor.u32 %v4665, %v4666
        %v4668 = vsub.s32 4294967266, %v4663
        %v4669 = vadd.s32 %v4668, 127
        %v4670 = vshll.u32 %v4669, 23
        %v4671 = vor.u32 4788187, %v4670
        %v4672 = vand.u32 2147483647, %v4671
        %v4674 = vcvt.s32.f32 %v4667
        %v4675 = vmul.f32 %v4674, %v4672
        %v4676 = vxor.u32 %v4675, 2147483648
        %v4677 = vsel %vm4594, %v4676, %v4675
        %v4678 = vsub.s32 4, %v4654
        %v4679 = vsel %vm4594, %v4678, %v4654
        %v4680 = vsel %vm4593, %v4559, %v4677
        %v4681 = vsel %vm4593, 0, %v4679
        %v4682 = vcosq.f32.pop %v4680
        %v4683 = vsinq.f32.pop %v4680
        %vm4684 = vweird.f32 %v4559
        %v4685 = vand.u32 %v4681, 3
        %vm4686 = vcmp.lt.s32.totalorder %v4685, 2
        %vm4687 = vcmp.eq.s32.totalorder %v4685, 0
        %v4688 = vxor.u32 %v4683, 2147483648
        %v4689 = vsel %vm4687, %v4682, %v4688
        %vm4690 = vcmp.eq.s32.totalorder %v4685, 2
        %v4691 = vxor.u32 %v4682, 2147483648
        %v4692 = vsel %vm4690, %v4691, %v4683
        %v4693 = vsel %vm4686, %v4689, %v4692
        %v4694 = vsel %vm4684, nan, %v4693
        %v4695 = vand.u32 2147483647, %v4560
        %vm4696 = vcmp.le.f32.partialorder %v4695, 0.7853982
        %vm4697 = vcmp.lt.s32.totalorder %v4560, 0
        %v4698 = vand.u32 %v4560, 2139095040
        %v4699 = vshrl.u32 %v4698, 23
        %v4700 = vsub.s32 %v4699, 127
        %v4701 = vand.u32 2147483647, %v4560
        %v4702 = vand.u32 %v4701, 8388607
        %v4703 = vor.u32 %v4702, 8388608
        %v4704 = vsub.s32 0, %v4703
        %v4705 = vadd.s32 %v4700, 1
        %vm4706 = vcmp.gt.s32.totalorder %v4705, 0
        %v4707 = vsel %vm4706, %v4705, 0
        %v4708 = vshrl.u32 %v4707, 5
        %v4709 = vand.u32 %v4707, 31
        %v4710 = vsub.s32 32, %v4709
        %v4711 = vshrl.u32 683565275, %v4710
        %v4712 = vshll.u32 683565275, %v4709
        %v4713 = vshrl.u32 2475754826, %v4710
        %v4714 = vor.u32 %v4712, %v4713
        %v4715 = vshll.u32 2475754826, %v4709
        %v4716 = vshrl.u32 2131351028, %v4710
        %v4717 = vor.u32 %v4715, %v4716
        %v4718 = vshll.u32 2131351028, %v4709
        %v4719 = vshrl.u32 2102212464, %v4710
        %v4720 = vor.u32 %v4718, %v4719
        %v4721 = vshll.u32 2102212464, %v4709
        %v4722 = vshrl.u32 920167782, %v4710
        %v4723 = vor.u32 %v4721, %v4722
        %v4724 = vshll.u32 920167782, %v4709
        %v4725 = vshrl.u32 1326507024, %v4710
        %v4726 = vor.u32 %v4724, %v4725
        %vm4727 = vcmp.lt.s32.totalorder %v4708, 1
        %vm4728 = vcmp.lt.s32.totalorder %v4708, 2
        %vm4729 = vcmp.lt.s32.totalorder %v4708, 3
        %vm4730 = vcmp.lt.s32.totalorder %v4708, 4
        %v4731 = vsel %vm4727, %v4711, %v4714
        %v4732 = vsel %vm4730, %v4720, 2102212464
        %v4733 = vsel %vm4729, %v4717, %v4732
        %v4734 = vsel %vm4728, %v4731, %v4733
        %v4735 = vsel %vm4727, %v4714, %v4717
        %v4736 = vsel %vm4730, %v4723, 920167782
        %v4737 = vsel %vm4729, %v4720, %v4736
        %v4738 = vsel %vm4728, %v4735, %v4737
        %v4739 = vsel %vm4727, %v4717, %v4720
        %v4740 = vsel %vm4730, %v4726, 1326507024
        %v4741 = vsel %vm4729, %v4723, %v4740
        %v4742 = vsel %vm4728, %v4739, %v4741
        %v4743 = vshll.u32 %v4703, 8
        %v4744 = vmul.u32.u64.compose %v4743, %v4742
        %v4745 = vextract.low.u32 %v4744
        %v4746 = vextract.high.u32 %v4744
        %v4747 = vmul.u32.u64.compose %v4743, %v4738
        %v4748 = vextract.low.u32 %v4747
        %v4749 = vextract.high.u32 %v4747
        %v4750 = vmul.u32 %v4743, %v4734
        %v4751 = vadd.s32 %v4746, %v4748
        %vm4752 = vc.u32 %v4746, %v4748
        %v4753 = vadd.s32 %v4749, 1
        %v4754 = vsel %vm4752, %v4753, %v4749
        %v4755 = vadd.s32 %v4750, %v4754
        %v4756 = vadd.s32 %v4755, 536870912
        %v4757 = vshrl.u32 %v4756, 30
        %v4758 = vshll.u32 %v4757, 30
        %v4759 = vsub.s32 %v4755, %v4758
        %vm4760 = vcmp.lt.s32.totalorder %v4759, 0
        %v4761 = vsub.s32 0, %v4759
        %v4762 = vsel %vm4760, %v4761, %v4759
        %v4763 = vclz %v4762
        %v4764 = vsub.s32 %v4763, 2
        %vm4765 = vcmp.gt.s32.totalorder 0, %v4764
        %v4766 = vsel %vm4765, 0, %v4764
        %v4767 = vsub.s32 32, %v4766
        %v4768 = vshll.u32 %v4759, %v4766
        %v4769 = vshrl.u32 %v4751, %v4767
        %v4770 = vor.u32 %v4768, %v4769
        %v4771 = vsub.s32 4294967266, %v4766
        %v4772 = vadd.s32 %v4771, 127
        %v4773 = vshll.u32 %v4772, 23
        %v4774 = vor.u32 4788187, %v4773
        %v4775 = vand.u32 2147483647, %v4774
        %v4777 = vcvt.s32.f32 %v4770
        %v4778 = vmul.f32 %v4777, %v4775
        %v4779 = vxor.u32 %v4778, 2147483648
        %v4780 = vsel %vm4697, %v4779, %v4778
        %v4781 = vsub.s32 4, %v4757
        %v4782 = vsel %vm4697, %v4781, %v4757
        %v4783 = vsel %vm4696, %v4560, %v4780
        %v4784 = vsel %vm4696, 0, %v4782
        %v4785 = vcosq.f32.pop %v4783
        %v4786 = vsinq.f32.pop %v4783
        %vm4787 = vweird.f32 %v4560
        %v4788 = vand.u32 %v4784, 3
        %vm4789 = vcmp.lt.s32.totalorder %v4788, 2
        %vm4790 = vcmp.eq.s32.totalorder %v4788, 0
        %v4791 = vxor.u32 %v4786, 2147483648
        %v4792 = vsel %vm4790, %v4785, %v4791
        %vm4793 = vcmp.eq.s32.totalorder %v4788, 2
        %v4794 = vxor.u32 %v4785, 2147483648
        %v4795 = vsel %vm4793, %v4794, %v4786
        %v4796 = vsel %vm4789, %v4792, %v4795
        %v4797 = vsel %vm4787, nan, %v4796
        %v4798 = vand.u32 2147483647, %v4561
        %vm4799 = vcmp.le.f32.partialorder %v4798, 0.7853982
        %vm4800 = vcmp.lt.s32.totalorder %v4561, 0
        %v4801 = vand.u32 %v4561, 2139095040
        %v4802 = vshrl.u32 %v4801, 23
        %v4803 = vsub.s32 %v4802, 127
        %v4804 = vand.u32 2147483647, %v4561
        %v4805 = vand.u32 %v4804, 8388607
        %v4806 = vor.u32 %v4805, 8388608
        %v4807 = vsub.s32 0, %v4806
        %v4808 = vadd.s32 %v4803, 1
        %vm4809 = vcmp.gt.s32.totalorder %v4808, 0
        %v4810 = vsel %vm4809, %v4808, 0
        %v4811 = vshrl.u32 %v4810, 5
        %v4812 = vand.u32 %v4810, 31
        %v4813 = vsub.s32 32, %v4812
        %v4814 = vshrl.u32 683565275, %v4813
        %v4815 = vshll.u32 683565275, %v4812
        %v4816 = vshrl.u32 2475754826, %v4813
        %v4817 = vor.u32 %v4815, %v4816
        %v4818 = vshll.u32 2475754826, %v4812
        %v4819 = vshrl.u32 2131351028, %v4813
        %v4820 = vor.u32 %v4818, %v4819
        %v4821 = vshll.u32 2131351028, %v4812
        %v4822 = vshrl.u32 2102212464, %v4813
        %v4823 = vor.u32 %v4821, %v4822
        %v4824 = vshll.u32 2102212464, %v4812
        %v4825 = vshrl.u32 920167782, %v4813
        %v4826 = vor.u32 %v4824, %v4825
        %v4827 = vshll.u32 920167782, %v4812
        %v4828 = vshrl.u32 1326507024, %v4813
        %v4829 = vor.u32 %v4827, %v4828
        %vm4830 = vcmp.lt.s32.totalorder %v4811, 1
        %vm4831 = vcmp.lt.s32.totalorder %v4811, 2
        %vm4832 = vcmp.lt.s32.totalorder %v4811, 3
        %vm4833 = vcmp.lt.s32.totalorder %v4811, 4
        %v4834 = vsel %vm4830, %v4814, %v4817
        %v4835 = vsel %vm4833, %v4823, 2102212464
        %v4836 = vsel %vm4832, %v4820, %v4835
        %v4837 = vsel %vm4831, %v4834, %v4836
        %v4838 = vsel %vm4830, %v4817, %v4820
        %v4839 = vsel %vm4833, %v4826, 920167782
        %v4840 = vsel %vm4832, %v4823, %v4839
        %v4841 = vsel %vm4831, %v4838, %v4840
        %v4842 = vsel %vm4830, %v4820, %v4823
        %v4843 = vsel %vm4833, %v4829, 1326507024
        %v4844 = vsel %vm4832, %v4826, %v4843
        %v4845 = vsel %vm4831, %v4842, %v4844
        %v4846 = vshll.u32 %v4806, 8
        %v4847 = vmul.u32.u64.compose %v4846, %v4845
        %v4848 = vextract.low.u32 %v4847
        %v4849 = vextract.high.u32 %v4847
        %v4850 = vmul.u32.u64.compose %v4846, %v4841
        %v4851 = vextract.low.u32 %v4850
        %v4852 = vextract.high.u32 %v4850
        %v4853 = vmul.u32 %v4846, %v4837
        %v4854 = vadd.s32 %v4849, %v4851
        %vm4855 = vc.u32 %v4849, %v4851
        %v4856 = vadd.s32 %v4852, 1
        %v4857 = vsel %vm4855, %v4856, %v4852
        %v4858 = vadd.s32 %v4853, %v4857
        %v4859 = vadd.s32 %v4858, 536870912
        %v4860 = vshrl.u32 %v4859, 30
        %v4861 = vshll.u32 %v4860, 30
        %v4862 = vsub.s32 %v4858, %v4861
        %vm4863 = vcmp.lt.s32.totalorder %v4862, 0
        %v4864 = vsub.s32 0, %v4862
        %v4865 = vsel %vm4863, %v4864, %v4862
        %v4866 = vclz %v4865
        %v4867 = vsub.s32 %v4866, 2
        %vm4868 = vcmp.gt.s32.totalorder 0, %v4867
        %v4869 = vsel %vm4868, 0, %v4867
        %v4870 = vsub.s32 32, %v4869
        %v4871 = vshll.u32 %v4862, %v4869
        %v4872 = vshrl.u32 %v4854, %v4870
        %v4873 = vor.u32 %v4871, %v4872
        %v4874 = vsub.s32 4294967266, %v4869
        %v4875 = vadd.s32 %v4874, 127
        %v4876 = vshll.u32 %v4875, 23
        %v4877 = vor.u32 4788187, %v4876
        %v4878 = vand.u32 2147483647, %v4877
        %v4880 = vcvt.s32.f32 %v4873
        %v4881 = vmul.f32 %v4880, %v4878
        %v4882 = vxor.u32 %v4881, 2147483648
        %v4883 = vsel %vm4800, %v4882, %v4881
        %v4884 = vsub.s32 4, %v4860
        %v4885 = vsel %vm4800, %v4884, %v4860
        %v4886 = vsel %vm4799, %v4561, %v4883
        %v4887 = vsel %vm4799, 0, %v4885
        %v4888 = vcosq.f32.pop %v4886
        %v4889 = vsinq.f32.pop %v4886
        %vm4890 = vweird.f32 %v4561
        %v4891 = vand.u32 %v4887, 3
        %vm4892 = vcmp.lt.s32.totalorder %v4891, 2
        %vm4893 = vcmp.eq.s32.totalorder %v4891, 0
        %v4894 = vxor.u32 %v4889, 2147483648
        %v4895 = vsel %vm4893, %v4888, %v4894
        %vm4896 = vcmp.eq.s32.totalorder %v4891, 2
        %v4897 = vxor.u32 %v4888, 2147483648
        %v4898 = vsel %vm4896, %v4897, %v4889
        %v4899 = vsel %vm4892, %v4895, %v4898
        %v4900 = vsel %vm4890, nan, %v4899
        %v4901 = vand.u32 2147483647, %v4562
        %vm4902 = vcmp.le.f32.partialorder %v4901, 0.7853982
        %vm4903 = vcmp.lt.s32.totalorder %v4562, 0
        %v4904 = vand.u32 %v4562, 2139095040
        %v4905 = vshrl.u32 %v4904, 23
        %v4906 = vsub.s32 %v4905, 127
        %v4907 = vand.u32 2147483647, %v4562
        %v4908 = vand.u32 %v4907, 8388607
        %v4909 = vor.u32 %v4908, 8388608
        %v4910 = vsub.s32 0, %v4909
        %v4911 = vadd.s32 %v4906, 1
        %vm4912 = vcmp.gt.s32.totalorder %v4911, 0
        %v4913 = vsel %vm4912, %v4911, 0
        %v4914 = vshrl.u32 %v4913, 5
        %v4915 = vand.u32 %v4913, 31
        %v4916 = vsub.s32 32, %v4915
        %v4917 = vshrl.u32 683565275, %v4916
        %v4918 = vshll.u32 683565275, %v4915
        %v4919 = vshrl.u32 2475754826, %v4916
        %v4920 = vor.u32 %v4918, %v4919
        %v4921 = vshll.u32 2475754826, %v4915
        %v4922 = vshrl.u32 2131351028, %v4916
        %v4923 = vor.u32 %v4921, %v4922
        %v4924 = vshll.u32 2131351028, %v4915
        %v4925 = vshrl.u32 2102212464, %v4916
        %v4926 = vor.u32 %v4924, %v4925
        %v4927 = vshll.u32 2102212464, %v4915
        %v4928 = vshrl.u32 920167782, %v4916
        %v4929 = vor.u32 %v4927, %v4928
        %v4930 = vshll.u32 920167782, %v4915
        %v4931 = vshrl.u32 1326507024, %v4916
        %v4932 = vor.u32 %v4930, %v4931
        %vm4933 = vcmp.lt.s32.totalorder %v4914, 1
        %vm4934 = vcmp.lt.s32.totalorder %v4914, 2
        %vm4935 = vcmp.lt.s32.totalorder %v4914, 3
        %vm4936 = vcmp.lt.s32.totalorder %v4914, 4
        %v4937 = vsel %vm4933, %v4917, %v4920
        %v4938 = vsel %vm4936, %v4926, 2102212464
        %v4939 = vsel %vm4935, %v4923, %v4938
        %v4940 = vsel %vm4934, %v4937, %v4939
        %v4941 = vsel %vm4933, %v4920, %v4923
        %v4942 = vsel %vm4936, %v4929, 920167782
        %v4943 = vsel %vm4935, %v4926, %v4942
        %v4944 = vsel %vm4934, %v4941, %v4943
        %v4945 = vsel %vm4933, %v4923, %v4926
        %v4946 = vsel %vm4936, %v4932, 1326507024
        %v4947 = vsel %vm4935, %v4929, %v4946
        %v4948 = vsel %vm4934, %v4945, %v4947
        %v4949 = vshll.u32 %v4909, 8
        %v4950 = vmul.u32.u64.compose %v4949, %v4948
        %v4951 = vextract.low.u32 %v4950
        %v4952 = vextract.high.u32 %v4950
        %v4953 = vmul.u32.u64.compose %v4949, %v4944
        %v4954 = vextract.low.u32 %v4953
        %v4955 = vextract.high.u32 %v4953
        %v4956 = vmul.u32 %v4949, %v4940
        %v4957 = vadd.s32 %v4952, %v4954
        %vm4958 = vc.u32 %v4952, %v4954
        %v4959 = vadd.s32 %v4955, 1
        %v4960 = vsel %vm4958, %v4959, %v4955
        %v4961 = vadd.s32 %v4956, %v4960
        %v4962 = vadd.s32 %v4961, 536870912
        %v4963 = vshrl.u32 %v4962, 30
        %v4964 = vshll.u32 %v4963, 30
        %v4965 = vsub.s32 %v4961, %v4964
        %vm4966 = vcmp.lt.s32.totalorder %v4965, 0
        %v4967 = vsub.s32 0, %v4965
        %v4968 = vsel %vm4966, %v4967, %v4965
        %v4969 = vclz %v4968
        %v4970 = vsub.s32 %v4969, 2
        %vm4971 = vcmp.gt.s32.totalorder 0, %v4970
        %v4972 = vsel %vm4971, 0, %v4970
        %v4973 = vsub.s32 32, %v4972
        %v4974 = vshll.u32 %v4965, %v4972
        %v4975 = vshrl.u32 %v4957, %v4973
        %v4976 = vor.u32 %v4974, %v4975
        %v4977 = vsub.s32 4294967266, %v4972
        %v4978 = vadd.s32 %v4977, 127
        %v4979 = vshll.u32 %v4978, 23
        %v4980 = vor.u32 4788187, %v4979
        %v4981 = vand.u32 2147483647, %v4980
        %v4983 = vcvt.s32.f32 %v4976
        %v4984 = vmul.f32 %v4983, %v4981
        %v4985 = vxor.u32 %v4984, 2147483648
        %v4986 = vsel %vm4903, %v4985, %v4984
        %v4987 = vsub.s32 4, %v4963
        %v4988 = vsel %vm4903, %v4987, %v4963
        %v4989 = vsel %vm4902, %v4562, %v4986
        %v4990 = vsel %vm4902, 0, %v4988
        %v4991 = vcosq.f32.pop %v4989
        %v4992 = vsinq.f32.pop %v4989
        %vm4993 = vweird.f32 %v4562
        %v4994 = vand.u32 %v4990, 3
        %vm4995 = vcmp.lt.s32.totalorder %v4994, 2
        %vm4996 = vcmp.eq.s32.totalorder %v4994, 0
        %v4997 = vxor.u32 %v4992, 2147483648
        %v4998 = vsel %vm4996, %v4991, %v4997
        %vm4999 = vcmp.eq.s32.totalorder %v4994, 2
        %v5000 = vxor.u32 %v4991, 2147483648
        %v5001 = vsel %vm4999, %v5000, %v4992
        %v5002 = vsel %vm4995, %v4998, %v5001
        %v5003 = vsel %vm4993, nan, %v5002
        %v5004 = vand.u32 2147483647, %v4563
        %vm5005 = vcmp.le.f32.partialorder %v5004, 0.7853982
        %vm5006 = vcmp.lt.s32.totalorder %v4563, 0
        %v5007 = vand.u32 %v4563, 2139095040
        %v5008 = vshrl.u32 %v5007, 23
        %v5009 = vsub.s32 %v5008, 127
        %v5010 = vand.u32 2147483647, %v4563
        %v5011 = vand.u32 %v5010, 8388607
        %v5012 = vor.u32 %v5011, 8388608
        %v5013 = vsub.s32 0, %v5012
        %v5014 = vadd.s32 %v5009, 1
        %vm5015 = vcmp.gt.s32.totalorder %v5014, 0
        %v5016 = vsel %vm5015, %v5014, 0
        %v5017 = vshrl.u32 %v5016, 5
        %v5018 = vand.u32 %v5016, 31
        %v5019 = vsub.s32 32, %v5018
        %v5020 = vshrl.u32 683565275, %v5019
        %v5021 = vshll.u32 683565275, %v5018
        %v5022 = vshrl.u32 2475754826, %v5019
        %v5023 = vor.u32 %v5021, %v5022
        %v5024 = vshll.u32 2475754826, %v5018
        %v5025 = vshrl.u32 2131351028, %v5019
        %v5026 = vor.u32 %v5024, %v5025
        %v5027 = vshll.u32 2131351028, %v5018
        %v5028 = vshrl.u32 2102212464, %v5019
        %v5029 = vor.u32 %v5027, %v5028
        %v5030 = vshll.u32 2102212464, %v5018
        %v5031 = vshrl.u32 920167782, %v5019
        %v5032 = vor.u32 %v5030, %v5031
        %v5033 = vshll.u32 920167782, %v5018
        %v5034 = vshrl.u32 1326507024, %v5019
        %v5035 = vor.u32 %v5033, %v5034
        %vm5036 = vcmp.lt.s32.totalorder %v5017, 1
        %vm5037 = vcmp.lt.s32.totalorder %v5017, 2
        %vm5038 = vcmp.lt.s32.totalorder %v5017, 3
        %vm5039 = vcmp.lt.s32.totalorder %v5017, 4
        %v5040 = vsel %vm5036, %v5020, %v5023
        %v5041 = vsel %vm5039, %v5029, 2102212464
        %v5042 = vsel %vm5038, %v5026, %v5041
        %v5043 = vsel %vm5037, %v5040, %v5042
        %v5044 = vsel %vm5036, %v5023, %v5026
        %v5045 = vsel %vm5039, %v5032, 920167782
        %v5046 = vsel %vm5038, %v5029, %v5045
        %v5047 = vsel %vm5037, %v5044, %v5046
        %v5048 = vsel %vm5036, %v5026, %v5029
        %v5049 = vsel %vm5039, %v5035, 1326507024
        %v5050 = vsel %vm5038, %v5032, %v5049
        %v5051 = vsel %vm5037, %v5048, %v5050
        %v5052 = vshll.u32 %v5012, 8
        %v5053 = vmul.u32.u64.compose %v5052, %v5051
        %v5054 = vextract.low.u32 %v5053
        %v5055 = vextract.high.u32 %v5053
        %v5056 = vmul.u32.u64.compose %v5052, %v5047
        %v5057 = vextract.low.u32 %v5056
        %v5058 = vextract.high.u32 %v5056
        %v5059 = vmul.u32 %v5052, %v5043
        %v5060 = vadd.s32 %v5055, %v5057
        %vm5061 = vc.u32 %v5055, %v5057
        %v5062 = vadd.s32 %v5058, 1
        %v5063 = vsel %vm5061, %v5062, %v5058
        %v5064 = vadd.s32 %v5059, %v5063
        %v5065 = vadd.s32 %v5064, 536870912
        %v5066 = vshrl.u32 %v5065, 30
        %v5067 = vshll.u32 %v5066, 30
        %v5068 = vsub.s32 %v5064, %v5067
        %vm5069 = vcmp.lt.s32.totalorder %v5068, 0
        %v5070 = vsub.s32 0, %v5068
        %v5071 = vsel %vm5069, %v5070, %v5068
        %v5072 = vclz %v5071
        %v5073 = vsub.s32 %v5072, 2
        %vm5074 = vcmp.gt.s32.totalorder 0, %v5073
        %v5075 = vsel %vm5074, 0, %v5073
        %v5076 = vsub.s32 32, %v5075
        %v5077 = vshll.u32 %v5068, %v5075
        %v5078 = vshrl.u32 %v5060, %v5076
        %v5079 = vor.u32 %v5077, %v5078
        %v5080 = vsub.s32 4294967266, %v5075
        %v5081 = vadd.s32 %v5080, 127
        %v5082 = vshll.u32 %v5081, 23
        %v5083 = vor.u32 4788187, %v5082
        %v5084 = vand.u32 2147483647, %v5083
        %v5086 = vcvt.s32.f32 %v5079
        %v5087 = vmul.f32 %v5086, %v5084
        %v5088 = vxor.u32 %v5087, 2147483648
        %v5089 = vsel %vm5006, %v5088, %v5087
        %v5090 = vsub.s32 4, %v5066
        %v5091 = vsel %vm5006, %v5090, %v5066
        %v5092 = vsel %vm5005, %v4563, %v5089
        %v5093 = vsel %vm5005, 0, %v5091
        %v5094 = vcosq.f32.pop %v5092
        %v5095 = vsinq.f32.pop %v5092
        %vm5096 = vweird.f32 %v4563
        %v5097 = vand.u32 %v5093, 3
        %vm5098 = vcmp.lt.s32.totalorder %v5097, 2
        %vm5099 = vcmp.eq.s32.totalorder %v5097, 0
        %v5100 = vxor.u32 %v5095, 2147483648
        %v5101 = vsel %vm5099, %v5094, %v5100
        %vm5102 = vcmp.eq.s32.totalorder %v5097, 2
        %v5103 = vxor.u32 %v5094, 2147483648
        %v5104 = vsel %vm5102, %v5103, %v5095
        %v5105 = vsel %vm5098, %v5101, %v5104
        %v5106 = vsel %vm5096, nan, %v5105
        %v5107 = vand.u32 2147483647, %v4564
        %vm5108 = vcmp.le.f32.partialorder %v5107, 0.7853982
        %vm5109 = vcmp.lt.s32.totalorder %v4564, 0
        %v5110 = vand.u32 %v4564, 2139095040
        %v5111 = vshrl.u32 %v5110, 23
        %v5112 = vsub.s32 %v5111, 127
        %v5113 = vand.u32 2147483647, %v4564
        %v5114 = vand.u32 %v5113, 8388607
        %v5115 = vor.u32 %v5114, 8388608
        %v5116 = vsub.s32 0, %v5115
        %v5117 = vadd.s32 %v5112, 1
        %vm5118 = vcmp.gt.s32.totalorder %v5117, 0
        %v5119 = vsel %vm5118, %v5117, 0
        %v5120 = vshrl.u32 %v5119, 5
        %v5121 = vand.u32 %v5119, 31
        %v5122 = vsub.s32 32, %v5121
        %v5123 = vshrl.u32 683565275, %v5122
        %v5124 = vshll.u32 683565275, %v5121
        %v5125 = vshrl.u32 2475754826, %v5122
        %v5126 = vor.u32 %v5124, %v5125
        %v5127 = vshll.u32 2475754826, %v5121
        %v5128 = vshrl.u32 2131351028, %v5122
        %v5129 = vor.u32 %v5127, %v5128
        %v5130 = vshll.u32 2131351028, %v5121
        %v5131 = vshrl.u32 2102212464, %v5122
        %v5132 = vor.u32 %v5130, %v5131
        %v5133 = vshll.u32 2102212464, %v5121
        %v5134 = vshrl.u32 920167782, %v5122
        %v5135 = vor.u32 %v5133, %v5134
        %v5136 = vshll.u32 920167782, %v5121
        %v5137 = vshrl.u32 1326507024, %v5122
        %v5138 = vor.u32 %v5136, %v5137
        %vm5139 = vcmp.lt.s32.totalorder %v5120, 1
        %vm5140 = vcmp.lt.s32.totalorder %v5120, 2
        %vm5141 = vcmp.lt.s32.totalorder %v5120, 3
        %vm5142 = vcmp.lt.s32.totalorder %v5120, 4
        %v5143 = vsel %vm5139, %v5123, %v5126
        %v5144 = vsel %vm5142, %v5132, 2102212464
        %v5145 = vsel %vm5141, %v5129, %v5144
        %v5146 = vsel %vm5140, %v5143, %v5145
        %v5147 = vsel %vm5139, %v5126, %v5129
        %v5148 = vsel %vm5142, %v5135, 920167782
        %v5149 = vsel %vm5141, %v5132, %v5148
        %v5150 = vsel %vm5140, %v5147, %v5149
        %v5151 = vsel %vm5139, %v5129, %v5132
        %v5152 = vsel %vm5142, %v5138, 1326507024
        %v5153 = vsel %vm5141, %v5135, %v5152
        %v5154 = vsel %vm5140, %v5151, %v5153
        %v5155 = vshll.u32 %v5115, 8
        %v5156 = vmul.u32.u64.compose %v5155, %v5154
        %v5157 = vextract.low.u32 %v5156
        %v5158 = vextract.high.u32 %v5156
        %v5159 = vmul.u32.u64.compose %v5155, %v5150
        %v5160 = vextract.low.u32 %v5159
        %v5161 = vextract.high.u32 %v5159
        %v5162 = vmul.u32 %v5155, %v5146
        %v5163 = vadd.s32 %v5158, %v5160
        %vm5164 = vc.u32 %v5158, %v5160
        %v5165 = vadd.s32 %v5161, 1
        %v5166 = vsel %vm5164, %v5165, %v5161
        %v5167 = vadd.s32 %v5162, %v5166
        %v5168 = vadd.s32 %v5167, 536870912
        %v5169 = vshrl.u32 %v5168, 30
        %v5170 = vshll.u32 %v5169, 30
        %v5171 = vsub.s32 %v5167, %v5170
        %vm5172 = vcmp.lt.s32.totalorder %v5171, 0
        %v5173 = vsub.s32 0, %v5171
        %v5174 = vsel %vm5172, %v5173, %v5171
        %v5175 = vclz %v5174
        %v5176 = vsub.s32 %v5175, 2
        %vm5177 = vcmp.gt.s32.totalorder 0, %v5176
        %v5178 = vsel %vm5177, 0, %v5176
        %v5179 = vsub.s32 32, %v5178
        %v5180 = vshll.u32 %v5171, %v5178
        %v5181 = vshrl.u32 %v5163, %v5179
        %v5182 = vor.u32 %v5180, %v5181
        %v5183 = vsub.s32 4294967266, %v5178
        %v5184 = vadd.s32 %v5183, 127
        %v5185 = vshll.u32 %v5184, 23
        %v5186 = vor.u32 4788187, %v5185
        %v5187 = vand.u32 2147483647, %v5186
        %v5189 = vcvt.s32.f32 %v5182
        %v5190 = vmul.f32 %v5189, %v5187
        %v5191 = vxor.u32 %v5190, 2147483648
        %v5192 = vsel %vm5109, %v5191, %v5190
        %v5193 = vsub.s32 4, %v5169
        %v5194 = vsel %vm5109, %v5193, %v5169
        %v5195 = vsel %vm5108, %v4564, %v5192
        %v5196 = vsel %vm5108, 0, %v5194
        %v5197 = vcosq.f32.pop %v5195
        %v5198 = vsinq.f32.pop %v5195
        %vm5199 = vweird.f32 %v4564
        %v5200 = vand.u32 %v5196, 3
        %vm5201 = vcmp.lt.s32.totalorder %v5200, 2
        %vm5202 = vcmp.eq.s32.totalorder %v5200, 0
        %v5203 = vxor.u32 %v5198, 2147483648
        %v5204 = vsel %vm5202, %v5197, %v5203
        %vm5205 = vcmp.eq.s32.totalorder %v5200, 2
        %v5206 = vxor.u32 %v5197, 2147483648
        %v5207 = vsel %vm5205, %v5206, %v5198
        %v5208 = vsel %vm5201, %v5204, %v5207
        %v5209 = vsel %vm5199, nan, %v5208
        %v5210 = vand.u32 2147483647, %v4565
        %vm5211 = vcmp.le.f32.partialorder %v5210, 0.7853982
        %vm5212 = vcmp.lt.s32.totalorder %v4565, 0
        %v5213 = vand.u32 %v4565, 2139095040
        %v5214 = vshrl.u32 %v5213, 23
        %v5215 = vsub.s32 %v5214, 127
        %v5216 = vand.u32 2147483647, %v4565
        %v5217 = vand.u32 %v5216, 8388607
        %v5218 = vor.u32 %v5217, 8388608
        %v5219 = vsub.s32 0, %v5218
        %v5220 = vadd.s32 %v5215, 1
        %vm5221 = vcmp.gt.s32.totalorder %v5220, 0
        %v5222 = vsel %vm5221, %v5220, 0
        %v5223 = vshrl.u32 %v5222, 5
        %v5224 = vand.u32 %v5222, 31
        %v5225 = vsub.s32 32, %v5224
        %v5226 = vshrl.u32 683565275, %v5225
        %v5227 = vshll.u32 683565275, %v5224
        %v5228 = vshrl.u32 2475754826, %v5225
        %v5229 = vor.u32 %v5227, %v5228
        %v5230 = vshll.u32 2475754826, %v5224
        %v5231 = vshrl.u32 2131351028, %v5225
        %v5232 = vor.u32 %v5230, %v5231
        %v5233 = vshll.u32 2131351028, %v5224
        %v5234 = vshrl.u32 2102212464, %v5225
        %v5235 = vor.u32 %v5233, %v5234
        %v5236 = vshll.u32 2102212464, %v5224
        %v5237 = vshrl.u32 920167782, %v5225
        %v5238 = vor.u32 %v5236, %v5237
        %v5239 = vshll.u32 920167782, %v5224
        %v5240 = vshrl.u32 1326507024, %v5225
        %v5241 = vor.u32 %v5239, %v5240
        %vm5242 = vcmp.lt.s32.totalorder %v5223, 1
        %vm5243 = vcmp.lt.s32.totalorder %v5223, 2
        %vm5244 = vcmp.lt.s32.totalorder %v5223, 3
        %vm5245 = vcmp.lt.s32.totalorder %v5223, 4
        %v5246 = vsel %vm5242, %v5226, %v5229
        %v5247 = vsel %vm5245, %v5235, 2102212464
        %v5248 = vsel %vm5244, %v5232, %v5247
        %v5249 = vsel %vm5243, %v5246, %v5248
        %v5250 = vsel %vm5242, %v5229, %v5232
        %v5251 = vsel %vm5245, %v5238, 920167782
        %v5252 = vsel %vm5244, %v5235, %v5251
        %v5253 = vsel %vm5243, %v5250, %v5252
        %v5254 = vsel %vm5242, %v5232, %v5235
        %v5255 = vsel %vm5245, %v5241, 1326507024
        %v5256 = vsel %vm5244, %v5238, %v5255
        %v5257 = vsel %vm5243, %v5254, %v5256
        %v5258 = vshll.u32 %v5218, 8
        %v5259 = vmul.u32.u64.compose %v5258, %v5257
        %v5260 = vextract.low.u32 %v5259
        %v5261 = vextract.high.u32 %v5259
        %v5262 = vmul.u32.u64.compose %v5258, %v5253
        %v5263 = vextract.low.u32 %v5262
        %v5264 = vextract.high.u32 %v5262
        %v5265 = vmul.u32 %v5258, %v5249
        %v5266 = vadd.s32 %v5261, %v5263
        %vm5267 = vc.u32 %v5261, %v5263
        %v5268 = vadd.s32 %v5264, 1
        %v5269 = vsel %vm5267, %v5268, %v5264
        %v5270 = vadd.s32 %v5265, %v5269
        %v5271 = vadd.s32 %v5270, 536870912
        %v5272 = vshrl.u32 %v5271, 30
        %v5273 = vshll.u32 %v5272, 30
        %v5274 = vsub.s32 %v5270, %v5273
        %vm5275 = vcmp.lt.s32.totalorder %v5274, 0
        %v5276 = vsub.s32 0, %v5274
        %v5277 = vsel %vm5275, %v5276, %v5274
        %v5278 = vclz %v5277
        %v5279 = vsub.s32 %v5278, 2
        %vm5280 = vcmp.gt.s32.totalorder 0, %v5279
        %v5281 = vsel %vm5280, 0, %v5279
        %v5282 = vsub.s32 32, %v5281
        %v5283 = vshll.u32 %v5274, %v5281
        %v5284 = vshrl.u32 %v5266, %v5282
        %v5285 = vor.u32 %v5283, %v5284
        %v5286 = vsub.s32 4294967266, %v5281
        %v5287 = vadd.s32 %v5286, 127
        %v5288 = vshll.u32 %v5287, 23
        %v5289 = vor.u32 4788187, %v5288
        %v5290 = vand.u32 2147483647, %v5289
        %v5292 = vcvt.s32.f32 %v5285
        %v5293 = vmul.f32 %v5292, %v5290
        %v5294 = vxor.u32 %v5293, 2147483648
        %v5295 = vsel %vm5212, %v5294, %v5293
        %v5296 = vsub.s32 4, %v5272
        %v5297 = vsel %vm5212, %v5296, %v5272
        %v5298 = vsel %vm5211, %v4565, %v5295
        %v5299 = vsel %vm5211, 0, %v5297
        %v5300 = vcosq.f32.pop %v5298
        %v5301 = vsinq.f32.pop %v5298
        %vm5302 = vweird.f32 %v4565
        %v5303 = vand.u32 %v5299, 3
        %vm5304 = vcmp.lt.s32.totalorder %v5303, 2
        %vm5305 = vcmp.eq.s32.totalorder %v5303, 0
        %v5306 = vxor.u32 %v5301, 2147483648
        %v5307 = vsel %vm5305, %v5300, %v5306
        %vm5308 = vcmp.eq.s32.totalorder %v5303, 2
        %v5309 = vxor.u32 %v5300, 2147483648
        %v5310 = vsel %vm5308, %v5309, %v5301
        %v5311 = vsel %vm5304, %v5307, %v5310
        %v5312 = vsel %vm5302, nan, %v5311
        %v5313 = vand.u32 2147483647, %v4566
        %vm5314 = vcmp.le.f32.partialorder %v5313, 0.7853982
        %vm5315 = vcmp.lt.s32.totalorder %v4566, 0
        %v5316 = vand.u32 %v4566, 2139095040
        %v5317 = vshrl.u32 %v5316, 23
        %v5318 = vsub.s32 %v5317, 127
        %v5319 = vand.u32 2147483647, %v4566
        %v5320 = vand.u32 %v5319, 8388607
        %v5321 = vor.u32 %v5320, 8388608
        %v5322 = vsub.s32 0, %v5321
        %v5323 = vadd.s32 %v5318, 1
        %vm5324 = vcmp.gt.s32.totalorder %v5323, 0
        %v5325 = vsel %vm5324, %v5323, 0
        %v5326 = vshrl.u32 %v5325, 5
        %v5327 = vand.u32 %v5325, 31
        %v5328 = vsub.s32 32, %v5327
        %v5329 = vshrl.u32 683565275, %v5328
        %v5330 = vshll.u32 683565275, %v5327
        %v5331 = vshrl.u32 2475754826, %v5328
        %v5332 = vor.u32 %v5330, %v5331
        %v5333 = vshll.u32 2475754826, %v5327
        %v5334 = vshrl.u32 2131351028, %v5328
        %v5335 = vor.u32 %v5333, %v5334
        %v5336 = vshll.u32 2131351028, %v5327
        %v5337 = vshrl.u32 2102212464, %v5328
        %v5338 = vor.u32 %v5336, %v5337
        %v5339 = vshll.u32 2102212464, %v5327
        %v5340 = vshrl.u32 920167782, %v5328
        %v5341 = vor.u32 %v5339, %v5340
        %v5342 = vshll.u32 920167782, %v5327
        %v5343 = vshrl.u32 1326507024, %v5328
        %v5344 = vor.u32 %v5342, %v5343
        %vm5345 = vcmp.lt.s32.totalorder %v5326, 1
        %vm5346 = vcmp.lt.s32.totalorder %v5326, 2
        %vm5347 = vcmp.lt.s32.totalorder %v5326, 3
        %vm5348 = vcmp.lt.s32.totalorder %v5326, 4
        %v5349 = vsel %vm5345, %v5329, %v5332
        %v5350 = vsel %vm5348, %v5338, 2102212464
        %v5351 = vsel %vm5347, %v5335, %v5350
        %v5352 = vsel %vm5346, %v5349, %v5351
        %v5353 = vsel %vm5345, %v5332, %v5335
        %v5354 = vsel %vm5348, %v5341, 920167782
        %v5355 = vsel %vm5347, %v5338, %v5354
        %v5356 = vsel %vm5346, %v5353, %v5355
        %v5357 = vsel %vm5345, %v5335, %v5338
        %v5358 = vsel %vm5348, %v5344, 1326507024
        %v5359 = vsel %vm5347, %v5341, %v5358
        %v5360 = vsel %vm5346, %v5357, %v5359
        %v5361 = vshll.u32 %v5321, 8
        %v5362 = vmul.u32.u64.compose %v5361, %v5360
        %v5363 = vextract.low.u32 %v5362
        %v5364 = vextract.high.u32 %v5362
        %v5365 = vmul.u32.u64.compose %v5361, %v5356
        %v5366 = vextract.low.u32 %v5365
        %v5367 = vextract.high.u32 %v5365
        %v5368 = vmul.u32 %v5361, %v5352
        %v5369 = vadd.s32 %v5364, %v5366
        %vm5370 = vc.u32 %v5364, %v5366
        %v5371 = vadd.s32 %v5367, 1
        %v5372 = vsel %vm5370, %v5371, %v5367
        %v5373 = vadd.s32 %v5368, %v5372
        %v5374 = vadd.s32 %v5373, 536870912
        %v5375 = vshrl.u32 %v5374, 30
        %v5376 = vshll.u32 %v5375, 30
        %v5377 = vsub.s32 %v5373, %v5376
        %vm5378 = vcmp.lt.s32.totalorder %v5377, 0
        %v5379 = vsub.s32 0, %v5377
        %v5380 = vsel %vm5378, %v5379, %v5377
        %v5381 = vclz %v5380
        %v5382 = vsub.s32 %v5381, 2
        %vm5383 = vcmp.gt.s32.totalorder 0, %v5382
        %v5384 = vsel %vm5383, 0, %v5382
        %v5385 = vsub.s32 32, %v5384
        %v5386 = vshll.u32 %v5377, %v5384
        %v5387 = vshrl.u32 %v5369, %v5385
        %v5388 = vor.u32 %v5386, %v5387
        %v5389 = vsub.s32 4294967266, %v5384
        %v5390 = vadd.s32 %v5389, 127
        %v5391 = vshll.u32 %v5390, 23
        %v5392 = vor.u32 4788187, %v5391
        %v5393 = vand.u32 2147483647, %v5392
        %v5395 = vcvt.s32.f32 %v5388
        %v5396 = vmul.f32 %v5395, %v5393
        %v5397 = vxor.u32 %v5396, 2147483648
        %v5398 = vsel %vm5315, %v5397, %v5396
        %v5399 = vsub.s32 4, %v5375
        %v5400 = vsel %vm5315, %v5399, %v5375
        %v5401 = vsel %vm5314, %v4566, %v5398
        %v5402 = vsel %vm5314, 0, %v5400
        %v5403 = vcosq.f32.pop %v5401
        %v5404 = vsinq.f32.pop %v5401
        %vm5405 = vweird.f32 %v4566
        %v5406 = vand.u32 %v5402, 3
        %vm5407 = vcmp.lt.s32.totalorder %v5406, 2
        %vm5408 = vcmp.eq.s32.totalorder %v5406, 0
        %v5409 = vxor.u32 %v5404, 2147483648
        %v5410 = vsel %vm5408, %v5403, %v5409
        %vm5411 = vcmp.eq.s32.totalorder %v5406, 2
        %v5412 = vxor.u32 %v5403, 2147483648
        %v5413 = vsel %vm5411, %v5412, %v5404
        %v5414 = vsel %vm5407, %v5410, %v5413
        %v5415 = vsel %vm5405, nan, %v5414
        %v5416 = vand.u32 2147483647, %v4567
        %vm5417 = vcmp.le.f32.partialorder %v5416, 0.7853982
        %vm5418 = vcmp.lt.s32.totalorder %v4567, 0
        %v5419 = vand.u32 %v4567, 2139095040
        %v5420 = vshrl.u32 %v5419, 23
        %v5421 = vsub.s32 %v5420, 127
        %v5422 = vand.u32 2147483647, %v4567
        %v5423 = vand.u32 %v5422, 8388607
        %v5424 = vor.u32 %v5423, 8388608
        %v5425 = vsub.s32 0, %v5424
        %v5426 = vadd.s32 %v5421, 1
        %vm5427 = vcmp.gt.s32.totalorder %v5426, 0
        %v5428 = vsel %vm5427, %v5426, 0
        %v5429 = vshrl.u32 %v5428, 5
        %v5430 = vand.u32 %v5428, 31
        %v5431 = vsub.s32 32, %v5430
        %v5432 = vshrl.u32 683565275, %v5431
        %v5433 = vshll.u32 683565275, %v5430
        %v5434 = vshrl.u32 2475754826, %v5431
        %v5435 = vor.u32 %v5433, %v5434
        %v5436 = vshll.u32 2475754826, %v5430
        %v5437 = vshrl.u32 2131351028, %v5431
        %v5438 = vor.u32 %v5436, %v5437
        %v5439 = vshll.u32 2131351028, %v5430
        %v5440 = vshrl.u32 2102212464, %v5431
        %v5441 = vor.u32 %v5439, %v5440
        %v5442 = vshll.u32 2102212464, %v5430
        %v5443 = vshrl.u32 920167782, %v5431
        %v5444 = vor.u32 %v5442, %v5443
        %v5445 = vshll.u32 920167782, %v5430
        %v5446 = vshrl.u32 1326507024, %v5431
        %v5447 = vor.u32 %v5445, %v5446
        %vm5448 = vcmp.lt.s32.totalorder %v5429, 1
        %vm5449 = vcmp.lt.s32.totalorder %v5429, 2
        %vm5450 = vcmp.lt.s32.totalorder %v5429, 3
        %vm5451 = vcmp.lt.s32.totalorder %v5429, 4
        %v5452 = vsel %vm5448, %v5432, %v5435
        %v5453 = vsel %vm5451, %v5441, 2102212464
        %v5454 = vsel %vm5450, %v5438, %v5453
        %v5455 = vsel %vm5449, %v5452, %v5454
        %v5456 = vsel %vm5448, %v5435, %v5438
        %v5457 = vsel %vm5451, %v5444, 920167782
        %v5458 = vsel %vm5450, %v5441, %v5457
        %v5459 = vsel %vm5449, %v5456, %v5458
        %v5460 = vsel %vm5448, %v5438, %v5441
        %v5461 = vsel %vm5451, %v5447, 1326507024
        %v5462 = vsel %vm5450, %v5444, %v5461
        %v5463 = vsel %vm5449, %v5460, %v5462
        %v5464 = vshll.u32 %v5424, 8
        %v5465 = vmul.u32.u64.compose %v5464, %v5463
        %v5466 = vextract.low.u32 %v5465
        %v5467 = vextract.high.u32 %v5465
        %v5468 = vmul.u32.u64.compose %v5464, %v5459
        %v5469 = vextract.low.u32 %v5468
        %v5470 = vextract.high.u32 %v5468
        %v5471 = vmul.u32 %v5464, %v5455
        %v5472 = vadd.s32 %v5467, %v5469
        %vm5473 = vc.u32 %v5467, %v5469
        %v5474 = vadd.s32 %v5470, 1
        %v5475 = vsel %vm5473, %v5474, %v5470
        %v5476 = vadd.s32 %v5471, %v5475
        %v5477 = vadd.s32 %v5476, 536870912
        %v5478 = vshrl.u32 %v5477, 30
        %v5479 = vshll.u32 %v5478, 30
        %v5480 = vsub.s32 %v5476, %v5479
        %vm5481 = vcmp.lt.s32.totalorder %v5480, 0
        %v5482 = vsub.s32 0, %v5480
        %v5483 = vsel %vm5481, %v5482, %v5480
        %v5484 = vclz %v5483
        %v5485 = vsub.s32 %v5484, 2
        %vm5486 = vcmp.gt.s32.totalorder 0, %v5485
        %v5487 = vsel %vm5486, 0, %v5485
        %v5488 = vsub.s32 32, %v5487
        %v5489 = vshll.u32 %v5480, %v5487
        %v5490 = vshrl.u32 %v5472, %v5488
        %v5491 = vor.u32 %v5489, %v5490
        %v5492 = vsub.s32 4294967266, %v5487
        %v5493 = vadd.s32 %v5492, 127
        %v5494 = vshll.u32 %v5493, 23
        %v5495 = vor.u32 4788187, %v5494
        %v5496 = vand.u32 2147483647, %v5495
        %v5498 = vcvt.s32.f32 %v5491
        %v5499 = vmul.f32 %v5498, %v5496
        %v5500 = vxor.u32 %v5499, 2147483648
        %v5501 = vsel %vm5418, %v5500, %v5499
        %v5502 = vsub.s32 4, %v5478
        %v5503 = vsel %vm5418, %v5502, %v5478
        %v5504 = vsel %vm5417, %v4567, %v5501
        %v5505 = vsel %vm5417, 0, %v5503
        %v5506 = vcosq.f32.pop %v5504
        %v5507 = vsinq.f32.pop %v5504
        %vm5508 = vweird.f32 %v4567
        %v5509 = vand.u32 %v5505, 3
        %vm5510 = vcmp.lt.s32.totalorder %v5509, 2
        %vm5511 = vcmp.eq.s32.totalorder %v5509, 0
        %v5512 = vxor.u32 %v5507, 2147483648
        %v5513 = vsel %vm5511, %v5506, %v5512
        %vm5514 = vcmp.eq.s32.totalorder %v5509, 2
        %v5515 = vxor.u32 %v5506, 2147483648
        %v5516 = vsel %vm5514, %v5515, %v5507
        %v5517 = vsel %vm5510, %v5513, %v5516
        %v5518 = vsel %vm5508, nan, %v5517
        %v5519 = vand.u32 2147483647, %v4568
        %vm5520 = vcmp.le.f32.partialorder %v5519, 0.7853982
        %vm5521 = vcmp.lt.s32.totalorder %v4568, 0
        %v5522 = vand.u32 %v4568, 2139095040
        %v5523 = vshrl.u32 %v5522, 23
        %v5524 = vsub.s32 %v5523, 127
        %v5525 = vand.u32 2147483647, %v4568
        %v5526 = vand.u32 %v5525, 8388607
        %v5527 = vor.u32 %v5526, 8388608
        %v5528 = vsub.s32 0, %v5527
        %v5529 = vadd.s32 %v5524, 1
        %vm5530 = vcmp.gt.s32.totalorder %v5529, 0
        %v5531 = vsel %vm5530, %v5529, 0
        %v5532 = vshrl.u32 %v5531, 5
        %v5533 = vand.u32 %v5531, 31
        %v5534 = vsub.s32 32, %v5533
        %v5535 = vshrl.u32 683565275, %v5534
        %v5536 = vshll.u32 683565275, %v5533
        %v5537 = vshrl.u32 2475754826, %v5534
        %v5538 = vor.u32 %v5536, %v5537
        %v5539 = vshll.u32 2475754826, %v5533
        %v5540 = vshrl.u32 2131351028, %v5534
        %v5541 = vor.u32 %v5539, %v5540
        %v5542 = vshll.u32 2131351028, %v5533
        %v5543 = vshrl.u32 2102212464, %v5534
        %v5544 = vor.u32 %v5542, %v5543
        %v5545 = vshll.u32 2102212464, %v5533
        %v5546 = vshrl.u32 920167782, %v5534
        %v5547 = vor.u32 %v5545, %v5546
        %v5548 = vshll.u32 920167782, %v5533
        %v5549 = vshrl.u32 1326507024, %v5534
        %v5550 = vor.u32 %v5548, %v5549
        %vm5551 = vcmp.lt.s32.totalorder %v5532, 1
        %vm5552 = vcmp.lt.s32.totalorder %v5532, 2
        %vm5553 = vcmp.lt.s32.totalorder %v5532, 3
        %vm5554 = vcmp.lt.s32.totalorder %v5532, 4
        %v5555 = vsel %vm5551, %v5535, %v5538
        %v5556 = vsel %vm5554, %v5544, 2102212464
        %v5557 = vsel %vm5553, %v5541, %v5556
        %v5558 = vsel %vm5552, %v5555, %v5557
        %v5559 = vsel %vm5551, %v5538, %v5541
        %v5560 = vsel %vm5554, %v5547, 920167782
        %v5561 = vsel %vm5553, %v5544, %v5560
        %v5562 = vsel %vm5552, %v5559, %v5561
        %v5563 = vsel %vm5551, %v5541, %v5544
        %v5564 = vsel %vm5554, %v5550, 1326507024
        %v5565 = vsel %vm5553, %v5547, %v5564
        %v5566 = vsel %vm5552, %v5563, %v5565
        %v5567 = vshll.u32 %v5527, 8
        %v5568 = vmul.u32.u64.compose %v5567, %v5566
        %v5569 = vextract.low.u32 %v5568
        %v5570 = vextract.high.u32 %v5568
        %v5571 = vmul.u32.u64.compose %v5567, %v5562
        %v5572 = vextract.low.u32 %v5571
        %v5573 = vextract.high.u32 %v5571
        %v5574 = vmul.u32 %v5567, %v5558
        %v5575 = vadd.s32 %v5570, %v5572
        %vm5576 = vc.u32 %v5570, %v5572
        %v5577 = vadd.s32 %v5573, 1
        %v5578 = vsel %vm5576, %v5577, %v5573
        %v5579 = vadd.s32 %v5574, %v5578
        %v5580 = vadd.s32 %v5579, 536870912
        %v5581 = vshrl.u32 %v5580, 30
        %v5582 = vshll.u32 %v5581, 30
        %v5583 = vsub.s32 %v5579, %v5582
        %vm5584 = vcmp.lt.s32.totalorder %v5583, 0
        %v5585 = vsub.s32 0, %v5583
        %v5586 = vsel %vm5584, %v5585, %v5583
        %v5587 = vclz %v5586
        %v5588 = vsub.s32 %v5587, 2
        %vm5589 = vcmp.gt.s32.totalorder 0, %v5588
        %v5590 = vsel %vm5589, 0, %v5588
        %v5591 = vsub.s32 32, %v5590
        %v5592 = vshll.u32 %v5583, %v5590
        %v5593 = vshrl.u32 %v5575, %v5591
        %v5594 = vor.u32 %v5592, %v5593
        %v5595 = vsub.s32 4294967266, %v5590
        %v5596 = vadd.s32 %v5595, 127
        %v5597 = vshll.u32 %v5596, 23
        %v5598 = vor.u32 4788187, %v5597
        %v5599 = vand.u32 2147483647, %v5598
        %v5601 = vcvt.s32.f32 %v5594
        %v5602 = vmul.f32 %v5601, %v5599
        %v5603 = vxor.u32 %v5602, 2147483648
        %v5604 = vsel %vm5521, %v5603, %v5602
        %v5605 = vsub.s32 4, %v5581
        %v5606 = vsel %vm5521, %v5605, %v5581
        %v5607 = vsel %vm5520, %v4568, %v5604
        %v5608 = vsel %vm5520, 0, %v5606
        %v5609 = vcosq.f32.pop %v5607
        %v5610 = vsinq.f32.pop %v5607
        %vm5611 = vweird.f32 %v4568
        %v5612 = vand.u32 %v5608, 3
        %vm5613 = vcmp.lt.s32.totalorder %v5612, 2
        %vm5614 = vcmp.eq.s32.totalorder %v5612, 0
        %v5615 = vxor.u32 %v5610, 2147483648
        %v5616 = vsel %vm5614, %v5609, %v5615
        %vm5617 = vcmp.eq.s32.totalorder %v5612, 2
        %v5618 = vxor.u32 %v5609, 2147483648
        %v5619 = vsel %vm5617, %v5618, %v5610
        %v5620 = vsel %vm5613, %v5616, %v5619
        %v5621 = vsel %vm5611, nan, %v5620
        %v5622 = vand.u32 2147483647, %v4569
        %vm5623 = vcmp.le.f32.partialorder %v5622, 0.7853982
        %vm5624 = vcmp.lt.s32.totalorder %v4569, 0
        %v5625 = vand.u32 %v4569, 2139095040
        %v5626 = vshrl.u32 %v5625, 23
        %v5627 = vsub.s32 %v5626, 127
        %v5628 = vand.u32 2147483647, %v4569
        %v5629 = vand.u32 %v5628, 8388607
        %v5630 = vor.u32 %v5629, 8388608
        %v5631 = vsub.s32 0, %v5630
        %v5632 = vadd.s32 %v5627, 1
        %vm5633 = vcmp.gt.s32.totalorder %v5632, 0
        %v5634 = vsel %vm5633, %v5632, 0
        %v5635 = vshrl.u32 %v5634, 5
        %v5636 = vand.u32 %v5634, 31
        %v5637 = vsub.s32 32, %v5636
        %v5638 = vshrl.u32 683565275, %v5637
        %v5639 = vshll.u32 683565275, %v5636
        %v5640 = vshrl.u32 2475754826, %v5637
        %v5641 = vor.u32 %v5639, %v5640
        %v5642 = vshll.u32 2475754826, %v5636
        %v5643 = vshrl.u32 2131351028, %v5637
        %v5644 = vor.u32 %v5642, %v5643
        %v5645 = vshll.u32 2131351028, %v5636
        %v5646 = vshrl.u32 2102212464, %v5637
        %v5647 = vor.u32 %v5645, %v5646
        %v5648 = vshll.u32 2102212464, %v5636
        %v5649 = vshrl.u32 920167782, %v5637
        %v5650 = vor.u32 %v5648, %v5649
        %v5651 = vshll.u32 920167782, %v5636
        %v5652 = vshrl.u32 1326507024, %v5637
        %v5653 = vor.u32 %v5651, %v5652
        %vm5654 = vcmp.lt.s32.totalorder %v5635, 1
        %vm5655 = vcmp.lt.s32.totalorder %v5635, 2
        %vm5656 = vcmp.lt.s32.totalorder %v5635, 3
        %vm5657 = vcmp.lt.s32.totalorder %v5635, 4
        %v5658 = vsel %vm5654, %v5638, %v5641
        %v5659 = vsel %vm5657, %v5647, 2102212464
        %v5660 = vsel %vm5656, %v5644, %v5659
        %v5661 = vsel %vm5655, %v5658, %v5660
        %v5662 = vsel %vm5654, %v5641, %v5644
        %v5663 = vsel %vm5657, %v5650, 920167782
        %v5664 = vsel %vm5656, %v5647, %v5663
        %v5665 = vsel %vm5655, %v5662, %v5664
        %v5666 = vsel %vm5654, %v5644, %v5647
        %v5667 = vsel %vm5657, %v5653, 1326507024
        %v5668 = vsel %vm5656, %v5650, %v5667
        %v5669 = vsel %vm5655, %v5666, %v5668
        %v5670 = vshll.u32 %v5630, 8
        %v5671 = vmul.u32.u64.compose %v5670, %v5669
        %v5672 = vextract.low.u32 %v5671
        %v5673 = vextract.high.u32 %v5671
        %v5674 = vmul.u32.u64.compose %v5670, %v5665
        %v5675 = vextract.low.u32 %v5674
        %v5676 = vextract.high.u32 %v5674
        %v5677 = vmul.u32 %v5670, %v5661
        %v5678 = vadd.s32 %v5673, %v5675
        %vm5679 = vc.u32 %v5673, %v5675
        %v5680 = vadd.s32 %v5676, 1
        %v5681 = vsel %vm5679, %v5680, %v5676
        %v5682 = vadd.s32 %v5677, %v5681
        %v5683 = vadd.s32 %v5682, 536870912
        %v5684 = vshrl.u32 %v5683, 30
        %v5685 = vshll.u32 %v5684, 30
        %v5686 = vsub.s32 %v5682, %v5685
        %vm5687 = vcmp.lt.s32.totalorder %v5686, 0
        %v5688 = vsub.s32 0, %v5686
        %v5689 = vsel %vm5687, %v5688, %v5686
        %v5690 = vclz %v5689
        %v5691 = vsub.s32 %v5690, 2
        %vm5692 = vcmp.gt.s32.totalorder 0, %v5691
        %v5693 = vsel %vm5692, 0, %v5691
        %v5694 = vsub.s32 32, %v5693
        %v5695 = vshll.u32 %v5686, %v5693
        %v5696 = vshrl.u32 %v5678, %v5694
        %v5697 = vor.u32 %v5695, %v5696
        %v5698 = vsub.s32 4294967266, %v5693
        %v5699 = vadd.s32 %v5698, 127
        %v5700 = vshll.u32 %v5699, 23
        %v5701 = vor.u32 4788187, %v5700
        %v5702 = vand.u32 2147483647, %v5701
        %v5704 = vcvt.s32.f32 %v5697
        %v5705 = vmul.f32 %v5704, %v5702
        %v5706 = vxor.u32 %v5705, 2147483648
        %v5707 = vsel %vm5624, %v5706, %v5705
        %v5708 = vsub.s32 4, %v5684
        %v5709 = vsel %vm5624, %v5708, %v5684
        %v5710 = vsel %vm5623, %v4569, %v5707
        %v5711 = vsel %vm5623, 0, %v5709
        %v5712 = vcosq.f32.pop %v5710
        %v5713 = vsinq.f32.pop %v5710
        %vm5714 = vweird.f32 %v4569
        %v5715 = vand.u32 %v5711, 3
        %vm5716 = vcmp.lt.s32.totalorder %v5715, 2
        %vm5717 = vcmp.eq.s32.totalorder %v5715, 0
        %v5718 = vxor.u32 %v5713, 2147483648
        %v5719 = vsel %vm5717, %v5712, %v5718
        %vm5720 = vcmp.eq.s32.totalorder %v5715, 2
        %v5721 = vxor.u32 %v5712, 2147483648
        %v5722 = vsel %vm5720, %v5721, %v5713
        %v5723 = vsel %vm5716, %v5719, %v5722
        %v5724 = vsel %vm5714, nan, %v5723
        %v5725 = vand.u32 2147483647, %v4570
        %vm5726 = vcmp.le.f32.partialorder %v5725, 0.7853982
        %vm5727 = vcmp.lt.s32.totalorder %v4570, 0
        %v5728 = vand.u32 %v4570, 2139095040
        %v5729 = vshrl.u32 %v5728, 23
        %v5730 = vsub.s32 %v5729, 127
        %v5731 = vand.u32 2147483647, %v4570
        %v5732 = vand.u32 %v5731, 8388607
        %v5733 = vor.u32 %v5732, 8388608
        %v5734 = vsub.s32 0, %v5733
        %v5735 = vadd.s32 %v5730, 1
        %vm5736 = vcmp.gt.s32.totalorder %v5735, 0
        %v5737 = vsel %vm5736, %v5735, 0
        %v5738 = vshrl.u32 %v5737, 5
        %v5739 = vand.u32 %v5737, 31
        %v5740 = vsub.s32 32, %v5739
        %v5741 = vshrl.u32 683565275, %v5740
        %v5742 = vshll.u32 683565275, %v5739
        %v5743 = vshrl.u32 2475754826, %v5740
        %v5744 = vor.u32 %v5742, %v5743
        %v5745 = vshll.u32 2475754826, %v5739
        %v5746 = vshrl.u32 2131351028, %v5740
        %v5747 = vor.u32 %v5745, %v5746
        %v5748 = vshll.u32 2131351028, %v5739
        %v5749 = vshrl.u32 2102212464, %v5740
        %v5750 = vor.u32 %v5748, %v5749
        %v5751 = vshll.u32 2102212464, %v5739
        %v5752 = vshrl.u32 920167782, %v5740
        %v5753 = vor.u32 %v5751, %v5752
        %v5754 = vshll.u32 920167782, %v5739
        %v5755 = vshrl.u32 1326507024, %v5740
        %v5756 = vor.u32 %v5754, %v5755
        %vm5757 = vcmp.lt.s32.totalorder %v5738, 1
        %vm5758 = vcmp.lt.s32.totalorder %v5738, 2
        %vm5759 = vcmp.lt.s32.totalorder %v5738, 3
        %vm5760 = vcmp.lt.s32.totalorder %v5738, 4
        %v5761 = vsel %vm5757, %v5741, %v5744
        %v5762 = vsel %vm5760, %v5750, 2102212464
        %v5763 = vsel %vm5759, %v5747, %v5762
        %v5764 = vsel %vm5758, %v5761, %v5763
        %v5765 = vsel %vm5757, %v5744, %v5747
        %v5766 = vsel %vm5760, %v5753, 920167782
        %v5767 = vsel %vm5759, %v5750, %v5766
        %v5768 = vsel %vm5758, %v5765, %v5767
        %v5769 = vsel %vm5757, %v5747, %v5750
        %v5770 = vsel %vm5760, %v5756, 1326507024
        %v5771 = vsel %vm5759, %v5753, %v5770
        %v5772 = vsel %vm5758, %v5769, %v5771
        %v5773 = vshll.u32 %v5733, 8
        %v5774 = vmul.u32.u64.compose %v5773, %v5772
        %v5775 = vextract.low.u32 %v5774
        %v5776 = vextract.high.u32 %v5774
        %v5777 = vmul.u32.u64.compose %v5773, %v5768
        %v5778 = vextract.low.u32 %v5777
        %v5779 = vextract.high.u32 %v5777
        %v5780 = vmul.u32 %v5773, %v5764
        %v5781 = vadd.s32 %v5776, %v5778
        %vm5782 = vc.u32 %v5776, %v5778
        %v5783 = vadd.s32 %v5779, 1
        %v5784 = vsel %vm5782, %v5783, %v5779
        %v5785 = vadd.s32 %v5780, %v5784
        %v5786 = vadd.s32 %v5785, 536870912
        %v5787 = vshrl.u32 %v5786, 30
        %v5788 = vshll.u32 %v5787, 30
        %v5789 = vsub.s32 %v5785, %v5788
        %vm5790 = vcmp.lt.s32.totalorder %v5789, 0
        %v5791 = vsub.s32 0, %v5789
        %v5792 = vsel %vm5790, %v5791, %v5789
        %v5793 = vclz %v5792
        %v5794 = vsub.s32 %v5793, 2
        %vm5795 = vcmp.gt.s32.totalorder 0, %v5794
        %v5796 = vsel %vm5795, 0, %v5794
        %v5797 = vsub.s32 32, %v5796
        %v5798 = vshll.u32 %v5789, %v5796
        %v5799 = vshrl.u32 %v5781, %v5797
        %v5800 = vor.u32 %v5798, %v5799
        %v5801 = vsub.s32 4294967266, %v5796
        %v5802 = vadd.s32 %v5801, 127
        %v5803 = vshll.u32 %v5802, 23
        %v5804 = vor.u32 4788187, %v5803
        %v5805 = vand.u32 2147483647, %v5804
        %v5807 = vcvt.s32.f32 %v5800
        %v5808 = vmul.f32 %v5807, %v5805
        %v5809 = vxor.u32 %v5808, 2147483648
        %v5810 = vsel %vm5727, %v5809, %v5808
        %v5811 = vsub.s32 4, %v5787
        %v5812 = vsel %vm5727, %v5811, %v5787
        %v5813 = vsel %vm5726, %v4570, %v5810
        %v5814 = vsel %vm5726, 0, %v5812
        %v5815 = vcosq.f32.pop %v5813
        %v5816 = vsinq.f32.pop %v5813
        %vm5817 = vweird.f32 %v4570
        %v5818 = vand.u32 %v5814, 3
        %vm5819 = vcmp.lt.s32.totalorder %v5818, 2
        %vm5820 = vcmp.eq.s32.totalorder %v5818, 0
        %v5821 = vxor.u32 %v5816, 2147483648
        %v5822 = vsel %vm5820, %v5815, %v5821
        %vm5823 = vcmp.eq.s32.totalorder %v5818, 2
        %v5824 = vxor.u32 %v5815, 2147483648
        %v5825 = vsel %vm5823, %v5824, %v5816
        %v5826 = vsel %vm5819, %v5822, %v5825
        %v5827 = vsel %vm5817, nan, %v5826
        %v5828 = vand.u32 2147483647, %v4571
        %vm5829 = vcmp.le.f32.partialorder %v5828, 0.7853982
        %vm5830 = vcmp.lt.s32.totalorder %v4571, 0
        %v5831 = vand.u32 %v4571, 2139095040
        %v5832 = vshrl.u32 %v5831, 23
        %v5833 = vsub.s32 %v5832, 127
        %v5834 = vand.u32 2147483647, %v4571
        %v5835 = vand.u32 %v5834, 8388607
        %v5836 = vor.u32 %v5835, 8388608
        %v5837 = vsub.s32 0, %v5836
        %v5838 = vadd.s32 %v5833, 1
        %vm5839 = vcmp.gt.s32.totalorder %v5838, 0
        %v5840 = vsel %vm5839, %v5838, 0
        %v5841 = vshrl.u32 %v5840, 5
        %v5842 = vand.u32 %v5840, 31
        %v5843 = vsub.s32 32, %v5842
        %v5844 = vshrl.u32 683565275, %v5843
        %v5845 = vshll.u32 683565275, %v5842
        %v5846 = vshrl.u32 2475754826, %v5843
        %v5847 = vor.u32 %v5845, %v5846
        %v5848 = vshll.u32 2475754826, %v5842
        %v5849 = vshrl.u32 2131351028, %v5843
        %v5850 = vor.u32 %v5848, %v5849
        %v5851 = vshll.u32 2131351028, %v5842
        %v5852 = vshrl.u32 2102212464, %v5843
        %v5853 = vor.u32 %v5851, %v5852
        %v5854 = vshll.u32 2102212464, %v5842
        %v5855 = vshrl.u32 920167782, %v5843
        %v5856 = vor.u32 %v5854, %v5855
        %v5857 = vshll.u32 920167782, %v5842
        %v5858 = vshrl.u32 1326507024, %v5843
        %v5859 = vor.u32 %v5857, %v5858
        %vm5860 = vcmp.lt.s32.totalorder %v5841, 1
        %vm5861 = vcmp.lt.s32.totalorder %v5841, 2
        %vm5862 = vcmp.lt.s32.totalorder %v5841, 3
        %vm5863 = vcmp.lt.s32.totalorder %v5841, 4
        %v5864 = vsel %vm5860, %v5844, %v5847
        %v5865 = vsel %vm5863, %v5853, 2102212464
        %v5866 = vsel %vm5862, %v5850, %v5865
        %v5867 = vsel %vm5861, %v5864, %v5866
        %v5868 = vsel %vm5860, %v5847, %v5850
        %v5869 = vsel %vm5863, %v5856, 920167782
        %v5870 = vsel %vm5862, %v5853, %v5869
        %v5871 = vsel %vm5861, %v5868, %v5870
        %v5872 = vsel %vm5860, %v5850, %v5853
        %v5873 = vsel %vm5863, %v5859, 1326507024
        %v5874 = vsel %vm5862, %v5856, %v5873
        %v5875 = vsel %vm5861, %v5872, %v5874
        %v5876 = vshll.u32 %v5836, 8
        %v5877 = vmul.u32.u64.compose %v5876, %v5875
        %v5878 = vextract.low.u32 %v5877
        %v5879 = vextract.high.u32 %v5877
        %v5880 = vmul.u32.u64.compose %v5876, %v5871
        %v5881 = vextract.low.u32 %v5880
        %v5882 = vextract.high.u32 %v5880
        %v5883 = vmul.u32 %v5876, %v5867
        %v5884 = vadd.s32 %v5879, %v5881
        %vm5885 = vc.u32 %v5879, %v5881
        %v5886 = vadd.s32 %v5882, 1
        %v5887 = vsel %vm5885, %v5886, %v5882
        %v5888 = vadd.s32 %v5883, %v5887
        %v5889 = vadd.s32 %v5888, 536870912
        %v5890 = vshrl.u32 %v5889, 30
        %v5891 = vshll.u32 %v5890, 30
        %v5892 = vsub.s32 %v5888, %v5891
        %vm5893 = vcmp.lt.s32.totalorder %v5892, 0
        %v5894 = vsub.s32 0, %v5892
        %v5895 = vsel %vm5893, %v5894, %v5892
        %v5896 = vclz %v5895
        %v5897 = vsub.s32 %v5896, 2
        %vm5898 = vcmp.gt.s32.totalorder 0, %v5897
        %v5899 = vsel %vm5898, 0, %v5897
        %v5900 = vsub.s32 32, %v5899
        %v5901 = vshll.u32 %v5892, %v5899
        %v5902 = vshrl.u32 %v5884, %v5900
        %v5903 = vor.u32 %v5901, %v5902
        %v5904 = vsub.s32 4294967266, %v5899
        %v5905 = vadd.s32 %v5904, 127
        %v5906 = vshll.u32 %v5905, 23
        %v5907 = vor.u32 4788187, %v5906
        %v5908 = vand.u32 2147483647, %v5907
        %v5910 = vcvt.s32.f32 %v5903
        %v5911 = vmul.f32 %v5910, %v5908
        %v5912 = vxor.u32 %v5911, 2147483648
        %v5913 = vsel %vm5830, %v5912, %v5911
        %v5914 = vsub.s32 4, %v5890
        %v5915 = vsel %vm5830, %v5914, %v5890
        %v5916 = vsel %vm5829, %v4571, %v5913
        %v5917 = vsel %vm5829, 0, %v5915
        %v5918 = vcosq.f32.pop %v5916
        %v5919 = vsinq.f32.pop %v5916
        %vm5920 = vweird.f32 %v4571
        %v5921 = vand.u32 %v5917, 3
        %vm5922 = vcmp.lt.s32.totalorder %v5921, 2
        %vm5923 = vcmp.eq.s32.totalorder %v5921, 0
        %v5924 = vxor.u32 %v5919, 2147483648
        %v5925 = vsel %vm5923, %v5918, %v5924
        %vm5926 = vcmp.eq.s32.totalorder %v5921, 2
        %v5927 = vxor.u32 %v5918, 2147483648
        %v5928 = vsel %vm5926, %v5927, %v5919
        %v5929 = vsel %vm5922, %v5925, %v5928
        %v5930 = vsel %vm5920, nan, %v5929
        %v5931 = vand.u32 2147483647, %v4572
        %vm5932 = vcmp.le.f32.partialorder %v5931, 0.7853982
        %vm5933 = vcmp.lt.s32.totalorder %v4572, 0
        %v5934 = vand.u32 %v4572, 2139095040
        %v5935 = vshrl.u32 %v5934, 23
        %v5936 = vsub.s32 %v5935, 127
        %v5937 = vand.u32 2147483647, %v4572
        %v5938 = vand.u32 %v5937, 8388607
        %v5939 = vor.u32 %v5938, 8388608
        %v5940 = vsub.s32 0, %v5939
        %v5941 = vadd.s32 %v5936, 1
        %vm5942 = vcmp.gt.s32.totalorder %v5941, 0
        %v5943 = vsel %vm5942, %v5941, 0
        %v5944 = vshrl.u32 %v5943, 5
        %v5945 = vand.u32 %v5943, 31
        %v5946 = vsub.s32 32, %v5945
        %v5947 = vshrl.u32 683565275, %v5946
        %v5948 = vshll.u32 683565275, %v5945
        %v5949 = vshrl.u32 2475754826, %v5946
        %v5950 = vor.u32 %v5948, %v5949
        %v5951 = vshll.u32 2475754826, %v5945
        %v5952 = vshrl.u32 2131351028, %v5946
        %v5953 = vor.u32 %v5951, %v5952
        %v5954 = vshll.u32 2131351028, %v5945
        %v5955 = vshrl.u32 2102212464, %v5946
        %v5956 = vor.u32 %v5954, %v5955
        %v5957 = vshll.u32 2102212464, %v5945
        %v5958 = vshrl.u32 920167782, %v5946
        %v5959 = vor.u32 %v5957, %v5958
        %v5960 = vshll.u32 920167782, %v5945
        %v5961 = vshrl.u32 1326507024, %v5946
        %v5962 = vor.u32 %v5960, %v5961
        %vm5963 = vcmp.lt.s32.totalorder %v5944, 1
        %vm5964 = vcmp.lt.s32.totalorder %v5944, 2
        %vm5965 = vcmp.lt.s32.totalorder %v5944, 3
        %vm5966 = vcmp.lt.s32.totalorder %v5944, 4
        %v5967 = vsel %vm5963, %v5947, %v5950
        %v5968 = vsel %vm5966, %v5956, 2102212464
        %v5969 = vsel %vm5965, %v5953, %v5968
        %v5970 = vsel %vm5964, %v5967, %v5969
        %v5971 = vsel %vm5963, %v5950, %v5953
        %v5972 = vsel %vm5966, %v5959, 920167782
        %v5973 = vsel %vm5965, %v5956, %v5972
        %v5974 = vsel %vm5964, %v5971, %v5973
        %v5975 = vsel %vm5963, %v5953, %v5956
        %v5976 = vsel %vm5966, %v5962, 1326507024
        %v5977 = vsel %vm5965, %v5959, %v5976
        %v5978 = vsel %vm5964, %v5975, %v5977
        %v5979 = vshll.u32 %v5939, 8
        %v5980 = vmul.u32.u64.compose %v5979, %v5978
        %v5981 = vextract.low.u32 %v5980
        %v5982 = vextract.high.u32 %v5980
        %v5983 = vmul.u32.u64.compose %v5979, %v5974
        %v5984 = vextract.low.u32 %v5983
        %v5985 = vextract.high.u32 %v5983
        %v5986 = vmul.u32 %v5979, %v5970
        %v5987 = vadd.s32 %v5982, %v5984
        %vm5988 = vc.u32 %v5982, %v5984
        %v5989 = vadd.s32 %v5985, 1
        %v5990 = vsel %vm5988, %v5989, %v5985
        %v5991 = vadd.s32 %v5986, %v5990
        %v5992 = vadd.s32 %v5991, 536870912
        %v5993 = vshrl.u32 %v5992, 30
        %v5994 = vshll.u32 %v5993, 30
        %v5995 = vsub.s32 %v5991, %v5994
        %vm5996 = vcmp.lt.s32.totalorder %v5995, 0
        %v5997 = vsub.s32 0, %v5995
        %v5998 = vsel %vm5996, %v5997, %v5995
        %v5999 = vclz %v5998
        %v6000 = vsub.s32 %v5999, 2
        %vm6001 = vcmp.gt.s32.totalorder 0, %v6000
        %v6002 = vsel %vm6001, 0, %v6000
        %v6003 = vsub.s32 32, %v6002
        %v6004 = vshll.u32 %v5995, %v6002
        %v6005 = vshrl.u32 %v5987, %v6003
        %v6006 = vor.u32 %v6004, %v6005
        %v6007 = vsub.s32 4294967266, %v6002
        %v6008 = vadd.s32 %v6007, 127
        %v6009 = vshll.u32 %v6008, 23
        %v6010 = vor.u32 4788187, %v6009
        %v6011 = vand.u32 2147483647, %v6010
        %v6013 = vcvt.s32.f32 %v6006
        %v6014 = vmul.f32 %v6013, %v6011
        %v6015 = vxor.u32 %v6014, 2147483648
        %v6016 = vsel %vm5933, %v6015, %v6014
        %v6017 = vsub.s32 4, %v5993
        %v6018 = vsel %vm5933, %v6017, %v5993
        %v6019 = vsel %vm5932, %v4572, %v6016
        %v6020 = vsel %vm5932, 0, %v6018
        %v6021 = vcosq.f32.pop %v6019
        %v6022 = vsinq.f32.pop %v6019
        %vm6023 = vweird.f32 %v4572
        %v6024 = vand.u32 %v6020, 3
        %vm6025 = vcmp.lt.s32.totalorder %v6024, 2
        %vm6026 = vcmp.eq.s32.totalorder %v6024, 0
        %v6027 = vxor.u32 %v6022, 2147483648
        %v6028 = vsel %vm6026, %v6021, %v6027
        %vm6029 = vcmp.eq.s32.totalorder %v6024, 2
        %v6030 = vxor.u32 %v6021, 2147483648
        %v6031 = vsel %vm6029, %v6030, %v6022
        %v6032 = vsel %vm6025, %v6028, %v6031
        %v6033 = vsel %vm6023, nan, %v6032
        %v6034 = vand.u32 2147483647, %v4573
        %vm6035 = vcmp.le.f32.partialorder %v6034, 0.7853982
        %vm6036 = vcmp.lt.s32.totalorder %v4573, 0
        %v6037 = vand.u32 %v4573, 2139095040
        %v6038 = vshrl.u32 %v6037, 23
        %v6039 = vsub.s32 %v6038, 127
        %v6040 = vand.u32 2147483647, %v4573
        %v6041 = vand.u32 %v6040, 8388607
        %v6042 = vor.u32 %v6041, 8388608
        %v6043 = vsub.s32 0, %v6042
        %v6044 = vadd.s32 %v6039, 1
        %vm6045 = vcmp.gt.s32.totalorder %v6044, 0
        %v6046 = vsel %vm6045, %v6044, 0
        %v6047 = vshrl.u32 %v6046, 5
        %v6048 = vand.u32 %v6046, 31
        %v6049 = vsub.s32 32, %v6048
        %v6050 = vshrl.u32 683565275, %v6049
        %v6051 = vshll.u32 683565275, %v6048
        %v6052 = vshrl.u32 2475754826, %v6049
        %v6053 = vor.u32 %v6051, %v6052
        %v6054 = vshll.u32 2475754826, %v6048
        %v6055 = vshrl.u32 2131351028, %v6049
        %v6056 = vor.u32 %v6054, %v6055
        %v6057 = vshll.u32 2131351028, %v6048
        %v6058 = vshrl.u32 2102212464, %v6049
        %v6059 = vor.u32 %v6057, %v6058
        %v6060 = vshll.u32 2102212464, %v6048
        %v6061 = vshrl.u32 920167782, %v6049
        %v6062 = vor.u32 %v6060, %v6061
        %v6063 = vshll.u32 920167782, %v6048
        %v6064 = vshrl.u32 1326507024, %v6049
        %v6065 = vor.u32 %v6063, %v6064
        %vm6066 = vcmp.lt.s32.totalorder %v6047, 1
        %vm6067 = vcmp.lt.s32.totalorder %v6047, 2
        %vm6068 = vcmp.lt.s32.totalorder %v6047, 3
        %vm6069 = vcmp.lt.s32.totalorder %v6047, 4
        %v6070 = vsel %vm6066, %v6050, %v6053
        %v6071 = vsel %vm6069, %v6059, 2102212464
        %v6072 = vsel %vm6068, %v6056, %v6071
        %v6073 = vsel %vm6067, %v6070, %v6072
        %v6074 = vsel %vm6066, %v6053, %v6056
        %v6075 = vsel %vm6069, %v6062, 920167782
        %v6076 = vsel %vm6068, %v6059, %v6075
        %v6077 = vsel %vm6067, %v6074, %v6076
        %v6078 = vsel %vm6066, %v6056, %v6059
        %v6079 = vsel %vm6069, %v6065, 1326507024
        %v6080 = vsel %vm6068, %v6062, %v6079
        %v6081 = vsel %vm6067, %v6078, %v6080
        %v6082 = vshll.u32 %v6042, 8
        %v6083 = vmul.u32.u64.compose %v6082, %v6081
        %v6084 = vextract.low.u32 %v6083
        %v6085 = vextract.high.u32 %v6083
        %v6086 = vmul.u32.u64.compose %v6082, %v6077
        %v6087 = vextract.low.u32 %v6086
        %v6088 = vextract.high.u32 %v6086
        %v6089 = vmul.u32 %v6082, %v6073
        %v6090 = vadd.s32 %v6085, %v6087
        %vm6091 = vc.u32 %v6085, %v6087
        %v6092 = vadd.s32 %v6088, 1
        %v6093 = vsel %vm6091, %v6092, %v6088
        %v6094 = vadd.s32 %v6089, %v6093
        %v6095 = vadd.s32 %v6094, 536870912
        %v6096 = vshrl.u32 %v6095, 30
        %v6097 = vshll.u32 %v6096, 30
        %v6098 = vsub.s32 %v6094, %v6097
        %vm6099 = vcmp.lt.s32.totalorder %v6098, 0
        %v6100 = vsub.s32 0, %v6098
        %v6101 = vsel %vm6099, %v6100, %v6098
        %v6102 = vclz %v6101
        %v6103 = vsub.s32 %v6102, 2
        %vm6104 = vcmp.gt.s32.totalorder 0, %v6103
        %v6105 = vsel %vm6104, 0, %v6103
        %v6106 = vsub.s32 32, %v6105
        %v6107 = vshll.u32 %v6098, %v6105
        %v6108 = vshrl.u32 %v6090, %v6106
        %v6109 = vor.u32 %v6107, %v6108
        %v6110 = vsub.s32 4294967266, %v6105
        %v6111 = vadd.s32 %v6110, 127
        %v6112 = vshll.u32 %v6111, 23
        %v6113 = vor.u32 4788187, %v6112
        %v6114 = vand.u32 2147483647, %v6113
        %v6116 = vcvt.s32.f32 %v6109
        %v6117 = vmul.f32 %v6116, %v6114
        %v6118 = vxor.u32 %v6117, 2147483648
        %v6119 = vsel %vm6036, %v6118, %v6117
        %v6120 = vsub.s32 4, %v6096
        %v6121 = vsel %vm6036, %v6120, %v6096
        %v6122 = vsel %vm6035, %v4573, %v6119
        %v6123 = vsel %vm6035, 0, %v6121
        %v6124 = vcosq.f32.pop %v6122
        %v6125 = vsinq.f32.pop %v6122
        %vm6126 = vweird.f32 %v4573
        %v6127 = vand.u32 %v6123, 3
        %vm6128 = vcmp.lt.s32.totalorder %v6127, 2
        %vm6129 = vcmp.eq.s32.totalorder %v6127, 0
        %v6130 = vxor.u32 %v6125, 2147483648
        %v6131 = vsel %vm6129, %v6124, %v6130
        %vm6132 = vcmp.eq.s32.totalorder %v6127, 2
        %v6133 = vxor.u32 %v6124, 2147483648
        %v6134 = vsel %vm6132, %v6133, %v6125
        %v6135 = vsel %vm6128, %v6131, %v6134
        %v6136 = vsel %vm6126, nan, %v6135
        %v6137 = vand.u32 2147483647, %v4574
        %vm6138 = vcmp.le.f32.partialorder %v6137, 0.7853982
        %vm6139 = vcmp.lt.s32.totalorder %v4574, 0
        %v6140 = vand.u32 %v4574, 2139095040
        %v6141 = vshrl.u32 %v6140, 23
        %v6142 = vsub.s32 %v6141, 127
        %v6143 = vand.u32 2147483647, %v4574
        %v6144 = vand.u32 %v6143, 8388607
        %v6145 = vor.u32 %v6144, 8388608
        %v6146 = vsub.s32 0, %v6145
        %v6147 = vadd.s32 %v6142, 1
        %vm6148 = vcmp.gt.s32.totalorder %v6147, 0
        %v6149 = vsel %vm6148, %v6147, 0
        %v6150 = vshrl.u32 %v6149, 5
        %v6151 = vand.u32 %v6149, 31
        %v6152 = vsub.s32 32, %v6151
        %v6153 = vshrl.u32 683565275, %v6152
        %v6154 = vshll.u32 683565275, %v6151
        %v6155 = vshrl.u32 2475754826, %v6152
        %v6156 = vor.u32 %v6154, %v6155
        %v6157 = vshll.u32 2475754826, %v6151
        %v6158 = vshrl.u32 2131351028, %v6152
        %v6159 = vor.u32 %v6157, %v6158
        %v6160 = vshll.u32 2131351028, %v6151
        %v6161 = vshrl.u32 2102212464, %v6152
        %v6162 = vor.u32 %v6160, %v6161
        %v6163 = vshll.u32 2102212464, %v6151
        %v6164 = vshrl.u32 920167782, %v6152
        %v6165 = vor.u32 %v6163, %v6164
        %v6166 = vshll.u32 920167782, %v6151
        %v6167 = vshrl.u32 1326507024, %v6152
        %v6168 = vor.u32 %v6166, %v6167
        %vm6169 = vcmp.lt.s32.totalorder %v6150, 1
        %vm6170 = vcmp.lt.s32.totalorder %v6150, 2
        %vm6171 = vcmp.lt.s32.totalorder %v6150, 3
        %vm6172 = vcmp.lt.s32.totalorder %v6150, 4
        %v6173 = vsel %vm6169, %v6153, %v6156
        %v6174 = vsel %vm6172, %v6162, 2102212464
        %v6175 = vsel %vm6171, %v6159, %v6174
        %v6176 = vsel %vm6170, %v6173, %v6175
        %v6177 = vsel %vm6169, %v6156, %v6159
        %v6178 = vsel %vm6172, %v6165, 920167782
        %v6179 = vsel %vm6171, %v6162, %v6178
        %v6180 = vsel %vm6170, %v6177, %v6179
        %v6181 = vsel %vm6169, %v6159, %v6162
        %v6182 = vsel %vm6172, %v6168, 1326507024
        %v6183 = vsel %vm6171, %v6165, %v6182
        %v6184 = vsel %vm6170, %v6181, %v6183
        %v6185 = vshll.u32 %v6145, 8
        %v6186 = vmul.u32.u64.compose %v6185, %v6184
        %v6187 = vextract.low.u32 %v6186
        %v6188 = vextract.high.u32 %v6186
        %v6189 = vmul.u32.u64.compose %v6185, %v6180
        %v6190 = vextract.low.u32 %v6189
        %v6191 = vextract.high.u32 %v6189
        %v6192 = vmul.u32 %v6185, %v6176
        %v6193 = vadd.s32 %v6188, %v6190
        %vm6194 = vc.u32 %v6188, %v6190
        %v6195 = vadd.s32 %v6191, 1
        %v6196 = vsel %vm6194, %v6195, %v6191
        %v6197 = vadd.s32 %v6192, %v6196
        %v6198 = vadd.s32 %v6197, 536870912
        %v6199 = vshrl.u32 %v6198, 30
        %v6200 = vshll.u32 %v6199, 30
        %v6201 = vsub.s32 %v6197, %v6200
        %vm6202 = vcmp.lt.s32.totalorder %v6201, 0
        %v6203 = vsub.s32 0, %v6201
        %v6204 = vsel %vm6202, %v6203, %v6201
        %v6205 = vclz %v6204
        %v6206 = vsub.s32 %v6205, 2
        %vm6207 = vcmp.gt.s32.totalorder 0, %v6206
        %v6208 = vsel %vm6207, 0, %v6206
        %v6209 = vsub.s32 32, %v6208
        %v6210 = vshll.u32 %v6201, %v6208
        %v6211 = vshrl.u32 %v6193, %v6209
        %v6212 = vor.u32 %v6210, %v6211
        %v6213 = vsub.s32 4294967266, %v6208
        %v6214 = vadd.s32 %v6213, 127
        %v6215 = vshll.u32 %v6214, 23
        %v6216 = vor.u32 4788187, %v6215
        %v6217 = vand.u32 2147483647, %v6216
        %v6219 = vcvt.s32.f32 %v6212
        %v6220 = vmul.f32 %v6219, %v6217
        %v6221 = vxor.u32 %v6220, 2147483648
        %v6222 = vsel %vm6139, %v6221, %v6220
        %v6223 = vsub.s32 4, %v6199
        %v6224 = vsel %vm6139, %v6223, %v6199
        %v6225 = vsel %vm6138, %v4574, %v6222
        %v6226 = vsel %vm6138, 0, %v6224
        %v6227 = vcosq.f32.pop %v6225
        %v6228 = vsinq.f32.pop %v6225
        %vm6229 = vweird.f32 %v4574
        %v6230 = vand.u32 %v6226, 3
        %vm6231 = vcmp.lt.s32.totalorder %v6230, 2
        %vm6232 = vcmp.eq.s32.totalorder %v6230, 0
        %v6233 = vxor.u32 %v6228, 2147483648
        %v6234 = vsel %vm6232, %v6227, %v6233
        %vm6235 = vcmp.eq.s32.totalorder %v6230, 2
        %v6236 = vxor.u32 %v6227, 2147483648
        %v6237 = vsel %vm6235, %v6236, %v6228
        %v6238 = vsel %vm6231, %v6234, %v6237
        %v6239 = vsel %vm6229, nan, %v6238
        %v6240 = vand.u32 2147483647, %v4575
        %vm6241 = vcmp.le.f32.partialorder %v6240, 0.7853982
        %vm6242 = vcmp.lt.s32.totalorder %v4575, 0
        %v6243 = vand.u32 %v4575, 2139095040
        %v6244 = vshrl.u32 %v6243, 23
        %v6245 = vsub.s32 %v6244, 127
        %v6246 = vand.u32 2147483647, %v4575
        %v6247 = vand.u32 %v6246, 8388607
        %v6248 = vor.u32 %v6247, 8388608
        %v6249 = vsub.s32 0, %v6248
        %v6250 = vadd.s32 %v6245, 1
        %vm6251 = vcmp.gt.s32.totalorder %v6250, 0
        %v6252 = vsel %vm6251, %v6250, 0
        %v6253 = vshrl.u32 %v6252, 5
        %v6254 = vand.u32 %v6252, 31
        %v6255 = vsub.s32 32, %v6254
        %v6256 = vshrl.u32 683565275, %v6255
        %v6257 = vshll.u32 683565275, %v6254
        %v6258 = vshrl.u32 2475754826, %v6255
        %v6259 = vor.u32 %v6257, %v6258
        %v6260 = vshll.u32 2475754826, %v6254
        %v6261 = vshrl.u32 2131351028, %v6255
        %v6262 = vor.u32 %v6260, %v6261
        %v6263 = vshll.u32 2131351028, %v6254
        %v6264 = vshrl.u32 2102212464, %v6255
        %v6265 = vor.u32 %v6263, %v6264
        %v6266 = vshll.u32 2102212464, %v6254
        %v6267 = vshrl.u32 920167782, %v6255
        %v6268 = vor.u32 %v6266, %v6267
        %v6269 = vshll.u32 920167782, %v6254
        %v6270 = vshrl.u32 1326507024, %v6255
        %v6271 = vor.u32 %v6269, %v6270
        %vm6272 = vcmp.lt.s32.totalorder %v6253, 1
        %vm6273 = vcmp.lt.s32.totalorder %v6253, 2
        %vm6274 = vcmp.lt.s32.totalorder %v6253, 3
        %vm6275 = vcmp.lt.s32.totalorder %v6253, 4
        %v6276 = vsel %vm6272, %v6256, %v6259
        %v6277 = vsel %vm6275, %v6265, 2102212464
        %v6278 = vsel %vm6274, %v6262, %v6277
        %v6279 = vsel %vm6273, %v6276, %v6278
        %v6280 = vsel %vm6272, %v6259, %v6262
        %v6281 = vsel %vm6275, %v6268, 920167782
        %v6282 = vsel %vm6274, %v6265, %v6281
        %v6283 = vsel %vm6273, %v6280, %v6282
        %v6284 = vsel %vm6272, %v6262, %v6265
        %v6285 = vsel %vm6275, %v6271, 1326507024
        %v6286 = vsel %vm6274, %v6268, %v6285
        %v6287 = vsel %vm6273, %v6284, %v6286
        %v6288 = vshll.u32 %v6248, 8
        %v6289 = vmul.u32.u64.compose %v6288, %v6287
        %v6290 = vextract.low.u32 %v6289
        %v6291 = vextract.high.u32 %v6289
        %v6292 = vmul.u32.u64.compose %v6288, %v6283
        %v6293 = vextract.low.u32 %v6292
        %v6294 = vextract.high.u32 %v6292
        %v6295 = vmul.u32 %v6288, %v6279
        %v6296 = vadd.s32 %v6291, %v6293
        %vm6297 = vc.u32 %v6291, %v6293
        %v6298 = vadd.s32 %v6294, 1
        %v6299 = vsel %vm6297, %v6298, %v6294
        %v6300 = vadd.s32 %v6295, %v6299
        %v6301 = vadd.s32 %v6300, 536870912
        %v6302 = vshrl.u32 %v6301, 30
        %v6303 = vshll.u32 %v6302, 30
        %v6304 = vsub.s32 %v6300, %v6303
        %vm6305 = vcmp.lt.s32.totalorder %v6304, 0
        %v6306 = vsub.s32 0, %v6304
        %v6307 = vsel %vm6305, %v6306, %v6304
        %v6308 = vclz %v6307
        %v6309 = vsub.s32 %v6308, 2
        %vm6310 = vcmp.gt.s32.totalorder 0, %v6309
        %v6311 = vsel %vm6310, 0, %v6309
        %v6312 = vsub.s32 32, %v6311
        %v6313 = vshll.u32 %v6304, %v6311
        %v6314 = vshrl.u32 %v6296, %v6312
        %v6315 = vor.u32 %v6313, %v6314
        %v6316 = vsub.s32 4294967266, %v6311
        %v6317 = vadd.s32 %v6316, 127
        %v6318 = vshll.u32 %v6317, 23
        %v6319 = vor.u32 4788187, %v6318
        %v6320 = vand.u32 2147483647, %v6319
        %v6322 = vcvt.s32.f32 %v6315
        %v6323 = vmul.f32 %v6322, %v6320
        %v6324 = vxor.u32 %v6323, 2147483648
        %v6325 = vsel %vm6242, %v6324, %v6323
        %v6326 = vsub.s32 4, %v6302
        %v6327 = vsel %vm6242, %v6326, %v6302
        %v6328 = vsel %vm6241, %v4575, %v6325
        %v6329 = vsel %vm6241, 0, %v6327
        %v6330 = vcosq.f32.pop %v6328
        %v6331 = vsinq.f32.pop %v6328
        %vm6332 = vweird.f32 %v4575
        %v6333 = vand.u32 %v6329, 3
        %vm6334 = vcmp.lt.s32.totalorder %v6333, 2
        %vm6335 = vcmp.eq.s32.totalorder %v6333, 0
        %v6336 = vxor.u32 %v6331, 2147483648
        %v6337 = vsel %vm6335, %v6330, %v6336
        %vm6338 = vcmp.eq.s32.totalorder %v6333, 2
        %v6339 = vxor.u32 %v6330, 2147483648
        %v6340 = vsel %vm6338, %v6339, %v6331
        %v6341 = vsel %vm6334, %v6337, %v6340
        %v6342 = vsel %vm6332, nan, %v6341
        %v6343 = vand.u32 2147483647, %v4576
        %vm6344 = vcmp.le.f32.partialorder %v6343, 0.7853982
        %vm6345 = vcmp.lt.s32.totalorder %v4576, 0
        %v6346 = vand.u32 %v4576, 2139095040
        %v6347 = vshrl.u32 %v6346, 23
        %v6348 = vsub.s32 %v6347, 127
        %v6349 = vand.u32 2147483647, %v4576
        %v6350 = vand.u32 %v6349, 8388607
        %v6351 = vor.u32 %v6350, 8388608
        %v6352 = vsub.s32 0, %v6351
        %v6353 = vadd.s32 %v6348, 1
        %vm6354 = vcmp.gt.s32.totalorder %v6353, 0
        %v6355 = vsel %vm6354, %v6353, 0
        %v6356 = vshrl.u32 %v6355, 5
        %v6357 = vand.u32 %v6355, 31
        %v6358 = vsub.s32 32, %v6357
        %v6359 = vshrl.u32 683565275, %v6358
        %v6360 = vshll.u32 683565275, %v6357
        %v6361 = vshrl.u32 2475754826, %v6358
        %v6362 = vor.u32 %v6360, %v6361
        %v6363 = vshll.u32 2475754826, %v6357
        %v6364 = vshrl.u32 2131351028, %v6358
        %v6365 = vor.u32 %v6363, %v6364
        %v6366 = vshll.u32 2131351028, %v6357
        %v6367 = vshrl.u32 2102212464, %v6358
        %v6368 = vor.u32 %v6366, %v6367
        %v6369 = vshll.u32 2102212464, %v6357
        %v6370 = vshrl.u32 920167782, %v6358
        %v6371 = vor.u32 %v6369, %v6370
        %v6372 = vshll.u32 920167782, %v6357
        %v6373 = vshrl.u32 1326507024, %v6358
        %v6374 = vor.u32 %v6372, %v6373
        %vm6375 = vcmp.lt.s32.totalorder %v6356, 1
        %vm6376 = vcmp.lt.s32.totalorder %v6356, 2
        %vm6377 = vcmp.lt.s32.totalorder %v6356, 3
        %vm6378 = vcmp.lt.s32.totalorder %v6356, 4
        %v6379 = vsel %vm6375, %v6359, %v6362
        %v6380 = vsel %vm6378, %v6368, 2102212464
        %v6381 = vsel %vm6377, %v6365, %v6380
        %v6382 = vsel %vm6376, %v6379, %v6381
        %v6383 = vsel %vm6375, %v6362, %v6365
        %v6384 = vsel %vm6378, %v6371, 920167782
        %v6385 = vsel %vm6377, %v6368, %v6384
        %v6386 = vsel %vm6376, %v6383, %v6385
        %v6387 = vsel %vm6375, %v6365, %v6368
        %v6388 = vsel %vm6378, %v6374, 1326507024
        %v6389 = vsel %vm6377, %v6371, %v6388
        %v6390 = vsel %vm6376, %v6387, %v6389
        %v6391 = vshll.u32 %v6351, 8
        %v6392 = vmul.u32.u64.compose %v6391, %v6390
        %v6393 = vextract.low.u32 %v6392
        %v6394 = vextract.high.u32 %v6392
        %v6395 = vmul.u32.u64.compose %v6391, %v6386
        %v6396 = vextract.low.u32 %v6395
        %v6397 = vextract.high.u32 %v6395
        %v6398 = vmul.u32 %v6391, %v6382
        %v6399 = vadd.s32 %v6394, %v6396
        %vm6400 = vc.u32 %v6394, %v6396
        %v6401 = vadd.s32 %v6397, 1
        %v6402 = vsel %vm6400, %v6401, %v6397
        %v6403 = vadd.s32 %v6398, %v6402
        %v6404 = vadd.s32 %v6403, 536870912
        %v6405 = vshrl.u32 %v6404, 30
        %v6406 = vshll.u32 %v6405, 30
        %v6407 = vsub.s32 %v6403, %v6406
        %vm6408 = vcmp.lt.s32.totalorder %v6407, 0
        %v6409 = vsub.s32 0, %v6407
        %v6410 = vsel %vm6408, %v6409, %v6407
        %v6411 = vclz %v6410
        %v6412 = vsub.s32 %v6411, 2
        %vm6413 = vcmp.gt.s32.totalorder 0, %v6412
        %v6414 = vsel %vm6413, 0, %v6412
        %v6415 = vsub.s32 32, %v6414
        %v6416 = vshll.u32 %v6407, %v6414
        %v6417 = vshrl.u32 %v6399, %v6415
        %v6418 = vor.u32 %v6416, %v6417
        %v6419 = vsub.s32 4294967266, %v6414
        %v6420 = vadd.s32 %v6419, 127
        %v6421 = vshll.u32 %v6420, 23
        %v6422 = vor.u32 4788187, %v6421
        %v6423 = vand.u32 2147483647, %v6422
        %v6425 = vcvt.s32.f32 %v6418
        %v6426 = vmul.f32 %v6425, %v6423
        %v6427 = vxor.u32 %v6426, 2147483648
        %v6428 = vsel %vm6345, %v6427, %v6426
        %v6429 = vsub.s32 4, %v6405
        %v6430 = vsel %vm6345, %v6429, %v6405
        %v6431 = vsel %vm6344, %v4576, %v6428
        %v6432 = vsel %vm6344, 0, %v6430
        %v6433 = vcosq.f32.pop %v6431
        %v6434 = vsinq.f32.pop %v6431
        %vm6435 = vweird.f32 %v4576
        %v6436 = vand.u32 %v6432, 3
        %vm6437 = vcmp.lt.s32.totalorder %v6436, 2
        %vm6438 = vcmp.eq.s32.totalorder %v6436, 0
        %v6439 = vxor.u32 %v6434, 2147483648
        %v6440 = vsel %vm6438, %v6433, %v6439
        %vm6441 = vcmp.eq.s32.totalorder %v6436, 2
        %v6442 = vxor.u32 %v6433, 2147483648
        %v6443 = vsel %vm6441, %v6442, %v6434
        %v6444 = vsel %vm6437, %v6440, %v6443
        %v6445 = vsel %vm6435, nan, %v6444
        %v6446 = vand.u32 2147483647, %v4577
        %vm6447 = vcmp.le.f32.partialorder %v6446, 0.7853982
        %vm6448 = vcmp.lt.s32.totalorder %v4577, 0
        %v6449 = vand.u32 %v4577, 2139095040
        %v6450 = vshrl.u32 %v6449, 23
        %v6451 = vsub.s32 %v6450, 127
        %v6452 = vand.u32 2147483647, %v4577
        %v6453 = vand.u32 %v6452, 8388607
        %v6454 = vor.u32 %v6453, 8388608
        %v6455 = vsub.s32 0, %v6454
        %v6456 = vadd.s32 %v6451, 1
        %vm6457 = vcmp.gt.s32.totalorder %v6456, 0
        %v6458 = vsel %vm6457, %v6456, 0
        %v6459 = vshrl.u32 %v6458, 5
        %v6460 = vand.u32 %v6458, 31
        %v6461 = vsub.s32 32, %v6460
        %v6462 = vshrl.u32 683565275, %v6461
        %v6463 = vshll.u32 683565275, %v6460
        %v6464 = vshrl.u32 2475754826, %v6461
        %v6465 = vor.u32 %v6463, %v6464
        %v6466 = vshll.u32 2475754826, %v6460
        %v6467 = vshrl.u32 2131351028, %v6461
        %v6468 = vor.u32 %v6466, %v6467
        %v6469 = vshll.u32 2131351028, %v6460
        %v6470 = vshrl.u32 2102212464, %v6461
        %v6471 = vor.u32 %v6469, %v6470
        %v6472 = vshll.u32 2102212464, %v6460
        %v6473 = vshrl.u32 920167782, %v6461
        %v6474 = vor.u32 %v6472, %v6473
        %v6475 = vshll.u32 920167782, %v6460
        %v6476 = vshrl.u32 1326507024, %v6461
        %v6477 = vor.u32 %v6475, %v6476
        %vm6478 = vcmp.lt.s32.totalorder %v6459, 1
        %vm6479 = vcmp.lt.s32.totalorder %v6459, 2
        %vm6480 = vcmp.lt.s32.totalorder %v6459, 3
        %vm6481 = vcmp.lt.s32.totalorder %v6459, 4
        %v6482 = vsel %vm6478, %v6462, %v6465
        %v6483 = vsel %vm6481, %v6471, 2102212464
        %v6484 = vsel %vm6480, %v6468, %v6483
        %v6485 = vsel %vm6479, %v6482, %v6484
        %v6486 = vsel %vm6478, %v6465, %v6468
        %v6487 = vsel %vm6481, %v6474, 920167782
        %v6488 = vsel %vm6480, %v6471, %v6487
        %v6489 = vsel %vm6479, %v6486, %v6488
        %v6490 = vsel %vm6478, %v6468, %v6471
        %v6491 = vsel %vm6481, %v6477, 1326507024
        %v6492 = vsel %vm6480, %v6474, %v6491
        %v6493 = vsel %vm6479, %v6490, %v6492
        %v6494 = vshll.u32 %v6454, 8
        %v6495 = vmul.u32.u64.compose %v6494, %v6493
        %v6496 = vextract.low.u32 %v6495
        %v6497 = vextract.high.u32 %v6495
        %v6498 = vmul.u32.u64.compose %v6494, %v6489
        %v6499 = vextract.low.u32 %v6498
        %v6500 = vextract.high.u32 %v6498
        %v6501 = vmul.u32 %v6494, %v6485
        %v6502 = vadd.s32 %v6497, %v6499
        %vm6503 = vc.u32 %v6497, %v6499
        %v6504 = vadd.s32 %v6500, 1
        %v6505 = vsel %vm6503, %v6504, %v6500
        %v6506 = vadd.s32 %v6501, %v6505
        %v6507 = vadd.s32 %v6506, 536870912
        %v6508 = vshrl.u32 %v6507, 30
        %v6509 = vshll.u32 %v6508, 30
        %v6510 = vsub.s32 %v6506, %v6509
        %vm6511 = vcmp.lt.s32.totalorder %v6510, 0
        %v6512 = vsub.s32 0, %v6510
        %v6513 = vsel %vm6511, %v6512, %v6510
        %v6514 = vclz %v6513
        %v6515 = vsub.s32 %v6514, 2
        %vm6516 = vcmp.gt.s32.totalorder 0, %v6515
        %v6517 = vsel %vm6516, 0, %v6515
        %v6518 = vsub.s32 32, %v6517
        %v6519 = vshll.u32 %v6510, %v6517
        %v6520 = vshrl.u32 %v6502, %v6518
        %v6521 = vor.u32 %v6519, %v6520
        %v6522 = vsub.s32 4294967266, %v6517
        %v6523 = vadd.s32 %v6522, 127
        %v6524 = vshll.u32 %v6523, 23
        %v6525 = vor.u32 4788187, %v6524
        %v6526 = vand.u32 2147483647, %v6525
        %v6528 = vcvt.s32.f32 %v6521
        %v6529 = vmul.f32 %v6528, %v6526
        %v6530 = vxor.u32 %v6529, 2147483648
        %v6531 = vsel %vm6448, %v6530, %v6529
        %v6532 = vsub.s32 4, %v6508
        %v6533 = vsel %vm6448, %v6532, %v6508
        %v6534 = vsel %vm6447, %v4577, %v6531
        %v6535 = vsel %vm6447, 0, %v6533
        %v6536 = vcosq.f32.pop %v6534
        %v6537 = vsinq.f32.pop %v6534
        %vm6538 = vweird.f32 %v4577
        %v6539 = vand.u32 %v6535, 3
        %vm6540 = vcmp.lt.s32.totalorder %v6539, 2
        %vm6541 = vcmp.eq.s32.totalorder %v6539, 0
        %v6542 = vxor.u32 %v6537, 2147483648
        %v6543 = vsel %vm6541, %v6536, %v6542
        %vm6544 = vcmp.eq.s32.totalorder %v6539, 2
        %v6545 = vxor.u32 %v6536, 2147483648
        %v6546 = vsel %vm6544, %v6545, %v6537
        %v6547 = vsel %vm6540, %v6543, %v6546
        %v6548 = vsel %vm6538, nan, %v6547
        %v6549 = vand.u32 2147483647, %v4578
        %vm6550 = vcmp.le.f32.partialorder %v6549, 0.7853982
        %vm6551 = vcmp.lt.s32.totalorder %v4578, 0
        %v6552 = vand.u32 %v4578, 2139095040
        %v6553 = vshrl.u32 %v6552, 23
        %v6554 = vsub.s32 %v6553, 127
        %v6555 = vand.u32 2147483647, %v4578
        %v6556 = vand.u32 %v6555, 8388607
        %v6557 = vor.u32 %v6556, 8388608
        %v6558 = vsub.s32 0, %v6557
        %v6559 = vadd.s32 %v6554, 1
        %vm6560 = vcmp.gt.s32.totalorder %v6559, 0
        %v6561 = vsel %vm6560, %v6559, 0
        %v6562 = vshrl.u32 %v6561, 5
        %v6563 = vand.u32 %v6561, 31
        %v6564 = vsub.s32 32, %v6563
        %v6565 = vshrl.u32 683565275, %v6564
        %v6566 = vshll.u32 683565275, %v6563
        %v6567 = vshrl.u32 2475754826, %v6564
        %v6568 = vor.u32 %v6566, %v6567
        %v6569 = vshll.u32 2475754826, %v6563
        %v6570 = vshrl.u32 2131351028, %v6564
        %v6571 = vor.u32 %v6569, %v6570
        %v6572 = vshll.u32 2131351028, %v6563
        %v6573 = vshrl.u32 2102212464, %v6564
        %v6574 = vor.u32 %v6572, %v6573
        %v6575 = vshll.u32 2102212464, %v6563
        %v6576 = vshrl.u32 920167782, %v6564
        %v6577 = vor.u32 %v6575, %v6576
        %v6578 = vshll.u32 920167782, %v6563
        %v6579 = vshrl.u32 1326507024, %v6564
        %v6580 = vor.u32 %v6578, %v6579
        %vm6581 = vcmp.lt.s32.totalorder %v6562, 1
        %vm6582 = vcmp.lt.s32.totalorder %v6562, 2
        %vm6583 = vcmp.lt.s32.totalorder %v6562, 3
        %vm6584 = vcmp.lt.s32.totalorder %v6562, 4
        %v6585 = vsel %vm6581, %v6565, %v6568
        %v6586 = vsel %vm6584, %v6574, 2102212464
        %v6587 = vsel %vm6583, %v6571, %v6586
        %v6588 = vsel %vm6582, %v6585, %v6587
        %v6589 = vsel %vm6581, %v6568, %v6571
        %v6590 = vsel %vm6584, %v6577, 920167782
        %v6591 = vsel %vm6583, %v6574, %v6590
        %v6592 = vsel %vm6582, %v6589, %v6591
        %v6593 = vsel %vm6581, %v6571, %v6574
        %v6594 = vsel %vm6584, %v6580, 1326507024
        %v6595 = vsel %vm6583, %v6577, %v6594
        %v6596 = vsel %vm6582, %v6593, %v6595
        %v6597 = vshll.u32 %v6557, 8
        %v6598 = vmul.u32.u64.compose %v6597, %v6596
        %v6599 = vextract.low.u32 %v6598
        %v6600 = vextract.high.u32 %v6598
        %v6601 = vmul.u32.u64.compose %v6597, %v6592
        %v6602 = vextract.low.u32 %v6601
        %v6603 = vextract.high.u32 %v6601
        %v6604 = vmul.u32 %v6597, %v6588
        %v6605 = vadd.s32 %v6600, %v6602
        %vm6606 = vc.u32 %v6600, %v6602
        %v6607 = vadd.s32 %v6603, 1
        %v6608 = vsel %vm6606, %v6607, %v6603
        %v6609 = vadd.s32 %v6604, %v6608
        %v6610 = vadd.s32 %v6609, 536870912
        %v6611 = vshrl.u32 %v6610, 30
        %v6612 = vshll.u32 %v6611, 30
        %v6613 = vsub.s32 %v6609, %v6612
        %vm6614 = vcmp.lt.s32.totalorder %v6613, 0
        %v6615 = vsub.s32 0, %v6613
        %v6616 = vsel %vm6614, %v6615, %v6613
        %v6617 = vclz %v6616
        %v6618 = vsub.s32 %v6617, 2
        %vm6619 = vcmp.gt.s32.totalorder 0, %v6618
        %v6620 = vsel %vm6619, 0, %v6618
        %v6621 = vsub.s32 32, %v6620
        %v6622 = vshll.u32 %v6613, %v6620
        %v6623 = vshrl.u32 %v6605, %v6621
        %v6624 = vor.u32 %v6622, %v6623
        %v6625 = vsub.s32 4294967266, %v6620
        %v6626 = vadd.s32 %v6625, 127
        %v6627 = vshll.u32 %v6626, 23
        %v6628 = vor.u32 4788187, %v6627
        %v6629 = vand.u32 2147483647, %v6628
        %v6631 = vcvt.s32.f32 %v6624
        %v6632 = vmul.f32 %v6631, %v6629
        %v6633 = vxor.u32 %v6632, 2147483648
        %v6634 = vsel %vm6551, %v6633, %v6632
        %v6635 = vsub.s32 4, %v6611
        %v6636 = vsel %vm6551, %v6635, %v6611
        %v6637 = vsel %vm6550, %v4578, %v6634
        %v6638 = vsel %vm6550, 0, %v6636
        %v6639 = vcosq.f32.pop %v6637
        %v6640 = vsinq.f32.pop %v6637
        %vm6641 = vweird.f32 %v4578
        %v6642 = vand.u32 %v6638, 3
        %vm6643 = vcmp.lt.s32.totalorder %v6642, 2
        %vm6644 = vcmp.eq.s32.totalorder %v6642, 0
        %v6645 = vxor.u32 %v6640, 2147483648
        %v6646 = vsel %vm6644, %v6639, %v6645
        %vm6647 = vcmp.eq.s32.totalorder %v6642, 2
        %v6648 = vxor.u32 %v6639, 2147483648
        %v6649 = vsel %vm6647, %v6648, %v6640
        %v6650 = vsel %vm6643, %v6646, %v6649
        %v6651 = vsel %vm6641, nan, %v6650
        %v6652 = vand.u32 2147483647, %v4579
        %vm6653 = vcmp.le.f32.partialorder %v6652, 0.7853982
        %vm6654 = vcmp.lt.s32.totalorder %v4579, 0
        %v6655 = vand.u32 %v4579, 2139095040
        %v6656 = vshrl.u32 %v6655, 23
        %v6657 = vsub.s32 %v6656, 127
        %v6658 = vand.u32 2147483647, %v4579
        %v6659 = vand.u32 %v6658, 8388607
        %v6660 = vor.u32 %v6659, 8388608
        %v6661 = vsub.s32 0, %v6660
        %v6662 = vadd.s32 %v6657, 1
        %vm6663 = vcmp.gt.s32.totalorder %v6662, 0
        %v6664 = vsel %vm6663, %v6662, 0
        %v6665 = vshrl.u32 %v6664, 5
        %v6666 = vand.u32 %v6664, 31
        %v6667 = vsub.s32 32, %v6666
        %v6668 = vshrl.u32 683565275, %v6667
        %v6669 = vshll.u32 683565275, %v6666
        %v6670 = vshrl.u32 2475754826, %v6667
        %v6671 = vor.u32 %v6669, %v6670
        %v6672 = vshll.u32 2475754826, %v6666
        %v6673 = vshrl.u32 2131351028, %v6667
        %v6674 = vor.u32 %v6672, %v6673
        %v6675 = vshll.u32 2131351028, %v6666
        %v6676 = vshrl.u32 2102212464, %v6667
        %v6677 = vor.u32 %v6675, %v6676
        %v6678 = vshll.u32 2102212464, %v6666
        %v6679 = vshrl.u32 920167782, %v6667
        %v6680 = vor.u32 %v6678, %v6679
        %v6681 = vshll.u32 920167782, %v6666
        %v6682 = vshrl.u32 1326507024, %v6667
        %v6683 = vor.u32 %v6681, %v6682
        %vm6684 = vcmp.lt.s32.totalorder %v6665, 1
        %vm6685 = vcmp.lt.s32.totalorder %v6665, 2
        %vm6686 = vcmp.lt.s32.totalorder %v6665, 3
        %vm6687 = vcmp.lt.s32.totalorder %v6665, 4
        %v6688 = vsel %vm6684, %v6668, %v6671
        %v6689 = vsel %vm6687, %v6677, 2102212464
        %v6690 = vsel %vm6686, %v6674, %v6689
        %v6691 = vsel %vm6685, %v6688, %v6690
        %v6692 = vsel %vm6684, %v6671, %v6674
        %v6693 = vsel %vm6687, %v6680, 920167782
        %v6694 = vsel %vm6686, %v6677, %v6693
        %v6695 = vsel %vm6685, %v6692, %v6694
        %v6696 = vsel %vm6684, %v6674, %v6677
        %v6697 = vsel %vm6687, %v6683, 1326507024
        %v6698 = vsel %vm6686, %v6680, %v6697
        %v6699 = vsel %vm6685, %v6696, %v6698
        %v6700 = vshll.u32 %v6660, 8
        %v6701 = vmul.u32.u64.compose %v6700, %v6699
        %v6702 = vextract.low.u32 %v6701
        %v6703 = vextract.high.u32 %v6701
        %v6704 = vmul.u32.u64.compose %v6700, %v6695
        %v6705 = vextract.low.u32 %v6704
        %v6706 = vextract.high.u32 %v6704
        %v6707 = vmul.u32 %v6700, %v6691
        %v6708 = vadd.s32 %v6703, %v6705
        %vm6709 = vc.u32 %v6703, %v6705
        %v6710 = vadd.s32 %v6706, 1
        %v6711 = vsel %vm6709, %v6710, %v6706
        %v6712 = vadd.s32 %v6707, %v6711
        %v6713 = vadd.s32 %v6712, 536870912
        %v6714 = vshrl.u32 %v6713, 30
        %v6715 = vshll.u32 %v6714, 30
        %v6716 = vsub.s32 %v6712, %v6715
        %vm6717 = vcmp.lt.s32.totalorder %v6716, 0
        %v6718 = vsub.s32 0, %v6716
        %v6719 = vsel %vm6717, %v6718, %v6716
        %v6720 = vclz %v6719
        %v6721 = vsub.s32 %v6720, 2
        %vm6722 = vcmp.gt.s32.totalorder 0, %v6721
        %v6723 = vsel %vm6722, 0, %v6721
        %v6724 = vsub.s32 32, %v6723
        %v6725 = vshll.u32 %v6716, %v6723
        %v6726 = vshrl.u32 %v6708, %v6724
        %v6727 = vor.u32 %v6725, %v6726
        %v6728 = vsub.s32 4294967266, %v6723
        %v6729 = vadd.s32 %v6728, 127
        %v6730 = vshll.u32 %v6729, 23
        %v6731 = vor.u32 4788187, %v6730
        %v6732 = vand.u32 2147483647, %v6731
        %v6734 = vcvt.s32.f32 %v6727
        %v6735 = vmul.f32 %v6734, %v6732
        %v6736 = vxor.u32 %v6735, 2147483648
        %v6737 = vsel %vm6654, %v6736, %v6735
        %v6738 = vsub.s32 4, %v6714
        %v6739 = vsel %vm6654, %v6738, %v6714
        %v6740 = vsel %vm6653, %v4579, %v6737
        %v6741 = vsel %vm6653, 0, %v6739
        %v6742 = vcosq.f32.pop %v6740
        %v6743 = vsinq.f32.pop %v6740
        %vm6744 = vweird.f32 %v4579
        %v6745 = vand.u32 %v6741, 3
        %vm6746 = vcmp.lt.s32.totalorder %v6745, 2
        %vm6747 = vcmp.eq.s32.totalorder %v6745, 0
        %v6748 = vxor.u32 %v6743, 2147483648
        %v6749 = vsel %vm6747, %v6742, %v6748
        %vm6750 = vcmp.eq.s32.totalorder %v6745, 2
        %v6751 = vxor.u32 %v6742, 2147483648
        %v6752 = vsel %vm6750, %v6751, %v6743
        %v6753 = vsel %vm6746, %v6749, %v6752
        %v6754 = vsel %vm6744, nan, %v6753
        %v6755 = vand.u32 2147483647, %v4580
        %vm6756 = vcmp.le.f32.partialorder %v6755, 0.7853982
        %vm6757 = vcmp.lt.s32.totalorder %v4580, 0
        %v6758 = vand.u32 %v4580, 2139095040
        %v6759 = vshrl.u32 %v6758, 23
        %v6760 = vsub.s32 %v6759, 127
        %v6761 = vand.u32 2147483647, %v4580
        %v6762 = vand.u32 %v6761, 8388607
        %v6763 = vor.u32 %v6762, 8388608
        %v6764 = vsub.s32 0, %v6763
        %v6765 = vadd.s32 %v6760, 1
        %vm6766 = vcmp.gt.s32.totalorder %v6765, 0
        %v6767 = vsel %vm6766, %v6765, 0
        %v6768 = vshrl.u32 %v6767, 5
        %v6769 = vand.u32 %v6767, 31
        %v6770 = vsub.s32 32, %v6769
        %v6771 = vshrl.u32 683565275, %v6770
        %v6772 = vshll.u32 683565275, %v6769
        %v6773 = vshrl.u32 2475754826, %v6770
        %v6774 = vor.u32 %v6772, %v6773
        %v6775 = vshll.u32 2475754826, %v6769
        %v6776 = vshrl.u32 2131351028, %v6770
        %v6777 = vor.u32 %v6775, %v6776
        %v6778 = vshll.u32 2131351028, %v6769
        %v6779 = vshrl.u32 2102212464, %v6770
        %v6780 = vor.u32 %v6778, %v6779
        %v6781 = vshll.u32 2102212464, %v6769
        %v6782 = vshrl.u32 920167782, %v6770
        %v6783 = vor.u32 %v6781, %v6782
        %v6784 = vshll.u32 920167782, %v6769
        %v6785 = vshrl.u32 1326507024, %v6770
        %v6786 = vor.u32 %v6784, %v6785
        %vm6787 = vcmp.lt.s32.totalorder %v6768, 1
        %vm6788 = vcmp.lt.s32.totalorder %v6768, 2
        %vm6789 = vcmp.lt.s32.totalorder %v6768, 3
        %vm6790 = vcmp.lt.s32.totalorder %v6768, 4
        %v6791 = vsel %vm6787, %v6771, %v6774
        %v6792 = vsel %vm6790, %v6780, 2102212464
        %v6793 = vsel %vm6789, %v6777, %v6792
        %v6794 = vsel %vm6788, %v6791, %v6793
        %v6795 = vsel %vm6787, %v6774, %v6777
        %v6796 = vsel %vm6790, %v6783, 920167782
        %v6797 = vsel %vm6789, %v6780, %v6796
        %v6798 = vsel %vm6788, %v6795, %v6797
        %v6799 = vsel %vm6787, %v6777, %v6780
        %v6800 = vsel %vm6790, %v6786, 1326507024
        %v6801 = vsel %vm6789, %v6783, %v6800
        %v6802 = vsel %vm6788, %v6799, %v6801
        %v6803 = vshll.u32 %v6763, 8
        %v6804 = vmul.u32.u64.compose %v6803, %v6802
        %v6805 = vextract.low.u32 %v6804
        %v6806 = vextract.high.u32 %v6804
        %v6807 = vmul.u32.u64.compose %v6803, %v6798
        %v6808 = vextract.low.u32 %v6807
        %v6809 = vextract.high.u32 %v6807
        %v6810 = vmul.u32 %v6803, %v6794
        %v6811 = vadd.s32 %v6806, %v6808
        %vm6812 = vc.u32 %v6806, %v6808
        %v6813 = vadd.s32 %v6809, 1
        %v6814 = vsel %vm6812, %v6813, %v6809
        %v6815 = vadd.s32 %v6810, %v6814
        %v6816 = vadd.s32 %v6815, 536870912
        %v6817 = vshrl.u32 %v6816, 30
        %v6818 = vshll.u32 %v6817, 30
        %v6819 = vsub.s32 %v6815, %v6818
        %vm6820 = vcmp.lt.s32.totalorder %v6819, 0
        %v6821 = vsub.s32 0, %v6819
        %v6822 = vsel %vm6820, %v6821, %v6819
        %v6823 = vclz %v6822
        %v6824 = vsub.s32 %v6823, 2
        %vm6825 = vcmp.gt.s32.totalorder 0, %v6824
        %v6826 = vsel %vm6825, 0, %v6824
        %v6827 = vsub.s32 32, %v6826
        %v6828 = vshll.u32 %v6819, %v6826
        %v6829 = vshrl.u32 %v6811, %v6827
        %v6830 = vor.u32 %v6828, %v6829
        %v6831 = vsub.s32 4294967266, %v6826
        %v6832 = vadd.s32 %v6831, 127
        %v6833 = vshll.u32 %v6832, 23
        %v6834 = vor.u32 4788187, %v6833
        %v6835 = vand.u32 2147483647, %v6834
        %v6837 = vcvt.s32.f32 %v6830
        %v6838 = vmul.f32 %v6837, %v6835
        %v6839 = vxor.u32 %v6838, 2147483648
        %v6840 = vsel %vm6757, %v6839, %v6838
        %v6841 = vsub.s32 4, %v6817
        %v6842 = vsel %vm6757, %v6841, %v6817
        %v6843 = vsel %vm6756, %v4580, %v6840
        %v6844 = vsel %vm6756, 0, %v6842
        %v6845 = vcosq.f32.pop %v6843
        %v6846 = vsinq.f32.pop %v6843
        %vm6847 = vweird.f32 %v4580
        %v6848 = vand.u32 %v6844, 3
        %vm6849 = vcmp.lt.s32.totalorder %v6848, 2
        %vm6850 = vcmp.eq.s32.totalorder %v6848, 0
        %v6851 = vxor.u32 %v6846, 2147483648
        %v6852 = vsel %vm6850, %v6845, %v6851
        %vm6853 = vcmp.eq.s32.totalorder %v6848, 2
        %v6854 = vxor.u32 %v6845, 2147483648
        %v6855 = vsel %vm6853, %v6854, %v6846
        %v6856 = vsel %vm6849, %v6852, %v6855
        %v6857 = vsel %vm6847, nan, %v6856
        %v6858 = vand.u32 2147483647, %v4581
        %vm6859 = vcmp.le.f32.partialorder %v6858, 0.7853982
        %vm6860 = vcmp.lt.s32.totalorder %v4581, 0
        %v6861 = vand.u32 %v4581, 2139095040
        %v6862 = vshrl.u32 %v6861, 23
        %v6863 = vsub.s32 %v6862, 127
        %v6864 = vand.u32 2147483647, %v4581
        %v6865 = vand.u32 %v6864, 8388607
        %v6866 = vor.u32 %v6865, 8388608
        %v6867 = vsub.s32 0, %v6866
        %v6868 = vadd.s32 %v6863, 1
        %vm6869 = vcmp.gt.s32.totalorder %v6868, 0
        %v6870 = vsel %vm6869, %v6868, 0
        %v6871 = vshrl.u32 %v6870, 5
        %v6872 = vand.u32 %v6870, 31
        %v6873 = vsub.s32 32, %v6872
        %v6874 = vshrl.u32 683565275, %v6873
        %v6875 = vshll.u32 683565275, %v6872
        %v6876 = vshrl.u32 2475754826, %v6873
        %v6877 = vor.u32 %v6875, %v6876
        %v6878 = vshll.u32 2475754826, %v6872
        %v6879 = vshrl.u32 2131351028, %v6873
        %v6880 = vor.u32 %v6878, %v6879
        %v6881 = vshll.u32 2131351028, %v6872
        %v6882 = vshrl.u32 2102212464, %v6873
        %v6883 = vor.u32 %v6881, %v6882
        %v6884 = vshll.u32 2102212464, %v6872
        %v6885 = vshrl.u32 920167782, %v6873
        %v6886 = vor.u32 %v6884, %v6885
        %v6887 = vshll.u32 920167782, %v6872
        %v6888 = vshrl.u32 1326507024, %v6873
        %v6889 = vor.u32 %v6887, %v6888
        %vm6890 = vcmp.lt.s32.totalorder %v6871, 1
        %vm6891 = vcmp.lt.s32.totalorder %v6871, 2
        %vm6892 = vcmp.lt.s32.totalorder %v6871, 3
        %vm6893 = vcmp.lt.s32.totalorder %v6871, 4
        %v6894 = vsel %vm6890, %v6874, %v6877
        %v6895 = vsel %vm6893, %v6883, 2102212464
        %v6896 = vsel %vm6892, %v6880, %v6895
        %v6897 = vsel %vm6891, %v6894, %v6896
        %v6898 = vsel %vm6890, %v6877, %v6880
        %v6899 = vsel %vm6893, %v6886, 920167782
        %v6900 = vsel %vm6892, %v6883, %v6899
        %v6901 = vsel %vm6891, %v6898, %v6900
        %v6902 = vsel %vm6890, %v6880, %v6883
        %v6903 = vsel %vm6893, %v6889, 1326507024
        %v6904 = vsel %vm6892, %v6886, %v6903
        %v6905 = vsel %vm6891, %v6902, %v6904
        %v6906 = vshll.u32 %v6866, 8
        %v6907 = vmul.u32.u64.compose %v6906, %v6905
        %v6908 = vextract.low.u32 %v6907
        %v6909 = vextract.high.u32 %v6907
        %v6910 = vmul.u32.u64.compose %v6906, %v6901
        %v6911 = vextract.low.u32 %v6910
        %v6912 = vextract.high.u32 %v6910
        %v6913 = vmul.u32 %v6906, %v6897
        %v6914 = vadd.s32 %v6909, %v6911
        %vm6915 = vc.u32 %v6909, %v6911
        %v6916 = vadd.s32 %v6912, 1
        %v6917 = vsel %vm6915, %v6916, %v6912
        %v6918 = vadd.s32 %v6913, %v6917
        %v6919 = vadd.s32 %v6918, 536870912
        %v6920 = vshrl.u32 %v6919, 30
        %v6921 = vshll.u32 %v6920, 30
        %v6922 = vsub.s32 %v6918, %v6921
        %vm6923 = vcmp.lt.s32.totalorder %v6922, 0
        %v6924 = vsub.s32 0, %v6922
        %v6925 = vsel %vm6923, %v6924, %v6922
        %v6926 = vclz %v6925
        %v6927 = vsub.s32 %v6926, 2
        %vm6928 = vcmp.gt.s32.totalorder 0, %v6927
        %v6929 = vsel %vm6928, 0, %v6927
        %v6930 = vsub.s32 32, %v6929
        %v6931 = vshll.u32 %v6922, %v6929
        %v6932 = vshrl.u32 %v6914, %v6930
        %v6933 = vor.u32 %v6931, %v6932
        %v6934 = vsub.s32 4294967266, %v6929
        %v6935 = vadd.s32 %v6934, 127
        %v6936 = vshll.u32 %v6935, 23
        %v6937 = vor.u32 4788187, %v6936
        %v6938 = vand.u32 2147483647, %v6937
        %v6940 = vcvt.s32.f32 %v6933
        %v6941 = vmul.f32 %v6940, %v6938
        %v6942 = vxor.u32 %v6941, 2147483648
        %v6943 = vsel %vm6860, %v6942, %v6941
        %v6944 = vsub.s32 4, %v6920
        %v6945 = vsel %vm6860, %v6944, %v6920
        %v6946 = vsel %vm6859, %v4581, %v6943
        %v6947 = vsel %vm6859, 0, %v6945
        %v6948 = vcosq.f32.pop %v6946
        %v6949 = vsinq.f32.pop %v6946
        %vm6950 = vweird.f32 %v4581
        %v6951 = vand.u32 %v6947, 3
        %vm6952 = vcmp.lt.s32.totalorder %v6951, 2
        %vm6953 = vcmp.eq.s32.totalorder %v6951, 0
        %v6954 = vxor.u32 %v6949, 2147483648
        %v6955 = vsel %vm6953, %v6948, %v6954
        %vm6956 = vcmp.eq.s32.totalorder %v6951, 2
        %v6957 = vxor.u32 %v6948, 2147483648
        %v6958 = vsel %vm6956, %v6957, %v6949
        %v6959 = vsel %vm6952, %v6955, %v6958
        %v6960 = vsel %vm6950, nan, %v6959
        %v6961 = vand.u32 2147483647, %v4582
        %vm6962 = vcmp.le.f32.partialorder %v6961, 0.7853982
        %vm6963 = vcmp.lt.s32.totalorder %v4582, 0
        %v6964 = vand.u32 %v4582, 2139095040
        %v6965 = vshrl.u32 %v6964, 23
        %v6966 = vsub.s32 %v6965, 127
        %v6967 = vand.u32 2147483647, %v4582
        %v6968 = vand.u32 %v6967, 8388607
        %v6969 = vor.u32 %v6968, 8388608
        %v6970 = vsub.s32 0, %v6969
        %v6971 = vadd.s32 %v6966, 1
        %vm6972 = vcmp.gt.s32.totalorder %v6971, 0
        %v6973 = vsel %vm6972, %v6971, 0
        %v6974 = vshrl.u32 %v6973, 5
        %v6975 = vand.u32 %v6973, 31
        %v6976 = vsub.s32 32, %v6975
        %v6977 = vshrl.u32 683565275, %v6976
        %v6978 = vshll.u32 683565275, %v6975
        %v6979 = vshrl.u32 2475754826, %v6976
        %v6980 = vor.u32 %v6978, %v6979
        %v6981 = vshll.u32 2475754826, %v6975
        %v6982 = vshrl.u32 2131351028, %v6976
        %v6983 = vor.u32 %v6981, %v6982
        %v6984 = vshll.u32 2131351028, %v6975
        %v6985 = vshrl.u32 2102212464, %v6976
        %v6986 = vor.u32 %v6984, %v6985
        %v6987 = vshll.u32 2102212464, %v6975
        %v6988 = vshrl.u32 920167782, %v6976
        %v6989 = vor.u32 %v6987, %v6988
        %v6990 = vshll.u32 920167782, %v6975
        %v6991 = vshrl.u32 1326507024, %v6976
        %v6992 = vor.u32 %v6990, %v6991
        %vm6993 = vcmp.lt.s32.totalorder %v6974, 1
        %vm6994 = vcmp.lt.s32.totalorder %v6974, 2
        %vm6995 = vcmp.lt.s32.totalorder %v6974, 3
        %vm6996 = vcmp.lt.s32.totalorder %v6974, 4
        %v6997 = vsel %vm6993, %v6977, %v6980
        %v6998 = vsel %vm6996, %v6986, 2102212464
        %v6999 = vsel %vm6995, %v6983, %v6998
        %v7000 = vsel %vm6994, %v6997, %v6999
        %v7001 = vsel %vm6993, %v6980, %v6983
        %v7002 = vsel %vm6996, %v6989, 920167782
        %v7003 = vsel %vm6995, %v6986, %v7002
        %v7004 = vsel %vm6994, %v7001, %v7003
        %v7005 = vsel %vm6993, %v6983, %v6986
        %v7006 = vsel %vm6996, %v6992, 1326507024
        %v7007 = vsel %vm6995, %v6989, %v7006
        %v7008 = vsel %vm6994, %v7005, %v7007
        %v7009 = vshll.u32 %v6969, 8
        %v7010 = vmul.u32.u64.compose %v7009, %v7008
        %v7011 = vextract.low.u32 %v7010
        %v7012 = vextract.high.u32 %v7010
        %v7013 = vmul.u32.u64.compose %v7009, %v7004
        %v7014 = vextract.low.u32 %v7013
        %v7015 = vextract.high.u32 %v7013
        %v7016 = vmul.u32 %v7009, %v7000
        %v7017 = vadd.s32 %v7012, %v7014
        %vm7018 = vc.u32 %v7012, %v7014
        %v7019 = vadd.s32 %v7015, 1
        %v7020 = vsel %vm7018, %v7019, %v7015
        %v7021 = vadd.s32 %v7016, %v7020
        %v7022 = vadd.s32 %v7021, 536870912
        %v7023 = vshrl.u32 %v7022, 30
        %v7024 = vshll.u32 %v7023, 30
        %v7025 = vsub.s32 %v7021, %v7024
        %vm7026 = vcmp.lt.s32.totalorder %v7025, 0
        %v7027 = vsub.s32 0, %v7025
        %v7028 = vsel %vm7026, %v7027, %v7025
        %v7029 = vclz %v7028
        %v7030 = vsub.s32 %v7029, 2
        %vm7031 = vcmp.gt.s32.totalorder 0, %v7030
        %v7032 = vsel %vm7031, 0, %v7030
        %v7033 = vsub.s32 32, %v7032
        %v7034 = vshll.u32 %v7025, %v7032
        %v7035 = vshrl.u32 %v7017, %v7033
        %v7036 = vor.u32 %v7034, %v7035
        %v7037 = vsub.s32 4294967266, %v7032
        %v7038 = vadd.s32 %v7037, 127
        %v7039 = vshll.u32 %v7038, 23
        %v7040 = vor.u32 4788187, %v7039
        %v7041 = vand.u32 2147483647, %v7040
        %v7043 = vcvt.s32.f32 %v7036
        %v7044 = vmul.f32 %v7043, %v7041
        %v7045 = vxor.u32 %v7044, 2147483648
        %v7046 = vsel %vm6963, %v7045, %v7044
        %v7047 = vsub.s32 4, %v7023
        %v7048 = vsel %vm6963, %v7047, %v7023
        %v7049 = vsel %vm6962, %v4582, %v7046
        %v7050 = vsel %vm6962, 0, %v7048
        %v7051 = vcosq.f32.pop %v7049
        %v7052 = vsinq.f32.pop %v7049
        %vm7053 = vweird.f32 %v4582
        %v7054 = vand.u32 %v7050, 3
        %vm7055 = vcmp.lt.s32.totalorder %v7054, 2
        %vm7056 = vcmp.eq.s32.totalorder %v7054, 0
        %v7057 = vxor.u32 %v7052, 2147483648
        %v7058 = vsel %vm7056, %v7051, %v7057
        %vm7059 = vcmp.eq.s32.totalorder %v7054, 2
        %v7060 = vxor.u32 %v7051, 2147483648
        %v7061 = vsel %vm7059, %v7060, %v7052
        %v7062 = vsel %vm7055, %v7058, %v7061
        %v7063 = vsel %vm7053, nan, %v7062
        %v7064 = vand.u32 2147483647, %v4583
        %vm7065 = vcmp.le.f32.partialorder %v7064, 0.7853982
        %vm7066 = vcmp.lt.s32.totalorder %v4583, 0
        %v7067 = vand.u32 %v4583, 2139095040
        %v7068 = vshrl.u32 %v7067, 23
        %v7069 = vsub.s32 %v7068, 127
        %v7070 = vand.u32 2147483647, %v4583
        %v7071 = vand.u32 %v7070, 8388607
        %v7072 = vor.u32 %v7071, 8388608
        %v7073 = vsub.s32 0, %v7072
        %v7074 = vadd.s32 %v7069, 1
        %vm7075 = vcmp.gt.s32.totalorder %v7074, 0
        %v7076 = vsel %vm7075, %v7074, 0
        %v7077 = vshrl.u32 %v7076, 5
        %v7078 = vand.u32 %v7076, 31
        %v7079 = vsub.s32 32, %v7078
        %v7080 = vshrl.u32 683565275, %v7079
        %v7081 = vshll.u32 683565275, %v7078
        %v7082 = vshrl.u32 2475754826, %v7079
        %v7083 = vor.u32 %v7081, %v7082
        %v7084 = vshll.u32 2475754826, %v7078
        %v7085 = vshrl.u32 2131351028, %v7079
        %v7086 = vor.u32 %v7084, %v7085
        %v7087 = vshll.u32 2131351028, %v7078
        %v7088 = vshrl.u32 2102212464, %v7079
        %v7089 = vor.u32 %v7087, %v7088
        %v7090 = vshll.u32 2102212464, %v7078
        %v7091 = vshrl.u32 920167782, %v7079
        %v7092 = vor.u32 %v7090, %v7091
        %v7093 = vshll.u32 920167782, %v7078
        %v7094 = vshrl.u32 1326507024, %v7079
        %v7095 = vor.u32 %v7093, %v7094
        %vm7096 = vcmp.lt.s32.totalorder %v7077, 1
        %vm7097 = vcmp.lt.s32.totalorder %v7077, 2
        %vm7098 = vcmp.lt.s32.totalorder %v7077, 3
        %vm7099 = vcmp.lt.s32.totalorder %v7077, 4
        %v7100 = vsel %vm7096, %v7080, %v7083
        %v7101 = vsel %vm7099, %v7089, 2102212464
        %v7102 = vsel %vm7098, %v7086, %v7101
        %v7103 = vsel %vm7097, %v7100, %v7102
        %v7104 = vsel %vm7096, %v7083, %v7086
        %v7105 = vsel %vm7099, %v7092, 920167782
        %v7106 = vsel %vm7098, %v7089, %v7105
        %v7107 = vsel %vm7097, %v7104, %v7106
        %v7108 = vsel %vm7096, %v7086, %v7089
        %v7109 = vsel %vm7099, %v7095, 1326507024
        %v7110 = vsel %vm7098, %v7092, %v7109
        %v7111 = vsel %vm7097, %v7108, %v7110
        %v7112 = vshll.u32 %v7072, 8
        %v7113 = vmul.u32.u64.compose %v7112, %v7111
        %v7114 = vextract.low.u32 %v7113
        %v7115 = vextract.high.u32 %v7113
        %v7116 = vmul.u32.u64.compose %v7112, %v7107
        %v7117 = vextract.low.u32 %v7116
        %v7118 = vextract.high.u32 %v7116
        %v7119 = vmul.u32 %v7112, %v7103
        %v7120 = vadd.s32 %v7115, %v7117
        %vm7121 = vc.u32 %v7115, %v7117
        %v7122 = vadd.s32 %v7118, 1
        %v7123 = vsel %vm7121, %v7122, %v7118
        %v7124 = vadd.s32 %v7119, %v7123
        %v7125 = vadd.s32 %v7124, 536870912
        %v7126 = vshrl.u32 %v7125, 30
        %v7127 = vshll.u32 %v7126, 30
        %v7128 = vsub.s32 %v7124, %v7127
        %vm7129 = vcmp.lt.s32.totalorder %v7128, 0
        %v7130 = vsub.s32 0, %v7128
        %v7131 = vsel %vm7129, %v7130, %v7128
        %v7132 = vclz %v7131
        %v7133 = vsub.s32 %v7132, 2
        %vm7134 = vcmp.gt.s32.totalorder 0, %v7133
        %v7135 = vsel %vm7134, 0, %v7133
        %v7136 = vsub.s32 32, %v7135
        %v7137 = vshll.u32 %v7128, %v7135
        %v7138 = vshrl.u32 %v7120, %v7136
        %v7139 = vor.u32 %v7137, %v7138
        %v7140 = vsub.s32 4294967266, %v7135
        %v7141 = vadd.s32 %v7140, 127
        %v7142 = vshll.u32 %v7141, 23
        %v7143 = vor.u32 4788187, %v7142
        %v7144 = vand.u32 2147483647, %v7143
        %v7146 = vcvt.s32.f32 %v7139
        %v7147 = vmul.f32 %v7146, %v7144
        %v7148 = vxor.u32 %v7147, 2147483648
        %v7149 = vsel %vm7066, %v7148, %v7147
        %v7150 = vsub.s32 4, %v7126
        %v7151 = vsel %vm7066, %v7150, %v7126
        %v7152 = vsel %vm7065, %v4583, %v7149
        %v7153 = vsel %vm7065, 0, %v7151
        %v7154 = vcosq.f32.pop %v7152
        %v7155 = vsinq.f32.pop %v7152
        %vm7156 = vweird.f32 %v4583
        %v7157 = vand.u32 %v7153, 3
        %vm7158 = vcmp.lt.s32.totalorder %v7157, 2
        %vm7159 = vcmp.eq.s32.totalorder %v7157, 0
        %v7160 = vxor.u32 %v7155, 2147483648
        %v7161 = vsel %vm7159, %v7154, %v7160
        %vm7162 = vcmp.eq.s32.totalorder %v7157, 2
        %v7163 = vxor.u32 %v7154, 2147483648
        %v7164 = vsel %vm7162, %v7163, %v7155
        %v7165 = vsel %vm7158, %v7161, %v7164
        %v7166 = vsel %vm7156, nan, %v7165
        %v7167 = vand.u32 2147483647, %v4584
        %vm7168 = vcmp.le.f32.partialorder %v7167, 0.7853982
        %vm7169 = vcmp.lt.s32.totalorder %v4584, 0
        %v7170 = vand.u32 %v4584, 2139095040
        %v7171 = vshrl.u32 %v7170, 23
        %v7172 = vsub.s32 %v7171, 127
        %v7173 = vand.u32 2147483647, %v4584
        %v7174 = vand.u32 %v7173, 8388607
        %v7175 = vor.u32 %v7174, 8388608
        %v7176 = vsub.s32 0, %v7175
        %v7177 = vadd.s32 %v7172, 1
        %vm7178 = vcmp.gt.s32.totalorder %v7177, 0
        %v7179 = vsel %vm7178, %v7177, 0
        %v7180 = vshrl.u32 %v7179, 5
        %v7181 = vand.u32 %v7179, 31
        %v7182 = vsub.s32 32, %v7181
        %v7183 = vshrl.u32 683565275, %v7182
        %v7184 = vshll.u32 683565275, %v7181
        %v7185 = vshrl.u32 2475754826, %v7182
        %v7186 = vor.u32 %v7184, %v7185
        %v7187 = vshll.u32 2475754826, %v7181
        %v7188 = vshrl.u32 2131351028, %v7182
        %v7189 = vor.u32 %v7187, %v7188
        %v7190 = vshll.u32 2131351028, %v7181
        %v7191 = vshrl.u32 2102212464, %v7182
        %v7192 = vor.u32 %v7190, %v7191
        %v7193 = vshll.u32 2102212464, %v7181
        %v7194 = vshrl.u32 920167782, %v7182
        %v7195 = vor.u32 %v7193, %v7194
        %v7196 = vshll.u32 920167782, %v7181
        %v7197 = vshrl.u32 1326507024, %v7182
        %v7198 = vor.u32 %v7196, %v7197
        %vm7199 = vcmp.lt.s32.totalorder %v7180, 1
        %vm7200 = vcmp.lt.s32.totalorder %v7180, 2
        %vm7201 = vcmp.lt.s32.totalorder %v7180, 3
        %vm7202 = vcmp.lt.s32.totalorder %v7180, 4
        %v7203 = vsel %vm7199, %v7183, %v7186
        %v7204 = vsel %vm7202, %v7192, 2102212464
        %v7205 = vsel %vm7201, %v7189, %v7204
        %v7206 = vsel %vm7200, %v7203, %v7205
        %v7207 = vsel %vm7199, %v7186, %v7189
        %v7208 = vsel %vm7202, %v7195, 920167782
        %v7209 = vsel %vm7201, %v7192, %v7208
        %v7210 = vsel %vm7200, %v7207, %v7209
        %v7211 = vsel %vm7199, %v7189, %v7192
        %v7212 = vsel %vm7202, %v7198, 1326507024
        %v7213 = vsel %vm7201, %v7195, %v7212
        %v7214 = vsel %vm7200, %v7211, %v7213
        %v7215 = vshll.u32 %v7175, 8
        %v7216 = vmul.u32.u64.compose %v7215, %v7214
        %v7217 = vextract.low.u32 %v7216
        %v7218 = vextract.high.u32 %v7216
        %v7219 = vmul.u32.u64.compose %v7215, %v7210
        %v7220 = vextract.low.u32 %v7219
        %v7221 = vextract.high.u32 %v7219
        %v7222 = vmul.u32 %v7215, %v7206
        %v7223 = vadd.s32 %v7218, %v7220
        %vm7224 = vc.u32 %v7218, %v7220
        %v7225 = vadd.s32 %v7221, 1
        %v7226 = vsel %vm7224, %v7225, %v7221
        %v7227 = vadd.s32 %v7222, %v7226
        %v7228 = vadd.s32 %v7227, 536870912
        %v7229 = vshrl.u32 %v7228, 30
        %v7230 = vshll.u32 %v7229, 30
        %v7231 = vsub.s32 %v7227, %v7230
        %vm7232 = vcmp.lt.s32.totalorder %v7231, 0
        %v7233 = vsub.s32 0, %v7231
        %v7234 = vsel %vm7232, %v7233, %v7231
        %v7235 = vclz %v7234
        %v7236 = vsub.s32 %v7235, 2
        %vm7237 = vcmp.gt.s32.totalorder 0, %v7236
        %v7238 = vsel %vm7237, 0, %v7236
        %v7239 = vsub.s32 32, %v7238
        %v7240 = vshll.u32 %v7231, %v7238
        %v7241 = vshrl.u32 %v7223, %v7239
        %v7242 = vor.u32 %v7240, %v7241
        %v7243 = vsub.s32 4294967266, %v7238
        %v7244 = vadd.s32 %v7243, 127
        %v7245 = vshll.u32 %v7244, 23
        %v7246 = vor.u32 4788187, %v7245
        %v7247 = vand.u32 2147483647, %v7246
        %v7249 = vcvt.s32.f32 %v7242
        %v7250 = vmul.f32 %v7249, %v7247
        %v7251 = vxor.u32 %v7250, 2147483648
        %v7252 = vsel %vm7169, %v7251, %v7250
        %v7253 = vsub.s32 4, %v7229
        %v7254 = vsel %vm7169, %v7253, %v7229
        %v7255 = vsel %vm7168, %v4584, %v7252
        %v7256 = vsel %vm7168, 0, %v7254
        %v7257 = vcosq.f32.pop %v7255
        %v7258 = vsinq.f32.pop %v7255
        %vm7259 = vweird.f32 %v4584
        %v7260 = vand.u32 %v7256, 3
        %vm7261 = vcmp.lt.s32.totalorder %v7260, 2
        %vm7262 = vcmp.eq.s32.totalorder %v7260, 0
        %v7263 = vxor.u32 %v7258, 2147483648
        %v7264 = vsel %vm7262, %v7257, %v7263
        %vm7265 = vcmp.eq.s32.totalorder %v7260, 2
        %v7266 = vxor.u32 %v7257, 2147483648
        %v7267 = vsel %vm7265, %v7266, %v7258
        %v7268 = vsel %vm7261, %v7264, %v7267
        %v7269 = vsel %vm7259, nan, %v7268
        %v7270 = vand.u32 2147483647, %v4585
        %vm7271 = vcmp.le.f32.partialorder %v7270, 0.7853982
        %vm7272 = vcmp.lt.s32.totalorder %v4585, 0
        %v7273 = vand.u32 %v4585, 2139095040
        %v7274 = vshrl.u32 %v7273, 23
        %v7275 = vsub.s32 %v7274, 127
        %v7276 = vand.u32 2147483647, %v4585
        %v7277 = vand.u32 %v7276, 8388607
        %v7278 = vor.u32 %v7277, 8388608
        %v7279 = vsub.s32 0, %v7278
        %v7280 = vadd.s32 %v7275, 1
        %vm7281 = vcmp.gt.s32.totalorder %v7280, 0
        %v7282 = vsel %vm7281, %v7280, 0
        %v7283 = vshrl.u32 %v7282, 5
        %v7284 = vand.u32 %v7282, 31
        %v7285 = vsub.s32 32, %v7284
        %v7286 = vshrl.u32 683565275, %v7285
        %v7287 = vshll.u32 683565275, %v7284
        %v7288 = vshrl.u32 2475754826, %v7285
        %v7289 = vor.u32 %v7287, %v7288
        %v7290 = vshll.u32 2475754826, %v7284
        %v7291 = vshrl.u32 2131351028, %v7285
        %v7292 = vor.u32 %v7290, %v7291
        %v7293 = vshll.u32 2131351028, %v7284
        %v7294 = vshrl.u32 2102212464, %v7285
        %v7295 = vor.u32 %v7293, %v7294
        %v7296 = vshll.u32 2102212464, %v7284
        %v7297 = vshrl.u32 920167782, %v7285
        %v7298 = vor.u32 %v7296, %v7297
        %v7299 = vshll.u32 920167782, %v7284
        %v7300 = vshrl.u32 1326507024, %v7285
        %v7301 = vor.u32 %v7299, %v7300
        %vm7302 = vcmp.lt.s32.totalorder %v7283, 1
        %vm7303 = vcmp.lt.s32.totalorder %v7283, 2
        %vm7304 = vcmp.lt.s32.totalorder %v7283, 3
        %vm7305 = vcmp.lt.s32.totalorder %v7283, 4
        %v7306 = vsel %vm7302, %v7286, %v7289
        %v7307 = vsel %vm7305, %v7295, 2102212464
        %v7308 = vsel %vm7304, %v7292, %v7307
        %v7309 = vsel %vm7303, %v7306, %v7308
        %v7310 = vsel %vm7302, %v7289, %v7292
        %v7311 = vsel %vm7305, %v7298, 920167782
        %v7312 = vsel %vm7304, %v7295, %v7311
        %v7313 = vsel %vm7303, %v7310, %v7312
        %v7314 = vsel %vm7302, %v7292, %v7295
        %v7315 = vsel %vm7305, %v7301, 1326507024
        %v7316 = vsel %vm7304, %v7298, %v7315
        %v7317 = vsel %vm7303, %v7314, %v7316
        %v7318 = vshll.u32 %v7278, 8
        %v7319 = vmul.u32.u64.compose %v7318, %v7317
        %v7320 = vextract.low.u32 %v7319
        %v7321 = vextract.high.u32 %v7319
        %v7322 = vmul.u32.u64.compose %v7318, %v7313
        %v7323 = vextract.low.u32 %v7322
        %v7324 = vextract.high.u32 %v7322
        %v7325 = vmul.u32 %v7318, %v7309
        %v7326 = vadd.s32 %v7321, %v7323
        %vm7327 = vc.u32 %v7321, %v7323
        %v7328 = vadd.s32 %v7324, 1
        %v7329 = vsel %vm7327, %v7328, %v7324
        %v7330 = vadd.s32 %v7325, %v7329
        %v7331 = vadd.s32 %v7330, 536870912
        %v7332 = vshrl.u32 %v7331, 30
        %v7333 = vshll.u32 %v7332, 30
        %v7334 = vsub.s32 %v7330, %v7333
        %vm7335 = vcmp.lt.s32.totalorder %v7334, 0
        %v7336 = vsub.s32 0, %v7334
        %v7337 = vsel %vm7335, %v7336, %v7334
        %v7338 = vclz %v7337
        %v7339 = vsub.s32 %v7338, 2
        %vm7340 = vcmp.gt.s32.totalorder 0, %v7339
        %v7341 = vsel %vm7340, 0, %v7339
        %v7342 = vsub.s32 32, %v7341
        %v7343 = vshll.u32 %v7334, %v7341
        %v7344 = vshrl.u32 %v7326, %v7342
        %v7345 = vor.u32 %v7343, %v7344
        %v7346 = vsub.s32 4294967266, %v7341
        %v7347 = vadd.s32 %v7346, 127
        %v7348 = vshll.u32 %v7347, 23
        %v7349 = vor.u32 4788187, %v7348
        %v7350 = vand.u32 2147483647, %v7349
        %v7352 = vcvt.s32.f32 %v7345
        %v7353 = vmul.f32 %v7352, %v7350
        %v7354 = vxor.u32 %v7353, 2147483648
        %v7355 = vsel %vm7272, %v7354, %v7353
        %v7356 = vsub.s32 4, %v7332
        %v7357 = vsel %vm7272, %v7356, %v7332
        %v7358 = vsel %vm7271, %v4585, %v7355
        %v7359 = vsel %vm7271, 0, %v7357
        %v7360 = vcosq.f32.pop %v7358
        %v7361 = vsinq.f32.pop %v7358
        %vm7362 = vweird.f32 %v4585
        %v7363 = vand.u32 %v7359, 3
        %vm7364 = vcmp.lt.s32.totalorder %v7363, 2
        %vm7365 = vcmp.eq.s32.totalorder %v7363, 0
        %v7366 = vxor.u32 %v7361, 2147483648
        %v7367 = vsel %vm7365, %v7360, %v7366
        %vm7368 = vcmp.eq.s32.totalorder %v7363, 2
        %v7369 = vxor.u32 %v7360, 2147483648
        %v7370 = vsel %vm7368, %v7369, %v7361
        %v7371 = vsel %vm7364, %v7367, %v7370
        %v7372 = vsel %vm7362, nan, %v7371
        %v7373 = vand.u32 2147483647, %v4586
        %vm7374 = vcmp.le.f32.partialorder %v7373, 0.7853982
        %vm7375 = vcmp.lt.s32.totalorder %v4586, 0
        %v7376 = vand.u32 %v4586, 2139095040
        %v7377 = vshrl.u32 %v7376, 23
        %v7378 = vsub.s32 %v7377, 127
        %v7379 = vand.u32 2147483647, %v4586
        %v7380 = vand.u32 %v7379, 8388607
        %v7381 = vor.u32 %v7380, 8388608
        %v7382 = vsub.s32 0, %v7381
        %v7383 = vadd.s32 %v7378, 1
        %vm7384 = vcmp.gt.s32.totalorder %v7383, 0
        %v7385 = vsel %vm7384, %v7383, 0
        %v7386 = vshrl.u32 %v7385, 5
        %v7387 = vand.u32 %v7385, 31
        %v7388 = vsub.s32 32, %v7387
        %v7389 = vshrl.u32 683565275, %v7388
        %v7390 = vshll.u32 683565275, %v7387
        %v7391 = vshrl.u32 2475754826, %v7388
        %v7392 = vor.u32 %v7390, %v7391
        %v7393 = vshll.u32 2475754826, %v7387
        %v7394 = vshrl.u32 2131351028, %v7388
        %v7395 = vor.u32 %v7393, %v7394
        %v7396 = vshll.u32 2131351028, %v7387
        %v7397 = vshrl.u32 2102212464, %v7388
        %v7398 = vor.u32 %v7396, %v7397
        %v7399 = vshll.u32 2102212464, %v7387
        %v7400 = vshrl.u32 920167782, %v7388
        %v7401 = vor.u32 %v7399, %v7400
        %v7402 = vshll.u32 920167782, %v7387
        %v7403 = vshrl.u32 1326507024, %v7388
        %v7404 = vor.u32 %v7402, %v7403
        %vm7405 = vcmp.lt.s32.totalorder %v7386, 1
        %vm7406 = vcmp.lt.s32.totalorder %v7386, 2
        %vm7407 = vcmp.lt.s32.totalorder %v7386, 3
        %vm7408 = vcmp.lt.s32.totalorder %v7386, 4
        %v7409 = vsel %vm7405, %v7389, %v7392
        %v7410 = vsel %vm7408, %v7398, 2102212464
        %v7411 = vsel %vm7407, %v7395, %v7410
        %v7412 = vsel %vm7406, %v7409, %v7411
        %v7413 = vsel %vm7405, %v7392, %v7395
        %v7414 = vsel %vm7408, %v7401, 920167782
        %v7415 = vsel %vm7407, %v7398, %v7414
        %v7416 = vsel %vm7406, %v7413, %v7415
        %v7417 = vsel %vm7405, %v7395, %v7398
        %v7418 = vsel %vm7408, %v7404, 1326507024
        %v7419 = vsel %vm7407, %v7401, %v7418
        %v7420 = vsel %vm7406, %v7417, %v7419
        %v7421 = vshll.u32 %v7381, 8
        %v7422 = vmul.u32.u64.compose %v7421, %v7420
        %v7423 = vextract.low.u32 %v7422
        %v7424 = vextract.high.u32 %v7422
        %v7425 = vmul.u32.u64.compose %v7421, %v7416
        %v7426 = vextract.low.u32 %v7425
        %v7427 = vextract.high.u32 %v7425
        %v7428 = vmul.u32 %v7421, %v7412
        %v7429 = vadd.s32 %v7424, %v7426
        %vm7430 = vc.u32 %v7424, %v7426
        %v7431 = vadd.s32 %v7427, 1
        %v7432 = vsel %vm7430, %v7431, %v7427
        %v7433 = vadd.s32 %v7428, %v7432
        %v7434 = vadd.s32 %v7433, 536870912
        %v7435 = vshrl.u32 %v7434, 30
        %v7436 = vshll.u32 %v7435, 30
        %v7437 = vsub.s32 %v7433, %v7436
        %vm7438 = vcmp.lt.s32.totalorder %v7437, 0
        %v7439 = vsub.s32 0, %v7437
        %v7440 = vsel %vm7438, %v7439, %v7437
        %v7441 = vclz %v7440
        %v7442 = vsub.s32 %v7441, 2
        %vm7443 = vcmp.gt.s32.totalorder 0, %v7442
        %v7444 = vsel %vm7443, 0, %v7442
        %v7445 = vsub.s32 32, %v7444
        %v7446 = vshll.u32 %v7437, %v7444
        %v7447 = vshrl.u32 %v7429, %v7445
        %v7448 = vor.u32 %v7446, %v7447
        %v7449 = vsub.s32 4294967266, %v7444
        %v7450 = vadd.s32 %v7449, 127
        %v7451 = vshll.u32 %v7450, 23
        %v7452 = vor.u32 4788187, %v7451
        %v7453 = vand.u32 2147483647, %v7452
        %v7455 = vcvt.s32.f32 %v7448
        %v7456 = vmul.f32 %v7455, %v7453
        %v7457 = vxor.u32 %v7456, 2147483648
        %v7458 = vsel %vm7375, %v7457, %v7456
        %v7459 = vsub.s32 4, %v7435
        %v7460 = vsel %vm7375, %v7459, %v7435
        %v7461 = vsel %vm7374, %v4586, %v7458
        %v7462 = vsel %vm7374, 0, %v7460
        %v7463 = vcosq.f32.pop %v7461
        %v7464 = vsinq.f32.pop %v7461
        %vm7465 = vweird.f32 %v4586
        %v7466 = vand.u32 %v7462, 3
        %vm7467 = vcmp.lt.s32.totalorder %v7466, 2
        %vm7468 = vcmp.eq.s32.totalorder %v7466, 0
        %v7469 = vxor.u32 %v7464, 2147483648
        %v7470 = vsel %vm7468, %v7463, %v7469
        %vm7471 = vcmp.eq.s32.totalorder %v7466, 2
        %v7472 = vxor.u32 %v7463, 2147483648
        %v7473 = vsel %vm7471, %v7472, %v7464
        %v7474 = vsel %vm7467, %v7470, %v7473
        %v7475 = vsel %vm7465, nan, %v7474
        %v7476 = vand.u32 2147483647, %v4587
        %vm7477 = vcmp.le.f32.partialorder %v7476, 0.7853982
        %vm7478 = vcmp.lt.s32.totalorder %v4587, 0
        %v7479 = vand.u32 %v4587, 2139095040
        %v7480 = vshrl.u32 %v7479, 23
        %v7481 = vsub.s32 %v7480, 127
        %v7482 = vand.u32 2147483647, %v4587
        %v7483 = vand.u32 %v7482, 8388607
        %v7484 = vor.u32 %v7483, 8388608
        %v7485 = vsub.s32 0, %v7484
        %v7486 = vadd.s32 %v7481, 1
        %vm7487 = vcmp.gt.s32.totalorder %v7486, 0
        %v7488 = vsel %vm7487, %v7486, 0
        %v7489 = vshrl.u32 %v7488, 5
        %v7490 = vand.u32 %v7488, 31
        %v7491 = vsub.s32 32, %v7490
        %v7492 = vshrl.u32 683565275, %v7491
        %v7493 = vshll.u32 683565275, %v7490
        %v7494 = vshrl.u32 2475754826, %v7491
        %v7495 = vor.u32 %v7493, %v7494
        %v7496 = vshll.u32 2475754826, %v7490
        %v7497 = vshrl.u32 2131351028, %v7491
        %v7498 = vor.u32 %v7496, %v7497
        %v7499 = vshll.u32 2131351028, %v7490
        %v7500 = vshrl.u32 2102212464, %v7491
        %v7501 = vor.u32 %v7499, %v7500
        %v7502 = vshll.u32 2102212464, %v7490
        %v7503 = vshrl.u32 920167782, %v7491
        %v7504 = vor.u32 %v7502, %v7503
        %v7505 = vshll.u32 920167782, %v7490
        %v7506 = vshrl.u32 1326507024, %v7491
        %v7507 = vor.u32 %v7505, %v7506
        %vm7508 = vcmp.lt.s32.totalorder %v7489, 1
        %vm7509 = vcmp.lt.s32.totalorder %v7489, 2
        %vm7510 = vcmp.lt.s32.totalorder %v7489, 3
        %vm7511 = vcmp.lt.s32.totalorder %v7489, 4
        %v7512 = vsel %vm7508, %v7492, %v7495
        %v7513 = vsel %vm7511, %v7501, 2102212464
        %v7514 = vsel %vm7510, %v7498, %v7513
        %v7515 = vsel %vm7509, %v7512, %v7514
        %v7516 = vsel %vm7508, %v7495, %v7498
        %v7517 = vsel %vm7511, %v7504, 920167782
        %v7518 = vsel %vm7510, %v7501, %v7517
        %v7519 = vsel %vm7509, %v7516, %v7518
        %v7520 = vsel %vm7508, %v7498, %v7501
        %v7521 = vsel %vm7511, %v7507, 1326507024
        %v7522 = vsel %vm7510, %v7504, %v7521
        %v7523 = vsel %vm7509, %v7520, %v7522
        %v7524 = vshll.u32 %v7484, 8
        %v7525 = vmul.u32.u64.compose %v7524, %v7523
        %v7526 = vextract.low.u32 %v7525
        %v7527 = vextract.high.u32 %v7525
        %v7528 = vmul.u32.u64.compose %v7524, %v7519
        %v7529 = vextract.low.u32 %v7528
        %v7530 = vextract.high.u32 %v7528
        %v7531 = vmul.u32 %v7524, %v7515
        %v7532 = vadd.s32 %v7527, %v7529
        %vm7533 = vc.u32 %v7527, %v7529
        %v7534 = vadd.s32 %v7530, 1
        %v7535 = vsel %vm7533, %v7534, %v7530
        %v7536 = vadd.s32 %v7531, %v7535
        %v7537 = vadd.s32 %v7536, 536870912
        %v7538 = vshrl.u32 %v7537, 30
        %v7539 = vshll.u32 %v7538, 30
        %v7540 = vsub.s32 %v7536, %v7539
        %vm7541 = vcmp.lt.s32.totalorder %v7540, 0
        %v7542 = vsub.s32 0, %v7540
        %v7543 = vsel %vm7541, %v7542, %v7540
        %v7544 = vclz %v7543
        %v7545 = vsub.s32 %v7544, 2
        %vm7546 = vcmp.gt.s32.totalorder 0, %v7545
        %v7547 = vsel %vm7546, 0, %v7545
        %v7548 = vsub.s32 32, %v7547
        %v7549 = vshll.u32 %v7540, %v7547
        %v7550 = vshrl.u32 %v7532, %v7548
        %v7551 = vor.u32 %v7549, %v7550
        %v7552 = vsub.s32 4294967266, %v7547
        %v7553 = vadd.s32 %v7552, 127
        %v7554 = vshll.u32 %v7553, 23
        %v7555 = vor.u32 4788187, %v7554
        %v7556 = vand.u32 2147483647, %v7555
        %v7558 = vcvt.s32.f32 %v7551
        %v7559 = vmul.f32 %v7558, %v7556
        %v7560 = vxor.u32 %v7559, 2147483648
        %v7561 = vsel %vm7478, %v7560, %v7559
        %v7562 = vsub.s32 4, %v7538
        %v7563 = vsel %vm7478, %v7562, %v7538
        %v7564 = vsel %vm7477, %v4587, %v7561
        %v7565 = vsel %vm7477, 0, %v7563
        %v7566 = vcosq.f32.pop %v7564
        %v7567 = vsinq.f32.pop %v7564
        %vm7568 = vweird.f32 %v4587
        %v7569 = vand.u32 %v7565, 3
        %vm7570 = vcmp.lt.s32.totalorder %v7569, 2
        %vm7571 = vcmp.eq.s32.totalorder %v7569, 0
        %v7572 = vxor.u32 %v7567, 2147483648
        %v7573 = vsel %vm7571, %v7566, %v7572
        %vm7574 = vcmp.eq.s32.totalorder %v7569, 2
        %v7575 = vxor.u32 %v7566, 2147483648
        %v7576 = vsel %vm7574, %v7575, %v7567
        %v7577 = vsel %vm7570, %v7573, %v7576
        %v7578 = vsel %vm7568, nan, %v7577
        %v7579 = vand.u32 2147483647, %v4588
        %vm7580 = vcmp.le.f32.partialorder %v7579, 0.7853982
        %vm7581 = vcmp.lt.s32.totalorder %v4588, 0
        %v7582 = vand.u32 %v4588, 2139095040
        %v7583 = vshrl.u32 %v7582, 23
        %v7584 = vsub.s32 %v7583, 127
        %v7585 = vand.u32 2147483647, %v4588
        %v7586 = vand.u32 %v7585, 8388607
        %v7587 = vor.u32 %v7586, 8388608
        %v7588 = vsub.s32 0, %v7587
        %v7589 = vadd.s32 %v7584, 1
        %vm7590 = vcmp.gt.s32.totalorder %v7589, 0
        %v7591 = vsel %vm7590, %v7589, 0
        %v7592 = vshrl.u32 %v7591, 5
        %v7593 = vand.u32 %v7591, 31
        %v7594 = vsub.s32 32, %v7593
        %v7595 = vshrl.u32 683565275, %v7594
        %v7596 = vshll.u32 683565275, %v7593
        %v7597 = vshrl.u32 2475754826, %v7594
        %v7598 = vor.u32 %v7596, %v7597
        %v7599 = vshll.u32 2475754826, %v7593
        %v7600 = vshrl.u32 2131351028, %v7594
        %v7601 = vor.u32 %v7599, %v7600
        %v7602 = vshll.u32 2131351028, %v7593
        %v7603 = vshrl.u32 2102212464, %v7594
        %v7604 = vor.u32 %v7602, %v7603
        %v7605 = vshll.u32 2102212464, %v7593
        %v7606 = vshrl.u32 920167782, %v7594
        %v7607 = vor.u32 %v7605, %v7606
        %v7608 = vshll.u32 920167782, %v7593
        %v7609 = vshrl.u32 1326507024, %v7594
        %v7610 = vor.u32 %v7608, %v7609
        %vm7611 = vcmp.lt.s32.totalorder %v7592, 1
        %vm7612 = vcmp.lt.s32.totalorder %v7592, 2
        %vm7613 = vcmp.lt.s32.totalorder %v7592, 3
        %vm7614 = vcmp.lt.s32.totalorder %v7592, 4
        %v7615 = vsel %vm7611, %v7595, %v7598
        %v7616 = vsel %vm7614, %v7604, 2102212464
        %v7617 = vsel %vm7613, %v7601, %v7616
        %v7618 = vsel %vm7612, %v7615, %v7617
        %v7619 = vsel %vm7611, %v7598, %v7601
        %v7620 = vsel %vm7614, %v7607, 920167782
        %v7621 = vsel %vm7613, %v7604, %v7620
        %v7622 = vsel %vm7612, %v7619, %v7621
        %v7623 = vsel %vm7611, %v7601, %v7604
        %v7624 = vsel %vm7614, %v7610, 1326507024
        %v7625 = vsel %vm7613, %v7607, %v7624
        %v7626 = vsel %vm7612, %v7623, %v7625
        %v7627 = vshll.u32 %v7587, 8
        %v7628 = vmul.u32.u64.compose %v7627, %v7626
        %v7629 = vextract.low.u32 %v7628
        %v7630 = vextract.high.u32 %v7628
        %v7631 = vmul.u32.u64.compose %v7627, %v7622
        %v7632 = vextract.low.u32 %v7631
        %v7633 = vextract.high.u32 %v7631
        %v7634 = vmul.u32 %v7627, %v7618
        %v7635 = vadd.s32 %v7630, %v7632
        %vm7636 = vc.u32 %v7630, %v7632
        %v7637 = vadd.s32 %v7633, 1
        %v7638 = vsel %vm7636, %v7637, %v7633
        %v7639 = vadd.s32 %v7634, %v7638
        %v7640 = vadd.s32 %v7639, 536870912
        %v7641 = vshrl.u32 %v7640, 30
        %v7642 = vshll.u32 %v7641, 30
        %v7643 = vsub.s32 %v7639, %v7642
        %vm7644 = vcmp.lt.s32.totalorder %v7643, 0
        %v7645 = vsub.s32 0, %v7643
        %v7646 = vsel %vm7644, %v7645, %v7643
        %v7647 = vclz %v7646
        %v7648 = vsub.s32 %v7647, 2
        %vm7649 = vcmp.gt.s32.totalorder 0, %v7648
        %v7650 = vsel %vm7649, 0, %v7648
        %v7651 = vsub.s32 32, %v7650
        %v7652 = vshll.u32 %v7643, %v7650
        %v7653 = vshrl.u32 %v7635, %v7651
        %v7654 = vor.u32 %v7652, %v7653
        %v7655 = vsub.s32 4294967266, %v7650
        %v7656 = vadd.s32 %v7655, 127
        %v7657 = vshll.u32 %v7656, 23
        %v7658 = vor.u32 4788187, %v7657
        %v7659 = vand.u32 2147483647, %v7658
        %v7661 = vcvt.s32.f32 %v7654
        %v7662 = vmul.f32 %v7661, %v7659
        %v7663 = vxor.u32 %v7662, 2147483648
        %v7664 = vsel %vm7581, %v7663, %v7662
        %v7665 = vsub.s32 4, %v7641
        %v7666 = vsel %vm7581, %v7665, %v7641
        %v7667 = vsel %vm7580, %v4588, %v7664
        %v7668 = vsel %vm7580, 0, %v7666
        %v7669 = vcosq.f32.pop %v7667
        %v7670 = vsinq.f32.pop %v7667
        %vm7671 = vweird.f32 %v4588
        %v7672 = vand.u32 %v7668, 3
        %vm7673 = vcmp.lt.s32.totalorder %v7672, 2
        %vm7674 = vcmp.eq.s32.totalorder %v7672, 0
        %v7675 = vxor.u32 %v7670, 2147483648
        %v7676 = vsel %vm7674, %v7669, %v7675
        %vm7677 = vcmp.eq.s32.totalorder %v7672, 2
        %v7678 = vxor.u32 %v7669, 2147483648
        %v7679 = vsel %vm7677, %v7678, %v7670
        %v7680 = vsel %vm7673, %v7676, %v7679
        %v7681 = vsel %vm7671, nan, %v7680
        %v7682 = vand.u32 2147483647, %v4589
        %vm7683 = vcmp.le.f32.partialorder %v7682, 0.7853982
        %vm7684 = vcmp.lt.s32.totalorder %v4589, 0
        %v7685 = vand.u32 %v4589, 2139095040
        %v7686 = vshrl.u32 %v7685, 23
        %v7687 = vsub.s32 %v7686, 127
        %v7688 = vand.u32 2147483647, %v4589
        %v7689 = vand.u32 %v7688, 8388607
        %v7690 = vor.u32 %v7689, 8388608
        %v7691 = vsub.s32 0, %v7690
        %v7692 = vadd.s32 %v7687, 1
        %vm7693 = vcmp.gt.s32.totalorder %v7692, 0
        %v7694 = vsel %vm7693, %v7692, 0
        %v7695 = vshrl.u32 %v7694, 5
        %v7696 = vand.u32 %v7694, 31
        %v7697 = vsub.s32 32, %v7696
        %v7698 = vshrl.u32 683565275, %v7697
        %v7699 = vshll.u32 683565275, %v7696
        %v7700 = vshrl.u32 2475754826, %v7697
        %v7701 = vor.u32 %v7699, %v7700
        %v7702 = vshll.u32 2475754826, %v7696
        %v7703 = vshrl.u32 2131351028, %v7697
        %v7704 = vor.u32 %v7702, %v7703
        %v7705 = vshll.u32 2131351028, %v7696
        %v7706 = vshrl.u32 2102212464, %v7697
        %v7707 = vor.u32 %v7705, %v7706
        %v7708 = vshll.u32 2102212464, %v7696
        %v7709 = vshrl.u32 920167782, %v7697
        %v7710 = vor.u32 %v7708, %v7709
        %v7711 = vshll.u32 920167782, %v7696
        %v7712 = vshrl.u32 1326507024, %v7697
        %v7713 = vor.u32 %v7711, %v7712
        %vm7714 = vcmp.lt.s32.totalorder %v7695, 1
        %vm7715 = vcmp.lt.s32.totalorder %v7695, 2
        %vm7716 = vcmp.lt.s32.totalorder %v7695, 3
        %vm7717 = vcmp.lt.s32.totalorder %v7695, 4
        %v7718 = vsel %vm7714, %v7698, %v7701
        %v7719 = vsel %vm7717, %v7707, 2102212464
        %v7720 = vsel %vm7716, %v7704, %v7719
        %v7721 = vsel %vm7715, %v7718, %v7720
        %v7722 = vsel %vm7714, %v7701, %v7704
        %v7723 = vsel %vm7717, %v7710, 920167782
        %v7724 = vsel %vm7716, %v7707, %v7723
        %v7725 = vsel %vm7715, %v7722, %v7724
        %v7726 = vsel %vm7714, %v7704, %v7707
        %v7727 = vsel %vm7717, %v7713, 1326507024
        %v7728 = vsel %vm7716, %v7710, %v7727
        %v7729 = vsel %vm7715, %v7726, %v7728
        %v7730 = vshll.u32 %v7690, 8
        %v7731 = vmul.u32.u64.compose %v7730, %v7729
        %v7732 = vextract.low.u32 %v7731
        %v7733 = vextract.high.u32 %v7731
        %v7734 = vmul.u32.u64.compose %v7730, %v7725
        %v7735 = vextract.low.u32 %v7734
        %v7736 = vextract.high.u32 %v7734
        %v7737 = vmul.u32 %v7730, %v7721
        %v7738 = vadd.s32 %v7733, %v7735
        %vm7739 = vc.u32 %v7733, %v7735
        %v7740 = vadd.s32 %v7736, 1
        %v7741 = vsel %vm7739, %v7740, %v7736
        %v7742 = vadd.s32 %v7737, %v7741
        %v7743 = vadd.s32 %v7742, 536870912
        %v7744 = vshrl.u32 %v7743, 30
        %v7745 = vshll.u32 %v7744, 30
        %v7746 = vsub.s32 %v7742, %v7745
        %vm7747 = vcmp.lt.s32.totalorder %v7746, 0
        %v7748 = vsub.s32 0, %v7746
        %v7749 = vsel %vm7747, %v7748, %v7746
        %v7750 = vclz %v7749
        %v7751 = vsub.s32 %v7750, 2
        %vm7752 = vcmp.gt.s32.totalorder 0, %v7751
        %v7753 = vsel %vm7752, 0, %v7751
        %v7754 = vsub.s32 32, %v7753
        %v7755 = vshll.u32 %v7746, %v7753
        %v7756 = vshrl.u32 %v7738, %v7754
        %v7757 = vor.u32 %v7755, %v7756
        %v7758 = vsub.s32 4294967266, %v7753
        %v7759 = vadd.s32 %v7758, 127
        %v7760 = vshll.u32 %v7759, 23
        %v7761 = vor.u32 4788187, %v7760
        %v7762 = vand.u32 2147483647, %v7761
        %v7764 = vcvt.s32.f32 %v7757
        %v7765 = vmul.f32 %v7764, %v7762
        %v7766 = vxor.u32 %v7765, 2147483648
        %v7767 = vsel %vm7684, %v7766, %v7765
        %v7768 = vsub.s32 4, %v7744
        %v7769 = vsel %vm7684, %v7768, %v7744
        %v7770 = vsel %vm7683, %v4589, %v7767
        %v7771 = vsel %vm7683, 0, %v7769
        %v7772 = vcosq.f32.pop %v7770
        %v7773 = vsinq.f32.pop %v7770
        %vm7774 = vweird.f32 %v4589
        %v7775 = vand.u32 %v7771, 3
        %vm7776 = vcmp.lt.s32.totalorder %v7775, 2
        %vm7777 = vcmp.eq.s32.totalorder %v7775, 0
        %v7778 = vxor.u32 %v7773, 2147483648
        %v7779 = vsel %vm7777, %v7772, %v7778
        %vm7780 = vcmp.eq.s32.totalorder %v7775, 2
        %v7781 = vxor.u32 %v7772, 2147483648
        %v7782 = vsel %vm7780, %v7781, %v7773
        %v7783 = vsel %vm7776, %v7779, %v7782
        %v7784 = vsel %vm7774, nan, %v7783
        %v7785 = vand.u32 2147483647, %v4590
        %vm7786 = vcmp.le.f32.partialorder %v7785, 0.7853982
        %vm7787 = vcmp.lt.s32.totalorder %v4590, 0
        %v7788 = vand.u32 %v4590, 2139095040
        %v7789 = vshrl.u32 %v7788, 23
        %v7790 = vsub.s32 %v7789, 127
        %v7791 = vand.u32 2147483647, %v4590
        %v7792 = vand.u32 %v7791, 8388607
        %v7793 = vor.u32 %v7792, 8388608
        %v7794 = vsub.s32 0, %v7793
        %v7795 = vadd.s32 %v7790, 1
        %vm7796 = vcmp.gt.s32.totalorder %v7795, 0
        %v7797 = vsel %vm7796, %v7795, 0
        %v7798 = vshrl.u32 %v7797, 5
        %v7799 = vand.u32 %v7797, 31
        %v7800 = vsub.s32 32, %v7799
        %v7801 = vshrl.u32 683565275, %v7800
        %v7802 = vshll.u32 683565275, %v7799
        %v7803 = vshrl.u32 2475754826, %v7800
        %v7804 = vor.u32 %v7802, %v7803
        %v7805 = vshll.u32 2475754826, %v7799
        %v7806 = vshrl.u32 2131351028, %v7800
        %v7807 = vor.u32 %v7805, %v7806
        %v7808 = vshll.u32 2131351028, %v7799
        %v7809 = vshrl.u32 2102212464, %v7800
        %v7810 = vor.u32 %v7808, %v7809
        %v7811 = vshll.u32 2102212464, %v7799
        %v7812 = vshrl.u32 920167782, %v7800
        %v7813 = vor.u32 %v7811, %v7812
        %v7814 = vshll.u32 920167782, %v7799
        %v7815 = vshrl.u32 1326507024, %v7800
        %v7816 = vor.u32 %v7814, %v7815
        %vm7817 = vcmp.lt.s32.totalorder %v7798, 1
        %vm7818 = vcmp.lt.s32.totalorder %v7798, 2
        %vm7819 = vcmp.lt.s32.totalorder %v7798, 3
        %vm7820 = vcmp.lt.s32.totalorder %v7798, 4
        %v7821 = vsel %vm7817, %v7801, %v7804
        %v7822 = vsel %vm7820, %v7810, 2102212464
        %v7823 = vsel %vm7819, %v7807, %v7822
        %v7824 = vsel %vm7818, %v7821, %v7823
        %v7825 = vsel %vm7817, %v7804, %v7807
        %v7826 = vsel %vm7820, %v7813, 920167782
        %v7827 = vsel %vm7819, %v7810, %v7826
        %v7828 = vsel %vm7818, %v7825, %v7827
        %v7829 = vsel %vm7817, %v7807, %v7810
        %v7830 = vsel %vm7820, %v7816, 1326507024
        %v7831 = vsel %vm7819, %v7813, %v7830
        %v7832 = vsel %vm7818, %v7829, %v7831
        %v7833 = vshll.u32 %v7793, 8
        %v7834 = vmul.u32.u64.compose %v7833, %v7832
        %v7835 = vextract.low.u32 %v7834
        %v7836 = vextract.high.u32 %v7834
        %v7837 = vmul.u32.u64.compose %v7833, %v7828
        %v7838 = vextract.low.u32 %v7837
        %v7839 = vextract.high.u32 %v7837
        %v7840 = vmul.u32 %v7833, %v7824
        %v7841 = vadd.s32 %v7836, %v7838
        %vm7842 = vc.u32 %v7836, %v7838
        %v7843 = vadd.s32 %v7839, 1
        %v7844 = vsel %vm7842, %v7843, %v7839
        %v7845 = vadd.s32 %v7840, %v7844
        %v7846 = vadd.s32 %v7845, 536870912
        %v7847 = vshrl.u32 %v7846, 30
        %v7848 = vshll.u32 %v7847, 30
        %v7849 = vsub.s32 %v7845, %v7848
        %vm7850 = vcmp.lt.s32.totalorder %v7849, 0
        %v7851 = vsub.s32 0, %v7849
        %v7852 = vsel %vm7850, %v7851, %v7849
        %v7853 = vclz %v7852
        %v7854 = vsub.s32 %v7853, 2
        %vm7855 = vcmp.gt.s32.totalorder 0, %v7854
        %v7856 = vsel %vm7855, 0, %v7854
        %v7857 = vsub.s32 32, %v7856
        %v7858 = vshll.u32 %v7849, %v7856
        %v7859 = vshrl.u32 %v7841, %v7857
        %v7860 = vor.u32 %v7858, %v7859
        %v7861 = vsub.s32 4294967266, %v7856
        %v7862 = vadd.s32 %v7861, 127
        %v7863 = vshll.u32 %v7862, 23
        %v7864 = vor.u32 4788187, %v7863
        %v7865 = vand.u32 2147483647, %v7864
        %v7867 = vcvt.s32.f32 %v7860
        %v7868 = vmul.f32 %v7867, %v7865
        %v7869 = vxor.u32 %v7868, 2147483648
        %v7870 = vsel %vm7787, %v7869, %v7868
        %v7871 = vsub.s32 4, %v7847
        %v7872 = vsel %vm7787, %v7871, %v7847
        %v7873 = vsel %vm7786, %v4590, %v7870
        %v7874 = vsel %vm7786, 0, %v7872
        %v7875 = vcosq.f32.pop %v7873
        %v7876 = vsinq.f32.pop %v7873
        %vm7877 = vweird.f32 %v4590
        %v7878 = vand.u32 %v7874, 3
        %vm7879 = vcmp.lt.s32.totalorder %v7878, 2
        %vm7880 = vcmp.eq.s32.totalorder %v7878, 0
        %v7881 = vxor.u32 %v7876, 2147483648
        %v7882 = vsel %vm7880, %v7875, %v7881
        %vm7883 = vcmp.eq.s32.totalorder %v7878, 2
        %v7884 = vxor.u32 %v7875, 2147483648
        %v7885 = vsel %vm7883, %v7884, %v7876
        %v7886 = vsel %vm7879, %v7882, %v7885
        %v7887 = vsel %vm7877, nan, %v7886
        %v7889 = vsel %vm4166, %v4591, 0
        %7891 = vmatprep.subr.mxu0 %v4797
        %7892 = vmatpush1.msra.mxu0 %v4694
        %7893 = vmatprep.subr.mxu0 %v5621
        %7894 = vmatpush1.msra.mxu0 %v5518
        %7895 = vmatprep.subr.mxu0 %v6445
        %7896 = vmatpush1.msra.mxu0 %v6342
        %7897 = vmatprep.subr.mxu0 %v7269
        %7898 = vmatpush1.msra.mxu0 %v7166
        %7899 = vmatprep.subr.mxu0 0.0
        %7900 = vmatpush1.msra.mxu0 0.0
        %7901 = vmatprep.subr.mxu0 0.0
        %7902 = vmatpush1.msra.mxu0 0.0
        %7903 = vmatprep.subr.mxu0 0.0
        %7904 = vmatpush1.msra.mxu0 0.0
        %7905 = vmatprep.subr.mxu0 0.0
        %7906 = vmatpush1.msra.mxu0 0.0
        %7907 = vmatprep.subr.mxu0 0.0
        %7908 = vmatpush1.msra.mxu0 0.0
        %7909 = vmatprep.subr.mxu0 0.0
        %7910 = vmatpush1.msra.mxu0 0.0
        %7911 = vmatprep.subr.mxu0 0.0
        %7912 = vmatpush1.msra.mxu0 0.0
        %7913 = vmatprep.subr.mxu0 0.0
        %7914 = vmatpush1.msra.mxu0 0.0
        %7915 = vmatprep.subr.mxu0 0.0
        %7916 = vmatpush1.msra.mxu0 0.0
        %7917 = vmatprep.subr.mxu0 0.0
        %7918 = vmatpush1.msra.mxu0 0.0
        %7919 = vmatprep.subr.mxu0 0.0
        %7920 = vmatpush1.msra.mxu0 0.0
        %7921 = vmatprep.subr.mxu0 0.0
        %7922 = vmatpush1.msra.mxu0 0.0
        %7923 = vmatprep.subr.mxu0 0.0
        %7924 = vmatpush1.msra.mxu0 0.0
        %7925 = vmatprep.subr.mxu0 0.0
        %7926 = vmatpush1.msra.mxu0 0.0
        %7927 = vmatprep.subr.mxu0 0.0
        %7928 = vmatpush1.msra.mxu0 0.0
        %7929 = vmatprep.subr.mxu0 0.0
        %7930 = vmatpush1.msra.mxu0 0.0
        %7931 = vmatprep.subr.mxu0 0.0
        %7932 = vmatpush1.msra.mxu0 0.0
        %7933 = vmatprep.subr.mxu0 0.0
        %7934 = vmatpush1.msra.mxu0 0.0
        %7935 = vmatprep.subr.mxu0 0.0
        %7936 = vmatpush1.msra.mxu0 0.0
        %7937 = vmatprep.subr.mxu0 0.0
        %7938 = vmatpush1.msra.mxu0 0.0
        %7939 = vmatprep.subr.mxu0 0.0
        %7940 = vmatpush1.msra.mxu0 0.0
        %7941 = vmatprep.subr.mxu0 0.0
        %7942 = vmatpush1.msra.mxu0 0.0
        %7943 = vmatprep.subr.mxu0 0.0
        %7944 = vmatpush1.msra.mxu0 0.0
        %7945 = vmatprep.subr.mxu0 0.0
        %7946 = vmatpush1.msra.mxu0 0.0
        %7947 = vmatprep.subr.mxu0 0.0
        %7948 = vmatpush1.msra.mxu0 0.0
        %7949 = vmatprep.subr.mxu0 0.0
        %7950 = vmatpush1.msra.mxu0 0.0
        %7951 = vmatprep.subr.mxu0 0.0
        %7952 = vmatpush1.msra.mxu0 0.0
        %7953 = vmatprep.subr.mxu0 0.0
        %7954 = vmatpush1.msra.mxu0 0.0
        %7955 = vmatprep.mubr.f32.mxu0 0.0
        %7956 = vmatmul.mubr.f32.gmra.mrb[0].mxu0 %v7889
        %v7957 = vpop.f32.mrb[0].mxu0
        %v7958 = vadd.f32 0.0, %v7957
        %v7959 = vpop.f32.mrb[0].mxu0
        %v7960 = vadd.f32 0.0, %v7959
        %7961 = vdwg.mxu0
        %7962 = vmatprep.subr.mxu0 %v5003
        %7963 = vmatpush1.msra.mxu0 %v4900
        %7964 = vmatprep.subr.mxu0 %v5827
        %7965 = vmatpush1.msra.mxu0 %v5724
        %7966 = vmatprep.subr.mxu0 %v6651
        %7967 = vmatpush1.msra.mxu0 %v6548
        %7968 = vmatprep.subr.mxu0 %v7475
        %7969 = vmatpush1.msra.mxu0 %v7372
        %7970 = vmatprep.subr.mxu0 0.0
        %7971 = vmatpush1.msra.mxu0 0.0
        %7972 = vmatprep.subr.mxu0 0.0
        %7973 = vmatpush1.msra.mxu0 0.0
        %7974 = vmatprep.subr.mxu0 0.0
        %7975 = vmatpush1.msra.mxu0 0.0
        %7976 = vmatprep.subr.mxu0 0.0
        %7977 = vmatpush1.msra.mxu0 0.0
        %7978 = vmatprep.subr.mxu0 0.0
        %7979 = vmatpush1.msra.mxu0 0.0
        %7980 = vmatprep.subr.mxu0 0.0
        %7981 = vmatpush1.msra.mxu0 0.0
        %7982 = vmatprep.subr.mxu0 0.0
        %7983 = vmatpush1.msra.mxu0 0.0
        %7984 = vmatprep.subr.mxu0 0.0
        %7985 = vmatpush1.msra.mxu0 0.0
        %7986 = vmatprep.subr.mxu0 0.0
        %7987 = vmatpush1.msra.mxu0 0.0
        %7988 = vmatprep.subr.mxu0 0.0
        %7989 = vmatpush1.msra.mxu0 0.0
        %7990 = vmatprep.subr.mxu0 0.0
        %7991 = vmatpush1.msra.mxu0 0.0
        %7992 = vmatprep.subr.mxu0 0.0
        %7993 = vmatpush1.msra.mxu0 0.0
        %7994 = vmatprep.subr.mxu0 0.0
        %7995 = vmatpush1.msra.mxu0 0.0
        %7996 = vmatprep.subr.mxu0 0.0
        %7997 = vmatpush1.msra.mxu0 0.0
        %7998 = vmatprep.subr.mxu0 0.0
        %7999 = vmatpush1.msra.mxu0 0.0
        %8000 = vmatprep.subr.mxu0 0.0
        %8001 = vmatpush1.msra.mxu0 0.0
        %8002 = vmatprep.subr.mxu0 0.0
        %8003 = vmatpush1.msra.mxu0 0.0
        %8004 = vmatprep.subr.mxu0 0.0
        %8005 = vmatpush1.msra.mxu0 0.0
        %8006 = vmatprep.subr.mxu0 0.0
        %8007 = vmatpush1.msra.mxu0 0.0
        %8008 = vmatprep.subr.mxu0 0.0
        %8009 = vmatpush1.msra.mxu0 0.0
        %8010 = vmatprep.subr.mxu0 0.0
        %8011 = vmatpush1.msra.mxu0 0.0
        %8012 = vmatprep.subr.mxu0 0.0
        %8013 = vmatpush1.msra.mxu0 0.0
        %8014 = vmatprep.subr.mxu0 0.0
        %8015 = vmatpush1.msra.mxu0 0.0
        %8016 = vmatprep.subr.mxu0 0.0
        %8017 = vmatpush1.msra.mxu0 0.0
        %8018 = vmatprep.subr.mxu0 0.0
        %8019 = vmatpush1.msra.mxu0 0.0
        %8020 = vmatprep.subr.mxu0 0.0
        %8021 = vmatpush1.msra.mxu0 0.0
        %8022 = vmatprep.subr.mxu0 0.0
        %8023 = vmatpush1.msra.mxu0 0.0
        %8024 = vmatprep.subr.mxu0 0.0
        %8025 = vmatpush1.msra.mxu0 0.0
        %8026 = vmatprep.mubr.f32.mxu0 0.0
        %8027 = vmatmul.mubr.f32.gmra.mrb[0].mxu0 %v7889
        %v8028 = vpop.f32.mrb[0].mxu0
        %v8029 = vadd.f32 0.0, %v8028
        %v8030 = vpop.f32.mrb[0].mxu0
        %v8031 = vadd.f32 0.0, %v8030
        %8032 = vdwg.mxu0
        %8033 = vmatprep.subr.mxu0 %v5209
        %8034 = vmatpush1.msra.mxu0 %v5106
        %8035 = vmatprep.subr.mxu0 %v6033
        %8036 = vmatpush1.msra.mxu0 %v5930
        %8037 = vmatprep.subr.mxu0 %v6857
        %8038 = vmatpush1.msra.mxu0 %v6754
        %8039 = vmatprep.subr.mxu0 %v7681
        %8040 = vmatpush1.msra.mxu0 %v7578
        %8041 = vmatprep.subr.mxu0 0.0
        %8042 = vmatpush1.msra.mxu0 0.0
        %8043 = vmatprep.subr.mxu0 0.0
        %8044 = vmatpush1.msra.mxu0 0.0
        %8045 = vmatprep.subr.mxu0 0.0
        %8046 = vmatpush1.msra.mxu0 0.0
        %8047 = vmatprep.subr.mxu0 0.0
        %8048 = vmatpush1.msra.mxu0 0.0
        %8049 = vmatprep.subr.mxu0 0.0
        %8050 = vmatpush1.msra.mxu0 0.0
        %8051 = vmatprep.subr.mxu0 0.0
        %8052 = vmatpush1.msra.mxu0 0.0
        %8053 = vmatprep.subr.mxu0 0.0
        %8054 = vmatpush1.msra.mxu0 0.0
        %8055 = vmatprep.subr.mxu0 0.0
        %8056 = vmatpush1.msra.mxu0 0.0
        %8057 = vmatprep.subr.mxu0 0.0
        %8058 = vmatpush1.msra.mxu0 0.0
        %8059 = vmatprep.subr.mxu0 0.0
        %8060 = vmatpush1.msra.mxu0 0.0
        %8061 = vmatprep.subr.mxu0 0.0
        %8062 = vmatpush1.msra.mxu0 0.0
        %8063 = vmatprep.subr.mxu0 0.0
        %8064 = vmatpush1.msra.mxu0 0.0
        %8065 = vmatprep.subr.mxu0 0.0
        %8066 = vmatpush1.msra.mxu0 0.0
        %8067 = vmatprep.subr.mxu0 0.0
        %8068 = vmatpush1.msra.mxu0 0.0
        %8069 = vmatprep.subr.mxu0 0.0
        %8070 = vmatpush1.msra.mxu0 0.0
        %8071 = vmatprep.subr.mxu0 0.0
        %8072 = vmatpush1.msra.mxu0 0.0
        %8073 = vmatprep.subr.mxu0 0.0
        %8074 = vmatpush1.msra.mxu0 0.0
        %8075 = vmatprep.subr.mxu0 0.0
        %8076 = vmatpush1.msra.mxu0 0.0
        %8077 = vmatprep.subr.mxu0 0.0
        %8078 = vmatpush1.msra.mxu0 0.0
        %8079 = vmatprep.subr.mxu0 0.0
        %8080 = vmatpush1.msra.mxu0 0.0
        %8081 = vmatprep.subr.mxu0 0.0
        %8082 = vmatpush1.msra.mxu0 0.0
        %8083 = vmatprep.subr.mxu0 0.0
        %8084 = vmatpush1.msra.mxu0 0.0
        %8085 = vmatprep.subr.mxu0 0.0
        %8086 = vmatpush1.msra.mxu0 0.0
        %8087 = vmatprep.subr.mxu0 0.0
        %8088 = vmatpush1.msra.mxu0 0.0
        %8089 = vmatprep.subr.mxu0 0.0
        %8090 = vmatpush1.msra.mxu0 0.0
        %8091 = vmatprep.subr.mxu0 0.0
        %8092 = vmatpush1.msra.mxu0 0.0
        %8093 = vmatprep.subr.mxu0 0.0
        %8094 = vmatpush1.msra.mxu0 0.0
        %8095 = vmatprep.subr.mxu0 0.0
        %8096 = vmatpush1.msra.mxu0 0.0
        %8097 = vmatprep.mubr.f32.mxu0 0.0
        %8098 = vmatmul.mubr.f32.gmra.mrb[0].mxu0 %v7889
        %v8099 = vpop.f32.mrb[0].mxu0
        %v8100 = vadd.f32 0.0, %v8099
        %v8101 = vpop.f32.mrb[0].mxu0
        %v8102 = vadd.f32 0.0, %v8101
        %8103 = vdwg.mxu0
        %8104 = vmatprep.subr.mxu0 %v5415
        %8105 = vmatpush1.msra.mxu0 %v5312
        %8106 = vmatprep.subr.mxu0 %v6239
        %8107 = vmatpush1.msra.mxu0 %v6136
        %8108 = vmatprep.subr.mxu0 %v7063
        %8109 = vmatpush1.msra.mxu0 %v6960
        %8110 = vmatprep.subr.mxu0 %v7887
        %8111 = vmatpush1.msra.mxu0 %v7784
        %8112 = vmatprep.subr.mxu0 0.0
        %8113 = vmatpush1.msra.mxu0 0.0
        %8114 = vmatprep.subr.mxu0 0.0
        %8115 = vmatpush1.msra.mxu0 0.0
        %8116 = vmatprep.subr.mxu0 0.0
        %8117 = vmatpush1.msra.mxu0 0.0
        %8118 = vmatprep.subr.mxu0 0.0
        %8119 = vmatpush1.msra.mxu0 0.0
        %8120 = vmatprep.subr.mxu0 0.0
        %8121 = vmatpush1.msra.mxu0 0.0
        %8122 = vmatprep.subr.mxu0 0.0
        %8123 = vmatpush1.msra.mxu0 0.0
        %8124 = vmatprep.subr.mxu0 0.0
        %8125 = vmatpush1.msra.mxu0 0.0
        %8126 = vmatprep.subr.mxu0 0.0
        %8127 = vmatpush1.msra.mxu0 0.0
        %8128 = vmatprep.subr.mxu0 0.0
        %8129 = vmatpush1.msra.mxu0 0.0
        %8130 = vmatprep.subr.mxu0 0.0
        %8131 = vmatpush1.msra.mxu0 0.0
        %8132 = vmatprep.subr.mxu0 0.0
        %8133 = vmatpush1.msra.mxu0 0.0
        %8134 = vmatprep.subr.mxu0 0.0
        %8135 = vmatpush1.msra.mxu0 0.0
        %8136 = vmatprep.subr.mxu0 0.0
        %8137 = vmatpush1.msra.mxu0 0.0
        %8138 = vmatprep.subr.mxu0 0.0
        %8139 = vmatpush1.msra.mxu0 0.0
        %8140 = vmatprep.subr.mxu0 0.0
        %8141 = vmatpush1.msra.mxu0 0.0
        %8142 = vmatprep.subr.mxu0 0.0
        %8143 = vmatpush1.msra.mxu0 0.0
        %8144 = vmatprep.subr.mxu0 0.0
        %8145 = vmatpush1.msra.mxu0 0.0
        %8146 = vmatprep.subr.mxu0 0.0
        %8147 = vmatpush1.msra.mxu0 0.0
        %8148 = vmatprep.subr.mxu0 0.0
        %8149 = vmatpush1.msra.mxu0 0.0
        %8150 = vmatprep.subr.mxu0 0.0
        %8151 = vmatpush1.msra.mxu0 0.0
        %8152 = vmatprep.subr.mxu0 0.0
        %8153 = vmatpush1.msra.mxu0 0.0
        %8154 = vmatprep.subr.mxu0 0.0
        %8155 = vmatpush1.msra.mxu0 0.0
        %8156 = vmatprep.subr.mxu0 0.0
        %8157 = vmatpush1.msra.mxu0 0.0
        %8158 = vmatprep.subr.mxu0 0.0
        %8159 = vmatpush1.msra.mxu0 0.0
        %8160 = vmatprep.subr.mxu0 0.0
        %8161 = vmatpush1.msra.mxu0 0.0
        %8162 = vmatprep.subr.mxu0 0.0
        %8163 = vmatpush1.msra.mxu0 0.0
        %8164 = vmatprep.subr.mxu0 0.0
        %8165 = vmatpush1.msra.mxu0 0.0
        %8166 = vmatprep.subr.mxu0 0.0
        %8167 = vmatpush1.msra.mxu0 0.0
        %8168 = vmatprep.mubr.f32.mxu0 0.0
        %8169 = vmatmul.mubr.f32.gmra.mrb[0].mxu0 %v7889
        %v8170 = vpop.f32.mrb[0].mxu0
        %v8171 = vadd.f32 0.0, %v8170
        %v8172 = vpop.f32.mrb[0].mxu0
        %v8173 = vadd.f32 0.0, %v8172
        %8174 = vdwg.mxu0
        %v8183 = vcombine.low %v7958, %v7960
        %v8184 = vcombine.low %v8029, %v8031
        %v8185 = vcombine.low %v8100, %v8102
        %v8186 = vcombine.low %v8171, %v8173
        %8191 = vst [vmem:[%s272] sm:$0x77] %v8183
        %8192 = vst [vmem:[%s272 + $0x8] sm:$0x77] %v8184
        %8193 = vst [vmem:[%s272 + $0x10] sm:$0x77] %v8185
        %8194 = vst [vmem:[%s272 + $0x18] sm:$0x77] %v8186
        %s8195 = sand.u32 %s181, 1
        %s8196 = scalar_lea.sflag [#allocation3], %s8195
        %s8197 = sand.u32 %s181, 1
        %s8198 = smul.addr %s8197, 32
        %s8199 = scalar_lea.vmem [#allocation2], %s8198
        // Predicated region
        $region49: #{tpu_custom_call.1} parent=47 // pred_check
          %p8200 = pneg %p191
        $region50: #{tpu_custom_call.1} parent=47 // pred_check_branch
          %8202 = sbr.rel (%p8200) target = $region52
        $region51: #{tpu_custom_call.1} parent=47 // pred_region
          %s8203 = smul.u32 8, %s21
          %s8205 = ssub.s32 512, 512
          %8206 = vsyncadd %s8196, %s8205
          %s8207 = smul.addr %s8203, 64
          %s8208 = scalar_lea.hbm %s7, %s8207
          %s8210 = sshll.u32 %s8199, 4
          %s8211 = int_to_ptr.vmem [resolvable:$true] %s8210
          %8213 = dma.vmem_to_hbm [thread:$0]  %s8211, 512, %s8208, %s8196
        $region52: #{tpu_custom_call.1} parent=47 // pred_fallthru
          _
      $region48: #{tpu_custom_call.1} parent=5 // pred_fallthru
        _
      %p8214 = scmp.le.s32.totalorder 2, %s16
      // Predicated region
      $region53: #{tpu_custom_call.1} parent=5 // pred_check
        %p8215 = pneg %p8214
      $region54: #{tpu_custom_call.1} parent=5 // pred_check_branch
        %8217 = sbr.rel (%p8215) target = $region56
      $region55: #{tpu_custom_call.1} parent=5 // pred_region
        %s8218 = ssub.s32 %s16, 2
        // Predicated region
        $region57: #{tpu_custom_call.1} parent=55 // pred_check
          %p8219 = pneg %p197
        $region58: #{tpu_custom_call.1} parent=55 // pred_check_branch
          %8221 = sbr.rel (%p8219) target = $region60
        $region59: #{tpu_custom_call.1} parent=55 // pred_region
          %s8222 = sand.u32 %s182, 1
          %s8223 = scalar_lea.sflag [#allocation3], %s8222
          %s8224 = sand.u32 %s182, 1
          %s8225 = smul.addr %s8224, 32
          %s8226 = scalar_lea.vmem [#allocation2], %s8225
          %8227 = dma.done %s8223, 512
        $region60: #{tpu_custom_call.1} parent=55 // pred_fallthru
          _
      $region56: #{tpu_custom_call.1} parent=5 // pred_fallthru
        _
    $region6: #{tpu_custom_call.1} parent=1 // loop_footer
      %s20 = sadd.s32 1, %s16
    $region7: #{tpu_custom_call.1} parent=1 // loop_footer_branch
      %15 = sbr.rel target = $region3
    $region8: #{tpu_custom_call.1} parent=1 // loop_exit
      _
    %8228 = vsyncpa [#allocation3], 1
    %s8229 = scalar_lea.sflag [#allocation3], 1
    %8230 = vsyncpa %s8229, 1

</llo_original>
